<compile_context>
chip_gen: v7x
topology: tpu7x:2x2x1
jax: 0.10.0
libtpu: 0.0.40
codegen_flags: <defaults>
</compile_context>

<pallas_src>
import numpy as np
import jax
import jax.numpy as jnp
from jax.experimental import pallas as pl
from jax.experimental.pallas import tpu as pltpu

# ----------------------------- model dimensions ----------------------------- #
K = 5
CIN, HIN, WIN = 3, 32, 32          # CIFAR input
C1, OH1, OW1 = 15, 28, 28          # conv1 output
PH1, PW1 = 14, 14                  # pool1 output
C2, OH2, OW2 = 28, 10, 10          # conv2 output
PH2, PW2 = 5, 5                    # pool2 output  (28*5*5 == 700)
FC1_OUT, NCLS = 300, 10


# --------------------- one-time weight / layout preparation ----------------- #
def _conv_toeplitz(w, w_in):
    """w: (Cout, Cin, K, K) torch conv weight -> (K, Cin*w_in, Cout*ow) banded
    matrices so that  out[oh, co*ow + j] = sum_kh x2[oh+kh, :] @ M[kh]
    where x2[h, cin*w_in + wcol] = x[cin, h, wcol]  (VALID conv, stride 1)."""
    cout, cin, k, _ = w.shape
    ow = w_in - k + 1
    m = np.zeros((k, cin * w_in, cout * ow), np.float32)
    ci = np.arange(cin)[:, None]
    co = np.arange(cout)[None, :]
    for kh in range(k):
        for kw in range(k):
            for j in range(ow):
                m[kh, ci * w_in + j + kw, co * ow + j] = w[:, :, kh, kw].T
    return m


def _pool_row_select(oh):
    ph = oh // 2
    r = np.zeros((2, ph, oh), np.float32)
    i = np.arange(ph)
    r[0, i, 2 * i] = 1.0
    r[1, i, 2 * i + 1] = 1.0
    return r


def _pool_col_select(cout, ow):
    pw = ow // 2
    c = np.zeros((2, cout * ow, cout * pw), np.float32)
    co = np.arange(cout)[:, None]
    p = np.arange(pw)[None, :]
    c[0, co * ow + 2 * p, co * pw + p] = 1.0
    c[1, co * ow + 2 * p + 1, co * pw + p] = 1.0
    return c


def prep_params(params):
    """One-time weight re-layout (kept OUTSIDE the jitted forward)."""
    c1w = np.asarray(params["conv1_w"], np.float32)
    c1b = np.asarray(params["conv1_b"], np.float32)
    c2w = np.asarray(params["conv2_w"], np.float32)
    c2b = np.asarray(params["conv2_b"], np.float32)
    f1w = np.asarray(params["fc1_w"], np.float32)
    f1b = np.asarray(params["fc1_b"], np.float32)
    f2w = np.asarray(params["fc2_w"], np.float32)
    f2b = np.asarray(params["fc2_b"], np.float32)

    m1 = _conv_toeplitz(c1w, WIN)                      # (5,  96, 420)
    m2 = _conv_toeplitz(c2w, PW1)                      # (5, 210, 280)
    b1 = np.repeat(c1b, OW1)[None, :]                  # (1, 420) cols = (co, ow)
    b2 = np.repeat(c2b, OW2)[None, :]                  # (1, 280)
    r1 = _pool_row_select(OH1)                         # (2, 14, 28)
    c1s = _pool_col_select(C1, OW1)                    # (2, 420, 210)
    r2 = _pool_row_select(OH2)                         # (2, 5, 10)
    c2s = _pool_col_select(C2, OW2)                    # (2, 280, 140)
    # torch view(-1,700) flattens (c, h, w); our pooled layout is (h, c*PW2+w),
    # so regroup fc1 weights into per-row slabs.
    wf1 = f1w.reshape(FC1_OUT, C2, PH2, PW2).transpose(2, 1, 3, 0) \
             .reshape(PH2, C2 * PW2, FC1_OUT)          # (5, 140, 300)
    bf1 = f1b[None, :]                                 # (1, 300)
    wf2 = f2w.T.copy()                                 # (300, 10)
    bf2 = f2b[None, :]                                 # (1, 10)

    arrs = (m1, b1, r1, c1s, m2, b2, r2, c2s, wf1, bf1, wf2, bf2)
    return tuple(jnp.asarray(a) for a in arrs)


# --------------------------------- kernel ----------------------------------- #
def _cnn_forward_kernel(x_ref, m1_ref, b1_ref, r1_ref, c1_ref,
                        m2_ref, b2_ref, r2_ref, c2_ref,
                        wf1_ref, bf1_ref, wf2_ref, bf2_ref, o_ref):
    f32 = jnp.float32

    def mm(a, b):
        return jnp.dot(a, b, preferred_element_type=f32)

    x = x_ref[0]                                         # (32, 96) rows=h, cols=(c,w)

    # conv1 + bias + relu: (32, 96) -> (28, 420), cols = (co, ow)
    acc = mm(x[0:OH1, :], m1_ref[0])
    for kh in range(1, K):
        acc = acc + mm(x[kh:kh + OH1, :], m1_ref[kh])
    y = jnp.maximum(acc + b1_ref[...], 0.0)

    # maxpool 2x2: (28, 420) -> (14, 210) via 0/1 selection matmuls + max
    rows = jnp.maximum(mm(r1_ref[0], y), mm(r1_ref[1], y))
    p = jnp.maximum(mm(rows, c1_ref[0]), mm(rows, c1_ref[1]))

    # conv2 + bias + relu: (14, 210) -> (10, 280)
    acc = mm(p[0:OH2, :], m2_ref[0])
    for kh in range(1, K):
        acc = acc + mm(p[kh:kh + OH2, :], m2_ref[kh])
    y = jnp.maximum(acc + b2_ref[...], 0.0)

    # maxpool 2x2: (10, 280) -> (5, 140)
    rows = jnp.maximum(mm(r2_ref[0], y), mm(r2_ref[1], y))
    p = jnp.maximum(mm(rows, c2_ref[0]), mm(rows, c2_ref[1]))

    # fc1 + relu (torch view(-1,700) folded into per-row weight slabs)
    h = bf1_ref[...]
    for r in range(PH2):
        h = h + mm(p[r:r + 1, :], wf1_ref[r])
    h = jnp.maximum(h, 0.0)                              # (1, 300)

    # fc2 + log_softmax
    logits = mm(h, wf2_ref[...]) + bf2_ref[...]          # (1, 10)
    mx = jnp.max(logits, axis=-1, keepdims=True)
    s = logits - mx
    lse = jnp.log(jnp.sum(jnp.exp(s), axis=-1, keepdims=True))
    o_ref[0] = s - lse


# --------------------------------- wrapper ---------------------------------- #
def cnn_cifar_forward(prepped, x):
    """x: (B, 3, 32, 32) NCHW float32 -> (B, 10) log-probabilities."""
    bsz = x.shape[0]
    # (B, C, H, W) -> (B, H, C*W): rows = image rows, cols = (chan, col) chan-major
    x2 = x.transpose(0, 2, 1, 3).reshape(bsz, HIN, CIN * WIN)

    def resident(a):
        nd = a.ndim
        return pl.BlockSpec(a.shape, lambda i: (0,) * nd)

    flops_per_sample = 2 * (
        K * OH1 * (CIN * WIN) * (C1 * OW1)
        + 2 * PH1 * OH1 * (C1 * OW1) + 2 * PH1 * (C1 * OW1) * (C1 * PW1)
        + K * OH2 * (C1 * PW1) * (C2 * OW2)
        + 2 * PH2 * OH2 * (C2 * OW2) + 2 * PH2 * (C2 * OW2) * (C2 * PW2)
        + PH2 * (C2 * PW2) * FC1_OUT + FC1_OUT * NCLS)
    bytes_accessed = int(x2.size * 4 + sum(a.size * 4 for a in prepped)
                         + bsz * NCLS * 4)

    out = pl.pallas_call(
        _cnn_forward_kernel,
        out_shape=jax.ShapeDtypeStruct((bsz, 1, NCLS), jnp.float32),
        grid=(bsz,),
        in_specs=[pl.BlockSpec((1, HIN, CIN * WIN), lambda i: (i, 0, 0))]
                 + [resident(a) for a in prepped],
        out_specs=pl.BlockSpec((1, 1, NCLS), lambda i: (i, 0, 0)),
        compiler_params=pltpu.CompilerParams(
            dimension_semantics=("parallel",),
            vmem_limit_bytes=32 * 1024 * 1024),
        cost_estimate=pl.CostEstimate(
            flops=bsz * flops_per_sample,
            transcendentals=bsz * (NCLS + 1),
            bytes_accessed=bytes_accessed),
    )(x2, *prepped)
    return out.reshape(bsz, NCLS)


# ------------------------------ params / reference --------------------------- #
def init_params(key):
    ks = jax.random.split(key, 8)
    n = jax.random.normal
    s = 0.1
    return {
        "conv1_w": n(ks[0], (C1, CIN, K, K), jnp.float32) * s,
        "conv1_b": n(ks[1], (C1,), jnp.float32) * s,
        "conv2_w": n(ks[2], (C2, C1, K, K), jnp.float32) * s,
        "conv2_b": n(ks[3], (C2,), jnp.float32) * s,
        "fc1_w": n(ks[4], (FC1_OUT, C2 * PH2 * PW2), jnp.float32) * s,
        "fc1_b": n(ks[5], (FC1_OUT,), jnp.float32) * s,
        "fc2_w": n(ks[6], (NCLS, FC1_OUT), jnp.float32) * s,
        "fc2_b": n(ks[7], (NCLS,), jnp.float32) * s,
    }


def reference_forward(params, x):
    """Pure-JAX/XLA reference of the PyTorch forward (validation only)."""
    hi = jax.lax.Precision.HIGHEST
    dn = ("NCHW", "OIHW", "NCHW")
    y = jax.lax.conv_general_dilated(x, params["conv1_w"], (1, 1), "VALID",
                                     dimension_numbers=dn, precision=hi)
    y = jax.nn.relu(y + params["conv1_b"][None, :, None, None])
    y = jax.lax.reduce_window(y, -jnp.inf, jax.lax.max,
                              (1, 1, 2, 2), (1, 1, 2, 2), "VALID")
    y = jax.lax.conv_general_dilated(y, params["conv2_w"], (1, 1), "VALID",
                                     dimension_numbers=dn, precision=hi)
    y = jax.nn.relu(y + params["conv2_b"][None, :, None, None])
    y = jax.lax.reduce_window(y, -jnp.inf, jax.lax.max,
                              (1, 1, 2, 2), (1, 1, 2, 2), "VALID")
    y = y.reshape(y.shape[0], -1)                          # torch view(-1, 700)
    y = jax.nn.relu(jnp.dot(y, params["fc1_w"].T, precision=hi) + params["fc1_b"])
    y = jnp.dot(y, params["fc2_w"].T, precision=hi) + params["fc2_b"]
    return jax.nn.log_softmax(y, axis=1)


if __name__ == "__main__":
    key = jax.random.PRNGKey(0)
    kx, kp = jax.random.split(key)
    x = jax.random.normal(kx, (2, CIN, HIN, WIN), jnp.float32)
    params = init_params(kp)
    prepped = prep_params(params)

    fwd = jax.jit(cnn_cifar_forward)
    out = jax.block_until_ready(fwd(prepped, x))

    assert out.shape == (2, NCLS)
    # log_softmax rows must exponentiate-sum to 1
    assert bool(jnp.allclose(jnp.sum(jnp.exp(out), axis=1), 1.0, atol=1e-4))
    # match the XLA reference (loose tolerance covers MXU default-precision rounding)
    ref = reference_forward(params, x)
    assert bool(jnp.max(jnp.abs(out - ref)) < 0.25)

    print("KERNEL_OK")
</pallas_src>

<mosaic_0001>
module attributes {stable_mosaic.version = 11 : i64} {
  func.func @_cnn_forward_kernel(%arg0: i32, %arg1: memref<1x32x96xf32, #tpu.memory_space<vmem>>, %arg2: memref<5x96x420xf32, #tpu.memory_space<vmem>>, %arg3: memref<1x420xf32, #tpu.memory_space<vmem>>, %arg4: memref<2x14x28xf32, #tpu.memory_space<vmem>>, %arg5: memref<2x420x210xf32, #tpu.memory_space<vmem>>, %arg6: memref<5x210x280xf32, #tpu.memory_space<vmem>>, %arg7: memref<1x280xf32, #tpu.memory_space<vmem>>, %arg8: memref<2x5x10xf32, #tpu.memory_space<vmem>>, %arg9: memref<2x280x140xf32, #tpu.memory_space<vmem>>, %arg10: memref<5x140x300xf32, #tpu.memory_space<vmem>>, %arg11: memref<1x300xf32, #tpu.memory_space<vmem>>, %arg12: memref<300x10xf32, #tpu.memory_space<vmem>>, %arg13: memref<1x10xf32, #tpu.memory_space<vmem>>, %arg14: memref<1x1x10xf32, #tpu.memory_space<vmem>>) attributes {dimension_semantics = [#tpu.dimension_semantics<parallel>], iteration_bounds = array<i64: 2>, scalar_prefetch = 0 : i64, scratch_operands = 0 : i64, tpu.core_type = #tpu.core_type<tc>, window_params = [{transform_indices = @transform_0, window_bounds = array<i64: 1, 32, 96>}, {pipeline_mode = #tpu.pipeline_mode<synchronous>, transform_indices = @transform_1, window_bounds = array<i64: 5, 96, 420>}, {pipeline_mode = #tpu.pipeline_mode<synchronous>, transform_indices = @transform_2, window_bounds = array<i64: 1, 420>}, {pipeline_mode = #tpu.pipeline_mode<synchronous>, transform_indices = @transform_3, window_bounds = array<i64: 2, 14, 28>}, {pipeline_mode = #tpu.pipeline_mode<synchronous>, transform_indices = @transform_4, window_bounds = array<i64: 2, 420, 210>}, {pipeline_mode = #tpu.pipeline_mode<synchronous>, transform_indices = @transform_5, window_bounds = array<i64: 5, 210, 280>}, {pipeline_mode = #tpu.pipeline_mode<synchronous>, transform_indices = @transform_6, window_bounds = array<i64: 1, 280>}, {pipeline_mode = #tpu.pipeline_mode<synchronous>, transform_indices = @transform_7, window_bounds = array<i64: 2, 5, 10>}, {pipeline_mode = #tpu.pipeline_mode<synchronous>, transform_indices = @transform_8, window_bounds = array<i64: 2, 280, 140>}, {pipeline_mode = #tpu.pipeline_mode<synchronous>, transform_indices = @transform_9, window_bounds = array<i64: 5, 140, 300>}, {pipeline_mode = #tpu.pipeline_mode<synchronous>, transform_indices = @transform_10, window_bounds = array<i64: 1, 300>}, {pipeline_mode = #tpu.pipeline_mode<synchronous>, transform_indices = @transform_11, window_bounds = array<i64: 300, 10>}, {pipeline_mode = #tpu.pipeline_mode<synchronous>, transform_indices = @transform_12, window_bounds = array<i64: 1, 10>}, {transform_indices = @transform_13, window_bounds = array<i64: 1, 1, 10>}]} {
    %c0 = arith.constant 0 : index
    %c0_0 = arith.constant 0 : index
    %c0_1 = arith.constant 0 : index
    %0 = vector.load %arg1[%c0, %c0_0, %c0_1] : memref<1x32x96xf32, #tpu.memory_space<vmem>>, vector<1x32x96xf32>
    %1 = vector.shape_cast %0 : vector<1x32x96xf32> to vector<32x96xf32>
    %2 = vector.extract_strided_slice %1 {offsets = [0, 0], sizes = [28, 96], strides = [1, 1]} : vector<32x96xf32> to vector<28x96xf32>
    %c0_2 = arith.constant 0 : index
    %c0_3 = arith.constant 0 : index
    %c0_4 = arith.constant 0 : index
    %3 = vector.load %arg2[%c0_2, %c0_3, %c0_4] : memref<5x96x420xf32, #tpu.memory_space<vmem>>, vector<1x96x420xf32>
    %4 = vector.shape_cast %3 : vector<1x96x420xf32> to vector<96x420xf32>
    %cst = arith.constant dense<0.000000e+00> : vector<28x420xf32>
    %5 = tpu.matmul %2, %4, %cst {dimension_numbers = #tpu.dot_dimension_numbers<[1], [0], [0], [1], [0, 0, 1, 1], [], []>} : vector<28x96xf32>, vector<96x420xf32>, vector<28x420xf32> -> vector<28x420xf32>
    %6 = vector.extract_strided_slice %1 {offsets = [1, 0], sizes = [28, 96], strides = [1, 1]} : vector<32x96xf32> to vector<28x96xf32>
    %c1 = arith.constant 1 : index
    %c0_5 = arith.constant 0 : index
    %c0_6 = arith.constant 0 : index
    %7 = vector.load %arg2[%c1, %c0_5, %c0_6] : memref<5x96x420xf32, #tpu.memory_space<vmem>>, vector<1x96x420xf32>
    %8 = vector.shape_cast %7 : vector<1x96x420xf32> to vector<96x420xf32>
    %cst_7 = arith.constant dense<0.000000e+00> : vector<28x420xf32>
    %9 = tpu.matmul %6, %8, %cst_7 {dimension_numbers = #tpu.dot_dimension_numbers<[1], [0], [0], [1], [0, 0, 1, 1], [], []>} : vector<28x96xf32>, vector<96x420xf32>, vector<28x420xf32> -> vector<28x420xf32>
    %10 = arith.addf %5, %9 : vector<28x420xf32>
    %11 = vector.extract_strided_slice %1 {offsets = [2, 0], sizes = [28, 96], strides = [1, 1]} : vector<32x96xf32> to vector<28x96xf32>
    %c2 = arith.constant 2 : index
    %c0_8 = arith.constant 0 : index
    %c0_9 = arith.constant 0 : index
    %12 = vector.load %arg2[%c2, %c0_8, %c0_9] : memref<5x96x420xf32, #tpu.memory_space<vmem>>, vector<1x96x420xf32>
    %13 = vector.shape_cast %12 : vector<1x96x420xf32> to vector<96x420xf32>
    %cst_10 = arith.constant dense<0.000000e+00> : vector<28x420xf32>
    %14 = tpu.matmul %11, %13, %cst_10 {dimension_numbers = #tpu.dot_dimension_numbers<[1], [0], [0], [1], [0, 0, 1, 1], [], []>} : vector<28x96xf32>, vector<96x420xf32>, vector<28x420xf32> -> vector<28x420xf32>
    %15 = arith.addf %10, %14 : vector<28x420xf32>
    %16 = vector.extract_strided_slice %1 {offsets = [3, 0], sizes = [28, 96], strides = [1, 1]} : vector<32x96xf32> to vector<28x96xf32>
    %c3 = arith.constant 3 : index
    %c0_11 = arith.constant 0 : index
    %c0_12 = arith.constant 0 : index
    %17 = vector.load %arg2[%c3, %c0_11, %c0_12] : memref<5x96x420xf32, #tpu.memory_space<vmem>>, vector<1x96x420xf32>
    %18 = vector.shape_cast %17 : vector<1x96x420xf32> to vector<96x420xf32>
    %cst_13 = arith.constant dense<0.000000e+00> : vector<28x420xf32>
    %19 = tpu.matmul %16, %18, %cst_13 {dimension_numbers = #tpu.dot_dimension_numbers<[1], [0], [0], [1], [0, 0, 1, 1], [], []>} : vector<28x96xf32>, vector<96x420xf32>, vector<28x420xf32> -> vector<28x420xf32>
    %20 = arith.addf %15, %19 : vector<28x420xf32>
    %21 = vector.extract_strided_slice %1 {offsets = [4, 0], sizes = [28, 96], strides = [1, 1]} : vector<32x96xf32> to vector<28x96xf32>
    %c4 = arith.constant 4 : index
    %c0_14 = arith.constant 0 : index
    %c0_15 = arith.constant 0 : index
    %22 = vector.load %arg2[%c4, %c0_14, %c0_15] : memref<5x96x420xf32, #tpu.memory_space<vmem>>, vector<1x96x420xf32>
    %23 = vector.shape_cast %22 : vector<1x96x420xf32> to vector<96x420xf32>
    %cst_16 = arith.constant dense<0.000000e+00> : vector<28x420xf32>
    %24 = tpu.matmul %21, %23, %cst_16 {dimension_numbers = #tpu.dot_dimension_numbers<[1], [0], [0], [1], [0, 0, 1, 1], [], []>} : vector<28x96xf32>, vector<96x420xf32>, vector<28x420xf32> -> vector<28x420xf32>
    %25 = arith.addf %20, %24 : vector<28x420xf32>
    %c0_17 = arith.constant 0 : index
    %c0_18 = arith.constant 0 : index
    %26 = vector.load %arg3[%c0_17, %c0_18] : memref<1x420xf32, #tpu.memory_space<vmem>>, vector<1x420xf32>
    %27 = vector.broadcast %26 : vector<1x420xf32> to vector<28x420xf32>
    %28 = arith.addf %25, %27 : vector<28x420xf32>
    %cst_19 = arith.constant 0.000000e+00 : f32
    %29 = vector.broadcast %cst_19 : f32 to vector<28x420xf32>
    %30 = arith.maximumf %28, %29 : vector<28x420xf32>
    %c0_20 = arith.constant 0 : index
    %c0_21 = arith.constant 0 : index
    %c0_22 = arith.constant 0 : index
    %31 = vector.load %arg4[%c0_20, %c0_21, %c0_22] : memref<2x14x28xf32, #tpu.memory_space<vmem>>, vector<1x14x28xf32>
    %32 = vector.shape_cast %31 : vector<1x14x28xf32> to vector<14x28xf32>
    %cst_23 = arith.constant dense<0.000000e+00> : vector<14x420xf32>
    %33 = tpu.matmul %32, %30, %cst_23 {dimension_numbers = #tpu.dot_dimension_numbers<[1], [0], [0], [1], [0, 0, 1, 1], [], []>} : vector<14x28xf32>, vector<28x420xf32>, vector<14x420xf32> -> vector<14x420xf32>
    %c1_24 = arith.constant 1 : index
    %c0_25 = arith.constant 0 : index
    %c0_26 = arith.constant 0 : index
    %34 = vector.load %arg4[%c1_24, %c0_25, %c0_26] : memref<2x14x28xf32, #tpu.memory_space<vmem>>, vector<1x14x28xf32>
    %35 = vector.shape_cast %34 : vector<1x14x28xf32> to vector<14x28xf32>
    %cst_27 = arith.constant dense<0.000000e+00> : vector<14x420xf32>
    %36 = tpu.matmul %35, %30, %cst_27 {dimension_numbers = #tpu.dot_dimension_numbers<[1], [0], [0], [1], [0, 0, 1, 1], [], []>} : vector<14x28xf32>, vector<28x420xf32>, vector<14x420xf32> -> vector<14x420xf32>
    %37 = arith.maximumf %33, %36 : vector<14x420xf32>
    %c0_28 = arith.constant 0 : index
    %c0_29 = arith.constant 0 : index
    %c0_30 = arith.constant 0 : index
    %38 = vector.load %arg5[%c0_28, %c0_29, %c0_30] : memref<2x420x210xf32, #tpu.memory_space<vmem>>, vector<1x420x210xf32>
    %39 = vector.shape_cast %38 : vector<1x420x210xf32> to vector<420x210xf32>
    %cst_31 = arith.constant dense<0.000000e+00> : vector<14x210xf32>
    %40 = tpu.matmul %37, %39, %cst_31 {dimension_numbers = #tpu.dot_dimension_numbers<[1], [0], [0], [1], [0, 0, 1, 1], [], []>} : vector<14x420xf32>, vector<420x210xf32>, vector<14x210xf32> -> vector<14x210xf32>
    %c1_32 = arith.constant 1 : index
    %c0_33 = arith.constant 0 : index
    %c0_34 = arith.constant 0 : index
    %41 = vector.load %arg5[%c1_32, %c0_33, %c0_34] : memref<2x420x210xf32, #tpu.memory_space<vmem>>, vector<1x420x210xf32>
    %42 = vector.shape_cast %41 : vector<1x420x210xf32> to vector<420x210xf32>
    %cst_35 = arith.constant dense<0.000000e+00> : vector<14x210xf32>
    %43 = tpu.matmul %37, %42, %cst_35 {dimension_numbers = #tpu.dot_dimension_numbers<[1], [0], [0], [1], [0, 0, 1, 1], [], []>} : vector<14x420xf32>, vector<420x210xf32>, vector<14x210xf32> -> vector<14x210xf32>
    %44 = arith.maximumf %40, %43 : vector<14x210xf32>
    %45 = vector.extract_strided_slice %44 {offsets = [0, 0], sizes = [10, 210], strides = [1, 1]} : vector<14x210xf32> to vector<10x210xf32>
    %c0_36 = arith.constant 0 : index
    %c0_37 = arith.constant 0 : index
    %c0_38 = arith.constant 0 : index
    %46 = vector.load %arg6[%c0_36, %c0_37, %c0_38] : memref<5x210x280xf32, #tpu.memory_space<vmem>>, vector<1x210x280xf32>
    %47 = vector.shape_cast %46 : vector<1x210x280xf32> to vector<210x280xf32>
    %cst_39 = arith.constant dense<0.000000e+00> : vector<10x280xf32>
    %48 = tpu.matmul %45, %47, %cst_39 {dimension_numbers = #tpu.dot_dimension_numbers<[1], [0], [0], [1], [0, 0, 1, 1], [], []>} : vector<10x210xf32>, vector<210x280xf32>, vector<10x280xf32> -> vector<10x280xf32>
    %49 = vector.extract_strided_slice %44 {offsets = [1, 0], sizes = [10, 210], strides = [1, 1]} : vector<14x210xf32> to vector<10x210xf32>
    %c1_40 = arith.constant 1 : index
    %c0_41 = arith.constant 0 : index
    %c0_42 = arith.constant 0 : index
    %50 = vector.load %arg6[%c1_40, %c0_41, %c0_42] : memref<5x210x280xf32, #tpu.memory_space<vmem>>, vector<1x210x280xf32>
    %51 = vector.shape_cast %50 : vector<1x210x280xf32> to vector<210x280xf32>
    %cst_43 = arith.constant dense<0.000000e+00> : vector<10x280xf32>
    %52 = tpu.matmul %49, %51, %cst_43 {dimension_numbers = #tpu.dot_dimension_numbers<[1], [0], [0], [1], [0, 0, 1, 1], [], []>} : vector<10x210xf32>, vector<210x280xf32>, vector<10x280xf32> -> vector<10x280xf32>
    %53 = arith.addf %48, %52 : vector<10x280xf32>
    %54 = vector.extract_strided_slice %44 {offsets = [2, 0], sizes = [10, 210], strides = [1, 1]} : vector<14x210xf32> to vector<10x210xf32>
    %c2_44 = arith.constant 2 : index
    %c0_45 = arith.constant 0 : index
    %c0_46 = arith.constant 0 : index
    %55 = vector.load %arg6[%c2_44, %c0_45, %c0_46] : memref<5x210x280xf32, #tpu.memory_space<vmem>>, vector<1x210x280xf32>
    %56 = vector.shape_cast %55 : vector<1x210x280xf32> to vector<210x280xf32>
    %cst_47 = arith.constant dense<0.000000e+00> : vector<10x280xf32>
    %57 = tpu.matmul %54, %56, %cst_47 {dimension_numbers = #tpu.dot_dimension_numbers<[1], [0], [0], [1], [0, 0, 1, 1], [], []>} : vector<10x210xf32>, vector<210x280xf32>, vector<10x280xf32> -> vector<10x280xf32>
    %58 = arith.addf %53, %57 : vector<10x280xf32>
    %59 = vector.extract_strided_slice %44 {offsets = [3, 0], sizes = [10, 210], strides = [1, 1]} : vector<14x210xf32> to vector<10x210xf32>
    %c3_48 = arith.constant 3 : index
    %c0_49 = arith.constant 0 : index
    %c0_50 = arith.constant 0 : index
    %60 = vector.load %arg6[%c3_48, %c0_49, %c0_50] : memref<5x210x280xf32, #tpu.memory_space<vmem>>, vector<1x210x280xf32>
    %61 = vector.shape_cast %60 : vector<1x210x280xf32> to vector<210x280xf32>
    %cst_51 = arith.constant dense<0.000000e+00> : vector<10x280xf32>
    %62 = tpu.matmul %59, %61, %cst_51 {dimension_numbers = #tpu.dot_dimension_numbers<[1], [0], [0], [1], [0, 0, 1, 1], [], []>} : vector<10x210xf32>, vector<210x280xf32>, vector<10x280xf32> -> vector<10x280xf32>
    %63 = arith.addf %58, %62 : vector<10x280xf32>
    %64 = vector.extract_strided_slice %44 {offsets = [4, 0], sizes = [10, 210], strides = [1, 1]} : vector<14x210xf32> to vector<10x210xf32>
    %c4_52 = arith.constant 4 : index
    %c0_53 = arith.constant 0 : index
    %c0_54 = arith.constant 0 : index
    %65 = vector.load %arg6[%c4_52, %c0_53, %c0_54] : memref<5x210x280xf32, #tpu.memory_space<vmem>>, vector<1x210x280xf32>
    %66 = vector.shape_cast %65 : vector<1x210x280xf32> to vector<210x280xf32>
    %cst_55 = arith.constant dense<0.000000e+00> : vector<10x280xf32>
    %67 = tpu.matmul %64, %66, %cst_55 {dimension_numbers = #tpu.dot_dimension_numbers<[1], [0], [0], [1], [0, 0, 1, 1], [], []>} : vector<10x210xf32>, vector<210x280xf32>, vector<10x280xf32> -> vector<10x280xf32>
    %68 = arith.addf %63, %67 : vector<10x280xf32>
    %c0_56 = arith.constant 0 : index
    %c0_57 = arith.constant 0 : index
    %69 = vector.load %arg7[%c0_56, %c0_57] : memref<1x280xf32, #tpu.memory_space<vmem>>, vector<1x280xf32>
    %70 = vector.broadcast %69 : vector<1x280xf32> to vector<10x280xf32>
    %71 = arith.addf %68, %70 : vector<10x280xf32>
    %cst_58 = arith.constant 0.000000e+00 : f32
    %72 = vector.broadcast %cst_58 : f32 to vector<10x280xf32>
    %73 = arith.maximumf %71, %72 : vector<10x280xf32>
    %c0_59 = arith.constant 0 : index
    %c0_60 = arith.constant 0 : index
    %c0_61 = arith.constant 0 : index
    %74 = vector.load %arg8[%c0_59, %c0_60, %c0_61] : memref<2x5x10xf32, #tpu.memory_space<vmem>>, vector<1x5x10xf32>
    %75 = vector.shape_cast %74 : vector<1x5x10xf32> to vector<5x10xf32>
    %cst_62 = arith.constant dense<0.000000e+00> : vector<5x280xf32>
    %76 = tpu.matmul %75, %73, %cst_62 {dimension_numbers = #tpu.dot_dimension_numbers<[1], [0], [0], [1], [0, 0, 1, 1], [], []>} : vector<5x10xf32>, vector<10x280xf32>, vector<5x280xf32> -> vector<5x280xf32>
    %c1_63 = arith.constant 1 : index
    %c0_64 = arith.constant 0 : index
    %c0_65 = arith.constant 0 : index
    %77 = vector.load %arg8[%c1_63, %c0_64, %c0_65] : memref<2x5x10xf32, #tpu.memory_space<vmem>>, vector<1x5x10xf32>
    %78 = vector.shape_cast %77 : vector<1x5x10xf32> to vector<5x10xf32>
    %cst_66 = arith.constant dense<0.000000e+00> : vector<5x280xf32>
    %79 = tpu.matmul %78, %73, %cst_66 {dimension_numbers = #tpu.dot_dimension_numbers<[1], [0], [0], [1], [0, 0, 1, 1], [], []>} : vector<5x10xf32>, vector<10x280xf32>, vector<5x280xf32> -> vector<5x280xf32>
    %80 = arith.maximumf %76, %79 : vector<5x280xf32>
    %c0_67 = arith.constant 0 : index
    %c0_68 = arith.constant 0 : index
    %c0_69 = arith.constant 0 : index
    %81 = vector.load %arg9[%c0_67, %c0_68, %c0_69] : memref<2x280x140xf32, #tpu.memory_space<vmem>>, vector<1x280x140xf32>
    %82 = vector.shape_cast %81 : vector<1x280x140xf32> to vector<280x140xf32>
    %cst_70 = arith.constant dense<0.000000e+00> : vector<5x140xf32>
    %83 = tpu.matmul %80, %82, %cst_70 {dimension_numbers = #tpu.dot_dimension_numbers<[1], [0], [0], [1], [0, 0, 1, 1], [], []>} : vector<5x280xf32>, vector<280x140xf32>, vector<5x140xf32> -> vector<5x140xf32>
    %c1_71 = arith.constant 1 : index
    %c0_72 = arith.constant 0 : index
    %c0_73 = arith.constant 0 : index
    %84 = vector.load %arg9[%c1_71, %c0_72, %c0_73] : memref<2x280x140xf32, #tpu.memory_space<vmem>>, vector<1x280x140xf32>
    %85 = vector.shape_cast %84 : vector<1x280x140xf32> to vector<280x140xf32>
    %cst_74 = arith.constant dense<0.000000e+00> : vector<5x140xf32>
    %86 = tpu.matmul %80, %85, %cst_74 {dimension_numbers = #tpu.dot_dimension_numbers<[1], [0], [0], [1], [0, 0, 1, 1], [], []>} : vector<5x280xf32>, vector<280x140xf32>, vector<5x140xf32> -> vector<5x140xf32>
    %87 = arith.maximumf %83, %86 : vector<5x140xf32>
    %c0_75 = arith.constant 0 : index
    %c0_76 = arith.constant 0 : index
    %88 = vector.load %arg11[%c0_75, %c0_76] : memref<1x300xf32, #tpu.memory_space<vmem>>, vector<1x300xf32>
    %89 = vector.extract_strided_slice %87 {offsets = [0, 0], sizes = [1, 140], strides = [1, 1]} : vector<5x140xf32> to vector<1x140xf32>
    %c0_77 = arith.constant 0 : index
    %c0_78 = arith.constant 0 : index
    %c0_79 = arith.constant 0 : index
    %90 = vector.load %arg10[%c0_77, %c0_78, %c0_79] : memref<5x140x300xf32, #tpu.memory_space<vmem>>, vector<1x140x300xf32>
    %91 = vector.shape_cast %90 : vector<1x140x300xf32> to vector<140x300xf32>
    %cst_80 = arith.constant dense<0.000000e+00> : vector<1x300xf32>
    %92 = tpu.matmul %89, %91, %cst_80 {dimension_numbers = #tpu.dot_dimension_numbers<[1], [0], [0], [1], [0, 0, 1, 1], [], []>} : vector<1x140xf32>, vector<140x300xf32>, vector<1x300xf32> -> vector<1x300xf32>
    %93 = arith.addf %88, %92 : vector<1x300xf32>
    %94 = vector.extract_strided_slice %87 {offsets = [1, 0], sizes = [1, 140], strides = [1, 1]} : vector<5x140xf32> to vector<1x140xf32>
    %c1_81 = arith.constant 1 : index
    %c0_82 = arith.constant 0 : index
    %c0_83 = arith.constant 0 : index
    %95 = vector.load %arg10[%c1_81, %c0_82, %c0_83] : memref<5x140x300xf32, #tpu.memory_space<vmem>>, vector<1x140x300xf32>
    %96 = vector.shape_cast %95 : vector<1x140x300xf32> to vector<140x300xf32>
    %cst_84 = arith.constant dense<0.000000e+00> : vector<1x300xf32>
    %97 = tpu.matmul %94, %96, %cst_84 {dimension_numbers = #tpu.dot_dimension_numbers<[1], [0], [0], [1], [0, 0, 1, 1], [], []>} : vector<1x140xf32>, vector<140x300xf32>, vector<1x300xf32> -> vector<1x300xf32>
    %98 = arith.addf %93, %97 : vector<1x300xf32>
    %99 = vector.extract_strided_slice %87 {offsets = [2, 0], sizes = [1, 140], strides = [1, 1]} : vector<5x140xf32> to vector<1x140xf32>
    %c2_85 = arith.constant 2 : index
    %c0_86 = arith.constant 0 : index
    %c0_87 = arith.constant 0 : index
    %100 = vector.load %arg10[%c2_85, %c0_86, %c0_87] : memref<5x140x300xf32, #tpu.memory_space<vmem>>, vector<1x140x300xf32>
    %101 = vector.shape_cast %100 : vector<1x140x300xf32> to vector<140x300xf32>
    %cst_88 = arith.constant dense<0.000000e+00> : vector<1x300xf32>
    %102 = tpu.matmul %99, %101, %cst_88 {dimension_numbers = #tpu.dot_dimension_numbers<[1], [0], [0], [1], [0, 0, 1, 1], [], []>} : vector<1x140xf32>, vector<140x300xf32>, vector<1x300xf32> -> vector<1x300xf32>
    %103 = arith.addf %98, %102 : vector<1x300xf32>
    %104 = vector.extract_strided_slice %87 {offsets = [3, 0], sizes = [1, 140], strides = [1, 1]} : vector<5x140xf32> to vector<1x140xf32>
    %c3_89 = arith.constant 3 : index
    %c0_90 = arith.constant 0 : index
    %c0_91 = arith.constant 0 : index
    %105 = vector.load %arg10[%c3_89, %c0_90, %c0_91] : memref<5x140x300xf32, #tpu.memory_space<vmem>>, vector<1x140x300xf32>
    %106 = vector.shape_cast %105 : vector<1x140x300xf32> to vector<140x300xf32>
    %cst_92 = arith.constant dense<0.000000e+00> : vector<1x300xf32>
    %107 = tpu.matmul %104, %106, %cst_92 {dimension_numbers = #tpu.dot_dimension_numbers<[1], [0], [0], [1], [0, 0, 1, 1], [], []>} : vector<1x140xf32>, vector<140x300xf32>, vector<1x300xf32> -> vector<1x300xf32>
    %108 = arith.addf %103, %107 : vector<1x300xf32>
    %109 = vector.extract_strided_slice %87 {offsets = [4, 0], sizes = [1, 140], strides = [1, 1]} : vector<5x140xf32> to vector<1x140xf32>
    %c4_93 = arith.constant 4 : index
    %c0_94 = arith.constant 0 : index
    %c0_95 = arith.constant 0 : index
    %110 = vector.load %arg10[%c4_93, %c0_94, %c0_95] : memref<5x140x300xf32, #tpu.memory_space<vmem>>, vector<1x140x300xf32>
    %111 = vector.shape_cast %110 : vector<1x140x300xf32> to vector<140x300xf32>
    %cst_96 = arith.constant dense<0.000000e+00> : vector<1x300xf32>
    %112 = tpu.matmul %109, %111, %cst_96 {dimension_numbers = #tpu.dot_dimension_numbers<[1], [0], [0], [1], [0, 0, 1, 1], [], []>} : vector<1x140xf32>, vector<140x300xf32>, vector<1x300xf32> -> vector<1x300xf32>
    %113 = arith.addf %108, %112 : vector<1x300xf32>
    %cst_97 = arith.constant 0.000000e+00 : f32
    %114 = vector.broadcast %cst_97 : f32 to vector<1x300xf32>
    %115 = arith.maximumf %113, %114 : vector<1x300xf32>
    %c0_98 = arith.constant 0 : index
    %c0_99 = arith.constant 0 : index
    %116 = vector.load %arg12[%c0_98, %c0_99] : memref<300x10xf32, #tpu.memory_space<vmem>>, vector<300x10xf32>
    %cst_100 = arith.constant dense<0.000000e+00> : vector<1x10xf32>
    %117 = tpu.matmul %115, %116, %cst_100 {dimension_numbers = #tpu.dot_dimension_numbers<[1], [0], [0], [1], [0, 0, 1, 1], [], []>} : vector<1x300xf32>, vector<300x10xf32>, vector<1x10xf32> -> vector<1x10xf32>
    %c0_101 = arith.constant 0 : index
    %c0_102 = arith.constant 0 : index
    %118 = vector.load %arg13[%c0_101, %c0_102] : memref<1x10xf32, #tpu.memory_space<vmem>>, vector<1x10xf32>
    %119 = arith.addf %117, %118 : vector<1x10xf32>
    %cst_103 = arith.constant dense<0xFF800000> : vector<1xf32>
    %120 = vector.multi_reduction <maximumf>, %119, %cst_103 [1] : vector<1x10xf32> to vector<1xf32>
    %121 = vector.shape_cast %120 : vector<1xf32> to vector<1x1xf32>
    %122 = vector.broadcast %121 : vector<1x1xf32> to vector<1x10xf32>
    %123 = arith.subf %119, %122 : vector<1x10xf32>
    %124 = math.exp %123 : vector<1x10xf32>
    %cst_104 = arith.constant dense<0.000000e+00> : vector<1xf32>
    %125 = vector.multi_reduction <add>, %124, %cst_104 [1] : vector<1x10xf32> to vector<1xf32>
    %126 = vector.shape_cast %125 : vector<1xf32> to vector<1x1xf32>
    %127 = math.log %126 : vector<1x1xf32>
    %128 = vector.broadcast %127 : vector<1x1xf32> to vector<1x10xf32>
    %129 = arith.subf %123, %128 : vector<1x10xf32>
    %c0_105 = arith.constant 0 : index
    %c0_106 = arith.constant 0 : index
    %c0_107 = arith.constant 0 : index
    %130 = vector.load %arg14[%c0_105, %c0_106, %c0_107] : memref<1x1x10xf32, #tpu.memory_space<vmem>>, vector<1x1x10xf32>
    %131 = vector.shape_cast %130 : vector<1x1x10xf32> to vector<1x10xf32>
    %132 = vector.shape_cast %129 : vector<1x10xf32> to vector<1x1x10xf32>
    tpu.vector_store %arg14[%c0_105, %c0_106, %c0_107], %132 {strides = array<i32>} : memref<1x1x10xf32, #tpu.memory_space<vmem>>, vector<1x1x10xf32>,
    return
  }
  func.func @transform_0(%arg0: i32) -> (i32, i32, i32) {
    %c0_i32 = arith.constant 0 : i32
    %c0_i32_0 = arith.constant 0 : i32
    %c0_i32_1 = arith.constant 0 : i32
    return %arg0, %c0_i32, %c0_i32_0 : i32, i32, i32
  }
  func.func @transform_1(%arg0: i32) -> (i32, i32, i32) {
    %c0_i32 = arith.constant 0 : i32
    %c0_i32_0 = arith.constant 0 : i32
    %c0_i32_1 = arith.constant 0 : i32
    %c0_i32_2 = arith.constant 0 : i32
    return %c0_i32, %c0_i32_0, %c0_i32_1 : i32, i32, i32
  }
  func.func @transform_2(%arg0: i32) -> (i32, i32) {
    %c0_i32 = arith.constant 0 : i32
    %c0_i32_0 = arith.constant 0 : i32
    %c0_i32_1 = arith.constant 0 : i32
    return %c0_i32, %c0_i32_0 : i32, i32
  }
  func.func @transform_3(%arg0: i32) -> (i32, i32, i32) {
    %c0_i32 = arith.constant 0 : i32
    %c0_i32_0 = arith.constant 0 : i32
    %c0_i32_1 = arith.constant 0 : i32
    %c0_i32_2 = arith.constant 0 : i32
    return %c0_i32, %c0_i32_0, %c0_i32_1 : i32, i32, i32
  }
  func.func @transform_4(%arg0: i32) -> (i32, i32, i32) {
    %c0_i32 = arith.constant 0 : i32
    %c0_i32_0 = arith.constant 0 : i32
    %c0_i32_1 = arith.constant 0 : i32
    %c0_i32_2 = arith.constant 0 : i32
    return %c0_i32, %c0_i32_0, %c0_i32_1 : i32, i32, i32
  }
  func.func @transform_5(%arg0: i32) -> (i32, i32, i32) {
    %c0_i32 = arith.constant 0 : i32
    %c0_i32_0 = arith.constant 0 : i32
    %c0_i32_1 = arith.constant 0 : i32
    %c0_i32_2 = arith.constant 0 : i32
    return %c0_i32, %c0_i32_0, %c0_i32_1 : i32, i32, i32
  }
  func.func @transform_6(%arg0: i32) -> (i32, i32) {
    %c0_i32 = arith.constant 0 : i32
    %c0_i32_0 = arith.constant 0 : i32
    %c0_i32_1 = arith.constant 0 : i32
    return %c0_i32, %c0_i32_0 : i32, i32
  }
  func.func @transform_7(%arg0: i32) -> (i32, i32, i32) {
    %c0_i32 = arith.constant 0 : i32
    %c0_i32_0 = arith.constant 0 : i32
    %c0_i32_1 = arith.constant 0 : i32
    %c0_i32_2 = arith.constant 0 : i32
    return %c0_i32, %c0_i32_0, %c0_i32_1 : i32, i32, i32
  }
  func.func @transform_8(%arg0: i32) -> (i32, i32, i32) {
    %c0_i32 = arith.constant 0 : i32
    %c0_i32_0 = arith.constant 0 : i32
    %c0_i32_1 = arith.constant 0 : i32
    %c0_i32_2 = arith.constant 0 : i32
    return %c0_i32, %c0_i32_0, %c0_i32_1 : i32, i32, i32
  }
  func.func @transform_9(%arg0: i32) -> (i32, i32, i32) {
    %c0_i32 = arith.constant 0 : i32
    %c0_i32_0 = arith.constant 0 : i32
    %c0_i32_1 = arith.constant 0 : i32
    %c0_i32_2 = arith.constant 0 : i32
    return %c0_i32, %c0_i32_0, %c0_i32_1 : i32, i32, i32
  }
  func.func @transform_10(%arg0: i32) -> (i32, i32) {
    %c0_i32 = arith.constant 0 : i32
    %c0_i32_0 = arith.constant 0 : i32
    %c0_i32_1 = arith.constant 0 : i32
    return %c0_i32, %c0_i32_0 : i32, i32
  }
  func.func @transform_11(%arg0: i32) -> (i32, i32) {
    %c0_i32 = arith.constant 0 : i32
    %c0_i32_0 = arith.constant 0 : i32
    %c0_i32_1 = arith.constant 0 : i32
    return %c0_i32, %c0_i32_0 : i32, i32
  }
  func.func @transform_12(%arg0: i32) -> (i32, i32) {
    %c0_i32 = arith.constant 0 : i32
    %c0_i32_0 = arith.constant 0 : i32
    %c0_i32_1 = arith.constant 0 : i32
    return %c0_i32, %c0_i32_0 : i32, i32
  }
  func.func @transform_13(%arg0: i32) -> (i32, i32, i32) {
    %c0_i32 = arith.constant 0 : i32
    %c0_i32_0 = arith.constant 0 : i32
    %c0_i32_1 = arith.constant 0 : i32
    return %arg0, %c0_i32, %c0_i32_0 : i32, i32, i32
  }
}

</mosaic_0001>

<llo_original>
// kernel: cnn_cifar_forward.1
$region0: #{cnn_cifar_forward.1}
  #allocation0 [shape = 'u32[]', space=smem, size = 0x4, offset = 0x4, fixed_abs, tag = 'smem constant byte address 0x4 - core index']
  #allocation1 [shape = 'u32[144,128]{1,0:T(1,128)}', space=vmem, size = 0x12000, scoped, tag = 'internal scratch']
  %s0 = inlined_call_operand.vmem [shape: f32[2,32,96], index: 0, kind: input, shape index: {}]
  %s1 = inlined_call_operand.vmem [shape: f32[5,96,420], index: 1, kind: input, shape index: {}]
  %s2 = inlined_call_operand.vmem [shape: f32[1,420], index: 2, kind: input, shape index: {}]
  %s3 = inlined_call_operand.vmem [shape: f32[2,14,28], index: 3, kind: input, shape index: {}]
  %s4 = inlined_call_operand.vmem [shape: f32[2,420,210], index: 4, kind: input, shape index: {}]
  %s5 = inlined_call_operand.vmem [shape: f32[5,210,280], index: 5, kind: input, shape index: {}]
  %s6 = inlined_call_operand.vmem [shape: f32[1,280], index: 6, kind: input, shape index: {}]
  %s7 = inlined_call_operand.vmem [shape: f32[2,5,10], index: 7, kind: input, shape index: {}]
  %s8 = inlined_call_operand.vmem [shape: f32[2,280,140], index: 8, kind: input, shape index: {}]
  %s9 = inlined_call_operand.vmem [shape: f32[5,140,300], index: 9, kind: input, shape index: {}]
  %s10 = inlined_call_operand.vmem [shape: f32[1,300], index: 10, kind: input, shape index: {}]
  %s11 = inlined_call_operand.vmem [shape: f32[300,10], index: 11, kind: input, shape index: {}]
  %s12 = inlined_call_operand.vmem [shape: f32[1,10], index: 12, kind: input, shape index: {}]
  %s13 = inlined_call_operand.hbm [shape: f32[2,1,10], index: 13, kind: output, shape index: {}]
  %s14 = sld [smem:[#allocation0]]
  $region85: #{cnn_cifar_forward.1} parent=0
    _
  %s16 = ssub.s32 1, %s14
  %s17 = scalar_select 0, %s16, %s14
  $region1: #{cnn_cifar_forward.1} parent=0
    #allocation2 [shape = 'u8[1024]{0}', space=vmem, size = 0x400, scoped, tag = 'output window, operand 0']
    #allocation3 [shape = 's32[2]{0}', space=sflag, size = 0x8, scoped, tag = 'scoped memory for cnn_cifar_forward.1']
    %18 = vsyncpa [#allocation3], 0
    %s19 = scalar_lea.sflag [#allocation3], 1
    %20 = vsyncpa %s19, 0
    loop: start=0, step=1, limit=4
    $region2: #{cnn_cifar_forward.1} parent=1 // loop_pre_header
      _
    $region3: #{cnn_cifar_forward.1} parent=1 // loop_header
      %s22 = sphi 0, %s26
      %p23 = scmp.ge.s32.totalorder %s22, 4
      %s32 = sphi 0, %s34
      %s35 = sphi 0, %s32
      %s36 = sphi 0, %s35
      %s52 = sphi 0, %s36
      %s56 = sphi 0, %s56
      %s58 = sphi 0, %s56
      %s59 = sphi 0, %s58
      %s73 = sphi 0, %s59
      %s77 = sphi 0, %s77
      %s79 = sphi 0, %s77
      %s80 = sphi 0, %s79
      %s94 = sphi 0, %s80
      %s98 = sphi 0, %s98
      %s100 = sphi 0, %s98
      %s101 = sphi 0, %s100
      %s115 = sphi 0, %s101
      %s119 = sphi 0, %s119
      %s121 = sphi 0, %s119
      %s122 = sphi 0, %s121
      %s136 = sphi 0, %s122
      %s140 = sphi 0, %s140
      %s142 = sphi 0, %s140
      %s143 = sphi 0, %s142
      %s157 = sphi 0, %s143
      %s161 = sphi 0, %s161
      %s163 = sphi 0, %s161
      %s164 = sphi 0, %s163
      %s178 = sphi 0, %s164
      %s182 = sphi 0, %s182
      %s184 = sphi 0, %s182
      %s185 = sphi 0, %s184
      %s199 = sphi 0, %s185
      %s203 = sphi 0, %s203
      %s205 = sphi 0, %s203
      %s206 = sphi 0, %s205
      %s220 = sphi 0, %s206
      %s224 = sphi 0, %s224
      %s226 = sphi 0, %s224
      %s227 = sphi 0, %s226
      %s241 = sphi 0, %s227
      %s245 = sphi 0, %s245
      %s247 = sphi 0, %s245
      %s248 = sphi 0, %s247
      %s262 = sphi 0, %s248
      %s266 = sphi 0, %s266
      %s268 = sphi 0, %s266
      %s269 = sphi 0, %s268
      %s283 = sphi 0, %s269
      %s287 = sphi 0, %s287
      %s289 = sphi 0, %s287
      %s290 = sphi 0, %s289
      %s304 = sphi 0, %s290
      %s310 = sphi 0, %s312
      %s313 = sphi 0, %s310
      %s314 = sphi 0, %s313
      %s330 = sphi 0, %s314
    $region4: #{cnn_cifar_forward.1} parent=1 // loop_header_branch
      %25 = sbr.rel (%p23) target = $region8
    $region5: #{cnn_cifar_forward.1} parent=1 // loop_body
      %s27 = ssub.s32 %s22, 1
      %s28 = ssub.s32 %s22, 2
      %s29 = sadd.s32 %s22, 1
      %s30 = ssub.s32 %s22, %s29
      %p31 = scmp.eq.s32.totalorder %s30, 0
      %s33 = sadd.s32 %s32, 1
      %s34 = scalar_select %p31, %s32, %s33
      %p37 = pneg %p31
      %p38 = scmp.eq.s32.totalorder %s22, 1
      %p39 = por %p37, %p38
      %p40 = scmp.ne.s32.totalorder %s32, %s35
      %p41 = scmp.eq.s32.totalorder %s22, 0
      %p42 = por %p40, %p41
      %p43 = scmp.ne.s32.totalorder %s32, %s35
      %p44 = scmp.eq.s32.totalorder %s27, 1
      %p45 = por %p43, %p44
      %p46 = scmp.ne.s32.totalorder %s35, %s36
      %p47 = scmp.eq.s32.totalorder %s27, 0
      %p48 = por %p46, %p47
      %p49 = scmp.ne.s32.totalorder %s35, %s36
      %p50 = scmp.eq.s32.totalorder %s28, 1
      %p51 = por %p49, %p50
      %p53 = scmp.ne.s32.totalorder %s36, %s52
      %p54 = scmp.eq.s32.totalorder %s28, 0
      %p55 = por %p53, %p54
      %s57 = sadd.s32 %s56, 1
      %p60 = scmp.eq.s32.totalorder %s22, 1
      %p61 = scmp.ne.s32.totalorder %s56, %s58
      %p62 = scmp.eq.s32.totalorder %s22, 0
      %p63 = por %p61, %p62
      %p64 = scmp.ne.s32.totalorder %s56, %s58
      %p65 = scmp.eq.s32.totalorder %s27, 1
      %p66 = por %p64, %p65
      %p67 = scmp.ne.s32.totalorder %s58, %s59
      %p68 = scmp.eq.s32.totalorder %s27, 0
      %p69 = por %p67, %p68
      %p70 = scmp.ne.s32.totalorder %s58, %s59
      %p71 = scmp.eq.s32.totalorder %s28, 1
      %p72 = por %p70, %p71
      %p74 = scmp.ne.s32.totalorder %s59, %s73
      %p75 = scmp.eq.s32.totalorder %s28, 0
      %p76 = por %p74, %p75
      %s78 = sadd.s32 %s77, 1
      %p81 = scmp.eq.s32.totalorder %s22, 1
      %p82 = scmp.ne.s32.totalorder %s77, %s79
      %p83 = scmp.eq.s32.totalorder %s22, 0
      %p84 = por %p82, %p83
      %p85 = scmp.ne.s32.totalorder %s77, %s79
      %p86 = scmp.eq.s32.totalorder %s27, 1
      %p87 = por %p85, %p86
      %p88 = scmp.ne.s32.totalorder %s79, %s80
      %p89 = scmp.eq.s32.totalorder %s27, 0
      %p90 = por %p88, %p89
      %p91 = scmp.ne.s32.totalorder %s79, %s80
      %p92 = scmp.eq.s32.totalorder %s28, 1
      %p93 = por %p91, %p92
      %p95 = scmp.ne.s32.totalorder %s80, %s94
      %p96 = scmp.eq.s32.totalorder %s28, 0
      %p97 = por %p95, %p96
      %s99 = sadd.s32 %s98, 1
      %p102 = scmp.eq.s32.totalorder %s22, 1
      %p103 = scmp.ne.s32.totalorder %s98, %s100
      %p104 = scmp.eq.s32.totalorder %s22, 0
      %p105 = por %p103, %p104
      %p106 = scmp.ne.s32.totalorder %s98, %s100
      %p107 = scmp.eq.s32.totalorder %s27, 1
      %p108 = por %p106, %p107
      %p109 = scmp.ne.s32.totalorder %s100, %s101
      %p110 = scmp.eq.s32.totalorder %s27, 0
      %p111 = por %p109, %p110
      %p112 = scmp.ne.s32.totalorder %s100, %s101
      %p113 = scmp.eq.s32.totalorder %s28, 1
      %p114 = por %p112, %p113
      %p116 = scmp.ne.s32.totalorder %s101, %s115
      %p117 = scmp.eq.s32.totalorder %s28, 0
      %p118 = por %p116, %p117
      %s120 = sadd.s32 %s119, 1
      %p123 = scmp.eq.s32.totalorder %s22, 1
      %p124 = scmp.ne.s32.totalorder %s119, %s121
      %p125 = scmp.eq.s32.totalorder %s22, 0
      %p126 = por %p124, %p125
      %p127 = scmp.ne.s32.totalorder %s119, %s121
      %p128 = scmp.eq.s32.totalorder %s27, 1
      %p129 = por %p127, %p128
      %p130 = scmp.ne.s32.totalorder %s121, %s122
      %p131 = scmp.eq.s32.totalorder %s27, 0
      %p132 = por %p130, %p131
      %p133 = scmp.ne.s32.totalorder %s121, %s122
      %p134 = scmp.eq.s32.totalorder %s28, 1
      %p135 = por %p133, %p134
      %p137 = scmp.ne.s32.totalorder %s122, %s136
      %p138 = scmp.eq.s32.totalorder %s28, 0
      %p139 = por %p137, %p138
      %s141 = sadd.s32 %s140, 1
      %p144 = scmp.eq.s32.totalorder %s22, 1
      %p145 = scmp.ne.s32.totalorder %s140, %s142
      %p146 = scmp.eq.s32.totalorder %s22, 0
      %p147 = por %p145, %p146
      %p148 = scmp.ne.s32.totalorder %s140, %s142
      %p149 = scmp.eq.s32.totalorder %s27, 1
      %p150 = por %p148, %p149
      %p151 = scmp.ne.s32.totalorder %s142, %s143
      %p152 = scmp.eq.s32.totalorder %s27, 0
      %p153 = por %p151, %p152
      %p154 = scmp.ne.s32.totalorder %s142, %s143
      %p155 = scmp.eq.s32.totalorder %s28, 1
      %p156 = por %p154, %p155
      %p158 = scmp.ne.s32.totalorder %s143, %s157
      %p159 = scmp.eq.s32.totalorder %s28, 0
      %p160 = por %p158, %p159
      %s162 = sadd.s32 %s161, 1
      %p165 = scmp.eq.s32.totalorder %s22, 1
      %p166 = scmp.ne.s32.totalorder %s161, %s163
      %p167 = scmp.eq.s32.totalorder %s22, 0
      %p168 = por %p166, %p167
      %p169 = scmp.ne.s32.totalorder %s161, %s163
      %p170 = scmp.eq.s32.totalorder %s27, 1
      %p171 = por %p169, %p170
      %p172 = scmp.ne.s32.totalorder %s163, %s164
      %p173 = scmp.eq.s32.totalorder %s27, 0
      %p174 = por %p172, %p173
      %p175 = scmp.ne.s32.totalorder %s163, %s164
      %p176 = scmp.eq.s32.totalorder %s28, 1
      %p177 = por %p175, %p176
      %p179 = scmp.ne.s32.totalorder %s164, %s178
      %p180 = scmp.eq.s32.totalorder %s28, 0
      %p181 = por %p179, %p180
      %s183 = sadd.s32 %s182, 1
      %p186 = scmp.eq.s32.totalorder %s22, 1
      %p187 = scmp.ne.s32.totalorder %s182, %s184
      %p188 = scmp.eq.s32.totalorder %s22, 0
      %p189 = por %p187, %p188
      %p190 = scmp.ne.s32.totalorder %s182, %s184
      %p191 = scmp.eq.s32.totalorder %s27, 1
      %p192 = por %p190, %p191
      %p193 = scmp.ne.s32.totalorder %s184, %s185
      %p194 = scmp.eq.s32.totalorder %s27, 0
      %p195 = por %p193, %p194
      %p196 = scmp.ne.s32.totalorder %s184, %s185
      %p197 = scmp.eq.s32.totalorder %s28, 1
      %p198 = por %p196, %p197
      %p200 = scmp.ne.s32.totalorder %s185, %s199
      %p201 = scmp.eq.s32.totalorder %s28, 0
      %p202 = por %p200, %p201
      %s204 = sadd.s32 %s203, 1
      %p207 = scmp.eq.s32.totalorder %s22, 1
      %p208 = scmp.ne.s32.totalorder %s203, %s205
      %p209 = scmp.eq.s32.totalorder %s22, 0
      %p210 = por %p208, %p209
      %p211 = scmp.ne.s32.totalorder %s203, %s205
      %p212 = scmp.eq.s32.totalorder %s27, 1
      %p213 = por %p211, %p212
      %p214 = scmp.ne.s32.totalorder %s205, %s206
      %p215 = scmp.eq.s32.totalorder %s27, 0
      %p216 = por %p214, %p215
      %p217 = scmp.ne.s32.totalorder %s205, %s206
      %p218 = scmp.eq.s32.totalorder %s28, 1
      %p219 = por %p217, %p218
      %p221 = scmp.ne.s32.totalorder %s206, %s220
      %p222 = scmp.eq.s32.totalorder %s28, 0
      %p223 = por %p221, %p222
      %s225 = sadd.s32 %s224, 1
      %p228 = scmp.eq.s32.totalorder %s22, 1
      %p229 = scmp.ne.s32.totalorder %s224, %s226
      %p230 = scmp.eq.s32.totalorder %s22, 0
      %p231 = por %p229, %p230
      %p232 = scmp.ne.s32.totalorder %s224, %s226
      %p233 = scmp.eq.s32.totalorder %s27, 1
      %p234 = por %p232, %p233
      %p235 = scmp.ne.s32.totalorder %s226, %s227
      %p236 = scmp.eq.s32.totalorder %s27, 0
      %p237 = por %p235, %p236
      %p238 = scmp.ne.s32.totalorder %s226, %s227
      %p239 = scmp.eq.s32.totalorder %s28, 1
      %p240 = por %p238, %p239
      %p242 = scmp.ne.s32.totalorder %s227, %s241
      %p243 = scmp.eq.s32.totalorder %s28, 0
      %p244 = por %p242, %p243
      %s246 = sadd.s32 %s245, 1
      %p249 = scmp.eq.s32.totalorder %s22, 1
      %p250 = scmp.ne.s32.totalorder %s245, %s247
      %p251 = scmp.eq.s32.totalorder %s22, 0
      %p252 = por %p250, %p251
      %p253 = scmp.ne.s32.totalorder %s245, %s247
      %p254 = scmp.eq.s32.totalorder %s27, 1
      %p255 = por %p253, %p254
      %p256 = scmp.ne.s32.totalorder %s247, %s248
      %p257 = scmp.eq.s32.totalorder %s27, 0
      %p258 = por %p256, %p257
      %p259 = scmp.ne.s32.totalorder %s247, %s248
      %p260 = scmp.eq.s32.totalorder %s28, 1
      %p261 = por %p259, %p260
      %p263 = scmp.ne.s32.totalorder %s248, %s262
      %p264 = scmp.eq.s32.totalorder %s28, 0
      %p265 = por %p263, %p264
      %s267 = sadd.s32 %s266, 1
      %p270 = scmp.eq.s32.totalorder %s22, 1
      %p271 = scmp.ne.s32.totalorder %s266, %s268
      %p272 = scmp.eq.s32.totalorder %s22, 0
      %p273 = por %p271, %p272
      %p274 = scmp.ne.s32.totalorder %s266, %s268
      %p275 = scmp.eq.s32.totalorder %s27, 1
      %p276 = por %p274, %p275
      %p277 = scmp.ne.s32.totalorder %s268, %s269
      %p278 = scmp.eq.s32.totalorder %s27, 0
      %p279 = por %p277, %p278
      %p280 = scmp.ne.s32.totalorder %s268, %s269
      %p281 = scmp.eq.s32.totalorder %s28, 1
      %p282 = por %p280, %p281
      %p284 = scmp.ne.s32.totalorder %s269, %s283
      %p285 = scmp.eq.s32.totalorder %s28, 0
      %p286 = por %p284, %p285
      %s288 = sadd.s32 %s287, 1
      %p291 = scmp.eq.s32.totalorder %s22, 1
      %p292 = scmp.ne.s32.totalorder %s287, %s289
      %p293 = scmp.eq.s32.totalorder %s22, 0
      %p294 = por %p292, %p293
      %p295 = scmp.ne.s32.totalorder %s287, %s289
      %p296 = scmp.eq.s32.totalorder %s27, 1
      %p297 = por %p295, %p296
      %p298 = scmp.ne.s32.totalorder %s289, %s290
      %p299 = scmp.eq.s32.totalorder %s27, 0
      %p300 = por %p298, %p299
      %p301 = scmp.ne.s32.totalorder %s289, %s290
      %p302 = scmp.eq.s32.totalorder %s28, 1
      %p303 = por %p301, %p302
      %p305 = scmp.ne.s32.totalorder %s290, %s304
      %p306 = scmp.eq.s32.totalorder %s28, 0
      %p307 = por %p305, %p306
      %s308 = ssub.s32 %s22, %s29
      %p309 = scmp.eq.s32.totalorder %s308, 0
      %s311 = sadd.s32 %s310, 1
      %s312 = scalar_select %p309, %s310, %s311
      %p315 = pneg %p309
      %p316 = scmp.eq.s32.totalorder %s22, 1
      %p317 = por %p315, %p316
      %p318 = scmp.ne.s32.totalorder %s310, %s313
      %p319 = scmp.eq.s32.totalorder %s22, 0
      %p320 = por %p318, %p319
      %p321 = scmp.ne.s32.totalorder %s310, %s313
      %p322 = scmp.eq.s32.totalorder %s27, 1
      %p323 = por %p321, %p322
      %p324 = scmp.ne.s32.totalorder %s313, %s314
      %p325 = scmp.eq.s32.totalorder %s27, 0
      %p326 = por %p324, %p325
      %p327 = scmp.ne.s32.totalorder %s313, %s314
      %p328 = scmp.eq.s32.totalorder %s28, 1
      %p329 = por %p327, %p328
      %p331 = scmp.ne.s32.totalorder %s314, %s330
      %p332 = scmp.eq.s32.totalorder %s28, 0
      %p333 = por %p331, %p332
      %p334 = scmp.le.s32.totalorder 1, %s22
      %p335 = scmp.lt.s32.totalorder %s22, 3
      %p336 = pnand %p334, %p335
      %p337 = pneg %p336
      // Predicated region
      $region9: #{cnn_cifar_forward.1} parent=5 // pred_check
        _
      $region10: #{cnn_cifar_forward.1} parent=5 // pred_check_branch
        %339 = sbr.rel (%p336) target = $region12
      $region11: #{cnn_cifar_forward.1} parent=5 // pred_region
        %s340 = ssub.s32 %s22, 1
        // Predicated region
        $region13: #{cnn_cifar_forward.1} parent=11 // pred_check
          %p341 = pneg %p69
        $region14: #{cnn_cifar_forward.1} parent=11 // pred_check_branch
          %343 = sbr.rel (%p341) target = $region16
        $region15: #{cnn_cifar_forward.1} parent=11 // pred_region
          _
        $region16: #{cnn_cifar_forward.1} parent=11 // pred_fallthru
          _
        // Predicated region
        $region17: #{cnn_cifar_forward.1} parent=11 // pred_check
          %p344 = pneg %p90
        $region18: #{cnn_cifar_forward.1} parent=11 // pred_check_branch
          %346 = sbr.rel (%p344) target = $region20
        $region19: #{cnn_cifar_forward.1} parent=11 // pred_region
          _
        $region20: #{cnn_cifar_forward.1} parent=11 // pred_fallthru
          _
        // Predicated region
        $region21: #{cnn_cifar_forward.1} parent=11 // pred_check
          %p347 = pneg %p111
        $region22: #{cnn_cifar_forward.1} parent=11 // pred_check_branch
          %349 = sbr.rel (%p347) target = $region24
        $region23: #{cnn_cifar_forward.1} parent=11 // pred_region
          _
        $region24: #{cnn_cifar_forward.1} parent=11 // pred_fallthru
          _
        // Predicated region
        $region25: #{cnn_cifar_forward.1} parent=11 // pred_check
          %p350 = pneg %p132
        $region26: #{cnn_cifar_forward.1} parent=11 // pred_check_branch
          %352 = sbr.rel (%p350) target = $region28
        $region27: #{cnn_cifar_forward.1} parent=11 // pred_region
          _
        $region28: #{cnn_cifar_forward.1} parent=11 // pred_fallthru
          _
        // Predicated region
        $region29: #{cnn_cifar_forward.1} parent=11 // pred_check
          %p353 = pneg %p153
        $region30: #{cnn_cifar_forward.1} parent=11 // pred_check_branch
          %355 = sbr.rel (%p353) target = $region32
        $region31: #{cnn_cifar_forward.1} parent=11 // pred_region
          _
        $region32: #{cnn_cifar_forward.1} parent=11 // pred_fallthru
          _
        // Predicated region
        $region33: #{cnn_cifar_forward.1} parent=11 // pred_check
          %p356 = pneg %p174
        $region34: #{cnn_cifar_forward.1} parent=11 // pred_check_branch
          %358 = sbr.rel (%p356) target = $region36
        $region35: #{cnn_cifar_forward.1} parent=11 // pred_region
          _
        $region36: #{cnn_cifar_forward.1} parent=11 // pred_fallthru
          _
        // Predicated region
        $region37: #{cnn_cifar_forward.1} parent=11 // pred_check
          %p359 = pneg %p195
        $region38: #{cnn_cifar_forward.1} parent=11 // pred_check_branch
          %361 = sbr.rel (%p359) target = $region40
        $region39: #{cnn_cifar_forward.1} parent=11 // pred_region
          _
        $region40: #{cnn_cifar_forward.1} parent=11 // pred_fallthru
          _
        // Predicated region
        $region41: #{cnn_cifar_forward.1} parent=11 // pred_check
          %p362 = pneg %p216
        $region42: #{cnn_cifar_forward.1} parent=11 // pred_check_branch
          %364 = sbr.rel (%p362) target = $region44
        $region43: #{cnn_cifar_forward.1} parent=11 // pred_region
          _
        $region44: #{cnn_cifar_forward.1} parent=11 // pred_fallthru
          _
        // Predicated region
        $region45: #{cnn_cifar_forward.1} parent=11 // pred_check
          %p365 = pneg %p237
        $region46: #{cnn_cifar_forward.1} parent=11 // pred_check_branch
          %367 = sbr.rel (%p365) target = $region48
        $region47: #{cnn_cifar_forward.1} parent=11 // pred_region
          _
        $region48: #{cnn_cifar_forward.1} parent=11 // pred_fallthru
          _
        // Predicated region
        $region49: #{cnn_cifar_forward.1} parent=11 // pred_check
          %p368 = pneg %p258
        $region50: #{cnn_cifar_forward.1} parent=11 // pred_check_branch
          %370 = sbr.rel (%p368) target = $region52
        $region51: #{cnn_cifar_forward.1} parent=11 // pred_region
          _
        $region52: #{cnn_cifar_forward.1} parent=11 // pred_fallthru
          _
        // Predicated region
        $region53: #{cnn_cifar_forward.1} parent=11 // pred_check
          %p371 = pneg %p279
        $region54: #{cnn_cifar_forward.1} parent=11 // pred_check_branch
          %373 = sbr.rel (%p371) target = $region56
        $region55: #{cnn_cifar_forward.1} parent=11 // pred_region
          _
        $region56: #{cnn_cifar_forward.1} parent=11 // pred_fallthru
          _
        // Predicated region
        $region57: #{cnn_cifar_forward.1} parent=11 // pred_check
          %p374 = pneg %p300
        $region58: #{cnn_cifar_forward.1} parent=11 // pred_check_branch
          %376 = sbr.rel (%p374) target = $region60
        $region59: #{cnn_cifar_forward.1} parent=11 // pred_region
          _
        $region60: #{cnn_cifar_forward.1} parent=11 // pred_fallthru
          _
      $region12: #{cnn_cifar_forward.1} parent=5 // pred_fallthru
        _
      %p377 = scmp.lt.s32.totalorder %s22, 2
      // Predicated region
      $region61: #{cnn_cifar_forward.1} parent=5 // pred_check
        %p378 = pneg %p377
      $region62: #{cnn_cifar_forward.1} parent=5 // pred_check_branch
        %380 = sbr.rel (%p378) target = $region64
      $region63: #{cnn_cifar_forward.1} parent=5 // pred_region
        // Predicated region
        $region65: #{cnn_cifar_forward.1} parent=63 // pred_check
          %p381 = pneg %p42
        $region66: #{cnn_cifar_forward.1} parent=63 // pred_check_branch
          %383 = sbr.rel (%p381) target = $region68
        $region67: #{cnn_cifar_forward.1} parent=63 // pred_region
          %p384 = scmp.lt.s32.totalorder %s22, 1
          %s385 = scalar_select %p384, %s22, 1
          %s386 = smul.addr %s385, 4
          %s387 = smul.addr %s386, 8
          %s388 = scalar_lea.vmem %s0, %s387
        $region68: #{cnn_cifar_forward.1} parent=63 // pred_fallthru
          _
      $region64: #{cnn_cifar_forward.1} parent=5 // pred_fallthru
        _
      %p389 = scmp.le.s32.totalorder 1, %s22
      %p390 = scmp.lt.s32.totalorder %s22, 3
      %p391 = pnand %p389, %p390
      %p392 = pneg %p391
      // Predicated region
      $region69: #{cnn_cifar_forward.1} parent=5 // pred_check
        _
      $region70: #{cnn_cifar_forward.1} parent=5 // pred_check_branch
        %394 = sbr.rel (%p391) target = $region72
      $region71: #{cnn_cifar_forward.1} parent=5 // pred_region
        %s395 = ssub.s32 %s22, 1
        %p396 = scmp.lt.s32.totalorder %s27, 1
        %s397 = scalar_select %p396, %s27, 1
        %s398 = smul.addr %s397, 4
        %s399 = smul.addr %s398, 8
        %s400 = scalar_lea.vmem %s0, %s399
        %p401 = pneg %p48
        %p402 = pneg %p45
        %p403 = pneg %p69
        %p404 = pneg %p66
        %p405 = pneg %p90
        %p406 = pneg %p87
        %p407 = pneg %p111
        %p408 = pneg %p108
        %p409 = pneg %p132
        %p410 = pneg %p129
        %p411 = pneg %p153
        %p412 = pneg %p150
        %p413 = pneg %p174
        %p414 = pneg %p171
        %p415 = pneg %p195
        %p416 = pneg %p192
        %p417 = pneg %p216
        %p418 = pneg %p213
        %p419 = pneg %p237
        %p420 = pneg %p234
        %p421 = pneg %p258
        %p422 = pneg %p255
        %p423 = pneg %p279
        %p424 = pneg %p276
        %p425 = pneg %p300
        %p426 = pneg %p297
        %p427 = pneg %p326
        %p428 = pneg %p323
        %s429 = sand.u32 %s313, 1
        %s430 = scalar_lea.sflag [#allocation3], %s429
        %s431 = sand.u32 %s313, 1
        %s432 = scalar_lea.vmem [#allocation2], %s431
        %p433 = scmp.lt.s32.totalorder %s27, 1
        %s434 = scalar_select %p433, %s27, 1
        %s435 = smul.addr %s434, 4
        %s436 = smul.addr %s435, 8
        %s437 = scalar_lea.vmem %s0, %s436
        %v438 = vld [vmem:[%s437] sm:$0xff]
        %v439 = vld [vmem:[%s437 + $0x8] sm:$0xff]
        %v440 = vld [vmem:[%s437 + $0x10] sm:$0xff]
        %v441 = vld [vmem:[%s437 + $0x18] sm:$0xff]
        %v442 = vld [vmem:[%s1] sm:$0xff]
        %v443 = vld [vmem:[%s1 + $0x8] sm:$0xff]
        %v444 = vld [vmem:[%s1 + $0x10] sm:$0xff]
        %v445 = vld [vmem:[%s1 + $0x18] sm:$0xff]
        %v446 = vld [vmem:[%s1 + $0x20] sm:$0xff]
        %v447 = vld [vmem:[%s1 + $0x28] sm:$0xff]
        %v448 = vld [vmem:[%s1 + $0x30] sm:$0xff]
        %v449 = vld [vmem:[%s1 + $0x38] sm:$0xff]
        %v450 = vld [vmem:[%s1 + $0x40] sm:$0xff]
        %v451 = vld [vmem:[%s1 + $0x48] sm:$0xff]
        %v452 = vld [vmem:[%s1 + $0x50] sm:$0xff]
        %v453 = vld [vmem:[%s1 + $0x58] sm:$0xff]
        %v454 = vld [vmem:[%s1 + $0x60] sm:$0xff]
        %v455 = vld [vmem:[%s1 + $0x68] sm:$0xff]
        %v456 = vld [vmem:[%s1 + $0x70] sm:$0xff]
        %v457 = vld [vmem:[%s1 + $0x78] sm:$0xff]
        %v458 = vld [vmem:[%s1 + $0x80] sm:$0xff]
        %v459 = vld [vmem:[%s1 + $0x88] sm:$0xff]
        %v460 = vld [vmem:[%s1 + $0x90] sm:$0xff]
        %v461 = vld [vmem:[%s1 + $0x98] sm:$0xff]
        %v462 = vld [vmem:[%s1 + $0xa0] sm:$0xff]
        %v463 = vld [vmem:[%s1 + $0xa8] sm:$0xff]
        %v464 = vld [vmem:[%s1 + $0xb0] sm:$0xff]
        %v465 = vld [vmem:[%s1 + $0xb8] sm:$0xff]
        %v466 = vld [vmem:[%s1 + $0xc0] sm:$0xff]
        %v467 = vld [vmem:[%s1 + $0xc8] sm:$0xff]
        %v468 = vld [vmem:[%s1 + $0xd0] sm:$0xff]
        %v469 = vld [vmem:[%s1 + $0xd8] sm:$0xff]
        %v470 = vld [vmem:[%s1 + $0xe0] sm:$0xff]
        %v471 = vld [vmem:[%s1 + $0xe8] sm:$0xff]
        %v472 = vld [vmem:[%s1 + $0xf0] sm:$0xff]
        %v473 = vld [vmem:[%s1 + $0xf8] sm:$0xff]
        %v474 = vld [vmem:[%s1 + $0x100] sm:$0xff]
        %v475 = vld [vmem:[%s1 + $0x108] sm:$0xff]
        %v476 = vld [vmem:[%s1 + $0x110] sm:$0xff]
        %v477 = vld [vmem:[%s1 + $0x118] sm:$0xff]
        %v478 = vld [vmem:[%s1 + $0x120] sm:$0xff]
        %v479 = vld [vmem:[%s1 + $0x128] sm:$0xff]
        %v480 = vld [vmem:[%s1 + $0x130] sm:$0xff]
        %v481 = vld [vmem:[%s1 + $0x138] sm:$0xff]
        %v482 = vld [vmem:[%s1 + $0x140] sm:$0xff]
        %v483 = vld [vmem:[%s1 + $0x148] sm:$0xff]
        %v484 = vld [vmem:[%s1 + $0x150] sm:$0xff]
        %v485 = vld [vmem:[%s1 + $0x158] sm:$0xff]
        %v486 = vld [vmem:[%s1 + $0x160] sm:$0xff]
        %v487 = vld [vmem:[%s1 + $0x168] sm:$0xff]
        %v488 = vld [vmem:[%s1 + $0x170] sm:$0xff]
        %v489 = vld [vmem:[%s1 + $0x178] sm:$0xff]
        %s490 = scalar_lea.vmem %s1, 384
        %v491 = vld [vmem:[%s490] sm:$0xff]
        %v492 = vld [vmem:[%s490 + $0x8] sm:$0xff]
        %v493 = vld [vmem:[%s490 + $0x10] sm:$0xff]
        %v494 = vld [vmem:[%s490 + $0x18] sm:$0xff]
        %v495 = vld [vmem:[%s490 + $0x20] sm:$0xff]
        %v496 = vld [vmem:[%s490 + $0x28] sm:$0xff]
        %v497 = vld [vmem:[%s490 + $0x30] sm:$0xff]
        %v498 = vld [vmem:[%s490 + $0x38] sm:$0xff]
        %v499 = vld [vmem:[%s490 + $0x40] sm:$0xff]
        %v500 = vld [vmem:[%s490 + $0x48] sm:$0xff]
        %v501 = vld [vmem:[%s490 + $0x50] sm:$0xff]
        %v502 = vld [vmem:[%s490 + $0x58] sm:$0xff]
        %v503 = vld [vmem:[%s490 + $0x60] sm:$0xff]
        %v504 = vld [vmem:[%s490 + $0x68] sm:$0xff]
        %v505 = vld [vmem:[%s490 + $0x70] sm:$0xff]
        %v506 = vld [vmem:[%s490 + $0x78] sm:$0xff]
        %v507 = vld [vmem:[%s490 + $0x80] sm:$0xff]
        %v508 = vld [vmem:[%s490 + $0x88] sm:$0xff]
        %v509 = vld [vmem:[%s490 + $0x90] sm:$0xff]
        %v510 = vld [vmem:[%s490 + $0x98] sm:$0xff]
        %v511 = vld [vmem:[%s490 + $0xa0] sm:$0xff]
        %v512 = vld [vmem:[%s490 + $0xa8] sm:$0xff]
        %v513 = vld [vmem:[%s490 + $0xb0] sm:$0xff]
        %v514 = vld [vmem:[%s490 + $0xb8] sm:$0xff]
        %v515 = vld [vmem:[%s490 + $0xc0] sm:$0xff]
        %v516 = vld [vmem:[%s490 + $0xc8] sm:$0xff]
        %v517 = vld [vmem:[%s490 + $0xd0] sm:$0xff]
        %v518 = vld [vmem:[%s490 + $0xd8] sm:$0xff]
        %v519 = vld [vmem:[%s490 + $0xe0] sm:$0xff]
        %v520 = vld [vmem:[%s490 + $0xe8] sm:$0xff]
        %v521 = vld [vmem:[%s490 + $0xf0] sm:$0xff]
        %v522 = vld [vmem:[%s490 + $0xf8] sm:$0xff]
        %v523 = vld [vmem:[%s490 + $0x100] sm:$0xff]
        %v524 = vld [vmem:[%s490 + $0x108] sm:$0xff]
        %v525 = vld [vmem:[%s490 + $0x110] sm:$0xff]
        %v526 = vld [vmem:[%s490 + $0x118] sm:$0xff]
        %v527 = vld [vmem:[%s490 + $0x120] sm:$0xff]
        %v528 = vld [vmem:[%s490 + $0x128] sm:$0xff]
        %v529 = vld [vmem:[%s490 + $0x130] sm:$0xff]
        %v530 = vld [vmem:[%s490 + $0x138] sm:$0xff]
        %v531 = vld [vmem:[%s490 + $0x140] sm:$0xff]
        %v532 = vld [vmem:[%s490 + $0x148] sm:$0xff]
        %v533 = vld [vmem:[%s490 + $0x150] sm:$0xff]
        %v534 = vld [vmem:[%s490 + $0x158] sm:$0xff]
        %v535 = vld [vmem:[%s490 + $0x160] sm:$0xff]
        %v536 = vld [vmem:[%s490 + $0x168] sm:$0xff]
        %v537 = vld [vmem:[%s490 + $0x170] sm:$0xff]
        %v538 = vld [vmem:[%s490 + $0x178] sm:$0xff]
        %vm543 = vcmask 1046528
        %v544 = vrot.slane %v438, 1
        %v545 = vrot.slane %v439, 1
        %v546 = vsel %vm543, %v544, %v545
        %v547 = vrot.slane %v440, 1
        %v548 = vsel %vm543, %v545, %v547
        %v549 = vrot.slane %v441, 1
        %v550 = vsel %vm543, %v547, %v549
        %vm551 = vcmask 785408
        %v552 = vsel %vm551, %v546, 0
        %v554 = vsel %vm551, %v548, 0
        %v556 = vsel %vm551, %v550, 0
        %v558 = vsel %vm551, %v549, 0
        %560 = vmatprep.subr.mxu0 %v492
        %561 = vmatpush1.msra.mxu0 %v491
        %562 = vmatprep.subr.mxu0 %v496
        %563 = vmatpush1.msra.mxu0 %v495
        %564 = vmatprep.subr.mxu0 %v500
        %565 = vmatpush1.msra.mxu0 %v499
        %566 = vmatprep.subr.mxu0 %v504
        %567 = vmatpush1.msra.mxu0 %v503
        %568 = vmatprep.subr.mxu0 %v508
        %569 = vmatpush1.msra.mxu0 %v507
        %570 = vmatprep.subr.mxu0 %v512
        %571 = vmatpush1.msra.mxu0 %v511
        %572 = vmatprep.subr.mxu0 %v516
        %573 = vmatpush1.msra.mxu0 %v515
        %574 = vmatprep.subr.mxu0 %v520
        %575 = vmatpush1.msra.mxu0 %v519
        %576 = vmatprep.subr.mxu0 %v524
        %577 = vmatpush1.msra.mxu0 %v523
        %578 = vmatprep.subr.mxu0 %v528
        %579 = vmatpush1.msra.mxu0 %v527
        %580 = vmatprep.subr.mxu0 %v532
        %581 = vmatpush1.msra.mxu0 %v531
        %582 = vmatprep.subr.mxu0 %v536
        %583 = vmatpush1.msra.mxu0 %v535
        %584 = vmatprep.subr.mxu0 0.0
        %585 = vmatpush1.msra.mxu0 0.0
        %586 = vmatprep.subr.mxu0 0.0
        %587 = vmatpush1.msra.mxu0 0.0
        %588 = vmatprep.subr.mxu0 0.0
        %589 = vmatpush1.msra.mxu0 0.0
        %590 = vmatprep.subr.mxu0 0.0
        %591 = vmatpush1.msra.mxu0 0.0
        %592 = vmatprep.subr.mxu0 0.0
        %593 = vmatpush1.msra.mxu0 0.0
        %594 = vmatprep.subr.mxu0 0.0
        %595 = vmatpush1.msra.mxu0 0.0
        %596 = vmatprep.subr.mxu0 0.0
        %597 = vmatpush1.msra.mxu0 0.0
        %598 = vmatprep.subr.mxu0 0.0
        %599 = vmatpush1.msra.mxu0 0.0
        %600 = vmatprep.subr.mxu0 0.0
        %601 = vmatpush1.msra.mxu0 0.0
        %602 = vmatprep.subr.mxu0 0.0
        %603 = vmatpush1.msra.mxu0 0.0
        %604 = vmatprep.subr.mxu0 0.0
        %605 = vmatpush1.msra.mxu0 0.0
        %606 = vmatprep.subr.mxu0 0.0
        %607 = vmatpush1.msra.mxu0 0.0
        %608 = vmatprep.subr.mxu0 0.0
        %609 = vmatpush1.msra.mxu0 0.0
        %610 = vmatprep.subr.mxu0 0.0
        %611 = vmatpush1.msra.mxu0 0.0
        %612 = vmatprep.subr.mxu0 0.0
        %613 = vmatpush1.msra.mxu0 0.0
        %614 = vmatprep.subr.mxu0 0.0
        %615 = vmatpush1.msra.mxu0 0.0
        %616 = vmatprep.subr.mxu0 0.0
        %617 = vmatpush1.msra.mxu0 0.0
        %618 = vmatprep.subr.mxu0 0.0
        %619 = vmatpush1.msra.mxu0 0.0
        %620 = vmatprep.subr.mxu0 0.0
        %621 = vmatpush1.msra.mxu0 0.0
        %622 = vmatprep.subr.mxu0 0.0
        %623 = vmatpush1.msra.mxu0 0.0
        %624 = vmatprep.mubr.f32.mxu0 0.0
        %625 = vmatmul.mubr.f32.gmra.mrb[0].mxu0 %v552
        %v626 = vpop.f32.mrb[0].mxu0
        %v627 = vadd.f32 0.0, %v626
        %v628 = vpop.f32.mrb[0].mxu0
        %v629 = vadd.f32 0.0, %v628
        %630 = vmatprep.mubr.f32.mxu0 0.0
        %631 = vmatmul.mubr.f32.gmra.mrb[0].mxu0 %v554
        %v632 = vpop.f32.mrb[0].mxu0
        %v633 = vadd.f32 0.0, %v632
        %v634 = vpop.f32.mrb[0].mxu0
        %v635 = vadd.f32 0.0, %v634
        %636 = vmatprep.mubr.f32.mxu0 0.0
        %637 = vmatmul.mubr.f32.gmra.mrb[0].mxu0 %v556
        %v638 = vpop.f32.mrb[0].mxu0
        %v639 = vadd.f32 0.0, %v638
        %v640 = vpop.f32.mrb[0].mxu0
        %v641 = vadd.f32 0.0, %v640
        %642 = vmatprep.mubr.f32.mxu0 0.0
        %643 = vmatmul.mubr.f32.gmra.mrb[0].mxu0 %v558
        %v644 = vpop.f32.mrb[0].mxu0
        %v645 = vadd.f32 0.0, %v644
        %v646 = vpop.f32.mrb[0].mxu0
        %v647 = vadd.f32 0.0, %v646
        %648 = vdwg.mxu0
        %649 = vmatprep.subr.mxu0 %v494
        %650 = vmatpush1.msra.mxu0 %v493
        %651 = vmatprep.subr.mxu0 %v498
        %652 = vmatpush1.msra.mxu0 %v497
        %653 = vmatprep.subr.mxu0 %v502
        %654 = vmatpush1.msra.mxu0 %v501
        %655 = vmatprep.subr.mxu0 %v506
        %656 = vmatpush1.msra.mxu0 %v505
        %657 = vmatprep.subr.mxu0 %v510
        %658 = vmatpush1.msra.mxu0 %v509
        %659 = vmatprep.subr.mxu0 %v514
        %660 = vmatpush1.msra.mxu0 %v513
        %661 = vmatprep.subr.mxu0 %v518
        %662 = vmatpush1.msra.mxu0 %v517
        %663 = vmatprep.subr.mxu0 %v522
        %664 = vmatpush1.msra.mxu0 %v521
        %665 = vmatprep.subr.mxu0 %v526
        %666 = vmatpush1.msra.mxu0 %v525
        %667 = vmatprep.subr.mxu0 %v530
        %668 = vmatpush1.msra.mxu0 %v529
        %669 = vmatprep.subr.mxu0 %v534
        %670 = vmatpush1.msra.mxu0 %v533
        %671 = vmatprep.subr.mxu0 %v538
        %672 = vmatpush1.msra.mxu0 %v537
        %673 = vmatprep.subr.mxu0 0.0
        %674 = vmatpush1.msra.mxu0 0.0
        %675 = vmatprep.subr.mxu0 0.0
        %676 = vmatpush1.msra.mxu0 0.0
        %677 = vmatprep.subr.mxu0 0.0
        %678 = vmatpush1.msra.mxu0 0.0
        %679 = vmatprep.subr.mxu0 0.0
        %680 = vmatpush1.msra.mxu0 0.0
        %681 = vmatprep.subr.mxu0 0.0
        %682 = vmatpush1.msra.mxu0 0.0
        %683 = vmatprep.subr.mxu0 0.0
        %684 = vmatpush1.msra.mxu0 0.0
        %685 = vmatprep.subr.mxu0 0.0
        %686 = vmatpush1.msra.mxu0 0.0
        %687 = vmatprep.subr.mxu0 0.0
        %688 = vmatpush1.msra.mxu0 0.0
        %689 = vmatprep.subr.mxu0 0.0
        %690 = vmatpush1.msra.mxu0 0.0
        %691 = vmatprep.subr.mxu0 0.0
        %692 = vmatpush1.msra.mxu0 0.0
        %693 = vmatprep.subr.mxu0 0.0
        %694 = vmatpush1.msra.mxu0 0.0
        %695 = vmatprep.subr.mxu0 0.0
        %696 = vmatpush1.msra.mxu0 0.0
        %697 = vmatprep.subr.mxu0 0.0
        %698 = vmatpush1.msra.mxu0 0.0
        %699 = vmatprep.subr.mxu0 0.0
        %700 = vmatpush1.msra.mxu0 0.0
        %701 = vmatprep.subr.mxu0 0.0
        %702 = vmatpush1.msra.mxu0 0.0
        %703 = vmatprep.subr.mxu0 0.0
        %704 = vmatpush1.msra.mxu0 0.0
        %705 = vmatprep.subr.mxu0 0.0
        %706 = vmatpush1.msra.mxu0 0.0
        %707 = vmatprep.subr.mxu0 0.0
        %708 = vmatpush1.msra.mxu0 0.0
        %709 = vmatprep.subr.mxu0 0.0
        %710 = vmatpush1.msra.mxu0 0.0
        %711 = vmatprep.subr.mxu0 0.0
        %712 = vmatpush1.msra.mxu0 0.0
        %713 = vmatprep.mubr.f32.mxu0 0.0
        %714 = vmatmul.mubr.f32.gmra.mrb[0].mxu0 %v552
        %v715 = vpop.f32.mrb[0].mxu0
        %v716 = vadd.f32 0.0, %v715
        %v717 = vpop.f32.mrb[0].mxu0
        %v718 = vadd.f32 0.0, %v717
        %719 = vmatprep.mubr.f32.mxu0 0.0
        %720 = vmatmul.mubr.f32.gmra.mrb[0].mxu0 %v554
        %v721 = vpop.f32.mrb[0].mxu0
        %v722 = vadd.f32 0.0, %v721
        %v723 = vpop.f32.mrb[0].mxu0
        %v724 = vadd.f32 0.0, %v723
        %725 = vmatprep.mubr.f32.mxu0 0.0
        %726 = vmatmul.mubr.f32.gmra.mrb[0].mxu0 %v556
        %v727 = vpop.f32.mrb[0].mxu0
        %v728 = vadd.f32 0.0, %v727
        %v729 = vpop.f32.mrb[0].mxu0
        %v730 = vadd.f32 0.0, %v729
        %731 = vmatprep.mubr.f32.mxu0 0.0
        %732 = vmatmul.mubr.f32.gmra.mrb[0].mxu0 %v558
        %v733 = vpop.f32.mrb[0].mxu0
        %v734 = vadd.f32 0.0, %v733
        %v735 = vpop.f32.mrb[0].mxu0
        %v736 = vadd.f32 0.0, %v735
        %737 = vdwg.mxu0
        %v738 = vsel %vm551, %v438, 0
        %v740 = vsel %vm551, %v439, 0
        %v742 = vsel %vm551, %v440, 0
        %v744 = vsel %vm551, %v441, 0
        %746 = vmatprep.subr.mxu0 %v443
        %747 = vmatpush1.msra.mxu0 %v442
        %748 = vmatprep.subr.mxu0 %v447
        %749 = vmatpush1.msra.mxu0 %v446
        %750 = vmatprep.subr.mxu0 %v451
        %751 = vmatpush1.msra.mxu0 %v450
        %752 = vmatprep.subr.mxu0 %v455
        %753 = vmatpush1.msra.mxu0 %v454
        %754 = vmatprep.subr.mxu0 %v459
        %755 = vmatpush1.msra.mxu0 %v458
        %756 = vmatprep.subr.mxu0 %v463
        %757 = vmatpush1.msra.mxu0 %v462
        %758 = vmatprep.subr.mxu0 %v467
        %759 = vmatpush1.msra.mxu0 %v466
        %760 = vmatprep.subr.mxu0 %v471
        %761 = vmatpush1.msra.mxu0 %v470
        %762 = vmatprep.subr.mxu0 %v475
        %763 = vmatpush1.msra.mxu0 %v474
        %764 = vmatprep.subr.mxu0 %v479
        %765 = vmatpush1.msra.mxu0 %v478
        %766 = vmatprep.subr.mxu0 %v483
        %767 = vmatpush1.msra.mxu0 %v482
        %768 = vmatprep.subr.mxu0 %v487
        %769 = vmatpush1.msra.mxu0 %v486
        %770 = vmatprep.subr.mxu0 0.0
        %771 = vmatpush1.msra.mxu0 0.0
        %772 = vmatprep.subr.mxu0 0.0
        %773 = vmatpush1.msra.mxu0 0.0
        %774 = vmatprep.subr.mxu0 0.0
        %775 = vmatpush1.msra.mxu0 0.0
        %776 = vmatprep.subr.mxu0 0.0
        %777 = vmatpush1.msra.mxu0 0.0
        %778 = vmatprep.subr.mxu0 0.0
        %779 = vmatpush1.msra.mxu0 0.0
        %780 = vmatprep.subr.mxu0 0.0
        %781 = vmatpush1.msra.mxu0 0.0
        %782 = vmatprep.subr.mxu0 0.0
        %783 = vmatpush1.msra.mxu0 0.0
        %784 = vmatprep.subr.mxu0 0.0
        %785 = vmatpush1.msra.mxu0 0.0
        %786 = vmatprep.subr.mxu0 0.0
        %787 = vmatpush1.msra.mxu0 0.0
        %788 = vmatprep.subr.mxu0 0.0
        %789 = vmatpush1.msra.mxu0 0.0
        %790 = vmatprep.subr.mxu0 0.0
        %791 = vmatpush1.msra.mxu0 0.0
        %792 = vmatprep.subr.mxu0 0.0
        %793 = vmatpush1.msra.mxu0 0.0
        %794 = vmatprep.subr.mxu0 0.0
        %795 = vmatpush1.msra.mxu0 0.0
        %796 = vmatprep.subr.mxu0 0.0
        %797 = vmatpush1.msra.mxu0 0.0
        %798 = vmatprep.subr.mxu0 0.0
        %799 = vmatpush1.msra.mxu0 0.0
        %800 = vmatprep.subr.mxu0 0.0
        %801 = vmatpush1.msra.mxu0 0.0
        %802 = vmatprep.subr.mxu0 0.0
        %803 = vmatpush1.msra.mxu0 0.0
        %804 = vmatprep.subr.mxu0 0.0
        %805 = vmatpush1.msra.mxu0 0.0
        %806 = vmatprep.subr.mxu0 0.0
        %807 = vmatpush1.msra.mxu0 0.0
        %808 = vmatprep.subr.mxu0 0.0
        %809 = vmatpush1.msra.mxu0 0.0
        %810 = vmatprep.mubr.f32.mxu0 0.0
        %811 = vmatmul.mubr.f32.gmra.mrb[0].mxu0 %v738
        %v812 = vpop.f32.mrb[0].mxu0
        %v813 = vadd.f32 %v627, %v812
        %v814 = vpop.f32.mrb[0].mxu0
        %v815 = vadd.f32 %v629, %v814
        %816 = vmatprep.mubr.f32.mxu0 0.0
        %817 = vmatmul.mubr.f32.gmra.mrb[0].mxu0 %v740
        %v818 = vpop.f32.mrb[0].mxu0
        %v819 = vadd.f32 %v633, %v818
        %v820 = vpop.f32.mrb[0].mxu0
        %v821 = vadd.f32 %v635, %v820
        %822 = vmatprep.mubr.f32.mxu0 0.0
        %823 = vmatmul.mubr.f32.gmra.mrb[0].mxu0 %v742
        %v824 = vpop.f32.mrb[0].mxu0
        %v825 = vadd.f32 %v639, %v824
        %v826 = vpop.f32.mrb[0].mxu0
        %v827 = vadd.f32 %v641, %v826
        %828 = vmatprep.mubr.f32.mxu0 0.0
        %829 = vmatmul.mubr.f32.gmra.mrb[0].mxu0 %v744
        %v830 = vpop.f32.mrb[0].mxu0
        %v831 = vadd.f32 %v645, %v830
        %v832 = vpop.f32.mrb[0].mxu0
        %v833 = vadd.f32 %v647, %v832
        %834 = vdwg.mxu0
        %835 = vmatprep.subr.mxu0 %v445
        %836 = vmatpush1.msra.mxu0 %v444
        %837 = vmatprep.subr.mxu0 %v449
        %838 = vmatpush1.msra.mxu0 %v448
        %839 = vmatprep.subr.mxu0 %v453
        %840 = vmatpush1.msra.mxu0 %v452
        %841 = vmatprep.subr.mxu0 %v457
        %842 = vmatpush1.msra.mxu0 %v456
        %843 = vmatprep.subr.mxu0 %v461
        %844 = vmatpush1.msra.mxu0 %v460
        %845 = vmatprep.subr.mxu0 %v465
        %846 = vmatpush1.msra.mxu0 %v464
        %847 = vmatprep.subr.mxu0 %v469
        %848 = vmatpush1.msra.mxu0 %v468
        %849 = vmatprep.subr.mxu0 %v473
        %850 = vmatpush1.msra.mxu0 %v472
        %851 = vmatprep.subr.mxu0 %v477
        %852 = vmatpush1.msra.mxu0 %v476
        %853 = vmatprep.subr.mxu0 %v481
        %854 = vmatpush1.msra.mxu0 %v480
        %855 = vmatprep.subr.mxu0 %v485
        %856 = vmatpush1.msra.mxu0 %v484
        %857 = vmatprep.subr.mxu0 %v489
        %858 = vmatpush1.msra.mxu0 %v488
        %859 = vmatprep.subr.mxu0 0.0
        %860 = vmatpush1.msra.mxu0 0.0
        %861 = vmatprep.subr.mxu0 0.0
        %862 = vmatpush1.msra.mxu0 0.0
        %863 = vmatprep.subr.mxu0 0.0
        %864 = vmatpush1.msra.mxu0 0.0
        %865 = vmatprep.subr.mxu0 0.0
        %866 = vmatpush1.msra.mxu0 0.0
        %867 = vmatprep.subr.mxu0 0.0
        %868 = vmatpush1.msra.mxu0 0.0
        %869 = vmatprep.subr.mxu0 0.0
        %870 = vmatpush1.msra.mxu0 0.0
        %871 = vmatprep.subr.mxu0 0.0
        %872 = vmatpush1.msra.mxu0 0.0
        %873 = vmatprep.subr.mxu0 0.0
        %874 = vmatpush1.msra.mxu0 0.0
        %875 = vmatprep.subr.mxu0 0.0
        %876 = vmatpush1.msra.mxu0 0.0
        %877 = vmatprep.subr.mxu0 0.0
        %878 = vmatpush1.msra.mxu0 0.0
        %879 = vmatprep.subr.mxu0 0.0
        %880 = vmatpush1.msra.mxu0 0.0
        %881 = vmatprep.subr.mxu0 0.0
        %882 = vmatpush1.msra.mxu0 0.0
        %883 = vmatprep.subr.mxu0 0.0
        %884 = vmatpush1.msra.mxu0 0.0
        %885 = vmatprep.subr.mxu0 0.0
        %886 = vmatpush1.msra.mxu0 0.0
        %887 = vmatprep.subr.mxu0 0.0
        %888 = vmatpush1.msra.mxu0 0.0
        %889 = vmatprep.subr.mxu0 0.0
        %890 = vmatpush1.msra.mxu0 0.0
        %891 = vmatprep.subr.mxu0 0.0
        %892 = vmatpush1.msra.mxu0 0.0
        %893 = vmatprep.subr.mxu0 0.0
        %894 = vmatpush1.msra.mxu0 0.0
        %895 = vmatprep.subr.mxu0 0.0
        %896 = vmatpush1.msra.mxu0 0.0
        %897 = vmatprep.subr.mxu0 0.0
        %898 = vmatpush1.msra.mxu0 0.0
        %899 = vmatprep.mubr.f32.mxu0 0.0
        %900 = vmatmul.mubr.f32.gmra.mrb[0].mxu0 %v738
        %v901 = vpop.f32.mrb[0].mxu0
        %v902 = vadd.f32 %v716, %v901
        %v903 = vpop.f32.mrb[0].mxu0
        %v904 = vadd.f32 %v718, %v903
        %905 = vmatprep.mubr.f32.mxu0 0.0
        %906 = vmatmul.mubr.f32.gmra.mrb[0].mxu0 %v740
        %v907 = vpop.f32.mrb[0].mxu0
        %v908 = vadd.f32 %v722, %v907
        %v909 = vpop.f32.mrb[0].mxu0
        %v910 = vadd.f32 %v724, %v909
        %911 = vmatprep.mubr.f32.mxu0 0.0
        %912 = vmatmul.mubr.f32.gmra.mrb[0].mxu0 %v742
        %v913 = vpop.f32.mrb[0].mxu0
        %v914 = vadd.f32 %v728, %v913
        %v915 = vpop.f32.mrb[0].mxu0
        %v916 = vadd.f32 %v730, %v915
        %917 = vmatprep.mubr.f32.mxu0 0.0
        %918 = vmatmul.mubr.f32.gmra.mrb[0].mxu0 %v744
        %v919 = vpop.f32.mrb[0].mxu0
        %v920 = vadd.f32 %v734, %v919
        %v921 = vpop.f32.mrb[0].mxu0
        %v922 = vadd.f32 %v736, %v921
        %923 = vdwg.mxu0
        %s924 = scalar_lea.vmem %s1, 768
        %v925 = vld [vmem:[%s924] sm:$0xff]
        %v926 = vld [vmem:[%s924 + $0x8] sm:$0xff]
        %v927 = vld [vmem:[%s924 + $0x10] sm:$0xff]
        %v928 = vld [vmem:[%s924 + $0x18] sm:$0xff]
        %v929 = vld [vmem:[%s924 + $0x20] sm:$0xff]
        %v930 = vld [vmem:[%s924 + $0x28] sm:$0xff]
        %v931 = vld [vmem:[%s924 + $0x30] sm:$0xff]
        %v932 = vld [vmem:[%s924 + $0x38] sm:$0xff]
        %v933 = vld [vmem:[%s924 + $0x40] sm:$0xff]
        %v934 = vld [vmem:[%s924 + $0x48] sm:$0xff]
        %v935 = vld [vmem:[%s924 + $0x50] sm:$0xff]
        %v936 = vld [vmem:[%s924 + $0x58] sm:$0xff]
        %v937 = vld [vmem:[%s924 + $0x60] sm:$0xff]
        %v938 = vld [vmem:[%s924 + $0x68] sm:$0xff]
        %v939 = vld [vmem:[%s924 + $0x70] sm:$0xff]
        %v940 = vld [vmem:[%s924 + $0x78] sm:$0xff]
        %v941 = vld [vmem:[%s924 + $0x80] sm:$0xff]
        %v942 = vld [vmem:[%s924 + $0x88] sm:$0xff]
        %v943 = vld [vmem:[%s924 + $0x90] sm:$0xff]
        %v944 = vld [vmem:[%s924 + $0x98] sm:$0xff]
        %v945 = vld [vmem:[%s924 + $0xa0] sm:$0xff]
        %v946 = vld [vmem:[%s924 + $0xa8] sm:$0xff]
        %v947 = vld [vmem:[%s924 + $0xb0] sm:$0xff]
        %v948 = vld [vmem:[%s924 + $0xb8] sm:$0xff]
        %v949 = vld [vmem:[%s924 + $0xc0] sm:$0xff]
        %v950 = vld [vmem:[%s924 + $0xc8] sm:$0xff]
        %v951 = vld [vmem:[%s924 + $0xd0] sm:$0xff]
        %v952 = vld [vmem:[%s924 + $0xd8] sm:$0xff]
        %v953 = vld [vmem:[%s924 + $0xe0] sm:$0xff]
        %v954 = vld [vmem:[%s924 + $0xe8] sm:$0xff]
        %v955 = vld [vmem:[%s924 + $0xf0] sm:$0xff]
        %v956 = vld [vmem:[%s924 + $0xf8] sm:$0xff]
        %v957 = vld [vmem:[%s924 + $0x100] sm:$0xff]
        %v958 = vld [vmem:[%s924 + $0x108] sm:$0xff]
        %v959 = vld [vmem:[%s924 + $0x110] sm:$0xff]
        %v960 = vld [vmem:[%s924 + $0x118] sm:$0xff]
        %v961 = vld [vmem:[%s924 + $0x120] sm:$0xff]
        %v962 = vld [vmem:[%s924 + $0x128] sm:$0xff]
        %v963 = vld [vmem:[%s924 + $0x130] sm:$0xff]
        %v964 = vld [vmem:[%s924 + $0x138] sm:$0xff]
        %v965 = vld [vmem:[%s924 + $0x140] sm:$0xff]
        %v966 = vld [vmem:[%s924 + $0x148] sm:$0xff]
        %v967 = vld [vmem:[%s924 + $0x150] sm:$0xff]
        %v968 = vld [vmem:[%s924 + $0x158] sm:$0xff]
        %v969 = vld [vmem:[%s924 + $0x160] sm:$0xff]
        %v970 = vld [vmem:[%s924 + $0x168] sm:$0xff]
        %v971 = vld [vmem:[%s924 + $0x170] sm:$0xff]
        %v972 = vld [vmem:[%s924 + $0x178] sm:$0xff]
        %vm973 = vcmask 1045504
        %v974 = vrot.slane %v438, 2
        %v975 = vrot.slane %v439, 2
        %v976 = vsel %vm973, %v974, %v975
        %v977 = vrot.slane %v440, 2
        %v978 = vsel %vm973, %v975, %v977
        %v979 = vrot.slane %v441, 2
        %v980 = vsel %vm973, %v977, %v979
        %v981 = vsel %vm551, %v976, 0
        %v983 = vsel %vm551, %v978, 0
        %v985 = vsel %vm551, %v980, 0
        %v987 = vsel %vm551, %v979, 0
        %989 = vmatprep.subr.mxu0 %v926
        %990 = vmatpush1.msra.mxu0 %v925
        %991 = vmatprep.subr.mxu0 %v930
        %992 = vmatpush1.msra.mxu0 %v929
        %993 = vmatprep.subr.mxu0 %v934
        %994 = vmatpush1.msra.mxu0 %v933
        %995 = vmatprep.subr.mxu0 %v938
        %996 = vmatpush1.msra.mxu0 %v937
        %997 = vmatprep.subr.mxu0 %v942
        %998 = vmatpush1.msra.mxu0 %v941
        %999 = vmatprep.subr.mxu0 %v946
        %1000 = vmatpush1.msra.mxu0 %v945
        %1001 = vmatprep.subr.mxu0 %v950
        %1002 = vmatpush1.msra.mxu0 %v949
        %1003 = vmatprep.subr.mxu0 %v954
        %1004 = vmatpush1.msra.mxu0 %v953
        %1005 = vmatprep.subr.mxu0 %v958
        %1006 = vmatpush1.msra.mxu0 %v957
        %1007 = vmatprep.subr.mxu0 %v962
        %1008 = vmatpush1.msra.mxu0 %v961
        %1009 = vmatprep.subr.mxu0 %v966
        %1010 = vmatpush1.msra.mxu0 %v965
        %1011 = vmatprep.subr.mxu0 %v970
        %1012 = vmatpush1.msra.mxu0 %v969
        %1013 = vmatprep.subr.mxu0 0.0
        %1014 = vmatpush1.msra.mxu0 0.0
        %1015 = vmatprep.subr.mxu0 0.0
        %1016 = vmatpush1.msra.mxu0 0.0
        %1017 = vmatprep.subr.mxu0 0.0
        %1018 = vmatpush1.msra.mxu0 0.0
        %1019 = vmatprep.subr.mxu0 0.0
        %1020 = vmatpush1.msra.mxu0 0.0
        %1021 = vmatprep.subr.mxu0 0.0
        %1022 = vmatpush1.msra.mxu0 0.0
        %1023 = vmatprep.subr.mxu0 0.0
        %1024 = vmatpush1.msra.mxu0 0.0
        %1025 = vmatprep.subr.mxu0 0.0
        %1026 = vmatpush1.msra.mxu0 0.0
        %1027 = vmatprep.subr.mxu0 0.0
        %1028 = vmatpush1.msra.mxu0 0.0
        %1029 = vmatprep.subr.mxu0 0.0
        %1030 = vmatpush1.msra.mxu0 0.0
        %1031 = vmatprep.subr.mxu0 0.0
        %1032 = vmatpush1.msra.mxu0 0.0
        %1033 = vmatprep.subr.mxu0 0.0
        %1034 = vmatpush1.msra.mxu0 0.0
        %1035 = vmatprep.subr.mxu0 0.0
        %1036 = vmatpush1.msra.mxu0 0.0
        %1037 = vmatprep.subr.mxu0 0.0
        %1038 = vmatpush1.msra.mxu0 0.0
        %1039 = vmatprep.subr.mxu0 0.0
        %1040 = vmatpush1.msra.mxu0 0.0
        %1041 = vmatprep.subr.mxu0 0.0
        %1042 = vmatpush1.msra.mxu0 0.0
        %1043 = vmatprep.subr.mxu0 0.0
        %1044 = vmatpush1.msra.mxu0 0.0
        %1045 = vmatprep.subr.mxu0 0.0
        %1046 = vmatpush1.msra.mxu0 0.0
        %1047 = vmatprep.subr.mxu0 0.0
        %1048 = vmatpush1.msra.mxu0 0.0
        %1049 = vmatprep.subr.mxu0 0.0
        %1050 = vmatpush1.msra.mxu0 0.0
        %1051 = vmatprep.subr.mxu0 0.0
        %1052 = vmatpush1.msra.mxu0 0.0
        %1053 = vmatprep.mubr.f32.mxu0 0.0
        %1054 = vmatmul.mubr.f32.gmra.mrb[0].mxu0 %v981
        %v1055 = vpop.f32.mrb[0].mxu0
        %v1056 = vadd.f32 0.0, %v1055
        %v1057 = vpop.f32.mrb[0].mxu0
        %v1058 = vadd.f32 0.0, %v1057
        %1059 = vmatprep.mubr.f32.mxu0 0.0
        %1060 = vmatmul.mubr.f32.gmra.mrb[0].mxu0 %v983
        %v1061 = vpop.f32.mrb[0].mxu0
        %v1062 = vadd.f32 0.0, %v1061
        %v1063 = vpop.f32.mrb[0].mxu0
        %v1064 = vadd.f32 0.0, %v1063
        %1065 = vmatprep.mubr.f32.mxu0 0.0
        %1066 = vmatmul.mubr.f32.gmra.mrb[0].mxu0 %v985
        %v1067 = vpop.f32.mrb[0].mxu0
        %v1068 = vadd.f32 0.0, %v1067
        %v1069 = vpop.f32.mrb[0].mxu0
        %v1070 = vadd.f32 0.0, %v1069
        %1071 = vmatprep.mubr.f32.mxu0 0.0
        %1072 = vmatmul.mubr.f32.gmra.mrb[0].mxu0 %v987
        %v1073 = vpop.f32.mrb[0].mxu0
        %v1074 = vadd.f32 0.0, %v1073
        %v1075 = vpop.f32.mrb[0].mxu0
        %v1076 = vadd.f32 0.0, %v1075
        %1077 = vdwg.mxu0
        %1078 = vmatprep.subr.mxu0 %v928
        %1079 = vmatpush1.msra.mxu0 %v927
        %1080 = vmatprep.subr.mxu0 %v932
        %1081 = vmatpush1.msra.mxu0 %v931
        %1082 = vmatprep.subr.mxu0 %v936
        %1083 = vmatpush1.msra.mxu0 %v935
        %1084 = vmatprep.subr.mxu0 %v940
        %1085 = vmatpush1.msra.mxu0 %v939
        %1086 = vmatprep.subr.mxu0 %v944
        %1087 = vmatpush1.msra.mxu0 %v943
        %1088 = vmatprep.subr.mxu0 %v948
        %1089 = vmatpush1.msra.mxu0 %v947
        %1090 = vmatprep.subr.mxu0 %v952
        %1091 = vmatpush1.msra.mxu0 %v951
        %1092 = vmatprep.subr.mxu0 %v956
        %1093 = vmatpush1.msra.mxu0 %v955
        %1094 = vmatprep.subr.mxu0 %v960
        %1095 = vmatpush1.msra.mxu0 %v959
        %1096 = vmatprep.subr.mxu0 %v964
        %1097 = vmatpush1.msra.mxu0 %v963
        %1098 = vmatprep.subr.mxu0 %v968
        %1099 = vmatpush1.msra.mxu0 %v967
        %1100 = vmatprep.subr.mxu0 %v972
        %1101 = vmatpush1.msra.mxu0 %v971
        %1102 = vmatprep.subr.mxu0 0.0
        %1103 = vmatpush1.msra.mxu0 0.0
        %1104 = vmatprep.subr.mxu0 0.0
        %1105 = vmatpush1.msra.mxu0 0.0
        %1106 = vmatprep.subr.mxu0 0.0
        %1107 = vmatpush1.msra.mxu0 0.0
        %1108 = vmatprep.subr.mxu0 0.0
        %1109 = vmatpush1.msra.mxu0 0.0
        %1110 = vmatprep.subr.mxu0 0.0
        %1111 = vmatpush1.msra.mxu0 0.0
        %1112 = vmatprep.subr.mxu0 0.0
        %1113 = vmatpush1.msra.mxu0 0.0
        %1114 = vmatprep.subr.mxu0 0.0
        %1115 = vmatpush1.msra.mxu0 0.0
        %1116 = vmatprep.subr.mxu0 0.0
        %1117 = vmatpush1.msra.mxu0 0.0
        %1118 = vmatprep.subr.mxu0 0.0
        %1119 = vmatpush1.msra.mxu0 0.0
        %1120 = vmatprep.subr.mxu0 0.0
        %1121 = vmatpush1.msra.mxu0 0.0
        %1122 = vmatprep.subr.mxu0 0.0
        %1123 = vmatpush1.msra.mxu0 0.0
        %1124 = vmatprep.subr.mxu0 0.0
        %1125 = vmatpush1.msra.mxu0 0.0
        %1126 = vmatprep.subr.mxu0 0.0
        %1127 = vmatpush1.msra.mxu0 0.0
        %1128 = vmatprep.subr.mxu0 0.0
        %1129 = vmatpush1.msra.mxu0 0.0
        %1130 = vmatprep.subr.mxu0 0.0
        %1131 = vmatpush1.msra.mxu0 0.0
        %1132 = vmatprep.subr.mxu0 0.0
        %1133 = vmatpush1.msra.mxu0 0.0
        %1134 = vmatprep.subr.mxu0 0.0
        %1135 = vmatpush1.msra.mxu0 0.0
        %1136 = vmatprep.subr.mxu0 0.0
        %1137 = vmatpush1.msra.mxu0 0.0
        %1138 = vmatprep.subr.mxu0 0.0
        %1139 = vmatpush1.msra.mxu0 0.0
        %1140 = vmatprep.subr.mxu0 0.0
        %1141 = vmatpush1.msra.mxu0 0.0
        %1142 = vmatprep.mubr.f32.mxu0 0.0
        %1143 = vmatmul.mubr.f32.gmra.mrb[0].mxu0 %v981
        %v1144 = vpop.f32.mrb[0].mxu0
        %v1145 = vadd.f32 0.0, %v1144
        %v1146 = vpop.f32.mrb[0].mxu0
        %v1147 = vadd.f32 0.0, %v1146
        %1148 = vmatprep.mubr.f32.mxu0 0.0
        %1149 = vmatmul.mubr.f32.gmra.mrb[0].mxu0 %v983
        %v1150 = vpop.f32.mrb[0].mxu0
        %v1151 = vadd.f32 0.0, %v1150
        %v1152 = vpop.f32.mrb[0].mxu0
        %v1153 = vadd.f32 0.0, %v1152
        %1154 = vmatprep.mubr.f32.mxu0 0.0
        %1155 = vmatmul.mubr.f32.gmra.mrb[0].mxu0 %v985
        %v1156 = vpop.f32.mrb[0].mxu0
        %v1157 = vadd.f32 0.0, %v1156
        %v1158 = vpop.f32.mrb[0].mxu0
        %v1159 = vadd.f32 0.0, %v1158
        %1160 = vmatprep.mubr.f32.mxu0 0.0
        %1161 = vmatmul.mubr.f32.gmra.mrb[0].mxu0 %v987
        %v1162 = vpop.f32.mrb[0].mxu0
        %v1163 = vadd.f32 0.0, %v1162
        %v1164 = vpop.f32.mrb[0].mxu0
        %v1165 = vadd.f32 0.0, %v1164
        %1166 = vdwg.mxu0
        %v1167 = vadd.f32 %v813, %v1056
        %v1168 = vadd.f32 %v815, %v1058
        %v1169 = vadd.f32 %v902, %v1145
        %v1170 = vadd.f32 %v904, %v1147
        %v1171 = vadd.f32 %v819, %v1062
        %v1172 = vadd.f32 %v821, %v1064
        %v1173 = vadd.f32 %v908, %v1151
        %v1174 = vadd.f32 %v910, %v1153
        %v1175 = vadd.f32 %v825, %v1068
        %v1176 = vadd.f32 %v827, %v1070
        %v1177 = vadd.f32 %v914, %v1157
        %v1178 = vadd.f32 %v916, %v1159
        %v1179 = vadd.f32 %v831, %v1074
        %v1180 = vadd.f32 %v833, %v1076
        %v1181 = vadd.f32 %v920, %v1163
        %v1182 = vadd.f32 %v922, %v1165
        %s1183 = scalar_lea.vmem %s1, 1152
        %v1184 = vld [vmem:[%s1183] sm:$0xff]
        %v1185 = vld [vmem:[%s1183 + $0x8] sm:$0xff]
        %v1186 = vld [vmem:[%s1183 + $0x10] sm:$0xff]
        %v1187 = vld [vmem:[%s1183 + $0x18] sm:$0xff]
        %v1188 = vld [vmem:[%s1183 + $0x20] sm:$0xff]
        %v1189 = vld [vmem:[%s1183 + $0x28] sm:$0xff]
        %v1190 = vld [vmem:[%s1183 + $0x30] sm:$0xff]
        %v1191 = vld [vmem:[%s1183 + $0x38] sm:$0xff]
        %v1192 = vld [vmem:[%s1183 + $0x40] sm:$0xff]
        %v1193 = vld [vmem:[%s1183 + $0x48] sm:$0xff]
        %v1194 = vld [vmem:[%s1183 + $0x50] sm:$0xff]
        %v1195 = vld [vmem:[%s1183 + $0x58] sm:$0xff]
        %v1196 = vld [vmem:[%s1183 + $0x60] sm:$0xff]
        %v1197 = vld [vmem:[%s1183 + $0x68] sm:$0xff]
        %v1198 = vld [vmem:[%s1183 + $0x70] sm:$0xff]
        %v1199 = vld [vmem:[%s1183 + $0x78] sm:$0xff]
        %v1200 = vld [vmem:[%s1183 + $0x80] sm:$0xff]
        %v1201 = vld [vmem:[%s1183 + $0x88] sm:$0xff]
        %v1202 = vld [vmem:[%s1183 + $0x90] sm:$0xff]
        %v1203 = vld [vmem:[%s1183 + $0x98] sm:$0xff]
        %v1204 = vld [vmem:[%s1183 + $0xa0] sm:$0xff]
        %v1205 = vld [vmem:[%s1183 + $0xa8] sm:$0xff]
        %v1206 = vld [vmem:[%s1183 + $0xb0] sm:$0xff]
        %v1207 = vld [vmem:[%s1183 + $0xb8] sm:$0xff]
        %v1208 = vld [vmem:[%s1183 + $0xc0] sm:$0xff]
        %v1209 = vld [vmem:[%s1183 + $0xc8] sm:$0xff]
        %v1210 = vld [vmem:[%s1183 + $0xd0] sm:$0xff]
        %v1211 = vld [vmem:[%s1183 + $0xd8] sm:$0xff]
        %v1212 = vld [vmem:[%s1183 + $0xe0] sm:$0xff]
        %v1213 = vld [vmem:[%s1183 + $0xe8] sm:$0xff]
        %v1214 = vld [vmem:[%s1183 + $0xf0] sm:$0xff]
        %v1215 = vld [vmem:[%s1183 + $0xf8] sm:$0xff]
        %v1216 = vld [vmem:[%s1183 + $0x100] sm:$0xff]
        %v1217 = vld [vmem:[%s1183 + $0x108] sm:$0xff]
        %v1218 = vld [vmem:[%s1183 + $0x110] sm:$0xff]
        %v1219 = vld [vmem:[%s1183 + $0x118] sm:$0xff]
        %v1220 = vld [vmem:[%s1183 + $0x120] sm:$0xff]
        %v1221 = vld [vmem:[%s1183 + $0x128] sm:$0xff]
        %v1222 = vld [vmem:[%s1183 + $0x130] sm:$0xff]
        %v1223 = vld [vmem:[%s1183 + $0x138] sm:$0xff]
        %v1224 = vld [vmem:[%s1183 + $0x140] sm:$0xff]
        %v1225 = vld [vmem:[%s1183 + $0x148] sm:$0xff]
        %v1226 = vld [vmem:[%s1183 + $0x150] sm:$0xff]
        %v1227 = vld [vmem:[%s1183 + $0x158] sm:$0xff]
        %v1228 = vld [vmem:[%s1183 + $0x160] sm:$0xff]
        %v1229 = vld [vmem:[%s1183 + $0x168] sm:$0xff]
        %v1230 = vld [vmem:[%s1183 + $0x170] sm:$0xff]
        %v1231 = vld [vmem:[%s1183 + $0x178] sm:$0xff]
        %vm1232 = vcmask 1044480
        %v1233 = vrot.slane %v438, 3
        %v1234 = vrot.slane %v439, 3
        %v1235 = vsel %vm1232, %v1233, %v1234
        %v1236 = vrot.slane %v440, 3
        %v1237 = vsel %vm1232, %v1234, %v1236
        %v1238 = vrot.slane %v441, 3
        %v1239 = vsel %vm1232, %v1236, %v1238
        %v1240 = vsel %vm551, %v1235, 0
        %v1242 = vsel %vm551, %v1237, 0
        %v1244 = vsel %vm551, %v1239, 0
        %v1246 = vsel %vm551, %v1238, 0
        %1248 = vmatprep.subr.mxu0 %v1185
        %1249 = vmatpush1.msra.mxu0 %v1184
        %1250 = vmatprep.subr.mxu0 %v1189
        %1251 = vmatpush1.msra.mxu0 %v1188
        %1252 = vmatprep.subr.mxu0 %v1193
        %1253 = vmatpush1.msra.mxu0 %v1192
        %1254 = vmatprep.subr.mxu0 %v1197
        %1255 = vmatpush1.msra.mxu0 %v1196
        %1256 = vmatprep.subr.mxu0 %v1201
        %1257 = vmatpush1.msra.mxu0 %v1200
        %1258 = vmatprep.subr.mxu0 %v1205
        %1259 = vmatpush1.msra.mxu0 %v1204
        %1260 = vmatprep.subr.mxu0 %v1209
        %1261 = vmatpush1.msra.mxu0 %v1208
        %1262 = vmatprep.subr.mxu0 %v1213
        %1263 = vmatpush1.msra.mxu0 %v1212
        %1264 = vmatprep.subr.mxu0 %v1217
        %1265 = vmatpush1.msra.mxu0 %v1216
        %1266 = vmatprep.subr.mxu0 %v1221
        %1267 = vmatpush1.msra.mxu0 %v1220
        %1268 = vmatprep.subr.mxu0 %v1225
        %1269 = vmatpush1.msra.mxu0 %v1224
        %1270 = vmatprep.subr.mxu0 %v1229
        %1271 = vmatpush1.msra.mxu0 %v1228
        %1272 = vmatprep.subr.mxu0 0.0
        %1273 = vmatpush1.msra.mxu0 0.0
        %1274 = vmatprep.subr.mxu0 0.0
        %1275 = vmatpush1.msra.mxu0 0.0
        %1276 = vmatprep.subr.mxu0 0.0
        %1277 = vmatpush1.msra.mxu0 0.0
        %1278 = vmatprep.subr.mxu0 0.0
        %1279 = vmatpush1.msra.mxu0 0.0
        %1280 = vmatprep.subr.mxu0 0.0
        %1281 = vmatpush1.msra.mxu0 0.0
        %1282 = vmatprep.subr.mxu0 0.0
        %1283 = vmatpush1.msra.mxu0 0.0
        %1284 = vmatprep.subr.mxu0 0.0
        %1285 = vmatpush1.msra.mxu0 0.0
        %1286 = vmatprep.subr.mxu0 0.0
        %1287 = vmatpush1.msra.mxu0 0.0
        %1288 = vmatprep.subr.mxu0 0.0
        %1289 = vmatpush1.msra.mxu0 0.0
        %1290 = vmatprep.subr.mxu0 0.0
        %1291 = vmatpush1.msra.mxu0 0.0
        %1292 = vmatprep.subr.mxu0 0.0
        %1293 = vmatpush1.msra.mxu0 0.0
        %1294 = vmatprep.subr.mxu0 0.0
        %1295 = vmatpush1.msra.mxu0 0.0
        %1296 = vmatprep.subr.mxu0 0.0
        %1297 = vmatpush1.msra.mxu0 0.0
        %1298 = vmatprep.subr.mxu0 0.0
        %1299 = vmatpush1.msra.mxu0 0.0
        %1300 = vmatprep.subr.mxu0 0.0
        %1301 = vmatpush1.msra.mxu0 0.0
        %1302 = vmatprep.subr.mxu0 0.0
        %1303 = vmatpush1.msra.mxu0 0.0
        %1304 = vmatprep.subr.mxu0 0.0
        %1305 = vmatpush1.msra.mxu0 0.0
        %1306 = vmatprep.subr.mxu0 0.0
        %1307 = vmatpush1.msra.mxu0 0.0
        %1308 = vmatprep.subr.mxu0 0.0
        %1309 = vmatpush1.msra.mxu0 0.0
        %1310 = vmatprep.subr.mxu0 0.0
        %1311 = vmatpush1.msra.mxu0 0.0
        %1312 = vmatprep.mubr.f32.mxu0 0.0
        %1313 = vmatmul.mubr.f32.gmra.mrb[0].mxu0 %v1240
        %v1314 = vpop.f32.mrb[0].mxu0
        %v1315 = vadd.f32 0.0, %v1314
        %v1316 = vpop.f32.mrb[0].mxu0
        %v1317 = vadd.f32 0.0, %v1316
        %1318 = vmatprep.mubr.f32.mxu0 0.0
        %1319 = vmatmul.mubr.f32.gmra.mrb[0].mxu0 %v1242
        %v1320 = vpop.f32.mrb[0].mxu0
        %v1321 = vadd.f32 0.0, %v1320
        %v1322 = vpop.f32.mrb[0].mxu0
        %v1323 = vadd.f32 0.0, %v1322
        %1324 = vmatprep.mubr.f32.mxu0 0.0
        %1325 = vmatmul.mubr.f32.gmra.mrb[0].mxu0 %v1244
        %v1326 = vpop.f32.mrb[0].mxu0
        %v1327 = vadd.f32 0.0, %v1326
        %v1328 = vpop.f32.mrb[0].mxu0
        %v1329 = vadd.f32 0.0, %v1328
        %1330 = vmatprep.mubr.f32.mxu0 0.0
        %1331 = vmatmul.mubr.f32.gmra.mrb[0].mxu0 %v1246
        %v1332 = vpop.f32.mrb[0].mxu0
        %v1333 = vadd.f32 0.0, %v1332
        %v1334 = vpop.f32.mrb[0].mxu0
        %v1335 = vadd.f32 0.0, %v1334
        %1336 = vdwg.mxu0
        %1337 = vmatprep.subr.mxu0 %v1187
        %1338 = vmatpush1.msra.mxu0 %v1186
        %1339 = vmatprep.subr.mxu0 %v1191
        %1340 = vmatpush1.msra.mxu0 %v1190
        %1341 = vmatprep.subr.mxu0 %v1195
        %1342 = vmatpush1.msra.mxu0 %v1194
        %1343 = vmatprep.subr.mxu0 %v1199
        %1344 = vmatpush1.msra.mxu0 %v1198
        %1345 = vmatprep.subr.mxu0 %v1203
        %1346 = vmatpush1.msra.mxu0 %v1202
        %1347 = vmatprep.subr.mxu0 %v1207
        %1348 = vmatpush1.msra.mxu0 %v1206
        %1349 = vmatprep.subr.mxu0 %v1211
        %1350 = vmatpush1.msra.mxu0 %v1210
        %1351 = vmatprep.subr.mxu0 %v1215
        %1352 = vmatpush1.msra.mxu0 %v1214
        %1353 = vmatprep.subr.mxu0 %v1219
        %1354 = vmatpush1.msra.mxu0 %v1218
        %1355 = vmatprep.subr.mxu0 %v1223
        %1356 = vmatpush1.msra.mxu0 %v1222
        %1357 = vmatprep.subr.mxu0 %v1227
        %1358 = vmatpush1.msra.mxu0 %v1226
        %1359 = vmatprep.subr.mxu0 %v1231
        %1360 = vmatpush1.msra.mxu0 %v1230
        %1361 = vmatprep.subr.mxu0 0.0
        %1362 = vmatpush1.msra.mxu0 0.0
        %1363 = vmatprep.subr.mxu0 0.0
        %1364 = vmatpush1.msra.mxu0 0.0
        %1365 = vmatprep.subr.mxu0 0.0
        %1366 = vmatpush1.msra.mxu0 0.0
        %1367 = vmatprep.subr.mxu0 0.0
        %1368 = vmatpush1.msra.mxu0 0.0
        %1369 = vmatprep.subr.mxu0 0.0
        %1370 = vmatpush1.msra.mxu0 0.0
        %1371 = vmatprep.subr.mxu0 0.0
        %1372 = vmatpush1.msra.mxu0 0.0
        %1373 = vmatprep.subr.mxu0 0.0
        %1374 = vmatpush1.msra.mxu0 0.0
        %1375 = vmatprep.subr.mxu0 0.0
        %1376 = vmatpush1.msra.mxu0 0.0
        %1377 = vmatprep.subr.mxu0 0.0
        %1378 = vmatpush1.msra.mxu0 0.0
        %1379 = vmatprep.subr.mxu0 0.0
        %1380 = vmatpush1.msra.mxu0 0.0
        %1381 = vmatprep.subr.mxu0 0.0
        %1382 = vmatpush1.msra.mxu0 0.0
        %1383 = vmatprep.subr.mxu0 0.0
        %1384 = vmatpush1.msra.mxu0 0.0
        %1385 = vmatprep.subr.mxu0 0.0
        %1386 = vmatpush1.msra.mxu0 0.0
        %1387 = vmatprep.subr.mxu0 0.0
        %1388 = vmatpush1.msra.mxu0 0.0
        %1389 = vmatprep.subr.mxu0 0.0
        %1390 = vmatpush1.msra.mxu0 0.0
        %1391 = vmatprep.subr.mxu0 0.0
        %1392 = vmatpush1.msra.mxu0 0.0
        %1393 = vmatprep.subr.mxu0 0.0
        %1394 = vmatpush1.msra.mxu0 0.0
        %1395 = vmatprep.subr.mxu0 0.0
        %1396 = vmatpush1.msra.mxu0 0.0
        %1397 = vmatprep.subr.mxu0 0.0
        %1398 = vmatpush1.msra.mxu0 0.0
        %1399 = vmatprep.subr.mxu0 0.0
        %1400 = vmatpush1.msra.mxu0 0.0
        %1401 = vmatprep.mubr.f32.mxu0 0.0
        %1402 = vmatmul.mubr.f32.gmra.mrb[0].mxu0 %v1240
        %v1403 = vpop.f32.mrb[0].mxu0
        %v1404 = vadd.f32 0.0, %v1403
        %v1405 = vpop.f32.mrb[0].mxu0
        %v1406 = vadd.f32 0.0, %v1405
        %1407 = vmatprep.mubr.f32.mxu0 0.0
        %1408 = vmatmul.mubr.f32.gmra.mrb[0].mxu0 %v1242
        %v1409 = vpop.f32.mrb[0].mxu0
        %v1410 = vadd.f32 0.0, %v1409
        %v1411 = vpop.f32.mrb[0].mxu0
        %v1412 = vadd.f32 0.0, %v1411
        %1413 = vmatprep.mubr.f32.mxu0 0.0
        %1414 = vmatmul.mubr.f32.gmra.mrb[0].mxu0 %v1244
        %v1415 = vpop.f32.mrb[0].mxu0
        %v1416 = vadd.f32 0.0, %v1415
        %v1417 = vpop.f32.mrb[0].mxu0
        %v1418 = vadd.f32 0.0, %v1417
        %1419 = vmatprep.mubr.f32.mxu0 0.0
        %1420 = vmatmul.mubr.f32.gmra.mrb[0].mxu0 %v1246
        %v1421 = vpop.f32.mrb[0].mxu0
        %v1422 = vadd.f32 0.0, %v1421
        %v1423 = vpop.f32.mrb[0].mxu0
        %v1424 = vadd.f32 0.0, %v1423
        %1425 = vdwg.mxu0
        %v1426 = vadd.f32 %v1167, %v1315
        %v1427 = vadd.f32 %v1168, %v1317
        %v1428 = vadd.f32 %v1169, %v1404
        %v1429 = vadd.f32 %v1170, %v1406
        %v1430 = vadd.f32 %v1171, %v1321
        %v1431 = vadd.f32 %v1172, %v1323
        %v1432 = vadd.f32 %v1173, %v1410
        %v1433 = vadd.f32 %v1174, %v1412
        %v1434 = vadd.f32 %v1175, %v1327
        %v1435 = vadd.f32 %v1176, %v1329
        %v1436 = vadd.f32 %v1177, %v1416
        %v1437 = vadd.f32 %v1178, %v1418
        %v1438 = vadd.f32 %v1179, %v1333
        %v1439 = vadd.f32 %v1180, %v1335
        %v1440 = vadd.f32 %v1181, %v1422
        %v1441 = vadd.f32 %v1182, %v1424
        %s1442 = scalar_lea.vmem %s1, 1536
        %v1443 = vld [vmem:[%s1442] sm:$0xff]
        %v1444 = vld [vmem:[%s1442 + $0x8] sm:$0xff]
        %v1445 = vld [vmem:[%s1442 + $0x10] sm:$0xff]
        %v1446 = vld [vmem:[%s1442 + $0x18] sm:$0xff]
        %v1447 = vld [vmem:[%s1442 + $0x20] sm:$0xff]
        %v1448 = vld [vmem:[%s1442 + $0x28] sm:$0xff]
        %v1449 = vld [vmem:[%s1442 + $0x30] sm:$0xff]
        %v1450 = vld [vmem:[%s1442 + $0x38] sm:$0xff]
        %v1451 = vld [vmem:[%s1442 + $0x40] sm:$0xff]
        %v1452 = vld [vmem:[%s1442 + $0x48] sm:$0xff]
        %v1453 = vld [vmem:[%s1442 + $0x50] sm:$0xff]
        %v1454 = vld [vmem:[%s1442 + $0x58] sm:$0xff]
        %v1455 = vld [vmem:[%s1442 + $0x60] sm:$0xff]
        %v1456 = vld [vmem:[%s1442 + $0x68] sm:$0xff]
        %v1457 = vld [vmem:[%s1442 + $0x70] sm:$0xff]
        %v1458 = vld [vmem:[%s1442 + $0x78] sm:$0xff]
        %v1459 = vld [vmem:[%s1442 + $0x80] sm:$0xff]
        %v1460 = vld [vmem:[%s1442 + $0x88] sm:$0xff]
        %v1461 = vld [vmem:[%s1442 + $0x90] sm:$0xff]
        %v1462 = vld [vmem:[%s1442 + $0x98] sm:$0xff]
        %v1463 = vld [vmem:[%s1442 + $0xa0] sm:$0xff]
        %v1464 = vld [vmem:[%s1442 + $0xa8] sm:$0xff]
        %v1465 = vld [vmem:[%s1442 + $0xb0] sm:$0xff]
        %v1466 = vld [vmem:[%s1442 + $0xb8] sm:$0xff]
        %v1467 = vld [vmem:[%s1442 + $0xc0] sm:$0xff]
        %v1468 = vld [vmem:[%s1442 + $0xc8] sm:$0xff]
        %v1469 = vld [vmem:[%s1442 + $0xd0] sm:$0xff]
        %v1470 = vld [vmem:[%s1442 + $0xd8] sm:$0xff]
        %v1471 = vld [vmem:[%s1442 + $0xe0] sm:$0xff]
        %v1472 = vld [vmem:[%s1442 + $0xe8] sm:$0xff]
        %v1473 = vld [vmem:[%s1442 + $0xf0] sm:$0xff]
        %v1474 = vld [vmem:[%s1442 + $0xf8] sm:$0xff]
        %v1475 = vld [vmem:[%s1442 + $0x100] sm:$0xff]
        %v1476 = vld [vmem:[%s1442 + $0x108] sm:$0xff]
        %v1477 = vld [vmem:[%s1442 + $0x110] sm:$0xff]
        %v1478 = vld [vmem:[%s1442 + $0x118] sm:$0xff]
        %v1479 = vld [vmem:[%s1442 + $0x120] sm:$0xff]
        %v1480 = vld [vmem:[%s1442 + $0x128] sm:$0xff]
        %v1481 = vld [vmem:[%s1442 + $0x130] sm:$0xff]
        %v1482 = vld [vmem:[%s1442 + $0x138] sm:$0xff]
        %v1483 = vld [vmem:[%s1442 + $0x140] sm:$0xff]
        %v1484 = vld [vmem:[%s1442 + $0x148] sm:$0xff]
        %v1485 = vld [vmem:[%s1442 + $0x150] sm:$0xff]
        %v1486 = vld [vmem:[%s1442 + $0x158] sm:$0xff]
        %v1487 = vld [vmem:[%s1442 + $0x160] sm:$0xff]
        %v1488 = vld [vmem:[%s1442 + $0x168] sm:$0xff]
        %v1489 = vld [vmem:[%s1442 + $0x170] sm:$0xff]
        %v1490 = vld [vmem:[%s1442 + $0x178] sm:$0xff]
        %vm1491 = vcmask 1043456
        %v1492 = vrot.slane %v438, 4
        %v1493 = vrot.slane %v439, 4
        %v1494 = vsel %vm1491, %v1492, %v1493
        %v1495 = vrot.slane %v440, 4
        %v1496 = vsel %vm1491, %v1493, %v1495
        %v1497 = vrot.slane %v441, 4
        %v1498 = vsel %vm1491, %v1495, %v1497
        %v1499 = vsel %vm551, %v1494, 0
        %v1501 = vsel %vm551, %v1496, 0
        %v1503 = vsel %vm551, %v1498, 0
        %v1505 = vsel %vm551, %v1497, 0
        %1507 = vmatprep.subr.mxu0 %v1444
        %1508 = vmatpush1.msra.mxu0 %v1443
        %1509 = vmatprep.subr.mxu0 %v1448
        %1510 = vmatpush1.msra.mxu0 %v1447
        %1511 = vmatprep.subr.mxu0 %v1452
        %1512 = vmatpush1.msra.mxu0 %v1451
        %1513 = vmatprep.subr.mxu0 %v1456
        %1514 = vmatpush1.msra.mxu0 %v1455
        %1515 = vmatprep.subr.mxu0 %v1460
        %1516 = vmatpush1.msra.mxu0 %v1459
        %1517 = vmatprep.subr.mxu0 %v1464
        %1518 = vmatpush1.msra.mxu0 %v1463
        %1519 = vmatprep.subr.mxu0 %v1468
        %1520 = vmatpush1.msra.mxu0 %v1467
        %1521 = vmatprep.subr.mxu0 %v1472
        %1522 = vmatpush1.msra.mxu0 %v1471
        %1523 = vmatprep.subr.mxu0 %v1476
        %1524 = vmatpush1.msra.mxu0 %v1475
        %1525 = vmatprep.subr.mxu0 %v1480
        %1526 = vmatpush1.msra.mxu0 %v1479
        %1527 = vmatprep.subr.mxu0 %v1484
        %1528 = vmatpush1.msra.mxu0 %v1483
        %1529 = vmatprep.subr.mxu0 %v1488
        %1530 = vmatpush1.msra.mxu0 %v1487
        %1531 = vmatprep.subr.mxu0 0.0
        %1532 = vmatpush1.msra.mxu0 0.0
        %1533 = vmatprep.subr.mxu0 0.0
        %1534 = vmatpush1.msra.mxu0 0.0
        %1535 = vmatprep.subr.mxu0 0.0
        %1536 = vmatpush1.msra.mxu0 0.0
        %1537 = vmatprep.subr.mxu0 0.0
        %1538 = vmatpush1.msra.mxu0 0.0
        %1539 = vmatprep.subr.mxu0 0.0
        %1540 = vmatpush1.msra.mxu0 0.0
        %1541 = vmatprep.subr.mxu0 0.0
        %1542 = vmatpush1.msra.mxu0 0.0
        %1543 = vmatprep.subr.mxu0 0.0
        %1544 = vmatpush1.msra.mxu0 0.0
        %1545 = vmatprep.subr.mxu0 0.0
        %1546 = vmatpush1.msra.mxu0 0.0
        %1547 = vmatprep.subr.mxu0 0.0
        %1548 = vmatpush1.msra.mxu0 0.0
        %1549 = vmatprep.subr.mxu0 0.0
        %1550 = vmatpush1.msra.mxu0 0.0
        %1551 = vmatprep.subr.mxu0 0.0
        %1552 = vmatpush1.msra.mxu0 0.0
        %1553 = vmatprep.subr.mxu0 0.0
        %1554 = vmatpush1.msra.mxu0 0.0
        %1555 = vmatprep.subr.mxu0 0.0
        %1556 = vmatpush1.msra.mxu0 0.0
        %1557 = vmatprep.subr.mxu0 0.0
        %1558 = vmatpush1.msra.mxu0 0.0
        %1559 = vmatprep.subr.mxu0 0.0
        %1560 = vmatpush1.msra.mxu0 0.0
        %1561 = vmatprep.subr.mxu0 0.0
        %1562 = vmatpush1.msra.mxu0 0.0
        %1563 = vmatprep.subr.mxu0 0.0
        %1564 = vmatpush1.msra.mxu0 0.0
        %1565 = vmatprep.subr.mxu0 0.0
        %1566 = vmatpush1.msra.mxu0 0.0
        %1567 = vmatprep.subr.mxu0 0.0
        %1568 = vmatpush1.msra.mxu0 0.0
        %1569 = vmatprep.subr.mxu0 0.0
        %1570 = vmatpush1.msra.mxu0 0.0
        %1571 = vmatprep.mubr.f32.mxu0 0.0
        %1572 = vmatmul.mubr.f32.gmra.mrb[0].mxu0 %v1499
        %v1573 = vpop.f32.mrb[0].mxu0
        %v1574 = vadd.f32 0.0, %v1573
        %v1575 = vpop.f32.mrb[0].mxu0
        %v1576 = vadd.f32 0.0, %v1575
        %1577 = vmatprep.mubr.f32.mxu0 0.0
        %1578 = vmatmul.mubr.f32.gmra.mrb[0].mxu0 %v1501
        %v1579 = vpop.f32.mrb[0].mxu0
        %v1580 = vadd.f32 0.0, %v1579
        %v1581 = vpop.f32.mrb[0].mxu0
        %v1582 = vadd.f32 0.0, %v1581
        %1583 = vmatprep.mubr.f32.mxu0 0.0
        %1584 = vmatmul.mubr.f32.gmra.mrb[0].mxu0 %v1503
        %v1585 = vpop.f32.mrb[0].mxu0
        %v1586 = vadd.f32 0.0, %v1585
        %v1587 = vpop.f32.mrb[0].mxu0
        %v1588 = vadd.f32 0.0, %v1587
        %1589 = vmatprep.mubr.f32.mxu0 0.0
        %1590 = vmatmul.mubr.f32.gmra.mrb[0].mxu0 %v1505
        %v1591 = vpop.f32.mrb[0].mxu0
        %v1592 = vadd.f32 0.0, %v1591
        %v1593 = vpop.f32.mrb[0].mxu0
        %v1594 = vadd.f32 0.0, %v1593
        %1595 = vdwg.mxu0
        %1596 = vmatprep.subr.mxu0 %v1446
        %1597 = vmatpush1.msra.mxu0 %v1445
        %1598 = vmatprep.subr.mxu0 %v1450
        %1599 = vmatpush1.msra.mxu0 %v1449
        %1600 = vmatprep.subr.mxu0 %v1454
        %1601 = vmatpush1.msra.mxu0 %v1453
        %1602 = vmatprep.subr.mxu0 %v1458
        %1603 = vmatpush1.msra.mxu0 %v1457
        %1604 = vmatprep.subr.mxu0 %v1462
        %1605 = vmatpush1.msra.mxu0 %v1461
        %1606 = vmatprep.subr.mxu0 %v1466
        %1607 = vmatpush1.msra.mxu0 %v1465
        %1608 = vmatprep.subr.mxu0 %v1470
        %1609 = vmatpush1.msra.mxu0 %v1469
        %1610 = vmatprep.subr.mxu0 %v1474
        %1611 = vmatpush1.msra.mxu0 %v1473
        %1612 = vmatprep.subr.mxu0 %v1478
        %1613 = vmatpush1.msra.mxu0 %v1477
        %1614 = vmatprep.subr.mxu0 %v1482
        %1615 = vmatpush1.msra.mxu0 %v1481
        %1616 = vmatprep.subr.mxu0 %v1486
        %1617 = vmatpush1.msra.mxu0 %v1485
        %1618 = vmatprep.subr.mxu0 %v1490
        %1619 = vmatpush1.msra.mxu0 %v1489
        %1620 = vmatprep.subr.mxu0 0.0
        %1621 = vmatpush1.msra.mxu0 0.0
        %1622 = vmatprep.subr.mxu0 0.0
        %1623 = vmatpush1.msra.mxu0 0.0
        %1624 = vmatprep.subr.mxu0 0.0
        %1625 = vmatpush1.msra.mxu0 0.0
        %1626 = vmatprep.subr.mxu0 0.0
        %1627 = vmatpush1.msra.mxu0 0.0
        %1628 = vmatprep.subr.mxu0 0.0
        %1629 = vmatpush1.msra.mxu0 0.0
        %1630 = vmatprep.subr.mxu0 0.0
        %1631 = vmatpush1.msra.mxu0 0.0
        %1632 = vmatprep.subr.mxu0 0.0
        %1633 = vmatpush1.msra.mxu0 0.0
        %1634 = vmatprep.subr.mxu0 0.0
        %1635 = vmatpush1.msra.mxu0 0.0
        %1636 = vmatprep.subr.mxu0 0.0
        %1637 = vmatpush1.msra.mxu0 0.0
        %1638 = vmatprep.subr.mxu0 0.0
        %1639 = vmatpush1.msra.mxu0 0.0
        %1640 = vmatprep.subr.mxu0 0.0
        %1641 = vmatpush1.msra.mxu0 0.0
        %1642 = vmatprep.subr.mxu0 0.0
        %1643 = vmatpush1.msra.mxu0 0.0
        %1644 = vmatprep.subr.mxu0 0.0
        %1645 = vmatpush1.msra.mxu0 0.0
        %1646 = vmatprep.subr.mxu0 0.0
        %1647 = vmatpush1.msra.mxu0 0.0
        %1648 = vmatprep.subr.mxu0 0.0
        %1649 = vmatpush1.msra.mxu0 0.0
        %1650 = vmatprep.subr.mxu0 0.0
        %1651 = vmatpush1.msra.mxu0 0.0
        %1652 = vmatprep.subr.mxu0 0.0
        %1653 = vmatpush1.msra.mxu0 0.0
        %1654 = vmatprep.subr.mxu0 0.0
        %1655 = vmatpush1.msra.mxu0 0.0
        %1656 = vmatprep.subr.mxu0 0.0
        %1657 = vmatpush1.msra.mxu0 0.0
        %1658 = vmatprep.subr.mxu0 0.0
        %1659 = vmatpush1.msra.mxu0 0.0
        %1660 = vmatprep.mubr.f32.mxu0 0.0
        %1661 = vmatmul.mubr.f32.gmra.mrb[0].mxu0 %v1499
        %v1662 = vpop.f32.mrb[0].mxu0
        %v1663 = vadd.f32 0.0, %v1662
        %v1664 = vpop.f32.mrb[0].mxu0
        %v1665 = vadd.f32 0.0, %v1664
        %1666 = vmatprep.mubr.f32.mxu0 0.0
        %1667 = vmatmul.mubr.f32.gmra.mrb[0].mxu0 %v1501
        %v1668 = vpop.f32.mrb[0].mxu0
        %v1669 = vadd.f32 0.0, %v1668
        %v1670 = vpop.f32.mrb[0].mxu0
        %v1671 = vadd.f32 0.0, %v1670
        %1672 = vmatprep.mubr.f32.mxu0 0.0
        %1673 = vmatmul.mubr.f32.gmra.mrb[0].mxu0 %v1503
        %v1674 = vpop.f32.mrb[0].mxu0
        %v1675 = vadd.f32 0.0, %v1674
        %v1676 = vpop.f32.mrb[0].mxu0
        %v1677 = vadd.f32 0.0, %v1676
        %1678 = vmatprep.mubr.f32.mxu0 0.0
        %1679 = vmatmul.mubr.f32.gmra.mrb[0].mxu0 %v1505
        %v1680 = vpop.f32.mrb[0].mxu0
        %v1681 = vadd.f32 0.0, %v1680
        %v1682 = vpop.f32.mrb[0].mxu0
        %v1683 = vadd.f32 0.0, %v1682
        %1684 = vdwg.mxu0
        %v1685 = vadd.f32 %v1426, %v1574
        %v1686 = vadd.f32 %v1427, %v1576
        %v1687 = vadd.f32 %v1428, %v1663
        %v1688 = vadd.f32 %v1429, %v1665
        %v1689 = vadd.f32 %v1430, %v1580
        %v1690 = vadd.f32 %v1431, %v1582
        %v1691 = vadd.f32 %v1432, %v1669
        %v1692 = vadd.f32 %v1433, %v1671
        %v1693 = vadd.f32 %v1434, %v1586
        %v1694 = vadd.f32 %v1435, %v1588
        %v1695 = vadd.f32 %v1436, %v1675
        %v1696 = vadd.f32 %v1437, %v1677
        %v1697 = vadd.f32 %v1438, %v1592
        %v1698 = vadd.f32 %v1439, %v1594
        %v1699 = vadd.f32 %v1440, %v1681
        %v1700 = vadd.f32 %v1441, %v1683
        %v1701 = vld [vmem:[%s2] sm:$0xf]
        %v1703 = vlaneseq
        %v1704 = vshrl.u32 %v1703, 7
        %v1705 = vsub.s32 0, %v1704
        %v1706 = vrot.slane %v1701, %v1705
        %v1707 = vlaneseq
        %v1708 = vshrl.u32 %v1707, 7
        %v1709 = vsub.s32 1, %v1708
        %v1710 = vrot.slane %v1701, %v1709
        %v1711 = vlaneseq
        %v1712 = vshrl.u32 %v1711, 7
        %v1713 = vsub.s32 2, %v1712
        %v1714 = vrot.slane %v1701, %v1713
        %v1715 = vlaneseq
        %v1716 = vshrl.u32 %v1715, 7
        %v1717 = vsub.s32 3, %v1716
        %v1718 = vrot.slane %v1701, %v1717
        %v1723 = vadd.f32 %v1685, %v1706
        %v1724 = vadd.f32 %v1686, %v1710
        %v1725 = vadd.f32 %v1687, %v1714
        %v1726 = vadd.f32 %v1688, %v1718
        %v1727 = vadd.f32 %v1689, %v1706
        %v1728 = vadd.f32 %v1690, %v1710
        %v1729 = vadd.f32 %v1691, %v1714
        %v1730 = vadd.f32 %v1692, %v1718
        %v1731 = vadd.f32 %v1693, %v1706
        %v1732 = vadd.f32 %v1694, %v1710
        %v1733 = vadd.f32 %v1695, %v1714
        %v1734 = vadd.f32 %v1696, %v1718
        %v1735 = vadd.f32 %v1697, %v1706
        %v1736 = vadd.f32 %v1698, %v1710
        %v1737 = vadd.f32 %v1699, %v1714
        %v1738 = vadd.f32 %v1700, %v1718
        %v1739 = vmax.f32 %v1723, 0.0
        %v1740 = vmax.f32 %v1724, 0.0
        %v1741 = vmax.f32 %v1725, 0.0
        %v1742 = vmax.f32 %v1726, 0.0
        %v1743 = vmax.f32 %v1727, 0.0
        %v1744 = vmax.f32 %v1728, 0.0
        %v1745 = vmax.f32 %v1729, 0.0
        %v1746 = vmax.f32 %v1730, 0.0
        %v1747 = vmax.f32 %v1731, 0.0
        %v1748 = vmax.f32 %v1732, 0.0
        %v1749 = vmax.f32 %v1733, 0.0
        %v1750 = vmax.f32 %v1734, 0.0
        %v1751 = vmax.f32 %v1735, 0.0
        %v1752 = vmax.f32 %v1736, 0.0
        %v1753 = vmax.f32 %v1737, 0.0
        %v1754 = vmax.f32 %v1738, 0.0
        %v1755 = vld [vmem:[%s3] sm:$0xff]
        %v1756 = vld [vmem:[%s3 + $0x8] sm:$0x3f]
        %vm1757 = vcmask 228352
        %v1759 = vsel %vm1757, %v1755, 0
        %v1762 = vsel %vm1757, %v1756, 0
        %v1765 = vsel %vm1491, %v1751, 0
        %v1768 = vsel %vm1491, %v1752, 0
        %v1771 = vsel %vm1491, %v1753, 0
        %v1774 = vsel %vm1491, %v1754, 0
        %1776 = vmatprep.subr.mxu0 %v1740
        %1777 = vmatpush1.msra.mxu0 %v1739
        %1778 = vmatprep.subr.mxu0 %v1744
        %1779 = vmatpush1.msra.mxu0 %v1743
        %1780 = vmatprep.subr.mxu0 %v1748
        %1781 = vmatpush1.msra.mxu0 %v1747
        %1782 = vmatprep.subr.mxu0 %v1768
        %1783 = vmatpush1.msra.mxu0 %v1765
        %1784 = vmatprep.subr.mxu0 0.0
        %1785 = vmatpush1.msra.mxu0 0.0
        %1786 = vmatprep.subr.mxu0 0.0
        %1787 = vmatpush1.msra.mxu0 0.0
        %1788 = vmatprep.subr.mxu0 0.0
        %1789 = vmatpush1.msra.mxu0 0.0
        %1790 = vmatprep.subr.mxu0 0.0
        %1791 = vmatpush1.msra.mxu0 0.0
        %1792 = vmatprep.subr.mxu0 0.0
        %1793 = vmatpush1.msra.mxu0 0.0
        %1794 = vmatprep.subr.mxu0 0.0
        %1795 = vmatpush1.msra.mxu0 0.0
        %1796 = vmatprep.subr.mxu0 0.0
        %1797 = vmatpush1.msra.mxu0 0.0
        %1798 = vmatprep.subr.mxu0 0.0
        %1799 = vmatpush1.msra.mxu0 0.0
        %1800 = vmatprep.subr.mxu0 0.0
        %1801 = vmatpush1.msra.mxu0 0.0
        %1802 = vmatprep.subr.mxu0 0.0
        %1803 = vmatpush1.msra.mxu0 0.0
        %1804 = vmatprep.subr.mxu0 0.0
        %1805 = vmatpush1.msra.mxu0 0.0
        %1806 = vmatprep.subr.mxu0 0.0
        %1807 = vmatpush1.msra.mxu0 0.0
        %1808 = vmatprep.subr.mxu0 0.0
        %1809 = vmatpush1.msra.mxu0 0.0
        %1810 = vmatprep.subr.mxu0 0.0
        %1811 = vmatpush1.msra.mxu0 0.0
        %1812 = vmatprep.subr.mxu0 0.0
        %1813 = vmatpush1.msra.mxu0 0.0
        %1814 = vmatprep.subr.mxu0 0.0
        %1815 = vmatpush1.msra.mxu0 0.0
        %1816 = vmatprep.subr.mxu0 0.0
        %1817 = vmatpush1.msra.mxu0 0.0
        %1818 = vmatprep.subr.mxu0 0.0
        %1819 = vmatpush1.msra.mxu0 0.0
        %1820 = vmatprep.subr.mxu0 0.0
        %1821 = vmatpush1.msra.mxu0 0.0
        %1822 = vmatprep.subr.mxu0 0.0
        %1823 = vmatpush1.msra.mxu0 0.0
        %1824 = vmatprep.subr.mxu0 0.0
        %1825 = vmatpush1.msra.mxu0 0.0
        %1826 = vmatprep.subr.mxu0 0.0
        %1827 = vmatpush1.msra.mxu0 0.0
        %1828 = vmatprep.subr.mxu0 0.0
        %1829 = vmatpush1.msra.mxu0 0.0
        %1830 = vmatprep.subr.mxu0 0.0
        %1831 = vmatpush1.msra.mxu0 0.0
        %1832 = vmatprep.subr.mxu0 0.0
        %1833 = vmatpush1.msra.mxu0 0.0
        %1834 = vmatprep.subr.mxu0 0.0
        %1835 = vmatpush1.msra.mxu0 0.0
        %1836 = vmatprep.subr.mxu0 0.0
        %1837 = vmatpush1.msra.mxu0 0.0
        %1838 = vmatprep.subr.mxu0 0.0
        %1839 = vmatpush1.msra.mxu0 0.0
        %1840 = vmatprep.mubr.f32.mxu0 0.0
        %1841 = vmatmul.mubr.f32.gmra.mrb[0].mxu0 %v1759
        %v1842 = vpop.f32.mrb[0].mxu0
        %v1843 = vadd.f32 0.0, %v1842
        %v1844 = vpop.f32.mrb[0].mxu0
        %v1845 = vadd.f32 0.0, %v1844
        %1846 = vmatprep.mubr.f32.mxu0 0.0
        %1847 = vmatmul.mubr.f32.gmra.mrb[0].mxu0 %v1762
        %v1848 = vpop.f32.mrb[0].mxu0
        %v1849 = vadd.f32 0.0, %v1848
        %v1850 = vpop.f32.mrb[0].mxu0
        %v1851 = vadd.f32 0.0, %v1850
        %1852 = vdwg.mxu0
        %1853 = vmatprep.subr.mxu0 %v1742
        %1854 = vmatpush1.msra.mxu0 %v1741
        %1855 = vmatprep.subr.mxu0 %v1746
        %1856 = vmatpush1.msra.mxu0 %v1745
        %1857 = vmatprep.subr.mxu0 %v1750
        %1858 = vmatpush1.msra.mxu0 %v1749
        %1859 = vmatprep.subr.mxu0 %v1774
        %1860 = vmatpush1.msra.mxu0 %v1771
        %1861 = vmatprep.subr.mxu0 0.0
        %1862 = vmatpush1.msra.mxu0 0.0
        %1863 = vmatprep.subr.mxu0 0.0
        %1864 = vmatpush1.msra.mxu0 0.0
        %1865 = vmatprep.subr.mxu0 0.0
        %1866 = vmatpush1.msra.mxu0 0.0
        %1867 = vmatprep.subr.mxu0 0.0
        %1868 = vmatpush1.msra.mxu0 0.0
        %1869 = vmatprep.subr.mxu0 0.0
        %1870 = vmatpush1.msra.mxu0 0.0
        %1871 = vmatprep.subr.mxu0 0.0
        %1872 = vmatpush1.msra.mxu0 0.0
        %1873 = vmatprep.subr.mxu0 0.0
        %1874 = vmatpush1.msra.mxu0 0.0
        %1875 = vmatprep.subr.mxu0 0.0
        %1876 = vmatpush1.msra.mxu0 0.0
        %1877 = vmatprep.subr.mxu0 0.0
        %1878 = vmatpush1.msra.mxu0 0.0
        %1879 = vmatprep.subr.mxu0 0.0
        %1880 = vmatpush1.msra.mxu0 0.0
        %1881 = vmatprep.subr.mxu0 0.0
        %1882 = vmatpush1.msra.mxu0 0.0
        %1883 = vmatprep.subr.mxu0 0.0
        %1884 = vmatpush1.msra.mxu0 0.0
        %1885 = vmatprep.subr.mxu0 0.0
        %1886 = vmatpush1.msra.mxu0 0.0
        %1887 = vmatprep.subr.mxu0 0.0
        %1888 = vmatpush1.msra.mxu0 0.0
        %1889 = vmatprep.subr.mxu0 0.0
        %1890 = vmatpush1.msra.mxu0 0.0
        %1891 = vmatprep.subr.mxu0 0.0
        %1892 = vmatpush1.msra.mxu0 0.0
        %1893 = vmatprep.subr.mxu0 0.0
        %1894 = vmatpush1.msra.mxu0 0.0
        %1895 = vmatprep.subr.mxu0 0.0
        %1896 = vmatpush1.msra.mxu0 0.0
        %1897 = vmatprep.subr.mxu0 0.0
        %1898 = vmatpush1.msra.mxu0 0.0
        %1899 = vmatprep.subr.mxu0 0.0
        %1900 = vmatpush1.msra.mxu0 0.0
        %1901 = vmatprep.subr.mxu0 0.0
        %1902 = vmatpush1.msra.mxu0 0.0
        %1903 = vmatprep.subr.mxu0 0.0
        %1904 = vmatpush1.msra.mxu0 0.0
        %1905 = vmatprep.subr.mxu0 0.0
        %1906 = vmatpush1.msra.mxu0 0.0
        %1907 = vmatprep.subr.mxu0 0.0
        %1908 = vmatpush1.msra.mxu0 0.0
        %1909 = vmatprep.subr.mxu0 0.0
        %1910 = vmatpush1.msra.mxu0 0.0
        %1911 = vmatprep.subr.mxu0 0.0
        %1912 = vmatpush1.msra.mxu0 0.0
        %1913 = vmatprep.subr.mxu0 0.0
        %1914 = vmatpush1.msra.mxu0 0.0
        %1915 = vmatprep.subr.mxu0 0.0
        %1916 = vmatpush1.msra.mxu0 0.0
        %1917 = vmatprep.mubr.f32.mxu0 0.0
        %1918 = vmatmul.mubr.f32.gmra.mrb[0].mxu0 %v1759
        %v1919 = vpop.f32.mrb[0].mxu0
        %v1920 = vadd.f32 0.0, %v1919
        %v1921 = vpop.f32.mrb[0].mxu0
        %v1922 = vadd.f32 0.0, %v1921
        %1923 = vmatprep.mubr.f32.mxu0 0.0
        %1924 = vmatmul.mubr.f32.gmra.mrb[0].mxu0 %v1762
        %v1925 = vpop.f32.mrb[0].mxu0
        %v1926 = vadd.f32 0.0, %v1925
        %v1927 = vpop.f32.mrb[0].mxu0
        %v1928 = vadd.f32 0.0, %v1927
        %1929 = vdwg.mxu0
        %s1930 = scalar_lea.vmem %s3, 16
        %v1931 = vld [vmem:[%s1930] sm:$0xff]
        %v1932 = vld [vmem:[%s1930 + $0x8] sm:$0x3f]
        %v1934 = vsel %vm1757, %v1931, 0
        %v1937 = vsel %vm1757, %v1932, 0
        %1939 = vmatprep.subr.mxu0 %v1740
        %1940 = vmatpush1.msra.mxu0 %v1739
        %1941 = vmatprep.subr.mxu0 %v1744
        %1942 = vmatpush1.msra.mxu0 %v1743
        %1943 = vmatprep.subr.mxu0 %v1748
        %1944 = vmatpush1.msra.mxu0 %v1747
        %1945 = vmatprep.subr.mxu0 %v1768
        %1946 = vmatpush1.msra.mxu0 %v1765
        %1947 = vmatprep.subr.mxu0 0.0
        %1948 = vmatpush1.msra.mxu0 0.0
        %1949 = vmatprep.subr.mxu0 0.0
        %1950 = vmatpush1.msra.mxu0 0.0
        %1951 = vmatprep.subr.mxu0 0.0
        %1952 = vmatpush1.msra.mxu0 0.0
        %1953 = vmatprep.subr.mxu0 0.0
        %1954 = vmatpush1.msra.mxu0 0.0
        %1955 = vmatprep.subr.mxu0 0.0
        %1956 = vmatpush1.msra.mxu0 0.0
        %1957 = vmatprep.subr.mxu0 0.0
        %1958 = vmatpush1.msra.mxu0 0.0
        %1959 = vmatprep.subr.mxu0 0.0
        %1960 = vmatpush1.msra.mxu0 0.0
        %1961 = vmatprep.subr.mxu0 0.0
        %1962 = vmatpush1.msra.mxu0 0.0
        %1963 = vmatprep.subr.mxu0 0.0
        %1964 = vmatpush1.msra.mxu0 0.0
        %1965 = vmatprep.subr.mxu0 0.0
        %1966 = vmatpush1.msra.mxu0 0.0
        %1967 = vmatprep.subr.mxu0 0.0
        %1968 = vmatpush1.msra.mxu0 0.0
        %1969 = vmatprep.subr.mxu0 0.0
        %1970 = vmatpush1.msra.mxu0 0.0
        %1971 = vmatprep.subr.mxu0 0.0
        %1972 = vmatpush1.msra.mxu0 0.0
        %1973 = vmatprep.subr.mxu0 0.0
        %1974 = vmatpush1.msra.mxu0 0.0
        %1975 = vmatprep.subr.mxu0 0.0
        %1976 = vmatpush1.msra.mxu0 0.0
        %1977 = vmatprep.subr.mxu0 0.0
        %1978 = vmatpush1.msra.mxu0 0.0
        %1979 = vmatprep.subr.mxu0 0.0
        %1980 = vmatpush1.msra.mxu0 0.0
        %1981 = vmatprep.subr.mxu0 0.0
        %1982 = vmatpush1.msra.mxu0 0.0
        %1983 = vmatprep.subr.mxu0 0.0
        %1984 = vmatpush1.msra.mxu0 0.0
        %1985 = vmatprep.subr.mxu0 0.0
        %1986 = vmatpush1.msra.mxu0 0.0
        %1987 = vmatprep.subr.mxu0 0.0
        %1988 = vmatpush1.msra.mxu0 0.0
        %1989 = vmatprep.subr.mxu0 0.0
        %1990 = vmatpush1.msra.mxu0 0.0
        %1991 = vmatprep.subr.mxu0 0.0
        %1992 = vmatpush1.msra.mxu0 0.0
        %1993 = vmatprep.subr.mxu0 0.0
        %1994 = vmatpush1.msra.mxu0 0.0
        %1995 = vmatprep.subr.mxu0 0.0
        %1996 = vmatpush1.msra.mxu0 0.0
        %1997 = vmatprep.subr.mxu0 0.0
        %1998 = vmatpush1.msra.mxu0 0.0
        %1999 = vmatprep.subr.mxu0 0.0
        %2000 = vmatpush1.msra.mxu0 0.0
        %2001 = vmatprep.subr.mxu0 0.0
        %2002 = vmatpush1.msra.mxu0 0.0
        %2003 = vmatprep.mubr.f32.mxu0 0.0
        %2004 = vmatmul.mubr.f32.gmra.mrb[0].mxu0 %v1934
        %v2005 = vpop.f32.mrb[0].mxu0
        %v2006 = vadd.f32 0.0, %v2005
        %v2007 = vpop.f32.mrb[0].mxu0
        %v2008 = vadd.f32 0.0, %v2007
        %2009 = vmatprep.mubr.f32.mxu0 0.0
        %2010 = vmatmul.mubr.f32.gmra.mrb[0].mxu0 %v1937
        %v2011 = vpop.f32.mrb[0].mxu0
        %v2012 = vadd.f32 0.0, %v2011
        %v2013 = vpop.f32.mrb[0].mxu0
        %v2014 = vadd.f32 0.0, %v2013
        %2015 = vdwg.mxu0
        %2016 = vmatprep.subr.mxu0 %v1742
        %2017 = vmatpush1.msra.mxu0 %v1741
        %2018 = vmatprep.subr.mxu0 %v1746
        %2019 = vmatpush1.msra.mxu0 %v1745
        %2020 = vmatprep.subr.mxu0 %v1750
        %2021 = vmatpush1.msra.mxu0 %v1749
        %2022 = vmatprep.subr.mxu0 %v1774
        %2023 = vmatpush1.msra.mxu0 %v1771
        %2024 = vmatprep.subr.mxu0 0.0
        %2025 = vmatpush1.msra.mxu0 0.0
        %2026 = vmatprep.subr.mxu0 0.0
        %2027 = vmatpush1.msra.mxu0 0.0
        %2028 = vmatprep.subr.mxu0 0.0
        %2029 = vmatpush1.msra.mxu0 0.0
        %2030 = vmatprep.subr.mxu0 0.0
        %2031 = vmatpush1.msra.mxu0 0.0
        %2032 = vmatprep.subr.mxu0 0.0
        %2033 = vmatpush1.msra.mxu0 0.0
        %2034 = vmatprep.subr.mxu0 0.0
        %2035 = vmatpush1.msra.mxu0 0.0
        %2036 = vmatprep.subr.mxu0 0.0
        %2037 = vmatpush1.msra.mxu0 0.0
        %2038 = vmatprep.subr.mxu0 0.0
        %2039 = vmatpush1.msra.mxu0 0.0
        %2040 = vmatprep.subr.mxu0 0.0
        %2041 = vmatpush1.msra.mxu0 0.0
        %2042 = vmatprep.subr.mxu0 0.0
        %2043 = vmatpush1.msra.mxu0 0.0
        %2044 = vmatprep.subr.mxu0 0.0
        %2045 = vmatpush1.msra.mxu0 0.0
        %2046 = vmatprep.subr.mxu0 0.0
        %2047 = vmatpush1.msra.mxu0 0.0
        %2048 = vmatprep.subr.mxu0 0.0
        %2049 = vmatpush1.msra.mxu0 0.0
        %2050 = vmatprep.subr.mxu0 0.0
        %2051 = vmatpush1.msra.mxu0 0.0
        %2052 = vmatprep.subr.mxu0 0.0
        %2053 = vmatpush1.msra.mxu0 0.0
        %2054 = vmatprep.subr.mxu0 0.0
        %2055 = vmatpush1.msra.mxu0 0.0
        %2056 = vmatprep.subr.mxu0 0.0
        %2057 = vmatpush1.msra.mxu0 0.0
        %2058 = vmatprep.subr.mxu0 0.0
        %2059 = vmatpush1.msra.mxu0 0.0
        %2060 = vmatprep.subr.mxu0 0.0
        %2061 = vmatpush1.msra.mxu0 0.0
        %2062 = vmatprep.subr.mxu0 0.0
        %2063 = vmatpush1.msra.mxu0 0.0
        %2064 = vmatprep.subr.mxu0 0.0
        %2065 = vmatpush1.msra.mxu0 0.0
        %2066 = vmatprep.subr.mxu0 0.0
        %2067 = vmatpush1.msra.mxu0 0.0
        %2068 = vmatprep.subr.mxu0 0.0
        %2069 = vmatpush1.msra.mxu0 0.0
        %2070 = vmatprep.subr.mxu0 0.0
        %2071 = vmatpush1.msra.mxu0 0.0
        %2072 = vmatprep.subr.mxu0 0.0
        %2073 = vmatpush1.msra.mxu0 0.0
        %2074 = vmatprep.subr.mxu0 0.0
        %2075 = vmatpush1.msra.mxu0 0.0
        %2076 = vmatprep.subr.mxu0 0.0
        %2077 = vmatpush1.msra.mxu0 0.0
        %2078 = vmatprep.subr.mxu0 0.0
        %2079 = vmatpush1.msra.mxu0 0.0
        %2080 = vmatprep.mubr.f32.mxu0 0.0
        %2081 = vmatmul.mubr.f32.gmra.mrb[0].mxu0 %v1934
        %v2082 = vpop.f32.mrb[0].mxu0
        %v2083 = vadd.f32 0.0, %v2082
        %v2084 = vpop.f32.mrb[0].mxu0
        %v2085 = vadd.f32 0.0, %v2084
        %2086 = vmatprep.mubr.f32.mxu0 0.0
        %2087 = vmatmul.mubr.f32.gmra.mrb[0].mxu0 %v1937
        %v2088 = vpop.f32.mrb[0].mxu0
        %v2089 = vadd.f32 0.0, %v2088
        %v2090 = vpop.f32.mrb[0].mxu0
        %v2091 = vadd.f32 0.0, %v2090
        %2092 = vdwg.mxu0
        %v2093 = vmax.f32 %v1843, %v2006
        %v2094 = vmax.f32 %v1845, %v2008
        %v2095 = vmax.f32 %v1920, %v2083
        %v2096 = vmax.f32 %v1922, %v2085
        %v2097 = vmax.f32 %v1849, %v2012
        %v2098 = vmax.f32 %v1851, %v2014
        %v2099 = vmax.f32 %v1926, %v2089
        %v2100 = vmax.f32 %v1928, %v2091
        %v2101 = vld [vmem:[%s4] sm:$0xff]
        %v2102 = vld [vmem:[%s4 + $0x8] sm:$0xff]
        %v2103 = vld [vmem:[%s4 + $0x10] sm:$0xff]
        %v2104 = vld [vmem:[%s4 + $0x18] sm:$0xff]
        %v2105 = vld [vmem:[%s4 + $0x20] sm:$0xff]
        %v2106 = vld [vmem:[%s4 + $0x28] sm:$0xff]
        %v2107 = vld [vmem:[%s4 + $0x30] sm:$0xff]
        %v2108 = vld [vmem:[%s4 + $0x38] sm:$0xff]
        %v2109 = vld [vmem:[%s4 + $0x40] sm:$0xff]
        %v2110 = vld [vmem:[%s4 + $0x48] sm:$0xff]
        %v2111 = vld [vmem:[%s4 + $0x50] sm:$0xff]
        %v2112 = vld [vmem:[%s4 + $0x58] sm:$0xff]
        %v2113 = vld [vmem:[%s4 + $0x60] sm:$0xff]
        %v2114 = vld [vmem:[%s4 + $0x68] sm:$0xff]
        %v2115 = vld [vmem:[%s4 + $0x70] sm:$0xff]
        %v2116 = vld [vmem:[%s4 + $0x78] sm:$0xff]
        %v2117 = vld [vmem:[%s4 + $0x80] sm:$0xff]
        %v2118 = vld [vmem:[%s4 + $0x88] sm:$0xff]
        %v2119 = vld [vmem:[%s4 + $0x90] sm:$0xff]
        %v2120 = vld [vmem:[%s4 + $0x98] sm:$0xff]
        %v2121 = vld [vmem:[%s4 + $0xa0] sm:$0xff]
        %v2122 = vld [vmem:[%s4 + $0xa8] sm:$0xff]
        %v2123 = vld [vmem:[%s4 + $0xb0] sm:$0xff]
        %v2124 = vld [vmem:[%s4 + $0xb8] sm:$0xff]
        %v2125 = vld [vmem:[%s4 + $0xc0] sm:$0xff]
        %v2126 = vld [vmem:[%s4 + $0xc8] sm:$0xff]
        %v2127 = vld [vmem:[%s4 + $0xd0] sm:$0xff]
        %v2128 = vld [vmem:[%s4 + $0xd8] sm:$0xff]
        %v2129 = vld [vmem:[%s4 + $0xe0] sm:$0xff]
        %v2130 = vld [vmem:[%s4 + $0xe8] sm:$0xff]
        %v2131 = vld [vmem:[%s4 + $0xf0] sm:$0xff]
        %v2132 = vld [vmem:[%s4 + $0xf8] sm:$0xff]
        %v2133 = vld [vmem:[%s4 + $0x100] sm:$0xff]
        %v2134 = vld [vmem:[%s4 + $0x108] sm:$0xff]
        %v2135 = vld [vmem:[%s4 + $0x110] sm:$0xff]
        %v2136 = vld [vmem:[%s4 + $0x118] sm:$0xff]
        %v2137 = vld [vmem:[%s4 + $0x120] sm:$0xff]
        %v2138 = vld [vmem:[%s4 + $0x128] sm:$0xff]
        %v2139 = vld [vmem:[%s4 + $0x130] sm:$0xff]
        %v2140 = vld [vmem:[%s4 + $0x138] sm:$0xff]
        %v2141 = vld [vmem:[%s4 + $0x140] sm:$0xff]
        %v2142 = vld [vmem:[%s4 + $0x148] sm:$0xff]
        %v2143 = vld [vmem:[%s4 + $0x150] sm:$0xff]
        %v2144 = vld [vmem:[%s4 + $0x158] sm:$0xff]
        %v2145 = vld [vmem:[%s4 + $0x160] sm:$0xff]
        %v2146 = vld [vmem:[%s4 + $0x168] sm:$0xff]
        %v2147 = vld [vmem:[%s4 + $0x170] sm:$0xff]
        %v2148 = vld [vmem:[%s4 + $0x178] sm:$0xff]
        %v2149 = vld [vmem:[%s4 + $0x180] sm:$0xff]
        %v2150 = vld [vmem:[%s4 + $0x188] sm:$0xff]
        %v2151 = vld [vmem:[%s4 + $0x190] sm:$0xff]
        %v2152 = vld [vmem:[%s4 + $0x198] sm:$0xff]
        %v2153 = vld [vmem:[%s4 + $0x1a0] sm:$0xff]
        %v2154 = vld [vmem:[%s4 + $0x1a8] sm:$0xff]
        %v2155 = vld [vmem:[%s4 + $0x1b0] sm:$0xff]
        %v2156 = vld [vmem:[%s4 + $0x1b8] sm:$0xff]
        %v2157 = vld [vmem:[%s4 + $0x1c0] sm:$0xff]
        %v2158 = vld [vmem:[%s4 + $0x1c8] sm:$0xff]
        %v2159 = vld [vmem:[%s4 + $0x1d0] sm:$0xff]
        %v2160 = vld [vmem:[%s4 + $0x1d8] sm:$0xff]
        %v2161 = vld [vmem:[%s4 + $0x1e0] sm:$0xff]
        %v2162 = vld [vmem:[%s4 + $0x1e8] sm:$0xff]
        %v2163 = vld [vmem:[%s4 + $0x1f0] sm:$0xff]
        %v2164 = vld [vmem:[%s4 + $0x1f8] sm:$0xff]
        %v2165 = vld [vmem:[%s4 + $0x200] sm:$0xff]
        %v2166 = vld [vmem:[%s4 + $0x208] sm:$0xff]
        %v2167 = vld [vmem:[%s4 + $0x210] sm:$0xff]
        %v2168 = vld [vmem:[%s4 + $0x218] sm:$0xff]
        %v2169 = vld [vmem:[%s4 + $0x220] sm:$0xff]
        %v2170 = vld [vmem:[%s4 + $0x228] sm:$0xff]
        %v2171 = vld [vmem:[%s4 + $0x230] sm:$0xff]
        %v2172 = vld [vmem:[%s4 + $0x238] sm:$0xff]
        %v2173 = vld [vmem:[%s4 + $0x240] sm:$0xff]
        %v2174 = vld [vmem:[%s4 + $0x248] sm:$0xff]
        %v2175 = vld [vmem:[%s4 + $0x250] sm:$0xff]
        %v2176 = vld [vmem:[%s4 + $0x258] sm:$0xff]
        %v2177 = vld [vmem:[%s4 + $0x260] sm:$0xff]
        %v2178 = vld [vmem:[%s4 + $0x268] sm:$0xff]
        %v2179 = vld [vmem:[%s4 + $0x270] sm:$0xff]
        %v2180 = vld [vmem:[%s4 + $0x278] sm:$0xff]
        %v2181 = vld [vmem:[%s4 + $0x280] sm:$0xff]
        %v2182 = vld [vmem:[%s4 + $0x288] sm:$0xff]
        %v2183 = vld [vmem:[%s4 + $0x290] sm:$0xff]
        %v2184 = vld [vmem:[%s4 + $0x298] sm:$0xff]
        %v2185 = vld [vmem:[%s4 + $0x2a0] sm:$0xff]
        %v2186 = vld [vmem:[%s4 + $0x2a8] sm:$0xff]
        %v2187 = vld [vmem:[%s4 + $0x2b0] sm:$0xff]
        %v2188 = vld [vmem:[%s4 + $0x2b8] sm:$0xff]
        %v2189 = vld [vmem:[%s4 + $0x2c0] sm:$0xff]
        %v2190 = vld [vmem:[%s4 + $0x2c8] sm:$0xff]
        %v2191 = vld [vmem:[%s4 + $0x2d0] sm:$0xff]
        %v2192 = vld [vmem:[%s4 + $0x2d8] sm:$0xff]
        %v2193 = vld [vmem:[%s4 + $0x2e0] sm:$0xff]
        %v2194 = vld [vmem:[%s4 + $0x2e8] sm:$0xff]
        %v2195 = vld [vmem:[%s4 + $0x2f0] sm:$0xff]
        %v2196 = vld [vmem:[%s4 + $0x2f8] sm:$0xff]
        %v2197 = vld [vmem:[%s4 + $0x300] sm:$0xff]
        %v2198 = vld [vmem:[%s4 + $0x308] sm:$0xff]
        %v2199 = vld [vmem:[%s4 + $0x310] sm:$0xff]
        %v2200 = vld [vmem:[%s4 + $0x318] sm:$0xff]
        %v2201 = vld [vmem:[%s4 + $0x320] sm:$0xff]
        %v2202 = vld [vmem:[%s4 + $0x328] sm:$0xff]
        %v2203 = vld [vmem:[%s4 + $0x330] sm:$0xff]
        %v2204 = vld [vmem:[%s4 + $0x338] sm:$0xff]
        %v2205 = vld [vmem:[%s4 + $0x340] sm:$0xf]
        %v2206 = vld [vmem:[%s4 + $0x348] sm:$0xf]
        %vm2207 = vcmask 293888
        %v2209 = vsel %vm2207, %v2096, 0
        %v2212 = vsel %vm2207, %v2100, 0
        %v2215 = vsel %vm1491, %v2205, 0
        %v2218 = vsel %vm1491, %v2206, 0
        %2220 = vmatprep.subr.mxu0 %v2102
        %2221 = vmatpush1.msra.mxu0 %v2101
        %2222 = vmatprep.subr.mxu0 %v2104
        %2223 = vmatpush1.msra.mxu0 %v2103
        %2224 = vmatprep.subr.mxu0 %v2106
        %2225 = vmatpush1.msra.mxu0 %v2105
        %2226 = vmatprep.subr.mxu0 %v2108
        %2227 = vmatpush1.msra.mxu0 %v2107
        %2228 = vmatprep.subr.mxu0 %v2110
        %2229 = vmatpush1.msra.mxu0 %v2109
        %2230 = vmatprep.subr.mxu0 %v2112
        %2231 = vmatpush1.msra.mxu0 %v2111
        %2232 = vmatprep.subr.mxu0 %v2114
        %2233 = vmatpush1.msra.mxu0 %v2113
        %2234 = vmatprep.subr.mxu0 %v2116
        %2235 = vmatpush1.msra.mxu0 %v2115
        %2236 = vmatprep.subr.mxu0 %v2118
        %2237 = vmatpush1.msra.mxu0 %v2117
        %2238 = vmatprep.subr.mxu0 %v2120
        %2239 = vmatpush1.msra.mxu0 %v2119
        %2240 = vmatprep.subr.mxu0 %v2122
        %2241 = vmatpush1.msra.mxu0 %v2121
        %2242 = vmatprep.subr.mxu0 %v2124
        %2243 = vmatpush1.msra.mxu0 %v2123
        %2244 = vmatprep.subr.mxu0 %v2126
        %2245 = vmatpush1.msra.mxu0 %v2125
        %2246 = vmatprep.subr.mxu0 %v2128
        %2247 = vmatpush1.msra.mxu0 %v2127
        %2248 = vmatprep.subr.mxu0 %v2130
        %2249 = vmatpush1.msra.mxu0 %v2129
        %2250 = vmatprep.subr.mxu0 %v2132
        %2251 = vmatpush1.msra.mxu0 %v2131
        %2252 = vmatprep.subr.mxu0 %v2134
        %2253 = vmatpush1.msra.mxu0 %v2133
        %2254 = vmatprep.subr.mxu0 %v2136
        %2255 = vmatpush1.msra.mxu0 %v2135
        %2256 = vmatprep.subr.mxu0 %v2138
        %2257 = vmatpush1.msra.mxu0 %v2137
        %2258 = vmatprep.subr.mxu0 %v2140
        %2259 = vmatpush1.msra.mxu0 %v2139
        %2260 = vmatprep.subr.mxu0 %v2142
        %2261 = vmatpush1.msra.mxu0 %v2141
        %2262 = vmatprep.subr.mxu0 %v2144
        %2263 = vmatpush1.msra.mxu0 %v2143
        %2264 = vmatprep.subr.mxu0 %v2146
        %2265 = vmatpush1.msra.mxu0 %v2145
        %2266 = vmatprep.subr.mxu0 %v2148
        %2267 = vmatpush1.msra.mxu0 %v2147
        %2268 = vmatprep.subr.mxu0 %v2150
        %2269 = vmatpush1.msra.mxu0 %v2149
        %2270 = vmatprep.subr.mxu0 %v2152
        %2271 = vmatpush1.msra.mxu0 %v2151
        %2272 = vmatprep.subr.mxu0 %v2154
        %2273 = vmatpush1.msra.mxu0 %v2153
        %2274 = vmatprep.subr.mxu0 %v2156
        %2275 = vmatpush1.msra.mxu0 %v2155
        %2276 = vmatprep.subr.mxu0 %v2158
        %2277 = vmatpush1.msra.mxu0 %v2157
        %2278 = vmatprep.subr.mxu0 %v2160
        %2279 = vmatpush1.msra.mxu0 %v2159
        %2280 = vmatprep.subr.mxu0 %v2162
        %2281 = vmatpush1.msra.mxu0 %v2161
        %2282 = vmatprep.subr.mxu0 %v2164
        %2283 = vmatpush1.msra.mxu0 %v2163
        %2284 = vmatprep.mubr.f32.mxu0 %v2094
        %2285 = vmatmul.mubr.f32.gmra.mrb[0].mxu0 %v2093
        %v2286 = vpop.f32.mrb[0].mxu0
        %v2287 = vadd.f32 0.0, %v2286
        %v2288 = vpop.f32.mrb[0].mxu0
        %v2289 = vadd.f32 0.0, %v2288
        %2290 = vmatprep.mubr.f32.mxu0 %v2098
        %2291 = vmatmul.mubr.f32.gmra.mrb[0].mxu0 %v2097
        %v2292 = vpop.f32.mrb[0].mxu0
        %v2293 = vadd.f32 0.0, %v2292
        %v2294 = vpop.f32.mrb[0].mxu0
        %v2295 = vadd.f32 0.0, %v2294
        %2296 = vdwg.mxu0
        %2297 = vmatprep.subr.mxu0 %v2166
        %2298 = vmatpush1.msra.mxu0 %v2165
        %2299 = vmatprep.subr.mxu0 %v2168
        %2300 = vmatpush1.msra.mxu0 %v2167
        %2301 = vmatprep.subr.mxu0 %v2170
        %2302 = vmatpush1.msra.mxu0 %v2169
        %2303 = vmatprep.subr.mxu0 %v2172
        %2304 = vmatpush1.msra.mxu0 %v2171
        %2305 = vmatprep.subr.mxu0 %v2174
        %2306 = vmatpush1.msra.mxu0 %v2173
        %2307 = vmatprep.subr.mxu0 %v2176
        %2308 = vmatpush1.msra.mxu0 %v2175
        %2309 = vmatprep.subr.mxu0 %v2178
        %2310 = vmatpush1.msra.mxu0 %v2177
        %2311 = vmatprep.subr.mxu0 %v2180
        %2312 = vmatpush1.msra.mxu0 %v2179
        %2313 = vmatprep.subr.mxu0 %v2182
        %2314 = vmatpush1.msra.mxu0 %v2181
        %2315 = vmatprep.subr.mxu0 %v2184
        %2316 = vmatpush1.msra.mxu0 %v2183
        %2317 = vmatprep.subr.mxu0 %v2186
        %2318 = vmatpush1.msra.mxu0 %v2185
        %2319 = vmatprep.subr.mxu0 %v2188
        %2320 = vmatpush1.msra.mxu0 %v2187
        %2321 = vmatprep.subr.mxu0 %v2190
        %2322 = vmatpush1.msra.mxu0 %v2189
        %2323 = vmatprep.subr.mxu0 %v2192
        %2324 = vmatpush1.msra.mxu0 %v2191
        %2325 = vmatprep.subr.mxu0 %v2194
        %2326 = vmatpush1.msra.mxu0 %v2193
        %2327 = vmatprep.subr.mxu0 %v2196
        %2328 = vmatpush1.msra.mxu0 %v2195
        %2329 = vmatprep.subr.mxu0 %v2198
        %2330 = vmatpush1.msra.mxu0 %v2197
        %2331 = vmatprep.subr.mxu0 %v2200
        %2332 = vmatpush1.msra.mxu0 %v2199
        %2333 = vmatprep.subr.mxu0 %v2202
        %2334 = vmatpush1.msra.mxu0 %v2201
        %2335 = vmatprep.subr.mxu0 %v2204
        %2336 = vmatpush1.msra.mxu0 %v2203
        %2337 = vmatprep.subr.mxu0 %v2218
        %2338 = vmatpush1.msra.mxu0 %v2215
        %2339 = vmatprep.subr.mxu0 0.0
        %2340 = vmatpush1.msra.mxu0 0.0
        %2341 = vmatprep.subr.mxu0 0.0
        %2342 = vmatpush1.msra.mxu0 0.0
        %2343 = vmatprep.subr.mxu0 0.0
        %2344 = vmatpush1.msra.mxu0 0.0
        %2345 = vmatprep.subr.mxu0 0.0
        %2346 = vmatpush1.msra.mxu0 0.0
        %2347 = vmatprep.subr.mxu0 0.0
        %2348 = vmatpush1.msra.mxu0 0.0
        %2349 = vmatprep.subr.mxu0 0.0
        %2350 = vmatpush1.msra.mxu0 0.0
        %2351 = vmatprep.subr.mxu0 0.0
        %2352 = vmatpush1.msra.mxu0 0.0
        %2353 = vmatprep.subr.mxu0 0.0
        %2354 = vmatpush1.msra.mxu0 0.0
        %2355 = vmatprep.subr.mxu0 0.0
        %2356 = vmatpush1.msra.mxu0 0.0
        %2357 = vmatprep.subr.mxu0 0.0
        %2358 = vmatpush1.msra.mxu0 0.0
        %2359 = vmatprep.subr.mxu0 0.0
        %2360 = vmatpush1.msra.mxu0 0.0
        %2361 = vmatprep.mubr.f32.mxu0 %v2209
        %2362 = vmatmul.mubr.f32.gmra.mrb[0].mxu0 %v2095
        %v2363 = vpop.f32.mrb[0].mxu0
        %v2364 = vadd.f32 %v2287, %v2363
        %v2365 = vpop.f32.mrb[0].mxu0
        %v2366 = vadd.f32 %v2289, %v2365
        %2367 = vmatprep.mubr.f32.mxu0 %v2212
        %2368 = vmatmul.mubr.f32.gmra.mrb[0].mxu0 %v2099
        %v2369 = vpop.f32.mrb[0].mxu0
        %v2370 = vadd.f32 %v2293, %v2369
        %v2371 = vpop.f32.mrb[0].mxu0
        %v2372 = vadd.f32 %v2295, %v2371
        %2373 = vdwg.mxu0
        %s2374 = scalar_lea.vmem %s4, 848
        %v2375 = vld [vmem:[%s2374] sm:$0xff]
        %v2376 = vld [vmem:[%s2374 + $0x8] sm:$0xff]
        %v2377 = vld [vmem:[%s2374 + $0x10] sm:$0xff]
        %v2378 = vld [vmem:[%s2374 + $0x18] sm:$0xff]
        %v2379 = vld [vmem:[%s2374 + $0x20] sm:$0xff]
        %v2380 = vld [vmem:[%s2374 + $0x28] sm:$0xff]
        %v2381 = vld [vmem:[%s2374 + $0x30] sm:$0xff]
        %v2382 = vld [vmem:[%s2374 + $0x38] sm:$0xff]
        %v2383 = vld [vmem:[%s2374 + $0x40] sm:$0xff]
        %v2384 = vld [vmem:[%s2374 + $0x48] sm:$0xff]
        %v2385 = vld [vmem:[%s2374 + $0x50] sm:$0xff]
        %v2386 = vld [vmem:[%s2374 + $0x58] sm:$0xff]
        %v2387 = vld [vmem:[%s2374 + $0x60] sm:$0xff]
        %v2388 = vld [vmem:[%s2374 + $0x68] sm:$0xff]
        %v2389 = vld [vmem:[%s2374 + $0x70] sm:$0xff]
        %v2390 = vld [vmem:[%s2374 + $0x78] sm:$0xff]
        %v2391 = vld [vmem:[%s2374 + $0x80] sm:$0xff]
        %v2392 = vld [vmem:[%s2374 + $0x88] sm:$0xff]
        %v2393 = vld [vmem:[%s2374 + $0x90] sm:$0xff]
        %v2394 = vld [vmem:[%s2374 + $0x98] sm:$0xff]
        %v2395 = vld [vmem:[%s2374 + $0xa0] sm:$0xff]
        %v2396 = vld [vmem:[%s2374 + $0xa8] sm:$0xff]
        %v2397 = vld [vmem:[%s2374 + $0xb0] sm:$0xff]
        %v2398 = vld [vmem:[%s2374 + $0xb8] sm:$0xff]
        %v2399 = vld [vmem:[%s2374 + $0xc0] sm:$0xff]
        %v2400 = vld [vmem:[%s2374 + $0xc8] sm:$0xff]
        %v2401 = vld [vmem:[%s2374 + $0xd0] sm:$0xff]
        %v2402 = vld [vmem:[%s2374 + $0xd8] sm:$0xff]
        %v2403 = vld [vmem:[%s2374 + $0xe0] sm:$0xff]
        %v2404 = vld [vmem:[%s2374 + $0xe8] sm:$0xff]
        %v2405 = vld [vmem:[%s2374 + $0xf0] sm:$0xff]
        %v2406 = vld [vmem:[%s2374 + $0xf8] sm:$0xff]
        %v2407 = vld [vmem:[%s2374 + $0x100] sm:$0xff]
        %v2408 = vld [vmem:[%s2374 + $0x108] sm:$0xff]
        %v2409 = vld [vmem:[%s2374 + $0x110] sm:$0xff]
        %v2410 = vld [vmem:[%s2374 + $0x118] sm:$0xff]
        %v2411 = vld [vmem:[%s2374 + $0x120] sm:$0xff]
        %v2412 = vld [vmem:[%s2374 + $0x128] sm:$0xff]
        %v2413 = vld [vmem:[%s2374 + $0x130] sm:$0xff]
        %v2414 = vld [vmem:[%s2374 + $0x138] sm:$0xff]
        %v2415 = vld [vmem:[%s2374 + $0x140] sm:$0xff]
        %v2416 = vld [vmem:[%s2374 + $0x148] sm:$0xff]
        %v2417 = vld [vmem:[%s2374 + $0x150] sm:$0xff]
        %v2418 = vld [vmem:[%s2374 + $0x158] sm:$0xff]
        %v2419 = vld [vmem:[%s2374 + $0x160] sm:$0xff]
        %v2420 = vld [vmem:[%s2374 + $0x168] sm:$0xff]
        %v2421 = vld [vmem:[%s2374 + $0x170] sm:$0xff]
        %v2422 = vld [vmem:[%s2374 + $0x178] sm:$0xff]
        %v2423 = vld [vmem:[%s2374 + $0x180] sm:$0xff]
        %v2424 = vld [vmem:[%s2374 + $0x188] sm:$0xff]
        %v2425 = vld [vmem:[%s2374 + $0x190] sm:$0xff]
        %v2426 = vld [vmem:[%s2374 + $0x198] sm:$0xff]
        %v2427 = vld [vmem:[%s2374 + $0x1a0] sm:$0xff]
        %v2428 = vld [vmem:[%s2374 + $0x1a8] sm:$0xff]
        %v2429 = vld [vmem:[%s2374 + $0x1b0] sm:$0xff]
        %v2430 = vld [vmem:[%s2374 + $0x1b8] sm:$0xff]
        %v2431 = vld [vmem:[%s2374 + $0x1c0] sm:$0xff]
        %v2432 = vld [vmem:[%s2374 + $0x1c8] sm:$0xff]
        %v2433 = vld [vmem:[%s2374 + $0x1d0] sm:$0xff]
        %v2434 = vld [vmem:[%s2374 + $0x1d8] sm:$0xff]
        %v2435 = vld [vmem:[%s2374 + $0x1e0] sm:$0xff]
        %v2436 = vld [vmem:[%s2374 + $0x1e8] sm:$0xff]
        %v2437 = vld [vmem:[%s2374 + $0x1f0] sm:$0xff]
        %v2438 = vld [vmem:[%s2374 + $0x1f8] sm:$0xff]
        %v2439 = vld [vmem:[%s2374 + $0x200] sm:$0xff]
        %v2440 = vld [vmem:[%s2374 + $0x208] sm:$0xff]
        %v2441 = vld [vmem:[%s2374 + $0x210] sm:$0xff]
        %v2442 = vld [vmem:[%s2374 + $0x218] sm:$0xff]
        %v2443 = vld [vmem:[%s2374 + $0x220] sm:$0xff]
        %v2444 = vld [vmem:[%s2374 + $0x228] sm:$0xff]
        %v2445 = vld [vmem:[%s2374 + $0x230] sm:$0xff]
        %v2446 = vld [vmem:[%s2374 + $0x238] sm:$0xff]
        %v2447 = vld [vmem:[%s2374 + $0x240] sm:$0xff]
        %v2448 = vld [vmem:[%s2374 + $0x248] sm:$0xff]
        %v2449 = vld [vmem:[%s2374 + $0x250] sm:$0xff]
        %v2450 = vld [vmem:[%s2374 + $0x258] sm:$0xff]
        %v2451 = vld [vmem:[%s2374 + $0x260] sm:$0xff]
        %v2452 = vld [vmem:[%s2374 + $0x268] sm:$0xff]
        %v2453 = vld [vmem:[%s2374 + $0x270] sm:$0xff]
        %v2454 = vld [vmem:[%s2374 + $0x278] sm:$0xff]
        %v2455 = vld [vmem:[%s2374 + $0x280] sm:$0xff]
        %v2456 = vld [vmem:[%s2374 + $0x288] sm:$0xff]
        %v2457 = vld [vmem:[%s2374 + $0x290] sm:$0xff]
        %v2458 = vld [vmem:[%s2374 + $0x298] sm:$0xff]
        %v2459 = vld [vmem:[%s2374 + $0x2a0] sm:$0xff]
        %v2460 = vld [vmem:[%s2374 + $0x2a8] sm:$0xff]
        %v2461 = vld [vmem:[%s2374 + $0x2b0] sm:$0xff]
        %v2462 = vld [vmem:[%s2374 + $0x2b8] sm:$0xff]
        %v2463 = vld [vmem:[%s2374 + $0x2c0] sm:$0xff]
        %v2464 = vld [vmem:[%s2374 + $0x2c8] sm:$0xff]
        %v2465 = vld [vmem:[%s2374 + $0x2d0] sm:$0xff]
        %v2466 = vld [vmem:[%s2374 + $0x2d8] sm:$0xff]
        %v2467 = vld [vmem:[%s2374 + $0x2e0] sm:$0xff]
        %v2468 = vld [vmem:[%s2374 + $0x2e8] sm:$0xff]
        %v2469 = vld [vmem:[%s2374 + $0x2f0] sm:$0xff]
        %v2470 = vld [vmem:[%s2374 + $0x2f8] sm:$0xff]
        %v2471 = vld [vmem:[%s2374 + $0x300] sm:$0xff]
        %v2472 = vld [vmem:[%s2374 + $0x308] sm:$0xff]
        %v2473 = vld [vmem:[%s2374 + $0x310] sm:$0xff]
        %v2474 = vld [vmem:[%s2374 + $0x318] sm:$0xff]
        %v2475 = vld [vmem:[%s2374 + $0x320] sm:$0xff]
        %v2476 = vld [vmem:[%s2374 + $0x328] sm:$0xff]
        %v2477 = vld [vmem:[%s2374 + $0x330] sm:$0xff]
        %v2478 = vld [vmem:[%s2374 + $0x338] sm:$0xff]
        %v2479 = vld [vmem:[%s2374 + $0x340] sm:$0xf]
        %v2480 = vld [vmem:[%s2374 + $0x348] sm:$0xf]
        %v2482 = vsel %vm1491, %v2479, 0
        %v2485 = vsel %vm1491, %v2480, 0
        %2487 = vmatprep.subr.mxu0 %v2376
        %2488 = vmatpush1.msra.mxu0 %v2375
        %2489 = vmatprep.subr.mxu0 %v2378
        %2490 = vmatpush1.msra.mxu0 %v2377
        %2491 = vmatprep.subr.mxu0 %v2380
        %2492 = vmatpush1.msra.mxu0 %v2379
        %2493 = vmatprep.subr.mxu0 %v2382
        %2494 = vmatpush1.msra.mxu0 %v2381
        %2495 = vmatprep.subr.mxu0 %v2384
        %2496 = vmatpush1.msra.mxu0 %v2383
        %2497 = vmatprep.subr.mxu0 %v2386
        %2498 = vmatpush1.msra.mxu0 %v2385
        %2499 = vmatprep.subr.mxu0 %v2388
        %2500 = vmatpush1.msra.mxu0 %v2387
        %2501 = vmatprep.subr.mxu0 %v2390
        %2502 = vmatpush1.msra.mxu0 %v2389
        %2503 = vmatprep.subr.mxu0 %v2392
        %2504 = vmatpush1.msra.mxu0 %v2391
        %2505 = vmatprep.subr.mxu0 %v2394
        %2506 = vmatpush1.msra.mxu0 %v2393
        %2507 = vmatprep.subr.mxu0 %v2396
        %2508 = vmatpush1.msra.mxu0 %v2395
        %2509 = vmatprep.subr.mxu0 %v2398
        %2510 = vmatpush1.msra.mxu0 %v2397
        %2511 = vmatprep.subr.mxu0 %v2400
        %2512 = vmatpush1.msra.mxu0 %v2399
        %2513 = vmatprep.subr.mxu0 %v2402
        %2514 = vmatpush1.msra.mxu0 %v2401
        %2515 = vmatprep.subr.mxu0 %v2404
        %2516 = vmatpush1.msra.mxu0 %v2403
        %2517 = vmatprep.subr.mxu0 %v2406
        %2518 = vmatpush1.msra.mxu0 %v2405
        %2519 = vmatprep.subr.mxu0 %v2408
        %2520 = vmatpush1.msra.mxu0 %v2407
        %2521 = vmatprep.subr.mxu0 %v2410
        %2522 = vmatpush1.msra.mxu0 %v2409
        %2523 = vmatprep.subr.mxu0 %v2412
        %2524 = vmatpush1.msra.mxu0 %v2411
        %2525 = vmatprep.subr.mxu0 %v2414
        %2526 = vmatpush1.msra.mxu0 %v2413
        %2527 = vmatprep.subr.mxu0 %v2416
        %2528 = vmatpush1.msra.mxu0 %v2415
        %2529 = vmatprep.subr.mxu0 %v2418
        %2530 = vmatpush1.msra.mxu0 %v2417
        %2531 = vmatprep.subr.mxu0 %v2420
        %2532 = vmatpush1.msra.mxu0 %v2419
        %2533 = vmatprep.subr.mxu0 %v2422
        %2534 = vmatpush1.msra.mxu0 %v2421
        %2535 = vmatprep.subr.mxu0 %v2424
        %2536 = vmatpush1.msra.mxu0 %v2423
        %2537 = vmatprep.subr.mxu0 %v2426
        %2538 = vmatpush1.msra.mxu0 %v2425
        %2539 = vmatprep.subr.mxu0 %v2428
        %2540 = vmatpush1.msra.mxu0 %v2427
        %2541 = vmatprep.subr.mxu0 %v2430
        %2542 = vmatpush1.msra.mxu0 %v2429
        %2543 = vmatprep.subr.mxu0 %v2432
        %2544 = vmatpush1.msra.mxu0 %v2431
        %2545 = vmatprep.subr.mxu0 %v2434
        %2546 = vmatpush1.msra.mxu0 %v2433
        %2547 = vmatprep.subr.mxu0 %v2436
        %2548 = vmatpush1.msra.mxu0 %v2435
        %2549 = vmatprep.subr.mxu0 %v2438
        %2550 = vmatpush1.msra.mxu0 %v2437
        %2551 = vmatprep.mubr.f32.mxu0 %v2094
        %2552 = vmatmul.mubr.f32.gmra.mrb[0].mxu0 %v2093
        %v2553 = vpop.f32.mrb[0].mxu0
        %v2554 = vadd.f32 0.0, %v2553
        %v2555 = vpop.f32.mrb[0].mxu0
        %v2556 = vadd.f32 0.0, %v2555
        %2557 = vmatprep.mubr.f32.mxu0 %v2098
        %2558 = vmatmul.mubr.f32.gmra.mrb[0].mxu0 %v2097
        %v2559 = vpop.f32.mrb[0].mxu0
        %v2560 = vadd.f32 0.0, %v2559
        %v2561 = vpop.f32.mrb[0].mxu0
        %v2562 = vadd.f32 0.0, %v2561
        %2563 = vdwg.mxu0
        %2564 = vmatprep.subr.mxu0 %v2440
        %2565 = vmatpush1.msra.mxu0 %v2439
        %2566 = vmatprep.subr.mxu0 %v2442
        %2567 = vmatpush1.msra.mxu0 %v2441
        %2568 = vmatprep.subr.mxu0 %v2444
        %2569 = vmatpush1.msra.mxu0 %v2443
        %2570 = vmatprep.subr.mxu0 %v2446
        %2571 = vmatpush1.msra.mxu0 %v2445
        %2572 = vmatprep.subr.mxu0 %v2448
        %2573 = vmatpush1.msra.mxu0 %v2447
        %2574 = vmatprep.subr.mxu0 %v2450
        %2575 = vmatpush1.msra.mxu0 %v2449
        %2576 = vmatprep.subr.mxu0 %v2452
        %2577 = vmatpush1.msra.mxu0 %v2451
        %2578 = vmatprep.subr.mxu0 %v2454
        %2579 = vmatpush1.msra.mxu0 %v2453
        %2580 = vmatprep.subr.mxu0 %v2456
        %2581 = vmatpush1.msra.mxu0 %v2455
        %2582 = vmatprep.subr.mxu0 %v2458
        %2583 = vmatpush1.msra.mxu0 %v2457
        %2584 = vmatprep.subr.mxu0 %v2460
        %2585 = vmatpush1.msra.mxu0 %v2459
        %2586 = vmatprep.subr.mxu0 %v2462
        %2587 = vmatpush1.msra.mxu0 %v2461
        %2588 = vmatprep.subr.mxu0 %v2464
        %2589 = vmatpush1.msra.mxu0 %v2463
        %2590 = vmatprep.subr.mxu0 %v2466
        %2591 = vmatpush1.msra.mxu0 %v2465
        %2592 = vmatprep.subr.mxu0 %v2468
        %2593 = vmatpush1.msra.mxu0 %v2467
        %2594 = vmatprep.subr.mxu0 %v2470
        %2595 = vmatpush1.msra.mxu0 %v2469
        %2596 = vmatprep.subr.mxu0 %v2472
        %2597 = vmatpush1.msra.mxu0 %v2471
        %2598 = vmatprep.subr.mxu0 %v2474
        %2599 = vmatpush1.msra.mxu0 %v2473
        %2600 = vmatprep.subr.mxu0 %v2476
        %2601 = vmatpush1.msra.mxu0 %v2475
        %2602 = vmatprep.subr.mxu0 %v2478
        %2603 = vmatpush1.msra.mxu0 %v2477
        %2604 = vmatprep.subr.mxu0 %v2485
        %2605 = vmatpush1.msra.mxu0 %v2482
        %2606 = vmatprep.subr.mxu0 0.0
        %2607 = vmatpush1.msra.mxu0 0.0
        %2608 = vmatprep.subr.mxu0 0.0
        %2609 = vmatpush1.msra.mxu0 0.0
        %2610 = vmatprep.subr.mxu0 0.0
        %2611 = vmatpush1.msra.mxu0 0.0
        %2612 = vmatprep.subr.mxu0 0.0
        %2613 = vmatpush1.msra.mxu0 0.0
        %2614 = vmatprep.subr.mxu0 0.0
        %2615 = vmatpush1.msra.mxu0 0.0
        %2616 = vmatprep.subr.mxu0 0.0
        %2617 = vmatpush1.msra.mxu0 0.0
        %2618 = vmatprep.subr.mxu0 0.0
        %2619 = vmatpush1.msra.mxu0 0.0
        %2620 = vmatprep.subr.mxu0 0.0
        %2621 = vmatpush1.msra.mxu0 0.0
        %2622 = vmatprep.subr.mxu0 0.0
        %2623 = vmatpush1.msra.mxu0 0.0
        %2624 = vmatprep.subr.mxu0 0.0
        %2625 = vmatpush1.msra.mxu0 0.0
        %2626 = vmatprep.subr.mxu0 0.0
        %2627 = vmatpush1.msra.mxu0 0.0
        %2628 = vmatprep.mubr.f32.mxu0 %v2209
        %2629 = vmatmul.mubr.f32.gmra.mrb[0].mxu0 %v2095
        %v2630 = vpop.f32.mrb[0].mxu0
        %v2631 = vadd.f32 %v2554, %v2630
        %v2632 = vpop.f32.mrb[0].mxu0
        %v2633 = vadd.f32 %v2556, %v2632
        %2634 = vmatprep.mubr.f32.mxu0 %v2212
        %2635 = vmatmul.mubr.f32.gmra.mrb[0].mxu0 %v2099
        %v2636 = vpop.f32.mrb[0].mxu0
        %v2637 = vadd.f32 %v2560, %v2636
        %v2638 = vpop.f32.mrb[0].mxu0
        %v2639 = vadd.f32 %v2562, %v2638
        %2640 = vdwg.mxu0
        %v2641 = vmax.f32 %v2364, %v2631
        %v2642 = vmax.f32 %v2366, %v2633
        %v2643 = vmax.f32 %v2370, %v2637
        %v2644 = vmax.f32 %v2372, %v2639
        %v2645 = vld [vmem:[%s5] sm:$0xff]
        %v2646 = vld [vmem:[%s5 + $0x8] sm:$0xff]
        %v2647 = vld [vmem:[%s5 + $0x10] sm:$0xff]
        %v2648 = vld [vmem:[%s5 + $0x18] sm:$0xff]
        %v2649 = vld [vmem:[%s5 + $0x20] sm:$0xff]
        %v2650 = vld [vmem:[%s5 + $0x28] sm:$0xff]
        %v2651 = vld [vmem:[%s5 + $0x30] sm:$0xff]
        %v2652 = vld [vmem:[%s5 + $0x38] sm:$0xff]
        %v2653 = vld [vmem:[%s5 + $0x40] sm:$0xff]
        %v2654 = vld [vmem:[%s5 + $0x48] sm:$0xff]
        %v2655 = vld [vmem:[%s5 + $0x50] sm:$0xff]
        %v2656 = vld [vmem:[%s5 + $0x58] sm:$0xff]
        %v2657 = vld [vmem:[%s5 + $0x60] sm:$0xff]
        %v2658 = vld [vmem:[%s5 + $0x68] sm:$0xff]
        %v2659 = vld [vmem:[%s5 + $0x70] sm:$0xff]
        %v2660 = vld [vmem:[%s5 + $0x78] sm:$0xff]
        %v2661 = vld [vmem:[%s5 + $0x80] sm:$0xff]
        %v2662 = vld [vmem:[%s5 + $0x88] sm:$0xff]
        %v2663 = vld [vmem:[%s5 + $0x90] sm:$0xff]
        %v2664 = vld [vmem:[%s5 + $0x98] sm:$0xff]
        %v2665 = vld [vmem:[%s5 + $0xa0] sm:$0xff]
        %v2666 = vld [vmem:[%s5 + $0xa8] sm:$0xff]
        %v2667 = vld [vmem:[%s5 + $0xb0] sm:$0xff]
        %v2668 = vld [vmem:[%s5 + $0xb8] sm:$0xff]
        %v2669 = vld [vmem:[%s5 + $0xc0] sm:$0xff]
        %v2670 = vld [vmem:[%s5 + $0xc8] sm:$0xff]
        %v2671 = vld [vmem:[%s5 + $0xd0] sm:$0xff]
        %v2672 = vld [vmem:[%s5 + $0xd8] sm:$0xff]
        %v2673 = vld [vmem:[%s5 + $0xe0] sm:$0xff]
        %v2674 = vld [vmem:[%s5 + $0xe8] sm:$0xff]
        %v2675 = vld [vmem:[%s5 + $0xf0] sm:$0xff]
        %v2676 = vld [vmem:[%s5 + $0xf8] sm:$0xff]
        %v2677 = vld [vmem:[%s5 + $0x100] sm:$0xff]
        %v2678 = vld [vmem:[%s5 + $0x108] sm:$0xff]
        %v2679 = vld [vmem:[%s5 + $0x110] sm:$0xff]
        %v2680 = vld [vmem:[%s5 + $0x118] sm:$0xff]
        %v2681 = vld [vmem:[%s5 + $0x120] sm:$0xff]
        %v2682 = vld [vmem:[%s5 + $0x128] sm:$0xff]
        %v2683 = vld [vmem:[%s5 + $0x130] sm:$0xff]
        %v2684 = vld [vmem:[%s5 + $0x138] sm:$0xff]
        %v2685 = vld [vmem:[%s5 + $0x140] sm:$0xff]
        %v2686 = vld [vmem:[%s5 + $0x148] sm:$0xff]
        %v2687 = vld [vmem:[%s5 + $0x150] sm:$0xff]
        %v2688 = vld [vmem:[%s5 + $0x158] sm:$0xff]
        %v2689 = vld [vmem:[%s5 + $0x160] sm:$0xff]
        %v2690 = vld [vmem:[%s5 + $0x168] sm:$0xff]
        %v2691 = vld [vmem:[%s5 + $0x170] sm:$0xff]
        %v2692 = vld [vmem:[%s5 + $0x178] sm:$0xff]
        %v2693 = vld [vmem:[%s5 + $0x180] sm:$0xff]
        %v2694 = vld [vmem:[%s5 + $0x188] sm:$0xff]
        %v2695 = vld [vmem:[%s5 + $0x190] sm:$0xff]
        %v2696 = vld [vmem:[%s5 + $0x198] sm:$0xff]
        %v2697 = vld [vmem:[%s5 + $0x1a0] sm:$0xff]
        %v2698 = vld [vmem:[%s5 + $0x1a8] sm:$0xff]
        %v2699 = vld [vmem:[%s5 + $0x1b0] sm:$0xff]
        %v2700 = vld [vmem:[%s5 + $0x1b8] sm:$0xff]
        %v2701 = vld [vmem:[%s5 + $0x1c0] sm:$0xff]
        %v2702 = vld [vmem:[%s5 + $0x1c8] sm:$0xff]
        %v2703 = vld [vmem:[%s5 + $0x1d0] sm:$0xff]
        %v2704 = vld [vmem:[%s5 + $0x1d8] sm:$0xff]
        %v2705 = vld [vmem:[%s5 + $0x1e0] sm:$0xff]
        %v2706 = vld [vmem:[%s5 + $0x1e8] sm:$0xff]
        %v2707 = vld [vmem:[%s5 + $0x1f0] sm:$0xff]
        %v2708 = vld [vmem:[%s5 + $0x1f8] sm:$0xff]
        %v2709 = vld [vmem:[%s5 + $0x200] sm:$0xff]
        %v2710 = vld [vmem:[%s5 + $0x208] sm:$0xff]
        %v2711 = vld [vmem:[%s5 + $0x210] sm:$0xff]
        %v2712 = vld [vmem:[%s5 + $0x218] sm:$0xff]
        %v2713 = vld [vmem:[%s5 + $0x220] sm:$0xff]
        %v2714 = vld [vmem:[%s5 + $0x228] sm:$0xff]
        %v2715 = vld [vmem:[%s5 + $0x230] sm:$0xff]
        %v2716 = vld [vmem:[%s5 + $0x238] sm:$0xff]
        %v2717 = vld [vmem:[%s5 + $0x240] sm:$0xff]
        %v2718 = vld [vmem:[%s5 + $0x248] sm:$0xff]
        %v2719 = vld [vmem:[%s5 + $0x250] sm:$0xff]
        %v2720 = vld [vmem:[%s5 + $0x258] sm:$0xff]
        %v2721 = vld [vmem:[%s5 + $0x260] sm:$0xff]
        %v2722 = vld [vmem:[%s5 + $0x268] sm:$0xff]
        %v2723 = vld [vmem:[%s5 + $0x270] sm:$0x3]
        %v2724 = vld [vmem:[%s5 + $0x278] sm:$0x3]
        %v2725 = vld [vmem:[%s5 + $0x280] sm:$0x3]
        %s2726 = scalar_lea.vmem %s5, 648
        %v2727 = vld [vmem:[%s2726] sm:$0xff]
        %v2728 = vld [vmem:[%s2726 + $0x8] sm:$0xff]
        %v2729 = vld [vmem:[%s2726 + $0x10] sm:$0xff]
        %v2730 = vld [vmem:[%s2726 + $0x18] sm:$0xff]
        %v2731 = vld [vmem:[%s2726 + $0x20] sm:$0xff]
        %v2732 = vld [vmem:[%s2726 + $0x28] sm:$0xff]
        %v2733 = vld [vmem:[%s2726 + $0x30] sm:$0xff]
        %v2734 = vld [vmem:[%s2726 + $0x38] sm:$0xff]
        %v2735 = vld [vmem:[%s2726 + $0x40] sm:$0xff]
        %v2736 = vld [vmem:[%s2726 + $0x48] sm:$0xff]
        %v2737 = vld [vmem:[%s2726 + $0x50] sm:$0xff]
        %v2738 = vld [vmem:[%s2726 + $0x58] sm:$0xff]
        %v2739 = vld [vmem:[%s2726 + $0x60] sm:$0xff]
        %v2740 = vld [vmem:[%s2726 + $0x68] sm:$0xff]
        %v2741 = vld [vmem:[%s2726 + $0x70] sm:$0xff]
        %v2742 = vld [vmem:[%s2726 + $0x78] sm:$0xff]
        %v2743 = vld [vmem:[%s2726 + $0x80] sm:$0xff]
        %v2744 = vld [vmem:[%s2726 + $0x88] sm:$0xff]
        %v2745 = vld [vmem:[%s2726 + $0x90] sm:$0xff]
        %v2746 = vld [vmem:[%s2726 + $0x98] sm:$0xff]
        %v2747 = vld [vmem:[%s2726 + $0xa0] sm:$0xff]
        %v2748 = vld [vmem:[%s2726 + $0xa8] sm:$0xff]
        %v2749 = vld [vmem:[%s2726 + $0xb0] sm:$0xff]
        %v2750 = vld [vmem:[%s2726 + $0xb8] sm:$0xff]
        %v2751 = vld [vmem:[%s2726 + $0xc0] sm:$0xff]
        %v2752 = vld [vmem:[%s2726 + $0xc8] sm:$0xff]
        %v2753 = vld [vmem:[%s2726 + $0xd0] sm:$0xff]
        %v2754 = vld [vmem:[%s2726 + $0xd8] sm:$0xff]
        %v2755 = vld [vmem:[%s2726 + $0xe0] sm:$0xff]
        %v2756 = vld [vmem:[%s2726 + $0xe8] sm:$0xff]
        %v2757 = vld [vmem:[%s2726 + $0xf0] sm:$0xff]
        %v2758 = vld [vmem:[%s2726 + $0xf8] sm:$0xff]
        %v2759 = vld [vmem:[%s2726 + $0x100] sm:$0xff]
        %v2760 = vld [vmem:[%s2726 + $0x108] sm:$0xff]
        %v2761 = vld [vmem:[%s2726 + $0x110] sm:$0xff]
        %v2762 = vld [vmem:[%s2726 + $0x118] sm:$0xff]
        %v2763 = vld [vmem:[%s2726 + $0x120] sm:$0xff]
        %v2764 = vld [vmem:[%s2726 + $0x128] sm:$0xff]
        %v2765 = vld [vmem:[%s2726 + $0x130] sm:$0xff]
        %v2766 = vld [vmem:[%s2726 + $0x138] sm:$0xff]
        %v2767 = vld [vmem:[%s2726 + $0x140] sm:$0xff]
        %v2768 = vld [vmem:[%s2726 + $0x148] sm:$0xff]
        %v2769 = vld [vmem:[%s2726 + $0x150] sm:$0xff]
        %v2770 = vld [vmem:[%s2726 + $0x158] sm:$0xff]
        %v2771 = vld [vmem:[%s2726 + $0x160] sm:$0xff]
        %v2772 = vld [vmem:[%s2726 + $0x168] sm:$0xff]
        %v2773 = vld [vmem:[%s2726 + $0x170] sm:$0xff]
        %v2774 = vld [vmem:[%s2726 + $0x178] sm:$0xff]
        %v2775 = vld [vmem:[%s2726 + $0x180] sm:$0xff]
        %v2776 = vld [vmem:[%s2726 + $0x188] sm:$0xff]
        %v2777 = vld [vmem:[%s2726 + $0x190] sm:$0xff]
        %v2778 = vld [vmem:[%s2726 + $0x198] sm:$0xff]
        %v2779 = vld [vmem:[%s2726 + $0x1a0] sm:$0xff]
        %v2780 = vld [vmem:[%s2726 + $0x1a8] sm:$0xff]
        %v2781 = vld [vmem:[%s2726 + $0x1b0] sm:$0xff]
        %v2782 = vld [vmem:[%s2726 + $0x1b8] sm:$0xff]
        %v2783 = vld [vmem:[%s2726 + $0x1c0] sm:$0xff]
        %v2784 = vld [vmem:[%s2726 + $0x1c8] sm:$0xff]
        %v2785 = vld [vmem:[%s2726 + $0x1d0] sm:$0xff]
        %v2786 = vld [vmem:[%s2726 + $0x1d8] sm:$0xff]
        %v2787 = vld [vmem:[%s2726 + $0x1e0] sm:$0xff]
        %v2788 = vld [vmem:[%s2726 + $0x1e8] sm:$0xff]
        %v2789 = vld [vmem:[%s2726 + $0x1f0] sm:$0xff]
        %v2790 = vld [vmem:[%s2726 + $0x1f8] sm:$0xff]
        %v2791 = vld [vmem:[%s2726 + $0x200] sm:$0xff]
        %v2792 = vld [vmem:[%s2726 + $0x208] sm:$0xff]
        %v2793 = vld [vmem:[%s2726 + $0x210] sm:$0xff]
        %v2794 = vld [vmem:[%s2726 + $0x218] sm:$0xff]
        %v2795 = vld [vmem:[%s2726 + $0x220] sm:$0xff]
        %v2796 = vld [vmem:[%s2726 + $0x228] sm:$0xff]
        %v2797 = vld [vmem:[%s2726 + $0x230] sm:$0xff]
        %v2798 = vld [vmem:[%s2726 + $0x238] sm:$0xff]
        %v2799 = vld [vmem:[%s2726 + $0x240] sm:$0xff]
        %v2800 = vld [vmem:[%s2726 + $0x248] sm:$0xff]
        %v2801 = vld [vmem:[%s2726 + $0x250] sm:$0xff]
        %v2802 = vld [vmem:[%s2726 + $0x258] sm:$0xff]
        %v2803 = vld [vmem:[%s2726 + $0x260] sm:$0xff]
        %v2804 = vld [vmem:[%s2726 + $0x268] sm:$0xff]
        %v2805 = vld [vmem:[%s2726 + $0x270] sm:$0x3]
        %v2806 = vld [vmem:[%s2726 + $0x278] sm:$0x3]
        %v2807 = vld [vmem:[%s2726 + $0x280] sm:$0x3]
        %v2812 = vrot.slane %v2641, 1
        %v2813 = vrot.slane %v2643, 1
        %v2814 = vsel %vm543, %v2812, %v2813
        %v2815 = vrot.slane %v2642, 1
        %v2816 = vrot.slane %v2644, 1
        %v2817 = vsel %vm543, %v2815, %v2816
        %vm2820 = vcmask 670720
        %v2821 = vsel %vm2820, %v2817, 0
        %v2823 = vsel %vm2820, %v2816, 0
        %vm2825 = vcmask 1041408
        %v2827 = vsel %vm2825, %v2805, 0
        %v2830 = vsel %vm2825, %v2806, 0
        %v2833 = vsel %vm2825, %v2807, 0
        %2835 = vmatprep.subr.mxu0 %v2728
        %2836 = vmatpush1.msra.mxu0 %v2727
        %2837 = vmatprep.subr.mxu0 %v2731
        %2838 = vmatpush1.msra.mxu0 %v2730
        %2839 = vmatprep.subr.mxu0 %v2734
        %2840 = vmatpush1.msra.mxu0 %v2733
        %2841 = vmatprep.subr.mxu0 %v2737
        %2842 = vmatpush1.msra.mxu0 %v2736
        %2843 = vmatprep.subr.mxu0 %v2740
        %2844 = vmatpush1.msra.mxu0 %v2739
        %2845 = vmatprep.subr.mxu0 %v2743
        %2846 = vmatpush1.msra.mxu0 %v2742
        %2847 = vmatprep.subr.mxu0 %v2746
        %2848 = vmatpush1.msra.mxu0 %v2745
        %2849 = vmatprep.subr.mxu0 %v2749
        %2850 = vmatpush1.msra.mxu0 %v2748
        %2851 = vmatprep.subr.mxu0 %v2752
        %2852 = vmatpush1.msra.mxu0 %v2751
        %2853 = vmatprep.subr.mxu0 %v2755
        %2854 = vmatpush1.msra.mxu0 %v2754
        %2855 = vmatprep.subr.mxu0 %v2758
        %2856 = vmatpush1.msra.mxu0 %v2757
        %2857 = vmatprep.subr.mxu0 %v2761
        %2858 = vmatpush1.msra.mxu0 %v2760
        %2859 = vmatprep.subr.mxu0 %v2764
        %2860 = vmatpush1.msra.mxu0 %v2763
        %2861 = vmatprep.subr.mxu0 %v2767
        %2862 = vmatpush1.msra.mxu0 %v2766
        %2863 = vmatprep.subr.mxu0 %v2770
        %2864 = vmatpush1.msra.mxu0 %v2769
        %2865 = vmatprep.subr.mxu0 %v2773
        %2866 = vmatpush1.msra.mxu0 %v2772
        %2867 = vmatprep.subr.mxu0 %v2776
        %2868 = vmatpush1.msra.mxu0 %v2775
        %2869 = vmatprep.subr.mxu0 %v2779
        %2870 = vmatpush1.msra.mxu0 %v2778
        %2871 = vmatprep.subr.mxu0 %v2782
        %2872 = vmatpush1.msra.mxu0 %v2781
        %2873 = vmatprep.subr.mxu0 %v2785
        %2874 = vmatpush1.msra.mxu0 %v2784
        %2875 = vmatprep.subr.mxu0 %v2788
        %2876 = vmatpush1.msra.mxu0 %v2787
        %2877 = vmatprep.subr.mxu0 %v2791
        %2878 = vmatpush1.msra.mxu0 %v2790
        %2879 = vmatprep.subr.mxu0 %v2794
        %2880 = vmatpush1.msra.mxu0 %v2793
        %2881 = vmatprep.subr.mxu0 %v2797
        %2882 = vmatpush1.msra.mxu0 %v2796
        %2883 = vmatprep.subr.mxu0 %v2800
        %2884 = vmatpush1.msra.mxu0 %v2799
        %2885 = vmatprep.subr.mxu0 %v2803
        %2886 = vmatpush1.msra.mxu0 %v2802
        %2887 = vmatprep.subr.mxu0 %v2830
        %2888 = vmatpush1.msra.mxu0 %v2827
        %2889 = vmatprep.subr.mxu0 0.0
        %2890 = vmatpush1.msra.mxu0 0.0
        %2891 = vmatprep.subr.mxu0 0.0
        %2892 = vmatpush1.msra.mxu0 0.0
        %2893 = vmatprep.subr.mxu0 0.0
        %2894 = vmatpush1.msra.mxu0 0.0
        %2895 = vmatprep.subr.mxu0 0.0
        %2896 = vmatpush1.msra.mxu0 0.0
        %2897 = vmatprep.subr.mxu0 0.0
        %2898 = vmatpush1.msra.mxu0 0.0
        %2899 = vmatprep.mubr.f32.mxu0 %v2821
        %2900 = vmatmul.mubr.f32.gmra.mrb[0].mxu0 %v2814
        %v2901 = vpop.f32.mrb[0].mxu0
        %v2902 = vadd.f32 0.0, %v2901
        %v2903 = vpop.f32.mrb[0].mxu0
        %v2904 = vadd.f32 0.0, %v2903
        %2905 = vmatprep.mubr.f32.mxu0 %v2823
        %2906 = vmatmul.mubr.f32.gmra.mrb[0].mxu0 %v2813
        %v2907 = vpop.f32.mrb[0].mxu0
        %v2908 = vadd.f32 0.0, %v2907
        %v2909 = vpop.f32.mrb[0].mxu0
        %v2910 = vadd.f32 0.0, %v2909
        %2911 = vdwg.mxu0
        %2912 = vmatprep.subr.mxu0 0.0
        %2913 = vmatpush1.msra.mxu0 %v2729
        %2914 = vmatprep.subr.mxu0 0.0
        %2915 = vmatpush1.msra.mxu0 %v2732
        %2916 = vmatprep.subr.mxu0 0.0
        %2917 = vmatpush1.msra.mxu0 %v2735
        %2918 = vmatprep.subr.mxu0 0.0
        %2919 = vmatpush1.msra.mxu0 %v2738
        %2920 = vmatprep.subr.mxu0 0.0
        %2921 = vmatpush1.msra.mxu0 %v2741
        %2922 = vmatprep.subr.mxu0 0.0
        %2923 = vmatpush1.msra.mxu0 %v2744
        %2924 = vmatprep.subr.mxu0 0.0
        %2925 = vmatpush1.msra.mxu0 %v2747
        %2926 = vmatprep.subr.mxu0 0.0
        %2927 = vmatpush1.msra.mxu0 %v2750
        %2928 = vmatprep.subr.mxu0 0.0
        %2929 = vmatpush1.msra.mxu0 %v2753
        %2930 = vmatprep.subr.mxu0 0.0
        %2931 = vmatpush1.msra.mxu0 %v2756
        %2932 = vmatprep.subr.mxu0 0.0
        %2933 = vmatpush1.msra.mxu0 %v2759
        %2934 = vmatprep.subr.mxu0 0.0
        %2935 = vmatpush1.msra.mxu0 %v2762
        %2936 = vmatprep.subr.mxu0 0.0
        %2937 = vmatpush1.msra.mxu0 %v2765
        %2938 = vmatprep.subr.mxu0 0.0
        %2939 = vmatpush1.msra.mxu0 %v2768
        %2940 = vmatprep.subr.mxu0 0.0
        %2941 = vmatpush1.msra.mxu0 %v2771
        %2942 = vmatprep.subr.mxu0 0.0
        %2943 = vmatpush1.msra.mxu0 %v2774
        %2944 = vmatprep.subr.mxu0 0.0
        %2945 = vmatpush1.msra.mxu0 %v2777
        %2946 = vmatprep.subr.mxu0 0.0
        %2947 = vmatpush1.msra.mxu0 %v2780
        %2948 = vmatprep.subr.mxu0 0.0
        %2949 = vmatpush1.msra.mxu0 %v2783
        %2950 = vmatprep.subr.mxu0 0.0
        %2951 = vmatpush1.msra.mxu0 %v2786
        %2952 = vmatprep.subr.mxu0 0.0
        %2953 = vmatpush1.msra.mxu0 %v2789
        %2954 = vmatprep.subr.mxu0 0.0
        %2955 = vmatpush1.msra.mxu0 %v2792
        %2956 = vmatprep.subr.mxu0 0.0
        %2957 = vmatpush1.msra.mxu0 %v2795
        %2958 = vmatprep.subr.mxu0 0.0
        %2959 = vmatpush1.msra.mxu0 %v2798
        %2960 = vmatprep.subr.mxu0 0.0
        %2961 = vmatpush1.msra.mxu0 %v2801
        %2962 = vmatprep.subr.mxu0 0.0
        %2963 = vmatpush1.msra.mxu0 %v2804
        %2964 = vmatprep.subr.mxu0 0.0
        %2965 = vmatpush1.msra.mxu0 %v2833
        %2966 = vmatprep.subr.mxu0 0.0
        %2967 = vmatpush1.msra.mxu0 0.0
        %2968 = vmatprep.subr.mxu0 0.0
        %2969 = vmatpush1.msra.mxu0 0.0
        %2970 = vmatprep.subr.mxu0 0.0
        %2971 = vmatpush1.msra.mxu0 0.0
        %2972 = vmatprep.subr.mxu0 0.0
        %2973 = vmatpush1.msra.mxu0 0.0
        %2974 = vmatprep.subr.mxu0 0.0
        %2975 = vmatpush1.msra.mxu0 0.0
        %2976 = vmatprep.mubr.f32.mxu0 %v2821
        %2977 = vmatmul.mubr.f32.gmra.mrb[0].mxu0 %v2814
        %v2978 = vpop.f32.mrb[0].mxu0
        %v2979 = vadd.f32 0.0, %v2978
        %v2980 = vpop.f32.mrb[0].mxu0
        %2981 = vmatprep.mubr.f32.mxu0 %v2823
        %2982 = vmatmul.mubr.f32.gmra.mrb[0].mxu0 %v2813
        %v2983 = vpop.f32.mrb[0].mxu0
        %v2984 = vadd.f32 0.0, %v2983
        %v2985 = vpop.f32.mrb[0].mxu0
        %2986 = vdwg.mxu0
        %v2987 = vsel %vm2820, %v2642, 0
        %v2989 = vsel %vm2820, %v2644, 0
        %v2992 = vsel %vm2825, %v2723, 0
        %v2995 = vsel %vm2825, %v2724, 0
        %v2998 = vsel %vm2825, %v2725, 0
        %3000 = vmatprep.subr.mxu0 %v2646
        %3001 = vmatpush1.msra.mxu0 %v2645
        %3002 = vmatprep.subr.mxu0 %v2649
        %3003 = vmatpush1.msra.mxu0 %v2648
        %3004 = vmatprep.subr.mxu0 %v2652
        %3005 = vmatpush1.msra.mxu0 %v2651
        %3006 = vmatprep.subr.mxu0 %v2655
        %3007 = vmatpush1.msra.mxu0 %v2654
        %3008 = vmatprep.subr.mxu0 %v2658
        %3009 = vmatpush1.msra.mxu0 %v2657
        %3010 = vmatprep.subr.mxu0 %v2661
        %3011 = vmatpush1.msra.mxu0 %v2660
        %3012 = vmatprep.subr.mxu0 %v2664
        %3013 = vmatpush1.msra.mxu0 %v2663
        %3014 = vmatprep.subr.mxu0 %v2667
        %3015 = vmatpush1.msra.mxu0 %v2666
        %3016 = vmatprep.subr.mxu0 %v2670
        %3017 = vmatpush1.msra.mxu0 %v2669
        %3018 = vmatprep.subr.mxu0 %v2673
        %3019 = vmatpush1.msra.mxu0 %v2672
        %3020 = vmatprep.subr.mxu0 %v2676
        %3021 = vmatpush1.msra.mxu0 %v2675
        %3022 = vmatprep.subr.mxu0 %v2679
        %3023 = vmatpush1.msra.mxu0 %v2678
        %3024 = vmatprep.subr.mxu0 %v2682
        %3025 = vmatpush1.msra.mxu0 %v2681
        %3026 = vmatprep.subr.mxu0 %v2685
        %3027 = vmatpush1.msra.mxu0 %v2684
        %3028 = vmatprep.subr.mxu0 %v2688
        %3029 = vmatpush1.msra.mxu0 %v2687
        %3030 = vmatprep.subr.mxu0 %v2691
        %3031 = vmatpush1.msra.mxu0 %v2690
        %3032 = vmatprep.subr.mxu0 %v2694
        %3033 = vmatpush1.msra.mxu0 %v2693
        %3034 = vmatprep.subr.mxu0 %v2697
        %3035 = vmatpush1.msra.mxu0 %v2696
        %3036 = vmatprep.subr.mxu0 %v2700
        %3037 = vmatpush1.msra.mxu0 %v2699
        %3038 = vmatprep.subr.mxu0 %v2703
        %3039 = vmatpush1.msra.mxu0 %v2702
        %3040 = vmatprep.subr.mxu0 %v2706
        %3041 = vmatpush1.msra.mxu0 %v2705
        %3042 = vmatprep.subr.mxu0 %v2709
        %3043 = vmatpush1.msra.mxu0 %v2708
        %3044 = vmatprep.subr.mxu0 %v2712
        %3045 = vmatpush1.msra.mxu0 %v2711
        %3046 = vmatprep.subr.mxu0 %v2715
        %3047 = vmatpush1.msra.mxu0 %v2714
        %3048 = vmatprep.subr.mxu0 %v2718
        %3049 = vmatpush1.msra.mxu0 %v2717
        %3050 = vmatprep.subr.mxu0 %v2721
        %3051 = vmatpush1.msra.mxu0 %v2720
        %3052 = vmatprep.subr.mxu0 %v2995
        %3053 = vmatpush1.msra.mxu0 %v2992
        %3054 = vmatprep.subr.mxu0 0.0
        %3055 = vmatpush1.msra.mxu0 0.0
        %3056 = vmatprep.subr.mxu0 0.0
        %3057 = vmatpush1.msra.mxu0 0.0
        %3058 = vmatprep.subr.mxu0 0.0
        %3059 = vmatpush1.msra.mxu0 0.0
        %3060 = vmatprep.subr.mxu0 0.0
        %3061 = vmatpush1.msra.mxu0 0.0
        %3062 = vmatprep.subr.mxu0 0.0
        %3063 = vmatpush1.msra.mxu0 0.0
        %3064 = vmatprep.mubr.f32.mxu0 %v2987
        %3065 = vmatmul.mubr.f32.gmra.mrb[0].mxu0 %v2641
        %v3066 = vpop.f32.mrb[0].mxu0
        %v3067 = vadd.f32 %v2902, %v3066
        %v3068 = vpop.f32.mrb[0].mxu0
        %v3069 = vadd.f32 %v2904, %v3068
        %3070 = vmatprep.mubr.f32.mxu0 %v2989
        %3071 = vmatmul.mubr.f32.gmra.mrb[0].mxu0 %v2643
        %v3072 = vpop.f32.mrb[0].mxu0
        %v3073 = vadd.f32 %v2908, %v3072
        %v3074 = vpop.f32.mrb[0].mxu0
        %v3075 = vadd.f32 %v2910, %v3074
        %3076 = vdwg.mxu0
        %3077 = vmatprep.subr.mxu0 0.0
        %3078 = vmatpush1.msra.mxu0 %v2647
        %3079 = vmatprep.subr.mxu0 0.0
        %3080 = vmatpush1.msra.mxu0 %v2650
        %3081 = vmatprep.subr.mxu0 0.0
        %3082 = vmatpush1.msra.mxu0 %v2653
        %3083 = vmatprep.subr.mxu0 0.0
        %3084 = vmatpush1.msra.mxu0 %v2656
        %3085 = vmatprep.subr.mxu0 0.0
        %3086 = vmatpush1.msra.mxu0 %v2659
        %3087 = vmatprep.subr.mxu0 0.0
        %3088 = vmatpush1.msra.mxu0 %v2662
        %3089 = vmatprep.subr.mxu0 0.0
        %3090 = vmatpush1.msra.mxu0 %v2665
        %3091 = vmatprep.subr.mxu0 0.0
        %3092 = vmatpush1.msra.mxu0 %v2668
        %3093 = vmatprep.subr.mxu0 0.0
        %3094 = vmatpush1.msra.mxu0 %v2671
        %3095 = vmatprep.subr.mxu0 0.0
        %3096 = vmatpush1.msra.mxu0 %v2674
        %3097 = vmatprep.subr.mxu0 0.0
        %3098 = vmatpush1.msra.mxu0 %v2677
        %3099 = vmatprep.subr.mxu0 0.0
        %3100 = vmatpush1.msra.mxu0 %v2680
        %3101 = vmatprep.subr.mxu0 0.0
        %3102 = vmatpush1.msra.mxu0 %v2683
        %3103 = vmatprep.subr.mxu0 0.0
        %3104 = vmatpush1.msra.mxu0 %v2686
        %3105 = vmatprep.subr.mxu0 0.0
        %3106 = vmatpush1.msra.mxu0 %v2689
        %3107 = vmatprep.subr.mxu0 0.0
        %3108 = vmatpush1.msra.mxu0 %v2692
        %3109 = vmatprep.subr.mxu0 0.0
        %3110 = vmatpush1.msra.mxu0 %v2695
        %3111 = vmatprep.subr.mxu0 0.0
        %3112 = vmatpush1.msra.mxu0 %v2698
        %3113 = vmatprep.subr.mxu0 0.0
        %3114 = vmatpush1.msra.mxu0 %v2701
        %3115 = vmatprep.subr.mxu0 0.0
        %3116 = vmatpush1.msra.mxu0 %v2704
        %3117 = vmatprep.subr.mxu0 0.0
        %3118 = vmatpush1.msra.mxu0 %v2707
        %3119 = vmatprep.subr.mxu0 0.0
        %3120 = vmatpush1.msra.mxu0 %v2710
        %3121 = vmatprep.subr.mxu0 0.0
        %3122 = vmatpush1.msra.mxu0 %v2713
        %3123 = vmatprep.subr.mxu0 0.0
        %3124 = vmatpush1.msra.mxu0 %v2716
        %3125 = vmatprep.subr.mxu0 0.0
        %3126 = vmatpush1.msra.mxu0 %v2719
        %3127 = vmatprep.subr.mxu0 0.0
        %3128 = vmatpush1.msra.mxu0 %v2722
        %3129 = vmatprep.subr.mxu0 0.0
        %3130 = vmatpush1.msra.mxu0 %v2998
        %3131 = vmatprep.subr.mxu0 0.0
        %3132 = vmatpush1.msra.mxu0 0.0
        %3133 = vmatprep.subr.mxu0 0.0
        %3134 = vmatpush1.msra.mxu0 0.0
        %3135 = vmatprep.subr.mxu0 0.0
        %3136 = vmatpush1.msra.mxu0 0.0
        %3137 = vmatprep.subr.mxu0 0.0
        %3138 = vmatpush1.msra.mxu0 0.0
        %3139 = vmatprep.subr.mxu0 0.0
        %3140 = vmatpush1.msra.mxu0 0.0
        %3141 = vmatprep.mubr.f32.mxu0 %v2987
        %3142 = vmatmul.mubr.f32.gmra.mrb[0].mxu0 %v2641
        %v3143 = vpop.f32.mrb[0].mxu0
        %v3144 = vadd.f32 %v2979, %v3143
        %v3145 = vpop.f32.mrb[0].mxu0
        %3146 = vmatprep.mubr.f32.mxu0 %v2989
        %3147 = vmatmul.mubr.f32.gmra.mrb[0].mxu0 %v2643
        %v3148 = vpop.f32.mrb[0].mxu0
        %v3149 = vadd.f32 %v2984, %v3148
        %v3150 = vpop.f32.mrb[0].mxu0
        %3151 = vdwg.mxu0
        %s3152 = scalar_lea.vmem %s5, 1296
        %v3153 = vld [vmem:[%s3152] sm:$0xff]
        %v3154 = vld [vmem:[%s3152 + $0x8] sm:$0xff]
        %v3155 = vld [vmem:[%s3152 + $0x10] sm:$0xff]
        %v3156 = vld [vmem:[%s3152 + $0x18] sm:$0xff]
        %v3157 = vld [vmem:[%s3152 + $0x20] sm:$0xff]
        %v3158 = vld [vmem:[%s3152 + $0x28] sm:$0xff]
        %v3159 = vld [vmem:[%s3152 + $0x30] sm:$0xff]
        %v3160 = vld [vmem:[%s3152 + $0x38] sm:$0xff]
        %v3161 = vld [vmem:[%s3152 + $0x40] sm:$0xff]
        %v3162 = vld [vmem:[%s3152 + $0x48] sm:$0xff]
        %v3163 = vld [vmem:[%s3152 + $0x50] sm:$0xff]
        %v3164 = vld [vmem:[%s3152 + $0x58] sm:$0xff]
        %v3165 = vld [vmem:[%s3152 + $0x60] sm:$0xff]
        %v3166 = vld [vmem:[%s3152 + $0x68] sm:$0xff]
        %v3167 = vld [vmem:[%s3152 + $0x70] sm:$0xff]
        %v3168 = vld [vmem:[%s3152 + $0x78] sm:$0xff]
        %v3169 = vld [vmem:[%s3152 + $0x80] sm:$0xff]
        %v3170 = vld [vmem:[%s3152 + $0x88] sm:$0xff]
        %v3171 = vld [vmem:[%s3152 + $0x90] sm:$0xff]
        %v3172 = vld [vmem:[%s3152 + $0x98] sm:$0xff]
        %v3173 = vld [vmem:[%s3152 + $0xa0] sm:$0xff]
        %v3174 = vld [vmem:[%s3152 + $0xa8] sm:$0xff]
        %v3175 = vld [vmem:[%s3152 + $0xb0] sm:$0xff]
        %v3176 = vld [vmem:[%s3152 + $0xb8] sm:$0xff]
        %v3177 = vld [vmem:[%s3152 + $0xc0] sm:$0xff]
        %v3178 = vld [vmem:[%s3152 + $0xc8] sm:$0xff]
        %v3179 = vld [vmem:[%s3152 + $0xd0] sm:$0xff]
        %v3180 = vld [vmem:[%s3152 + $0xd8] sm:$0xff]
        %v3181 = vld [vmem:[%s3152 + $0xe0] sm:$0xff]
        %v3182 = vld [vmem:[%s3152 + $0xe8] sm:$0xff]
        %v3183 = vld [vmem:[%s3152 + $0xf0] sm:$0xff]
        %v3184 = vld [vmem:[%s3152 + $0xf8] sm:$0xff]
        %v3185 = vld [vmem:[%s3152 + $0x100] sm:$0xff]
        %v3186 = vld [vmem:[%s3152 + $0x108] sm:$0xff]
        %v3187 = vld [vmem:[%s3152 + $0x110] sm:$0xff]
        %v3188 = vld [vmem:[%s3152 + $0x118] sm:$0xff]
        %v3189 = vld [vmem:[%s3152 + $0x120] sm:$0xff]
        %v3190 = vld [vmem:[%s3152 + $0x128] sm:$0xff]
        %v3191 = vld [vmem:[%s3152 + $0x130] sm:$0xff]
        %v3192 = vld [vmem:[%s3152 + $0x138] sm:$0xff]
        %v3193 = vld [vmem:[%s3152 + $0x140] sm:$0xff]
        %v3194 = vld [vmem:[%s3152 + $0x148] sm:$0xff]
        %v3195 = vld [vmem:[%s3152 + $0x150] sm:$0xff]
        %v3196 = vld [vmem:[%s3152 + $0x158] sm:$0xff]
        %v3197 = vld [vmem:[%s3152 + $0x160] sm:$0xff]
        %v3198 = vld [vmem:[%s3152 + $0x168] sm:$0xff]
        %v3199 = vld [vmem:[%s3152 + $0x170] sm:$0xff]
        %v3200 = vld [vmem:[%s3152 + $0x178] sm:$0xff]
        %v3201 = vld [vmem:[%s3152 + $0x180] sm:$0xff]
        %v3202 = vld [vmem:[%s3152 + $0x188] sm:$0xff]
        %v3203 = vld [vmem:[%s3152 + $0x190] sm:$0xff]
        %v3204 = vld [vmem:[%s3152 + $0x198] sm:$0xff]
        %v3205 = vld [vmem:[%s3152 + $0x1a0] sm:$0xff]
        %v3206 = vld [vmem:[%s3152 + $0x1a8] sm:$0xff]
        %v3207 = vld [vmem:[%s3152 + $0x1b0] sm:$0xff]
        %v3208 = vld [vmem:[%s3152 + $0x1b8] sm:$0xff]
        %v3209 = vld [vmem:[%s3152 + $0x1c0] sm:$0xff]
        %v3210 = vld [vmem:[%s3152 + $0x1c8] sm:$0xff]
        %v3211 = vld [vmem:[%s3152 + $0x1d0] sm:$0xff]
        %v3212 = vld [vmem:[%s3152 + $0x1d8] sm:$0xff]
        %v3213 = vld [vmem:[%s3152 + $0x1e0] sm:$0xff]
        %v3214 = vld [vmem:[%s3152 + $0x1e8] sm:$0xff]
        %v3215 = vld [vmem:[%s3152 + $0x1f0] sm:$0xff]
        %v3216 = vld [vmem:[%s3152 + $0x1f8] sm:$0xff]
        %v3217 = vld [vmem:[%s3152 + $0x200] sm:$0xff]
        %v3218 = vld [vmem:[%s3152 + $0x208] sm:$0xff]
        %v3219 = vld [vmem:[%s3152 + $0x210] sm:$0xff]
        %v3220 = vld [vmem:[%s3152 + $0x218] sm:$0xff]
        %v3221 = vld [vmem:[%s3152 + $0x220] sm:$0xff]
        %v3222 = vld [vmem:[%s3152 + $0x228] sm:$0xff]
        %v3223 = vld [vmem:[%s3152 + $0x230] sm:$0xff]
        %v3224 = vld [vmem:[%s3152 + $0x238] sm:$0xff]
        %v3225 = vld [vmem:[%s3152 + $0x240] sm:$0xff]
        %v3226 = vld [vmem:[%s3152 + $0x248] sm:$0xff]
        %v3227 = vld [vmem:[%s3152 + $0x250] sm:$0xff]
        %v3228 = vld [vmem:[%s3152 + $0x258] sm:$0xff]
        %v3229 = vld [vmem:[%s3152 + $0x260] sm:$0xff]
        %v3230 = vld [vmem:[%s3152 + $0x268] sm:$0xff]
        %v3231 = vld [vmem:[%s3152 + $0x270] sm:$0x3]
        %v3232 = vld [vmem:[%s3152 + $0x278] sm:$0x3]
        %v3233 = vld [vmem:[%s3152 + $0x280] sm:$0x3]
        %v3234 = vrot.slane %v2641, 2
        %v3235 = vrot.slane %v2643, 2
        %v3236 = vsel %vm973, %v3234, %v3235
        %v3237 = vrot.slane %v2642, 2
        %v3238 = vrot.slane %v2644, 2
        %v3239 = vsel %vm973, %v3237, %v3238
        %v3242 = vsel %vm2820, %v3239, 0
        %v3244 = vsel %vm2820, %v3238, 0
        %v3247 = vsel %vm2825, %v3231, 0
        %v3250 = vsel %vm2825, %v3232, 0
        %v3253 = vsel %vm2825, %v3233, 0
        %3255 = vmatprep.subr.mxu0 %v3154
        %3256 = vmatpush1.msra.mxu0 %v3153
        %3257 = vmatprep.subr.mxu0 %v3157
        %3258 = vmatpush1.msra.mxu0 %v3156
        %3259 = vmatprep.subr.mxu0 %v3160
        %3260 = vmatpush1.msra.mxu0 %v3159
        %3261 = vmatprep.subr.mxu0 %v3163
        %3262 = vmatpush1.msra.mxu0 %v3162
        %3263 = vmatprep.subr.mxu0 %v3166
        %3264 = vmatpush1.msra.mxu0 %v3165
        %3265 = vmatprep.subr.mxu0 %v3169
        %3266 = vmatpush1.msra.mxu0 %v3168
        %3267 = vmatprep.subr.mxu0 %v3172
        %3268 = vmatpush1.msra.mxu0 %v3171
        %3269 = vmatprep.subr.mxu0 %v3175
        %3270 = vmatpush1.msra.mxu0 %v3174
        %3271 = vmatprep.subr.mxu0 %v3178
        %3272 = vmatpush1.msra.mxu0 %v3177
        %3273 = vmatprep.subr.mxu0 %v3181
        %3274 = vmatpush1.msra.mxu0 %v3180
        %3275 = vmatprep.subr.mxu0 %v3184
        %3276 = vmatpush1.msra.mxu0 %v3183
        %3277 = vmatprep.subr.mxu0 %v3187
        %3278 = vmatpush1.msra.mxu0 %v3186
        %3279 = vmatprep.subr.mxu0 %v3190
        %3280 = vmatpush1.msra.mxu0 %v3189
        %3281 = vmatprep.subr.mxu0 %v3193
        %3282 = vmatpush1.msra.mxu0 %v3192
        %3283 = vmatprep.subr.mxu0 %v3196
        %3284 = vmatpush1.msra.mxu0 %v3195
        %3285 = vmatprep.subr.mxu0 %v3199
        %3286 = vmatpush1.msra.mxu0 %v3198
        %3287 = vmatprep.subr.mxu0 %v3202
        %3288 = vmatpush1.msra.mxu0 %v3201
        %3289 = vmatprep.subr.mxu0 %v3205
        %3290 = vmatpush1.msra.mxu0 %v3204
        %3291 = vmatprep.subr.mxu0 %v3208
        %3292 = vmatpush1.msra.mxu0 %v3207
        %3293 = vmatprep.subr.mxu0 %v3211
        %3294 = vmatpush1.msra.mxu0 %v3210
        %3295 = vmatprep.subr.mxu0 %v3214
        %3296 = vmatpush1.msra.mxu0 %v3213
        %3297 = vmatprep.subr.mxu0 %v3217
        %3298 = vmatpush1.msra.mxu0 %v3216
        %3299 = vmatprep.subr.mxu0 %v3220
        %3300 = vmatpush1.msra.mxu0 %v3219
        %3301 = vmatprep.subr.mxu0 %v3223
        %3302 = vmatpush1.msra.mxu0 %v3222
        %3303 = vmatprep.subr.mxu0 %v3226
        %3304 = vmatpush1.msra.mxu0 %v3225
        %3305 = vmatprep.subr.mxu0 %v3229
        %3306 = vmatpush1.msra.mxu0 %v3228
        %3307 = vmatprep.subr.mxu0 %v3250
        %3308 = vmatpush1.msra.mxu0 %v3247
        %3309 = vmatprep.subr.mxu0 0.0
        %3310 = vmatpush1.msra.mxu0 0.0
        %3311 = vmatprep.subr.mxu0 0.0
        %3312 = vmatpush1.msra.mxu0 0.0
        %3313 = vmatprep.subr.mxu0 0.0
        %3314 = vmatpush1.msra.mxu0 0.0
        %3315 = vmatprep.subr.mxu0 0.0
        %3316 = vmatpush1.msra.mxu0 0.0
        %3317 = vmatprep.subr.mxu0 0.0
        %3318 = vmatpush1.msra.mxu0 0.0
        %3319 = vmatprep.mubr.f32.mxu0 %v3242
        %3320 = vmatmul.mubr.f32.gmra.mrb[0].mxu0 %v3236
        %v3321 = vpop.f32.mrb[0].mxu0
        %v3322 = vadd.f32 0.0, %v3321
        %v3323 = vpop.f32.mrb[0].mxu0
        %v3324 = vadd.f32 0.0, %v3323
        %3325 = vmatprep.mubr.f32.mxu0 %v3244
        %3326 = vmatmul.mubr.f32.gmra.mrb[0].mxu0 %v3235
        %v3327 = vpop.f32.mrb[0].mxu0
        %v3328 = vadd.f32 0.0, %v3327
        %v3329 = vpop.f32.mrb[0].mxu0
        %v3330 = vadd.f32 0.0, %v3329
        %3331 = vdwg.mxu0
        %3332 = vmatprep.subr.mxu0 0.0
        %3333 = vmatpush1.msra.mxu0 %v3155
        %3334 = vmatprep.subr.mxu0 0.0
        %3335 = vmatpush1.msra.mxu0 %v3158
        %3336 = vmatprep.subr.mxu0 0.0
        %3337 = vmatpush1.msra.mxu0 %v3161
        %3338 = vmatprep.subr.mxu0 0.0
        %3339 = vmatpush1.msra.mxu0 %v3164
        %3340 = vmatprep.subr.mxu0 0.0
        %3341 = vmatpush1.msra.mxu0 %v3167
        %3342 = vmatprep.subr.mxu0 0.0
        %3343 = vmatpush1.msra.mxu0 %v3170
        %3344 = vmatprep.subr.mxu0 0.0
        %3345 = vmatpush1.msra.mxu0 %v3173
        %3346 = vmatprep.subr.mxu0 0.0
        %3347 = vmatpush1.msra.mxu0 %v3176
        %3348 = vmatprep.subr.mxu0 0.0
        %3349 = vmatpush1.msra.mxu0 %v3179
        %3350 = vmatprep.subr.mxu0 0.0
        %3351 = vmatpush1.msra.mxu0 %v3182
        %3352 = vmatprep.subr.mxu0 0.0
        %3353 = vmatpush1.msra.mxu0 %v3185
        %3354 = vmatprep.subr.mxu0 0.0
        %3355 = vmatpush1.msra.mxu0 %v3188
        %3356 = vmatprep.subr.mxu0 0.0
        %3357 = vmatpush1.msra.mxu0 %v3191
        %3358 = vmatprep.subr.mxu0 0.0
        %3359 = vmatpush1.msra.mxu0 %v3194
        %3360 = vmatprep.subr.mxu0 0.0
        %3361 = vmatpush1.msra.mxu0 %v3197
        %3362 = vmatprep.subr.mxu0 0.0
        %3363 = vmatpush1.msra.mxu0 %v3200
        %3364 = vmatprep.subr.mxu0 0.0
        %3365 = vmatpush1.msra.mxu0 %v3203
        %3366 = vmatprep.subr.mxu0 0.0
        %3367 = vmatpush1.msra.mxu0 %v3206
        %3368 = vmatprep.subr.mxu0 0.0
        %3369 = vmatpush1.msra.mxu0 %v3209
        %3370 = vmatprep.subr.mxu0 0.0
        %3371 = vmatpush1.msra.mxu0 %v3212
        %3372 = vmatprep.subr.mxu0 0.0
        %3373 = vmatpush1.msra.mxu0 %v3215
        %3374 = vmatprep.subr.mxu0 0.0
        %3375 = vmatpush1.msra.mxu0 %v3218
        %3376 = vmatprep.subr.mxu0 0.0
        %3377 = vmatpush1.msra.mxu0 %v3221
        %3378 = vmatprep.subr.mxu0 0.0
        %3379 = vmatpush1.msra.mxu0 %v3224
        %3380 = vmatprep.subr.mxu0 0.0
        %3381 = vmatpush1.msra.mxu0 %v3227
        %3382 = vmatprep.subr.mxu0 0.0
        %3383 = vmatpush1.msra.mxu0 %v3230
        %3384 = vmatprep.subr.mxu0 0.0
        %3385 = vmatpush1.msra.mxu0 %v3253
        %3386 = vmatprep.subr.mxu0 0.0
        %3387 = vmatpush1.msra.mxu0 0.0
        %3388 = vmatprep.subr.mxu0 0.0
        %3389 = vmatpush1.msra.mxu0 0.0
        %3390 = vmatprep.subr.mxu0 0.0
        %3391 = vmatpush1.msra.mxu0 0.0
        %3392 = vmatprep.subr.mxu0 0.0
        %3393 = vmatpush1.msra.mxu0 0.0
        %3394 = vmatprep.subr.mxu0 0.0
        %3395 = vmatpush1.msra.mxu0 0.0
        %3396 = vmatprep.mubr.f32.mxu0 %v3242
        %3397 = vmatmul.mubr.f32.gmra.mrb[0].mxu0 %v3236
        %v3398 = vpop.f32.mrb[0].mxu0
        %v3399 = vadd.f32 0.0, %v3398
        %v3400 = vpop.f32.mrb[0].mxu0
        %3401 = vmatprep.mubr.f32.mxu0 %v3244
        %3402 = vmatmul.mubr.f32.gmra.mrb[0].mxu0 %v3235
        %v3403 = vpop.f32.mrb[0].mxu0
        %v3404 = vadd.f32 0.0, %v3403
        %v3405 = vpop.f32.mrb[0].mxu0
        %3406 = vdwg.mxu0
        %v3407 = vadd.f32 %v3067, %v3322
        %v3408 = vadd.f32 %v3069, %v3324
        %v3409 = vadd.f32 %v3144, %v3399
        %v3410 = vadd.f32 %v3073, %v3328
        %v3411 = vadd.f32 %v3075, %v3330
        %v3412 = vadd.f32 %v3149, %v3404
        %s3413 = scalar_lea.vmem %s5, 1944
        %v3414 = vld [vmem:[%s3413] sm:$0xff]
        %v3415 = vld [vmem:[%s3413 + $0x8] sm:$0xff]
        %v3416 = vld [vmem:[%s3413 + $0x10] sm:$0xff]
        %v3417 = vld [vmem:[%s3413 + $0x18] sm:$0xff]
        %v3418 = vld [vmem:[%s3413 + $0x20] sm:$0xff]
        %v3419 = vld [vmem:[%s3413 + $0x28] sm:$0xff]
        %v3420 = vld [vmem:[%s3413 + $0x30] sm:$0xff]
        %v3421 = vld [vmem:[%s3413 + $0x38] sm:$0xff]
        %v3422 = vld [vmem:[%s3413 + $0x40] sm:$0xff]
        %v3423 = vld [vmem:[%s3413 + $0x48] sm:$0xff]
        %v3424 = vld [vmem:[%s3413 + $0x50] sm:$0xff]
        %v3425 = vld [vmem:[%s3413 + $0x58] sm:$0xff]
        %v3426 = vld [vmem:[%s3413 + $0x60] sm:$0xff]
        %v3427 = vld [vmem:[%s3413 + $0x68] sm:$0xff]
        %v3428 = vld [vmem:[%s3413 + $0x70] sm:$0xff]
        %v3429 = vld [vmem:[%s3413 + $0x78] sm:$0xff]
        %v3430 = vld [vmem:[%s3413 + $0x80] sm:$0xff]
        %v3431 = vld [vmem:[%s3413 + $0x88] sm:$0xff]
        %v3432 = vld [vmem:[%s3413 + $0x90] sm:$0xff]
        %v3433 = vld [vmem:[%s3413 + $0x98] sm:$0xff]
        %v3434 = vld [vmem:[%s3413 + $0xa0] sm:$0xff]
        %v3435 = vld [vmem:[%s3413 + $0xa8] sm:$0xff]
        %v3436 = vld [vmem:[%s3413 + $0xb0] sm:$0xff]
        %v3437 = vld [vmem:[%s3413 + $0xb8] sm:$0xff]
        %v3438 = vld [vmem:[%s3413 + $0xc0] sm:$0xff]
        %v3439 = vld [vmem:[%s3413 + $0xc8] sm:$0xff]
        %v3440 = vld [vmem:[%s3413 + $0xd0] sm:$0xff]
        %v3441 = vld [vmem:[%s3413 + $0xd8] sm:$0xff]
        %v3442 = vld [vmem:[%s3413 + $0xe0] sm:$0xff]
        %v3443 = vld [vmem:[%s3413 + $0xe8] sm:$0xff]
        %v3444 = vld [vmem:[%s3413 + $0xf0] sm:$0xff]
        %v3445 = vld [vmem:[%s3413 + $0xf8] sm:$0xff]
        %v3446 = vld [vmem:[%s3413 + $0x100] sm:$0xff]
        %v3447 = vld [vmem:[%s3413 + $0x108] sm:$0xff]
        %v3448 = vld [vmem:[%s3413 + $0x110] sm:$0xff]
        %v3449 = vld [vmem:[%s3413 + $0x118] sm:$0xff]
        %v3450 = vld [vmem:[%s3413 + $0x120] sm:$0xff]
        %v3451 = vld [vmem:[%s3413 + $0x128] sm:$0xff]
        %v3452 = vld [vmem:[%s3413 + $0x130] sm:$0xff]
        %v3453 = vld [vmem:[%s3413 + $0x138] sm:$0xff]
        %v3454 = vld [vmem:[%s3413 + $0x140] sm:$0xff]
        %v3455 = vld [vmem:[%s3413 + $0x148] sm:$0xff]
        %v3456 = vld [vmem:[%s3413 + $0x150] sm:$0xff]
        %v3457 = vld [vmem:[%s3413 + $0x158] sm:$0xff]
        %v3458 = vld [vmem:[%s3413 + $0x160] sm:$0xff]
        %v3459 = vld [vmem:[%s3413 + $0x168] sm:$0xff]
        %v3460 = vld [vmem:[%s3413 + $0x170] sm:$0xff]
        %v3461 = vld [vmem:[%s3413 + $0x178] sm:$0xff]
        %v3462 = vld [vmem:[%s3413 + $0x180] sm:$0xff]
        %v3463 = vld [vmem:[%s3413 + $0x188] sm:$0xff]
        %v3464 = vld [vmem:[%s3413 + $0x190] sm:$0xff]
        %v3465 = vld [vmem:[%s3413 + $0x198] sm:$0xff]
        %v3466 = vld [vmem:[%s3413 + $0x1a0] sm:$0xff]
        %v3467 = vld [vmem:[%s3413 + $0x1a8] sm:$0xff]
        %v3468 = vld [vmem:[%s3413 + $0x1b0] sm:$0xff]
        %v3469 = vld [vmem:[%s3413 + $0x1b8] sm:$0xff]
        %v3470 = vld [vmem:[%s3413 + $0x1c0] sm:$0xff]
        %v3471 = vld [vmem:[%s3413 + $0x1c8] sm:$0xff]
        %v3472 = vld [vmem:[%s3413 + $0x1d0] sm:$0xff]
        %v3473 = vld [vmem:[%s3413 + $0x1d8] sm:$0xff]
        %v3474 = vld [vmem:[%s3413 + $0x1e0] sm:$0xff]
        %v3475 = vld [vmem:[%s3413 + $0x1e8] sm:$0xff]
        %v3476 = vld [vmem:[%s3413 + $0x1f0] sm:$0xff]
        %v3477 = vld [vmem:[%s3413 + $0x1f8] sm:$0xff]
        %v3478 = vld [vmem:[%s3413 + $0x200] sm:$0xff]
        %v3479 = vld [vmem:[%s3413 + $0x208] sm:$0xff]
        %v3480 = vld [vmem:[%s3413 + $0x210] sm:$0xff]
        %v3481 = vld [vmem:[%s3413 + $0x218] sm:$0xff]
        %v3482 = vld [vmem:[%s3413 + $0x220] sm:$0xff]
        %v3483 = vld [vmem:[%s3413 + $0x228] sm:$0xff]
        %v3484 = vld [vmem:[%s3413 + $0x230] sm:$0xff]
        %v3485 = vld [vmem:[%s3413 + $0x238] sm:$0xff]
        %v3486 = vld [vmem:[%s3413 + $0x240] sm:$0xff]
        %v3487 = vld [vmem:[%s3413 + $0x248] sm:$0xff]
        %v3488 = vld [vmem:[%s3413 + $0x250] sm:$0xff]
        %v3489 = vld [vmem:[%s3413 + $0x258] sm:$0xff]
        %v3490 = vld [vmem:[%s3413 + $0x260] sm:$0xff]
        %v3491 = vld [vmem:[%s3413 + $0x268] sm:$0xff]
        %v3492 = vld [vmem:[%s3413 + $0x270] sm:$0x3]
        %v3493 = vld [vmem:[%s3413 + $0x278] sm:$0x3]
        %v3494 = vld [vmem:[%s3413 + $0x280] sm:$0x3]
        %v3495 = vrot.slane %v2641, 3
        %v3496 = vrot.slane %v2643, 3
        %v3497 = vsel %vm1232, %v3495, %v3496
        %v3498 = vrot.slane %v2642, 3
        %v3499 = vrot.slane %v2644, 3
        %v3500 = vsel %vm1232, %v3498, %v3499
        %v3503 = vsel %vm2820, %v3500, 0
        %v3505 = vsel %vm2820, %v3499, 0
        %v3508 = vsel %vm2825, %v3492, 0
        %v3511 = vsel %vm2825, %v3493, 0
        %v3514 = vsel %vm2825, %v3494, 0
        %3516 = vmatprep.subr.mxu0 %v3415
        %3517 = vmatpush1.msra.mxu0 %v3414
        %3518 = vmatprep.subr.mxu0 %v3418
        %3519 = vmatpush1.msra.mxu0 %v3417
        %3520 = vmatprep.subr.mxu0 %v3421
        %3521 = vmatpush1.msra.mxu0 %v3420
        %3522 = vmatprep.subr.mxu0 %v3424
        %3523 = vmatpush1.msra.mxu0 %v3423
        %3524 = vmatprep.subr.mxu0 %v3427
        %3525 = vmatpush1.msra.mxu0 %v3426
        %3526 = vmatprep.subr.mxu0 %v3430
        %3527 = vmatpush1.msra.mxu0 %v3429
        %3528 = vmatprep.subr.mxu0 %v3433
        %3529 = vmatpush1.msra.mxu0 %v3432
        %3530 = vmatprep.subr.mxu0 %v3436
        %3531 = vmatpush1.msra.mxu0 %v3435
        %3532 = vmatprep.subr.mxu0 %v3439
        %3533 = vmatpush1.msra.mxu0 %v3438
        %3534 = vmatprep.subr.mxu0 %v3442
        %3535 = vmatpush1.msra.mxu0 %v3441
        %3536 = vmatprep.subr.mxu0 %v3445
        %3537 = vmatpush1.msra.mxu0 %v3444
        %3538 = vmatprep.subr.mxu0 %v3448
        %3539 = vmatpush1.msra.mxu0 %v3447
        %3540 = vmatprep.subr.mxu0 %v3451
        %3541 = vmatpush1.msra.mxu0 %v3450
        %3542 = vmatprep.subr.mxu0 %v3454
        %3543 = vmatpush1.msra.mxu0 %v3453
        %3544 = vmatprep.subr.mxu0 %v3457
        %3545 = vmatpush1.msra.mxu0 %v3456
        %3546 = vmatprep.subr.mxu0 %v3460
        %3547 = vmatpush1.msra.mxu0 %v3459
        %3548 = vmatprep.subr.mxu0 %v3463
        %3549 = vmatpush1.msra.mxu0 %v3462
        %3550 = vmatprep.subr.mxu0 %v3466
        %3551 = vmatpush1.msra.mxu0 %v3465
        %3552 = vmatprep.subr.mxu0 %v3469
        %3553 = vmatpush1.msra.mxu0 %v3468
        %3554 = vmatprep.subr.mxu0 %v3472
        %3555 = vmatpush1.msra.mxu0 %v3471
        %3556 = vmatprep.subr.mxu0 %v3475
        %3557 = vmatpush1.msra.mxu0 %v3474
        %3558 = vmatprep.subr.mxu0 %v3478
        %3559 = vmatpush1.msra.mxu0 %v3477
        %3560 = vmatprep.subr.mxu0 %v3481
        %3561 = vmatpush1.msra.mxu0 %v3480
        %3562 = vmatprep.subr.mxu0 %v3484
        %3563 = vmatpush1.msra.mxu0 %v3483
        %3564 = vmatprep.subr.mxu0 %v3487
        %3565 = vmatpush1.msra.mxu0 %v3486
        %3566 = vmatprep.subr.mxu0 %v3490
        %3567 = vmatpush1.msra.mxu0 %v3489
        %3568 = vmatprep.subr.mxu0 %v3511
        %3569 = vmatpush1.msra.mxu0 %v3508
        %3570 = vmatprep.subr.mxu0 0.0
        %3571 = vmatpush1.msra.mxu0 0.0
        %3572 = vmatprep.subr.mxu0 0.0
        %3573 = vmatpush1.msra.mxu0 0.0
        %3574 = vmatprep.subr.mxu0 0.0
        %3575 = vmatpush1.msra.mxu0 0.0
        %3576 = vmatprep.subr.mxu0 0.0
        %3577 = vmatpush1.msra.mxu0 0.0
        %3578 = vmatprep.subr.mxu0 0.0
        %3579 = vmatpush1.msra.mxu0 0.0
        %3580 = vmatprep.mubr.f32.mxu0 %v3503
        %3581 = vmatmul.mubr.f32.gmra.mrb[0].mxu0 %v3497
        %v3582 = vpop.f32.mrb[0].mxu0
        %v3583 = vadd.f32 0.0, %v3582
        %v3584 = vpop.f32.mrb[0].mxu0
        %v3585 = vadd.f32 0.0, %v3584
        %3586 = vmatprep.mubr.f32.mxu0 %v3505
        %3587 = vmatmul.mubr.f32.gmra.mrb[0].mxu0 %v3496
        %v3588 = vpop.f32.mrb[0].mxu0
        %v3589 = vadd.f32 0.0, %v3588
        %v3590 = vpop.f32.mrb[0].mxu0
        %v3591 = vadd.f32 0.0, %v3590
        %3592 = vdwg.mxu0
        %3593 = vmatprep.subr.mxu0 0.0
        %3594 = vmatpush1.msra.mxu0 %v3416
        %3595 = vmatprep.subr.mxu0 0.0
        %3596 = vmatpush1.msra.mxu0 %v3419
        %3597 = vmatprep.subr.mxu0 0.0
        %3598 = vmatpush1.msra.mxu0 %v3422
        %3599 = vmatprep.subr.mxu0 0.0
        %3600 = vmatpush1.msra.mxu0 %v3425
        %3601 = vmatprep.subr.mxu0 0.0
        %3602 = vmatpush1.msra.mxu0 %v3428
        %3603 = vmatprep.subr.mxu0 0.0
        %3604 = vmatpush1.msra.mxu0 %v3431
        %3605 = vmatprep.subr.mxu0 0.0
        %3606 = vmatpush1.msra.mxu0 %v3434
        %3607 = vmatprep.subr.mxu0 0.0
        %3608 = vmatpush1.msra.mxu0 %v3437
        %3609 = vmatprep.subr.mxu0 0.0
        %3610 = vmatpush1.msra.mxu0 %v3440
        %3611 = vmatprep.subr.mxu0 0.0
        %3612 = vmatpush1.msra.mxu0 %v3443
        %3613 = vmatprep.subr.mxu0 0.0
        %3614 = vmatpush1.msra.mxu0 %v3446
        %3615 = vmatprep.subr.mxu0 0.0
        %3616 = vmatpush1.msra.mxu0 %v3449
        %3617 = vmatprep.subr.mxu0 0.0
        %3618 = vmatpush1.msra.mxu0 %v3452
        %3619 = vmatprep.subr.mxu0 0.0
        %3620 = vmatpush1.msra.mxu0 %v3455
        %3621 = vmatprep.subr.mxu0 0.0
        %3622 = vmatpush1.msra.mxu0 %v3458
        %3623 = vmatprep.subr.mxu0 0.0
        %3624 = vmatpush1.msra.mxu0 %v3461
        %3625 = vmatprep.subr.mxu0 0.0
        %3626 = vmatpush1.msra.mxu0 %v3464
        %3627 = vmatprep.subr.mxu0 0.0
        %3628 = vmatpush1.msra.mxu0 %v3467
        %3629 = vmatprep.subr.mxu0 0.0
        %3630 = vmatpush1.msra.mxu0 %v3470
        %3631 = vmatprep.subr.mxu0 0.0
        %3632 = vmatpush1.msra.mxu0 %v3473
        %3633 = vmatprep.subr.mxu0 0.0
        %3634 = vmatpush1.msra.mxu0 %v3476
        %3635 = vmatprep.subr.mxu0 0.0
        %3636 = vmatpush1.msra.mxu0 %v3479
        %3637 = vmatprep.subr.mxu0 0.0
        %3638 = vmatpush1.msra.mxu0 %v3482
        %3639 = vmatprep.subr.mxu0 0.0
        %3640 = vmatpush1.msra.mxu0 %v3485
        %3641 = vmatprep.subr.mxu0 0.0
        %3642 = vmatpush1.msra.mxu0 %v3488
        %3643 = vmatprep.subr.mxu0 0.0
        %3644 = vmatpush1.msra.mxu0 %v3491
        %3645 = vmatprep.subr.mxu0 0.0
        %3646 = vmatpush1.msra.mxu0 %v3514
        %3647 = vmatprep.subr.mxu0 0.0
        %3648 = vmatpush1.msra.mxu0 0.0
        %3649 = vmatprep.subr.mxu0 0.0
        %3650 = vmatpush1.msra.mxu0 0.0
        %3651 = vmatprep.subr.mxu0 0.0
        %3652 = vmatpush1.msra.mxu0 0.0
        %3653 = vmatprep.subr.mxu0 0.0
        %3654 = vmatpush1.msra.mxu0 0.0
        %3655 = vmatprep.subr.mxu0 0.0
        %3656 = vmatpush1.msra.mxu0 0.0
        %3657 = vmatprep.mubr.f32.mxu0 %v3503
        %3658 = vmatmul.mubr.f32.gmra.mrb[0].mxu0 %v3497
        %v3659 = vpop.f32.mrb[0].mxu0
        %v3660 = vadd.f32 0.0, %v3659
        %v3661 = vpop.f32.mrb[0].mxu0
        %3662 = vmatprep.mubr.f32.mxu0 %v3505
        %3663 = vmatmul.mubr.f32.gmra.mrb[0].mxu0 %v3496
        %v3664 = vpop.f32.mrb[0].mxu0
        %v3665 = vadd.f32 0.0, %v3664
        %v3666 = vpop.f32.mrb[0].mxu0
        %3667 = vdwg.mxu0
        %v3668 = vadd.f32 %v3407, %v3583
        %v3669 = vadd.f32 %v3408, %v3585
        %v3670 = vadd.f32 %v3409, %v3660
        %v3671 = vadd.f32 %v3410, %v3589
        %v3672 = vadd.f32 %v3411, %v3591
        %v3673 = vadd.f32 %v3412, %v3665
        %s3674 = scalar_lea.vmem %s5, 2592
        %v3675 = vld [vmem:[%s3674] sm:$0xff]
        %v3676 = vld [vmem:[%s3674 + $0x8] sm:$0xff]
        %v3677 = vld [vmem:[%s3674 + $0x10] sm:$0xff]
        %v3678 = vld [vmem:[%s3674 + $0x18] sm:$0xff]
        %v3679 = vld [vmem:[%s3674 + $0x20] sm:$0xff]
        %v3680 = vld [vmem:[%s3674 + $0x28] sm:$0xff]
        %v3681 = vld [vmem:[%s3674 + $0x30] sm:$0xff]
        %v3682 = vld [vmem:[%s3674 + $0x38] sm:$0xff]
        %v3683 = vld [vmem:[%s3674 + $0x40] sm:$0xff]
        %v3684 = vld [vmem:[%s3674 + $0x48] sm:$0xff]
        %v3685 = vld [vmem:[%s3674 + $0x50] sm:$0xff]
        %v3686 = vld [vmem:[%s3674 + $0x58] sm:$0xff]
        %v3687 = vld [vmem:[%s3674 + $0x60] sm:$0xff]
        %v3688 = vld [vmem:[%s3674 + $0x68] sm:$0xff]
        %v3689 = vld [vmem:[%s3674 + $0x70] sm:$0xff]
        %v3690 = vld [vmem:[%s3674 + $0x78] sm:$0xff]
        %v3691 = vld [vmem:[%s3674 + $0x80] sm:$0xff]
        %v3692 = vld [vmem:[%s3674 + $0x88] sm:$0xff]
        %v3693 = vld [vmem:[%s3674 + $0x90] sm:$0xff]
        %v3694 = vld [vmem:[%s3674 + $0x98] sm:$0xff]
        %v3695 = vld [vmem:[%s3674 + $0xa0] sm:$0xff]
        %v3696 = vld [vmem:[%s3674 + $0xa8] sm:$0xff]
        %v3697 = vld [vmem:[%s3674 + $0xb0] sm:$0xff]
        %v3698 = vld [vmem:[%s3674 + $0xb8] sm:$0xff]
        %v3699 = vld [vmem:[%s3674 + $0xc0] sm:$0xff]
        %v3700 = vld [vmem:[%s3674 + $0xc8] sm:$0xff]
        %v3701 = vld [vmem:[%s3674 + $0xd0] sm:$0xff]
        %v3702 = vld [vmem:[%s3674 + $0xd8] sm:$0xff]
        %v3703 = vld [vmem:[%s3674 + $0xe0] sm:$0xff]
        %v3704 = vld [vmem:[%s3674 + $0xe8] sm:$0xff]
        %v3705 = vld [vmem:[%s3674 + $0xf0] sm:$0xff]
        %v3706 = vld [vmem:[%s3674 + $0xf8] sm:$0xff]
        %v3707 = vld [vmem:[%s3674 + $0x100] sm:$0xff]
        %v3708 = vld [vmem:[%s3674 + $0x108] sm:$0xff]
        %v3709 = vld [vmem:[%s3674 + $0x110] sm:$0xff]
        %v3710 = vld [vmem:[%s3674 + $0x118] sm:$0xff]
        %v3711 = vld [vmem:[%s3674 + $0x120] sm:$0xff]
        %v3712 = vld [vmem:[%s3674 + $0x128] sm:$0xff]
        %v3713 = vld [vmem:[%s3674 + $0x130] sm:$0xff]
        %v3714 = vld [vmem:[%s3674 + $0x138] sm:$0xff]
        %v3715 = vld [vmem:[%s3674 + $0x140] sm:$0xff]
        %v3716 = vld [vmem:[%s3674 + $0x148] sm:$0xff]
        %v3717 = vld [vmem:[%s3674 + $0x150] sm:$0xff]
        %v3718 = vld [vmem:[%s3674 + $0x158] sm:$0xff]
        %v3719 = vld [vmem:[%s3674 + $0x160] sm:$0xff]
        %v3720 = vld [vmem:[%s3674 + $0x168] sm:$0xff]
        %v3721 = vld [vmem:[%s3674 + $0x170] sm:$0xff]
        %v3722 = vld [vmem:[%s3674 + $0x178] sm:$0xff]
        %v3723 = vld [vmem:[%s3674 + $0x180] sm:$0xff]
        %v3724 = vld [vmem:[%s3674 + $0x188] sm:$0xff]
        %v3725 = vld [vmem:[%s3674 + $0x190] sm:$0xff]
        %v3726 = vld [vmem:[%s3674 + $0x198] sm:$0xff]
        %v3727 = vld [vmem:[%s3674 + $0x1a0] sm:$0xff]
        %v3728 = vld [vmem:[%s3674 + $0x1a8] sm:$0xff]
        %v3729 = vld [vmem:[%s3674 + $0x1b0] sm:$0xff]
        %v3730 = vld [vmem:[%s3674 + $0x1b8] sm:$0xff]
        %v3731 = vld [vmem:[%s3674 + $0x1c0] sm:$0xff]
        %v3732 = vld [vmem:[%s3674 + $0x1c8] sm:$0xff]
        %v3733 = vld [vmem:[%s3674 + $0x1d0] sm:$0xff]
        %v3734 = vld [vmem:[%s3674 + $0x1d8] sm:$0xff]
        %v3735 = vld [vmem:[%s3674 + $0x1e0] sm:$0xff]
        %v3736 = vld [vmem:[%s3674 + $0x1e8] sm:$0xff]
        %v3737 = vld [vmem:[%s3674 + $0x1f0] sm:$0xff]
        %v3738 = vld [vmem:[%s3674 + $0x1f8] sm:$0xff]
        %v3739 = vld [vmem:[%s3674 + $0x200] sm:$0xff]
        %v3740 = vld [vmem:[%s3674 + $0x208] sm:$0xff]
        %v3741 = vld [vmem:[%s3674 + $0x210] sm:$0xff]
        %v3742 = vld [vmem:[%s3674 + $0x218] sm:$0xff]
        %v3743 = vld [vmem:[%s3674 + $0x220] sm:$0xff]
        %v3744 = vld [vmem:[%s3674 + $0x228] sm:$0xff]
        %v3745 = vld [vmem:[%s3674 + $0x230] sm:$0xff]
        %v3746 = vld [vmem:[%s3674 + $0x238] sm:$0xff]
        %v3747 = vld [vmem:[%s3674 + $0x240] sm:$0xff]
        %v3748 = vld [vmem:[%s3674 + $0x248] sm:$0xff]
        %v3749 = vld [vmem:[%s3674 + $0x250] sm:$0xff]
        %v3750 = vld [vmem:[%s3674 + $0x258] sm:$0xff]
        %v3751 = vld [vmem:[%s3674 + $0x260] sm:$0xff]
        %v3752 = vld [vmem:[%s3674 + $0x268] sm:$0xff]
        %v3753 = vld [vmem:[%s3674 + $0x270] sm:$0x3]
        %v3754 = vld [vmem:[%s3674 + $0x278] sm:$0x3]
        %v3755 = vld [vmem:[%s3674 + $0x280] sm:$0x3]
        %v3756 = vrot.slane %v2641, 4
        %v3757 = vrot.slane %v2643, 4
        %v3758 = vsel %vm1491, %v3756, %v3757
        %v3759 = vrot.slane %v2642, 4
        %v3760 = vrot.slane %v2644, 4
        %v3761 = vsel %vm1491, %v3759, %v3760
        %v3764 = vsel %vm2820, %v3761, 0
        %v3766 = vsel %vm2820, %v3760, 0
        %v3769 = vsel %vm2825, %v3753, 0
        %v3772 = vsel %vm2825, %v3754, 0
        %v3775 = vsel %vm2825, %v3755, 0
        %3777 = vmatprep.subr.mxu0 %v3676
        %3778 = vmatpush1.msra.mxu0 %v3675
        %3779 = vmatprep.subr.mxu0 %v3679
        %3780 = vmatpush1.msra.mxu0 %v3678
        %3781 = vmatprep.subr.mxu0 %v3682
        %3782 = vmatpush1.msra.mxu0 %v3681
        %3783 = vmatprep.subr.mxu0 %v3685
        %3784 = vmatpush1.msra.mxu0 %v3684
        %3785 = vmatprep.subr.mxu0 %v3688
        %3786 = vmatpush1.msra.mxu0 %v3687
        %3787 = vmatprep.subr.mxu0 %v3691
        %3788 = vmatpush1.msra.mxu0 %v3690
        %3789 = vmatprep.subr.mxu0 %v3694
        %3790 = vmatpush1.msra.mxu0 %v3693
        %3791 = vmatprep.subr.mxu0 %v3697
        %3792 = vmatpush1.msra.mxu0 %v3696
        %3793 = vmatprep.subr.mxu0 %v3700
        %3794 = vmatpush1.msra.mxu0 %v3699
        %3795 = vmatprep.subr.mxu0 %v3703
        %3796 = vmatpush1.msra.mxu0 %v3702
        %3797 = vmatprep.subr.mxu0 %v3706
        %3798 = vmatpush1.msra.mxu0 %v3705
        %3799 = vmatprep.subr.mxu0 %v3709
        %3800 = vmatpush1.msra.mxu0 %v3708
        %3801 = vmatprep.subr.mxu0 %v3712
        %3802 = vmatpush1.msra.mxu0 %v3711
        %3803 = vmatprep.subr.mxu0 %v3715
        %3804 = vmatpush1.msra.mxu0 %v3714
        %3805 = vmatprep.subr.mxu0 %v3718
        %3806 = vmatpush1.msra.mxu0 %v3717
        %3807 = vmatprep.subr.mxu0 %v3721
        %3808 = vmatpush1.msra.mxu0 %v3720
        %3809 = vmatprep.subr.mxu0 %v3724
        %3810 = vmatpush1.msra.mxu0 %v3723
        %3811 = vmatprep.subr.mxu0 %v3727
        %3812 = vmatpush1.msra.mxu0 %v3726
        %3813 = vmatprep.subr.mxu0 %v3730
        %3814 = vmatpush1.msra.mxu0 %v3729
        %3815 = vmatprep.subr.mxu0 %v3733
        %3816 = vmatpush1.msra.mxu0 %v3732
        %3817 = vmatprep.subr.mxu0 %v3736
        %3818 = vmatpush1.msra.mxu0 %v3735
        %3819 = vmatprep.subr.mxu0 %v3739
        %3820 = vmatpush1.msra.mxu0 %v3738
        %3821 = vmatprep.subr.mxu0 %v3742
        %3822 = vmatpush1.msra.mxu0 %v3741
        %3823 = vmatprep.subr.mxu0 %v3745
        %3824 = vmatpush1.msra.mxu0 %v3744
        %3825 = vmatprep.subr.mxu0 %v3748
        %3826 = vmatpush1.msra.mxu0 %v3747
        %3827 = vmatprep.subr.mxu0 %v3751
        %3828 = vmatpush1.msra.mxu0 %v3750
        %3829 = vmatprep.subr.mxu0 %v3772
        %3830 = vmatpush1.msra.mxu0 %v3769
        %3831 = vmatprep.subr.mxu0 0.0
        %3832 = vmatpush1.msra.mxu0 0.0
        %3833 = vmatprep.subr.mxu0 0.0
        %3834 = vmatpush1.msra.mxu0 0.0
        %3835 = vmatprep.subr.mxu0 0.0
        %3836 = vmatpush1.msra.mxu0 0.0
        %3837 = vmatprep.subr.mxu0 0.0
        %3838 = vmatpush1.msra.mxu0 0.0
        %3839 = vmatprep.subr.mxu0 0.0
        %3840 = vmatpush1.msra.mxu0 0.0
        %3841 = vmatprep.mubr.f32.mxu0 %v3764
        %3842 = vmatmul.mubr.f32.gmra.mrb[0].mxu0 %v3758
        %v3843 = vpop.f32.mrb[0].mxu0
        %v3844 = vadd.f32 0.0, %v3843
        %v3845 = vpop.f32.mrb[0].mxu0
        %v3846 = vadd.f32 0.0, %v3845
        %3847 = vmatprep.mubr.f32.mxu0 %v3766
        %3848 = vmatmul.mubr.f32.gmra.mrb[0].mxu0 %v3757
        %v3849 = vpop.f32.mrb[0].mxu0
        %v3850 = vadd.f32 0.0, %v3849
        %v3851 = vpop.f32.mrb[0].mxu0
        %v3852 = vadd.f32 0.0, %v3851
        %3853 = vdwg.mxu0
        %3854 = vmatprep.subr.mxu0 0.0
        %3855 = vmatpush1.msra.mxu0 %v3677
        %3856 = vmatprep.subr.mxu0 0.0
        %3857 = vmatpush1.msra.mxu0 %v3680
        %3858 = vmatprep.subr.mxu0 0.0
        %3859 = vmatpush1.msra.mxu0 %v3683
        %3860 = vmatprep.subr.mxu0 0.0
        %3861 = vmatpush1.msra.mxu0 %v3686
        %3862 = vmatprep.subr.mxu0 0.0
        %3863 = vmatpush1.msra.mxu0 %v3689
        %3864 = vmatprep.subr.mxu0 0.0
        %3865 = vmatpush1.msra.mxu0 %v3692
        %3866 = vmatprep.subr.mxu0 0.0
        %3867 = vmatpush1.msra.mxu0 %v3695
        %3868 = vmatprep.subr.mxu0 0.0
        %3869 = vmatpush1.msra.mxu0 %v3698
        %3870 = vmatprep.subr.mxu0 0.0
        %3871 = vmatpush1.msra.mxu0 %v3701
        %3872 = vmatprep.subr.mxu0 0.0
        %3873 = vmatpush1.msra.mxu0 %v3704
        %3874 = vmatprep.subr.mxu0 0.0
        %3875 = vmatpush1.msra.mxu0 %v3707
        %3876 = vmatprep.subr.mxu0 0.0
        %3877 = vmatpush1.msra.mxu0 %v3710
        %3878 = vmatprep.subr.mxu0 0.0
        %3879 = vmatpush1.msra.mxu0 %v3713
        %3880 = vmatprep.subr.mxu0 0.0
        %3881 = vmatpush1.msra.mxu0 %v3716
        %3882 = vmatprep.subr.mxu0 0.0
        %3883 = vmatpush1.msra.mxu0 %v3719
        %3884 = vmatprep.subr.mxu0 0.0
        %3885 = vmatpush1.msra.mxu0 %v3722
        %3886 = vmatprep.subr.mxu0 0.0
        %3887 = vmatpush1.msra.mxu0 %v3725
        %3888 = vmatprep.subr.mxu0 0.0
        %3889 = vmatpush1.msra.mxu0 %v3728
        %3890 = vmatprep.subr.mxu0 0.0
        %3891 = vmatpush1.msra.mxu0 %v3731
        %3892 = vmatprep.subr.mxu0 0.0
        %3893 = vmatpush1.msra.mxu0 %v3734
        %3894 = vmatprep.subr.mxu0 0.0
        %3895 = vmatpush1.msra.mxu0 %v3737
        %3896 = vmatprep.subr.mxu0 0.0
        %3897 = vmatpush1.msra.mxu0 %v3740
        %3898 = vmatprep.subr.mxu0 0.0
        %3899 = vmatpush1.msra.mxu0 %v3743
        %3900 = vmatprep.subr.mxu0 0.0
        %3901 = vmatpush1.msra.mxu0 %v3746
        %3902 = vmatprep.subr.mxu0 0.0
        %3903 = vmatpush1.msra.mxu0 %v3749
        %3904 = vmatprep.subr.mxu0 0.0
        %3905 = vmatpush1.msra.mxu0 %v3752
        %3906 = vmatprep.subr.mxu0 0.0
        %3907 = vmatpush1.msra.mxu0 %v3775
        %3908 = vmatprep.subr.mxu0 0.0
        %3909 = vmatpush1.msra.mxu0 0.0
        %3910 = vmatprep.subr.mxu0 0.0
        %3911 = vmatpush1.msra.mxu0 0.0
        %3912 = vmatprep.subr.mxu0 0.0
        %3913 = vmatpush1.msra.mxu0 0.0
        %3914 = vmatprep.subr.mxu0 0.0
        %3915 = vmatpush1.msra.mxu0 0.0
        %3916 = vmatprep.subr.mxu0 0.0
        %3917 = vmatpush1.msra.mxu0 0.0
        %3918 = vmatprep.mubr.f32.mxu0 %v3764
        %3919 = vmatmul.mubr.f32.gmra.mrb[0].mxu0 %v3758
        %v3920 = vpop.f32.mrb[0].mxu0
        %v3921 = vadd.f32 0.0, %v3920
        %v3922 = vpop.f32.mrb[0].mxu0
        %3923 = vmatprep.mubr.f32.mxu0 %v3766
        %3924 = vmatmul.mubr.f32.gmra.mrb[0].mxu0 %v3757
        %v3925 = vpop.f32.mrb[0].mxu0
        %v3926 = vadd.f32 0.0, %v3925
        %v3927 = vpop.f32.mrb[0].mxu0
        %3928 = vdwg.mxu0
        %v3929 = vadd.f32 %v3668, %v3844
        %v3930 = vadd.f32 %v3669, %v3846
        %v3931 = vadd.f32 %v3670, %v3921
        %v3932 = vadd.f32 %v3671, %v3850
        %v3933 = vadd.f32 %v3672, %v3852
        %v3934 = vadd.f32 %v3673, %v3926
        %v3935 = vld [vmem:[%s6] sm:$0x7]
        %v3937 = vlaneseq
        %v3938 = vshrl.u32 %v3937, 7
        %v3939 = vsub.s32 0, %v3938
        %v3940 = vrot.slane %v3935, %v3939
        %v3941 = vlaneseq
        %v3942 = vshrl.u32 %v3941, 7
        %v3943 = vsub.s32 1, %v3942
        %v3944 = vrot.slane %v3935, %v3943
        %v3945 = vlaneseq
        %v3946 = vshrl.u32 %v3945, 7
        %v3947 = vsub.s32 2, %v3946
        %v3948 = vrot.slane %v3935, %v3947
        %v3952 = vadd.f32 %v3929, %v3940
        %v3953 = vadd.f32 %v3930, %v3944
        %v3954 = vadd.f32 %v3931, %v3948
        %v3955 = vadd.f32 %v3932, %v3940
        %v3956 = vadd.f32 %v3933, %v3944
        %v3957 = vadd.f32 %v3934, %v3948
        %v3958 = vmax.f32 %v3952, 0.0
        %v3959 = vmax.f32 %v3953, 0.0
        %v3960 = vmax.f32 %v3954, 0.0
        %v3961 = vmax.f32 %v3955, 0.0
        %v3962 = vmax.f32 %v3956, 0.0
        %v3963 = vmax.f32 %v3957, 0.0
        %v3964 = vld [vmem:[%s7] sm:$0x1f]
        %vm3965 = vcmask 80896
        %v3967 = vsel %vm3965, %v3964, 0
        %v3970 = vsel %vm2825, %v3961, 0
        %v3973 = vsel %vm2825, %v3962, 0
        %v3976 = vsel %vm2825, %v3963, 0
        %3978 = vmatprep.subr.mxu0 %v3959
        %3979 = vmatpush1.msra.mxu0 %v3958
        %3980 = vmatprep.subr.mxu0 %v3973
        %3981 = vmatpush1.msra.mxu0 %v3970
        %3982 = vmatprep.subr.mxu0 0.0
        %3983 = vmatpush1.msra.mxu0 0.0
        %3984 = vmatprep.subr.mxu0 0.0
        %3985 = vmatpush1.msra.mxu0 0.0
        %3986 = vmatprep.subr.mxu0 0.0
        %3987 = vmatpush1.msra.mxu0 0.0
        %3988 = vmatprep.subr.mxu0 0.0
        %3989 = vmatpush1.msra.mxu0 0.0
        %3990 = vmatprep.subr.mxu0 0.0
        %3991 = vmatpush1.msra.mxu0 0.0
        %3992 = vmatprep.subr.mxu0 0.0
        %3993 = vmatpush1.msra.mxu0 0.0
        %3994 = vmatprep.subr.mxu0 0.0
        %3995 = vmatpush1.msra.mxu0 0.0
        %3996 = vmatprep.subr.mxu0 0.0
        %3997 = vmatpush1.msra.mxu0 0.0
        %3998 = vmatprep.subr.mxu0 0.0
        %3999 = vmatpush1.msra.mxu0 0.0
        %4000 = vmatprep.subr.mxu0 0.0
        %4001 = vmatpush1.msra.mxu0 0.0
        %4002 = vmatprep.subr.mxu0 0.0
        %4003 = vmatpush1.msra.mxu0 0.0
        %4004 = vmatprep.subr.mxu0 0.0
        %4005 = vmatpush1.msra.mxu0 0.0
        %4006 = vmatprep.subr.mxu0 0.0
        %4007 = vmatpush1.msra.mxu0 0.0
        %4008 = vmatprep.subr.mxu0 0.0
        %4009 = vmatpush1.msra.mxu0 0.0
        %4010 = vmatprep.subr.mxu0 0.0
        %4011 = vmatpush1.msra.mxu0 0.0
        %4012 = vmatprep.subr.mxu0 0.0
        %4013 = vmatpush1.msra.mxu0 0.0
        %4014 = vmatprep.subr.mxu0 0.0
        %4015 = vmatpush1.msra.mxu0 0.0
        %4016 = vmatprep.subr.mxu0 0.0
        %4017 = vmatpush1.msra.mxu0 0.0
        %4018 = vmatprep.subr.mxu0 0.0
        %4019 = vmatpush1.msra.mxu0 0.0
        %4020 = vmatprep.subr.mxu0 0.0
        %4021 = vmatpush1.msra.mxu0 0.0
        %4022 = vmatprep.subr.mxu0 0.0
        %4023 = vmatpush1.msra.mxu0 0.0
        %4024 = vmatprep.subr.mxu0 0.0
        %4025 = vmatpush1.msra.mxu0 0.0
        %4026 = vmatprep.subr.mxu0 0.0
        %4027 = vmatpush1.msra.mxu0 0.0
        %4028 = vmatprep.subr.mxu0 0.0
        %4029 = vmatpush1.msra.mxu0 0.0
        %4030 = vmatprep.subr.mxu0 0.0
        %4031 = vmatpush1.msra.mxu0 0.0
        %4032 = vmatprep.subr.mxu0 0.0
        %4033 = vmatpush1.msra.mxu0 0.0
        %4034 = vmatprep.subr.mxu0 0.0
        %4035 = vmatpush1.msra.mxu0 0.0
        %4036 = vmatprep.subr.mxu0 0.0
        %4037 = vmatpush1.msra.mxu0 0.0
        %4038 = vmatprep.subr.mxu0 0.0
        %4039 = vmatpush1.msra.mxu0 0.0
        %4040 = vmatprep.subr.mxu0 0.0
        %4041 = vmatpush1.msra.mxu0 0.0
        %4042 = vmatprep.mubr.f32.mxu0 0.0
        %4043 = vmatmul.mubr.f32.gmra.mrb[0].mxu0 %v3967
        %v4044 = vpop.f32.mrb[0].mxu0
        %v4045 = vadd.f32 0.0, %v4044
        %v4046 = vpop.f32.mrb[0].mxu0
        %v4047 = vadd.f32 0.0, %v4046
        %4048 = vdwg.mxu0
        %4049 = vmatprep.subr.mxu0 0.0
        %4050 = vmatpush1.msra.mxu0 %v3960
        %4051 = vmatprep.subr.mxu0 0.0
        %4052 = vmatpush1.msra.mxu0 %v3976
        %4053 = vmatprep.subr.mxu0 0.0
        %4054 = vmatpush1.msra.mxu0 0.0
        %4055 = vmatprep.subr.mxu0 0.0
        %4056 = vmatpush1.msra.mxu0 0.0
        %4057 = vmatprep.subr.mxu0 0.0
        %4058 = vmatpush1.msra.mxu0 0.0
        %4059 = vmatprep.subr.mxu0 0.0
        %4060 = vmatpush1.msra.mxu0 0.0
        %4061 = vmatprep.subr.mxu0 0.0
        %4062 = vmatpush1.msra.mxu0 0.0
        %4063 = vmatprep.subr.mxu0 0.0
        %4064 = vmatpush1.msra.mxu0 0.0
        %4065 = vmatprep.subr.mxu0 0.0
        %4066 = vmatpush1.msra.mxu0 0.0
        %4067 = vmatprep.subr.mxu0 0.0
        %4068 = vmatpush1.msra.mxu0 0.0
        %4069 = vmatprep.subr.mxu0 0.0
        %4070 = vmatpush1.msra.mxu0 0.0
        %4071 = vmatprep.subr.mxu0 0.0
        %4072 = vmatpush1.msra.mxu0 0.0
        %4073 = vmatprep.subr.mxu0 0.0
        %4074 = vmatpush1.msra.mxu0 0.0
        %4075 = vmatprep.subr.mxu0 0.0
        %4076 = vmatpush1.msra.mxu0 0.0
        %4077 = vmatprep.subr.mxu0 0.0
        %4078 = vmatpush1.msra.mxu0 0.0
        %4079 = vmatprep.subr.mxu0 0.0
        %4080 = vmatpush1.msra.mxu0 0.0
        %4081 = vmatprep.subr.mxu0 0.0
        %4082 = vmatpush1.msra.mxu0 0.0
        %4083 = vmatprep.subr.mxu0 0.0
        %4084 = vmatpush1.msra.mxu0 0.0
        %4085 = vmatprep.subr.mxu0 0.0
        %4086 = vmatpush1.msra.mxu0 0.0
        %4087 = vmatprep.subr.mxu0 0.0
        %4088 = vmatpush1.msra.mxu0 0.0
        %4089 = vmatprep.subr.mxu0 0.0
        %4090 = vmatpush1.msra.mxu0 0.0
        %4091 = vmatprep.subr.mxu0 0.0
        %4092 = vmatpush1.msra.mxu0 0.0
        %4093 = vmatprep.subr.mxu0 0.0
        %4094 = vmatpush1.msra.mxu0 0.0
        %4095 = vmatprep.subr.mxu0 0.0
        %4096 = vmatpush1.msra.mxu0 0.0
        %4097 = vmatprep.subr.mxu0 0.0
        %4098 = vmatpush1.msra.mxu0 0.0
        %4099 = vmatprep.subr.mxu0 0.0
        %4100 = vmatpush1.msra.mxu0 0.0
        %4101 = vmatprep.subr.mxu0 0.0
        %4102 = vmatpush1.msra.mxu0 0.0
        %4103 = vmatprep.subr.mxu0 0.0
        %4104 = vmatpush1.msra.mxu0 0.0
        %4105 = vmatprep.subr.mxu0 0.0
        %4106 = vmatpush1.msra.mxu0 0.0
        %4107 = vmatprep.subr.mxu0 0.0
        %4108 = vmatpush1.msra.mxu0 0.0
        %4109 = vmatprep.subr.mxu0 0.0
        %4110 = vmatpush1.msra.mxu0 0.0
        %4111 = vmatprep.subr.mxu0 0.0
        %4112 = vmatpush1.msra.mxu0 0.0
        %4113 = vmatprep.mubr.f32.mxu0 0.0
        %4114 = vmatmul.mubr.f32.gmra.mrb[0].mxu0 %v3967
        %v4115 = vpop.f32.mrb[0].mxu0
        %v4116 = vadd.f32 0.0, %v4115
        %v4117 = vpop.f32.mrb[0].mxu0
        %4118 = vdwg.mxu0
        %s4119 = scalar_lea.vmem %s7, 8
        %v4120 = vld [vmem:[%s4119] sm:$0x1f]
        %v4122 = vsel %vm3965, %v4120, 0
        %4124 = vmatprep.subr.mxu0 %v3959
        %4125 = vmatpush1.msra.mxu0 %v3958
        %4126 = vmatprep.subr.mxu0 %v3973
        %4127 = vmatpush1.msra.mxu0 %v3970
        %4128 = vmatprep.subr.mxu0 0.0
        %4129 = vmatpush1.msra.mxu0 0.0
        %4130 = vmatprep.subr.mxu0 0.0
        %4131 = vmatpush1.msra.mxu0 0.0
        %4132 = vmatprep.subr.mxu0 0.0
        %4133 = vmatpush1.msra.mxu0 0.0
        %4134 = vmatprep.subr.mxu0 0.0
        %4135 = vmatpush1.msra.mxu0 0.0
        %4136 = vmatprep.subr.mxu0 0.0
        %4137 = vmatpush1.msra.mxu0 0.0
        %4138 = vmatprep.subr.mxu0 0.0
        %4139 = vmatpush1.msra.mxu0 0.0
        %4140 = vmatprep.subr.mxu0 0.0
        %4141 = vmatpush1.msra.mxu0 0.0
        %4142 = vmatprep.subr.mxu0 0.0
        %4143 = vmatpush1.msra.mxu0 0.0
        %4144 = vmatprep.subr.mxu0 0.0
        %4145 = vmatpush1.msra.mxu0 0.0
        %4146 = vmatprep.subr.mxu0 0.0
        %4147 = vmatpush1.msra.mxu0 0.0
        %4148 = vmatprep.subr.mxu0 0.0
        %4149 = vmatpush1.msra.mxu0 0.0
        %4150 = vmatprep.subr.mxu0 0.0
        %4151 = vmatpush1.msra.mxu0 0.0
        %4152 = vmatprep.subr.mxu0 0.0
        %4153 = vmatpush1.msra.mxu0 0.0
        %4154 = vmatprep.subr.mxu0 0.0
        %4155 = vmatpush1.msra.mxu0 0.0
        %4156 = vmatprep.subr.mxu0 0.0
        %4157 = vmatpush1.msra.mxu0 0.0
        %4158 = vmatprep.subr.mxu0 0.0
        %4159 = vmatpush1.msra.mxu0 0.0
        %4160 = vmatprep.subr.mxu0 0.0
        %4161 = vmatpush1.msra.mxu0 0.0
        %4162 = vmatprep.subr.mxu0 0.0
        %4163 = vmatpush1.msra.mxu0 0.0
        %4164 = vmatprep.subr.mxu0 0.0
        %4165 = vmatpush1.msra.mxu0 0.0
        %4166 = vmatprep.subr.mxu0 0.0
        %4167 = vmatpush1.msra.mxu0 0.0
        %4168 = vmatprep.subr.mxu0 0.0
        %4169 = vmatpush1.msra.mxu0 0.0
        %4170 = vmatprep.subr.mxu0 0.0
        %4171 = vmatpush1.msra.mxu0 0.0
        %4172 = vmatprep.subr.mxu0 0.0
        %4173 = vmatpush1.msra.mxu0 0.0
        %4174 = vmatprep.subr.mxu0 0.0
        %4175 = vmatpush1.msra.mxu0 0.0
        %4176 = vmatprep.subr.mxu0 0.0
        %4177 = vmatpush1.msra.mxu0 0.0
        %4178 = vmatprep.subr.mxu0 0.0
        %4179 = vmatpush1.msra.mxu0 0.0
        %4180 = vmatprep.subr.mxu0 0.0
        %4181 = vmatpush1.msra.mxu0 0.0
        %4182 = vmatprep.subr.mxu0 0.0
        %4183 = vmatpush1.msra.mxu0 0.0
        %4184 = vmatprep.subr.mxu0 0.0
        %4185 = vmatpush1.msra.mxu0 0.0
        %4186 = vmatprep.subr.mxu0 0.0
        %4187 = vmatpush1.msra.mxu0 0.0
        %4188 = vmatprep.mubr.f32.mxu0 0.0
        %4189 = vmatmul.mubr.f32.gmra.mrb[0].mxu0 %v4122
        %v4190 = vpop.f32.mrb[0].mxu0
        %v4191 = vadd.f32 0.0, %v4190
        %v4192 = vpop.f32.mrb[0].mxu0
        %v4193 = vadd.f32 0.0, %v4192
        %4194 = vdwg.mxu0
        %4195 = vmatprep.subr.mxu0 0.0
        %4196 = vmatpush1.msra.mxu0 %v3960
        %4197 = vmatprep.subr.mxu0 0.0
        %4198 = vmatpush1.msra.mxu0 %v3976
        %4199 = vmatprep.subr.mxu0 0.0
        %4200 = vmatpush1.msra.mxu0 0.0
        %4201 = vmatprep.subr.mxu0 0.0
        %4202 = vmatpush1.msra.mxu0 0.0
        %4203 = vmatprep.subr.mxu0 0.0
        %4204 = vmatpush1.msra.mxu0 0.0
        %4205 = vmatprep.subr.mxu0 0.0
        %4206 = vmatpush1.msra.mxu0 0.0
        %4207 = vmatprep.subr.mxu0 0.0
        %4208 = vmatpush1.msra.mxu0 0.0
        %4209 = vmatprep.subr.mxu0 0.0
        %4210 = vmatpush1.msra.mxu0 0.0
        %4211 = vmatprep.subr.mxu0 0.0
        %4212 = vmatpush1.msra.mxu0 0.0
        %4213 = vmatprep.subr.mxu0 0.0
        %4214 = vmatpush1.msra.mxu0 0.0
        %4215 = vmatprep.subr.mxu0 0.0
        %4216 = vmatpush1.msra.mxu0 0.0
        %4217 = vmatprep.subr.mxu0 0.0
        %4218 = vmatpush1.msra.mxu0 0.0
        %4219 = vmatprep.subr.mxu0 0.0
        %4220 = vmatpush1.msra.mxu0 0.0
        %4221 = vmatprep.subr.mxu0 0.0
        %4222 = vmatpush1.msra.mxu0 0.0
        %4223 = vmatprep.subr.mxu0 0.0
        %4224 = vmatpush1.msra.mxu0 0.0
        %4225 = vmatprep.subr.mxu0 0.0
        %4226 = vmatpush1.msra.mxu0 0.0
        %4227 = vmatprep.subr.mxu0 0.0
        %4228 = vmatpush1.msra.mxu0 0.0
        %4229 = vmatprep.subr.mxu0 0.0
        %4230 = vmatpush1.msra.mxu0 0.0
        %4231 = vmatprep.subr.mxu0 0.0
        %4232 = vmatpush1.msra.mxu0 0.0
        %4233 = vmatprep.subr.mxu0 0.0
        %4234 = vmatpush1.msra.mxu0 0.0
        %4235 = vmatprep.subr.mxu0 0.0
        %4236 = vmatpush1.msra.mxu0 0.0
        %4237 = vmatprep.subr.mxu0 0.0
        %4238 = vmatpush1.msra.mxu0 0.0
        %4239 = vmatprep.subr.mxu0 0.0
        %4240 = vmatpush1.msra.mxu0 0.0
        %4241 = vmatprep.subr.mxu0 0.0
        %4242 = vmatpush1.msra.mxu0 0.0
        %4243 = vmatprep.subr.mxu0 0.0
        %4244 = vmatpush1.msra.mxu0 0.0
        %4245 = vmatprep.subr.mxu0 0.0
        %4246 = vmatpush1.msra.mxu0 0.0
        %4247 = vmatprep.subr.mxu0 0.0
        %4248 = vmatpush1.msra.mxu0 0.0
        %4249 = vmatprep.subr.mxu0 0.0
        %4250 = vmatpush1.msra.mxu0 0.0
        %4251 = vmatprep.subr.mxu0 0.0
        %4252 = vmatpush1.msra.mxu0 0.0
        %4253 = vmatprep.subr.mxu0 0.0
        %4254 = vmatpush1.msra.mxu0 0.0
        %4255 = vmatprep.subr.mxu0 0.0
        %4256 = vmatpush1.msra.mxu0 0.0
        %4257 = vmatprep.subr.mxu0 0.0
        %4258 = vmatpush1.msra.mxu0 0.0
        %4259 = vmatprep.mubr.f32.mxu0 0.0
        %4260 = vmatmul.mubr.f32.gmra.mrb[0].mxu0 %v4122
        %v4261 = vpop.f32.mrb[0].mxu0
        %v4262 = vadd.f32 0.0, %v4261
        %v4263 = vpop.f32.mrb[0].mxu0
        %4264 = vdwg.mxu0
        %v4265 = vmax.f32 %v4045, %v4191
        %v4266 = vmax.f32 %v4047, %v4193
        %v4267 = vmax.f32 %v4116, %v4262
        %v4268 = vld [vmem:[%s8] sm:$0xff]
        %v4269 = vld [vmem:[%s8 + $0x8] sm:$0xff]
        %v4270 = vld [vmem:[%s8 + $0x10] sm:$0xff]
        %v4271 = vld [vmem:[%s8 + $0x18] sm:$0xff]
        %v4272 = vld [vmem:[%s8 + $0x20] sm:$0xff]
        %v4273 = vld [vmem:[%s8 + $0x28] sm:$0xff]
        %v4274 = vld [vmem:[%s8 + $0x30] sm:$0xff]
        %v4275 = vld [vmem:[%s8 + $0x38] sm:$0xff]
        %v4276 = vld [vmem:[%s8 + $0x40] sm:$0xff]
        %v4277 = vld [vmem:[%s8 + $0x48] sm:$0xff]
        %v4278 = vld [vmem:[%s8 + $0x50] sm:$0xff]
        %v4279 = vld [vmem:[%s8 + $0x58] sm:$0xff]
        %v4280 = vld [vmem:[%s8 + $0x60] sm:$0xff]
        %v4281 = vld [vmem:[%s8 + $0x68] sm:$0xff]
        %v4282 = vld [vmem:[%s8 + $0x70] sm:$0xff]
        %v4283 = vld [vmem:[%s8 + $0x78] sm:$0xff]
        %v4284 = vld [vmem:[%s8 + $0x80] sm:$0xff]
        %v4285 = vld [vmem:[%s8 + $0x88] sm:$0xff]
        %v4286 = vld [vmem:[%s8 + $0x90] sm:$0xff]
        %v4287 = vld [vmem:[%s8 + $0x98] sm:$0xff]
        %v4288 = vld [vmem:[%s8 + $0xa0] sm:$0xff]
        %v4289 = vld [vmem:[%s8 + $0xa8] sm:$0xff]
        %v4290 = vld [vmem:[%s8 + $0xb0] sm:$0xff]
        %v4291 = vld [vmem:[%s8 + $0xb8] sm:$0xff]
        %v4292 = vld [vmem:[%s8 + $0xc0] sm:$0xff]
        %v4293 = vld [vmem:[%s8 + $0xc8] sm:$0xff]
        %v4294 = vld [vmem:[%s8 + $0xd0] sm:$0xff]
        %v4295 = vld [vmem:[%s8 + $0xd8] sm:$0xff]
        %v4296 = vld [vmem:[%s8 + $0xe0] sm:$0xff]
        %v4297 = vld [vmem:[%s8 + $0xe8] sm:$0xff]
        %v4298 = vld [vmem:[%s8 + $0xf0] sm:$0xff]
        %v4299 = vld [vmem:[%s8 + $0xf8] sm:$0xff]
        %v4300 = vld [vmem:[%s8 + $0x100] sm:$0xff]
        %v4301 = vld [vmem:[%s8 + $0x108] sm:$0xff]
        %v4302 = vld [vmem:[%s8 + $0x110] sm:$0xff]
        %v4303 = vld [vmem:[%s8 + $0x118] sm:$0xff]
        %v4304 = vld [vmem:[%s8 + $0x120] sm:$0xff]
        %v4305 = vld [vmem:[%s8 + $0x128] sm:$0xff]
        %v4306 = vld [vmem:[%s8 + $0x130] sm:$0xff]
        %v4307 = vld [vmem:[%s8 + $0x138] sm:$0xff]
        %v4308 = vld [vmem:[%s8 + $0x140] sm:$0xff]
        %v4309 = vld [vmem:[%s8 + $0x148] sm:$0xff]
        %v4310 = vld [vmem:[%s8 + $0x150] sm:$0xff]
        %v4311 = vld [vmem:[%s8 + $0x158] sm:$0xff]
        %v4312 = vld [vmem:[%s8 + $0x160] sm:$0xff]
        %v4313 = vld [vmem:[%s8 + $0x168] sm:$0xff]
        %v4314 = vld [vmem:[%s8 + $0x170] sm:$0xff]
        %v4315 = vld [vmem:[%s8 + $0x178] sm:$0xff]
        %v4316 = vld [vmem:[%s8 + $0x180] sm:$0xff]
        %v4317 = vld [vmem:[%s8 + $0x188] sm:$0xff]
        %v4318 = vld [vmem:[%s8 + $0x190] sm:$0xff]
        %v4319 = vld [vmem:[%s8 + $0x198] sm:$0xff]
        %v4320 = vld [vmem:[%s8 + $0x1a0] sm:$0xff]
        %v4321 = vld [vmem:[%s8 + $0x1a8] sm:$0xff]
        %v4322 = vld [vmem:[%s8 + $0x1b0] sm:$0xff]
        %v4323 = vld [vmem:[%s8 + $0x1b8] sm:$0xff]
        %v4324 = vld [vmem:[%s8 + $0x1c0] sm:$0xff]
        %v4325 = vld [vmem:[%s8 + $0x1c8] sm:$0xff]
        %v4326 = vld [vmem:[%s8 + $0x1d0] sm:$0xff]
        %v4327 = vld [vmem:[%s8 + $0x1d8] sm:$0xff]
        %v4328 = vld [vmem:[%s8 + $0x1e0] sm:$0xff]
        %v4329 = vld [vmem:[%s8 + $0x1e8] sm:$0xff]
        %v4330 = vld [vmem:[%s8 + $0x1f0] sm:$0xff]
        %v4331 = vld [vmem:[%s8 + $0x1f8] sm:$0xff]
        %v4332 = vld [vmem:[%s8 + $0x200] sm:$0xff]
        %v4333 = vld [vmem:[%s8 + $0x208] sm:$0xff]
        %v4334 = vld [vmem:[%s8 + $0x210] sm:$0xff]
        %v4335 = vld [vmem:[%s8 + $0x218] sm:$0xff]
        %v4336 = vld [vmem:[%s8 + $0x220] sm:$0xff]
        %v4337 = vld [vmem:[%s8 + $0x228] sm:$0xff]
        %vm4338 = vcmask 195584
        %v4340 = vsel %vm4338, %v4267, 0
        %4342 = vmatprep.subr.mxu0 %v4269
        %4343 = vmatpush1.msra.mxu0 %v4268
        %4344 = vmatprep.subr.mxu0 %v4271
        %4345 = vmatpush1.msra.mxu0 %v4270
        %4346 = vmatprep.subr.mxu0 %v4273
        %4347 = vmatpush1.msra.mxu0 %v4272
        %4348 = vmatprep.subr.mxu0 %v4275
        %4349 = vmatpush1.msra.mxu0 %v4274
        %4350 = vmatprep.subr.mxu0 %v4277
        %4351 = vmatpush1.msra.mxu0 %v4276
        %4352 = vmatprep.subr.mxu0 %v4279
        %4353 = vmatpush1.msra.mxu0 %v4278
        %4354 = vmatprep.subr.mxu0 %v4281
        %4355 = vmatpush1.msra.mxu0 %v4280
        %4356 = vmatprep.subr.mxu0 %v4283
        %4357 = vmatpush1.msra.mxu0 %v4282
        %4358 = vmatprep.subr.mxu0 %v4285
        %4359 = vmatpush1.msra.mxu0 %v4284
        %4360 = vmatprep.subr.mxu0 %v4287
        %4361 = vmatpush1.msra.mxu0 %v4286
        %4362 = vmatprep.subr.mxu0 %v4289
        %4363 = vmatpush1.msra.mxu0 %v4288
        %4364 = vmatprep.subr.mxu0 %v4291
        %4365 = vmatpush1.msra.mxu0 %v4290
        %4366 = vmatprep.subr.mxu0 %v4293
        %4367 = vmatpush1.msra.mxu0 %v4292
        %4368 = vmatprep.subr.mxu0 %v4295
        %4369 = vmatpush1.msra.mxu0 %v4294
        %4370 = vmatprep.subr.mxu0 %v4297
        %4371 = vmatpush1.msra.mxu0 %v4296
        %4372 = vmatprep.subr.mxu0 %v4299
        %4373 = vmatpush1.msra.mxu0 %v4298
        %4374 = vmatprep.subr.mxu0 %v4301
        %4375 = vmatpush1.msra.mxu0 %v4300
        %4376 = vmatprep.subr.mxu0 %v4303
        %4377 = vmatpush1.msra.mxu0 %v4302
        %4378 = vmatprep.subr.mxu0 %v4305
        %4379 = vmatpush1.msra.mxu0 %v4304
        %4380 = vmatprep.subr.mxu0 %v4307
        %4381 = vmatpush1.msra.mxu0 %v4306
        %4382 = vmatprep.subr.mxu0 %v4309
        %4383 = vmatpush1.msra.mxu0 %v4308
        %4384 = vmatprep.subr.mxu0 %v4311
        %4385 = vmatpush1.msra.mxu0 %v4310
        %4386 = vmatprep.subr.mxu0 %v4313
        %4387 = vmatpush1.msra.mxu0 %v4312
        %4388 = vmatprep.subr.mxu0 %v4315
        %4389 = vmatpush1.msra.mxu0 %v4314
        %4390 = vmatprep.subr.mxu0 %v4317
        %4391 = vmatpush1.msra.mxu0 %v4316
        %4392 = vmatprep.subr.mxu0 %v4319
        %4393 = vmatpush1.msra.mxu0 %v4318
        %4394 = vmatprep.subr.mxu0 %v4321
        %4395 = vmatpush1.msra.mxu0 %v4320
        %4396 = vmatprep.subr.mxu0 %v4323
        %4397 = vmatpush1.msra.mxu0 %v4322
        %4398 = vmatprep.subr.mxu0 %v4325
        %4399 = vmatpush1.msra.mxu0 %v4324
        %4400 = vmatprep.subr.mxu0 %v4327
        %4401 = vmatpush1.msra.mxu0 %v4326
        %4402 = vmatprep.subr.mxu0 %v4329
        %4403 = vmatpush1.msra.mxu0 %v4328
        %4404 = vmatprep.subr.mxu0 %v4331
        %4405 = vmatpush1.msra.mxu0 %v4330
        %4406 = vmatprep.mubr.f32.mxu0 %v4266
        %4407 = vmatmul.mubr.f32.gmra.mrb[0].mxu0 %v4265
        %v4408 = vpop.f32.mrb[0].mxu0
        %v4409 = vadd.f32 0.0, %v4408
        %v4410 = vpop.f32.mrb[0].mxu0
        %v4411 = vadd.f32 0.0, %v4410
        %4412 = vdwg.mxu0
        %4413 = vmatprep.subr.mxu0 %v4333
        %4414 = vmatpush1.msra.mxu0 %v4332
        %4415 = vmatprep.subr.mxu0 %v4335
        %4416 = vmatpush1.msra.mxu0 %v4334
        %4417 = vmatprep.subr.mxu0 %v4337
        %4418 = vmatpush1.msra.mxu0 %v4336
        %4419 = vmatprep.subr.mxu0 0.0
        %4420 = vmatpush1.msra.mxu0 0.0
        %4421 = vmatprep.subr.mxu0 0.0
        %4422 = vmatpush1.msra.mxu0 0.0
        %4423 = vmatprep.subr.mxu0 0.0
        %4424 = vmatpush1.msra.mxu0 0.0
        %4425 = vmatprep.subr.mxu0 0.0
        %4426 = vmatpush1.msra.mxu0 0.0
        %4427 = vmatprep.subr.mxu0 0.0
        %4428 = vmatpush1.msra.mxu0 0.0
        %4429 = vmatprep.subr.mxu0 0.0
        %4430 = vmatpush1.msra.mxu0 0.0
        %4431 = vmatprep.subr.mxu0 0.0
        %4432 = vmatpush1.msra.mxu0 0.0
        %4433 = vmatprep.subr.mxu0 0.0
        %4434 = vmatpush1.msra.mxu0 0.0
        %4435 = vmatprep.subr.mxu0 0.0
        %4436 = vmatpush1.msra.mxu0 0.0
        %4437 = vmatprep.subr.mxu0 0.0
        %4438 = vmatpush1.msra.mxu0 0.0
        %4439 = vmatprep.subr.mxu0 0.0
        %4440 = vmatpush1.msra.mxu0 0.0
        %4441 = vmatprep.subr.mxu0 0.0
        %4442 = vmatpush1.msra.mxu0 0.0
        %4443 = vmatprep.subr.mxu0 0.0
        %4444 = vmatpush1.msra.mxu0 0.0
        %4445 = vmatprep.subr.mxu0 0.0
        %4446 = vmatpush1.msra.mxu0 0.0
        %4447 = vmatprep.subr.mxu0 0.0
        %4448 = vmatpush1.msra.mxu0 0.0
        %4449 = vmatprep.subr.mxu0 0.0
        %4450 = vmatpush1.msra.mxu0 0.0
        %4451 = vmatprep.subr.mxu0 0.0
        %4452 = vmatpush1.msra.mxu0 0.0
        %4453 = vmatprep.subr.mxu0 0.0
        %4454 = vmatpush1.msra.mxu0 0.0
        %4455 = vmatprep.subr.mxu0 0.0
        %4456 = vmatpush1.msra.mxu0 0.0
        %4457 = vmatprep.subr.mxu0 0.0
        %4458 = vmatpush1.msra.mxu0 0.0
        %4459 = vmatprep.subr.mxu0 0.0
        %4460 = vmatpush1.msra.mxu0 0.0
        %4461 = vmatprep.subr.mxu0 0.0
        %4462 = vmatpush1.msra.mxu0 0.0
        %4463 = vmatprep.subr.mxu0 0.0
        %4464 = vmatpush1.msra.mxu0 0.0
        %4465 = vmatprep.subr.mxu0 0.0
        %4466 = vmatpush1.msra.mxu0 0.0
        %4467 = vmatprep.subr.mxu0 0.0
        %4468 = vmatpush1.msra.mxu0 0.0
        %4469 = vmatprep.subr.mxu0 0.0
        %4470 = vmatpush1.msra.mxu0 0.0
        %4471 = vmatprep.subr.mxu0 0.0
        %4472 = vmatpush1.msra.mxu0 0.0
        %4473 = vmatprep.subr.mxu0 0.0
        %4474 = vmatpush1.msra.mxu0 0.0
        %4475 = vmatprep.subr.mxu0 0.0
        %4476 = vmatpush1.msra.mxu0 0.0
        %4477 = vmatprep.mubr.f32.mxu0 0.0
        %4478 = vmatmul.mubr.f32.gmra.mrb[0].mxu0 %v4340
        %v4479 = vpop.f32.mrb[0].mxu0
        %v4480 = vadd.f32 %v4409, %v4479
        %v4481 = vpop.f32.mrb[0].mxu0
        %v4482 = vadd.f32 %v4411, %v4481
        %4483 = vdwg.mxu0
        %s4484 = scalar_lea.vmem %s8, 560
        %v4485 = vld [vmem:[%s4484] sm:$0xff]
        %v4486 = vld [vmem:[%s4484 + $0x8] sm:$0xff]
        %v4487 = vld [vmem:[%s4484 + $0x10] sm:$0xff]
        %v4488 = vld [vmem:[%s4484 + $0x18] sm:$0xff]
        %v4489 = vld [vmem:[%s4484 + $0x20] sm:$0xff]
        %v4490 = vld [vmem:[%s4484 + $0x28] sm:$0xff]
        %v4491 = vld [vmem:[%s4484 + $0x30] sm:$0xff]
        %v4492 = vld [vmem:[%s4484 + $0x38] sm:$0xff]
        %v4493 = vld [vmem:[%s4484 + $0x40] sm:$0xff]
        %v4494 = vld [vmem:[%s4484 + $0x48] sm:$0xff]
        %v4495 = vld [vmem:[%s4484 + $0x50] sm:$0xff]
        %v4496 = vld [vmem:[%s4484 + $0x58] sm:$0xff]
        %v4497 = vld [vmem:[%s4484 + $0x60] sm:$0xff]
        %v4498 = vld [vmem:[%s4484 + $0x68] sm:$0xff]
        %v4499 = vld [vmem:[%s4484 + $0x70] sm:$0xff]
        %v4500 = vld [vmem:[%s4484 + $0x78] sm:$0xff]
        %v4501 = vld [vmem:[%s4484 + $0x80] sm:$0xff]
        %v4502 = vld [vmem:[%s4484 + $0x88] sm:$0xff]
        %v4503 = vld [vmem:[%s4484 + $0x90] sm:$0xff]
        %v4504 = vld [vmem:[%s4484 + $0x98] sm:$0xff]
        %v4505 = vld [vmem:[%s4484 + $0xa0] sm:$0xff]
        %v4506 = vld [vmem:[%s4484 + $0xa8] sm:$0xff]
        %v4507 = vld [vmem:[%s4484 + $0xb0] sm:$0xff]
        %v4508 = vld [vmem:[%s4484 + $0xb8] sm:$0xff]
        %v4509 = vld [vmem:[%s4484 + $0xc0] sm:$0xff]
        %v4510 = vld [vmem:[%s4484 + $0xc8] sm:$0xff]
        %v4511 = vld [vmem:[%s4484 + $0xd0] sm:$0xff]
        %v4512 = vld [vmem:[%s4484 + $0xd8] sm:$0xff]
        %v4513 = vld [vmem:[%s4484 + $0xe0] sm:$0xff]
        %v4514 = vld [vmem:[%s4484 + $0xe8] sm:$0xff]
        %v4515 = vld [vmem:[%s4484 + $0xf0] sm:$0xff]
        %v4516 = vld [vmem:[%s4484 + $0xf8] sm:$0xff]
        %v4517 = vld [vmem:[%s4484 + $0x100] sm:$0xff]
        %v4518 = vld [vmem:[%s4484 + $0x108] sm:$0xff]
        %v4519 = vld [vmem:[%s4484 + $0x110] sm:$0xff]
        %v4520 = vld [vmem:[%s4484 + $0x118] sm:$0xff]
        %v4521 = vld [vmem:[%s4484 + $0x120] sm:$0xff]
        %v4522 = vld [vmem:[%s4484 + $0x128] sm:$0xff]
        %v4523 = vld [vmem:[%s4484 + $0x130] sm:$0xff]
        %v4524 = vld [vmem:[%s4484 + $0x138] sm:$0xff]
        %v4525 = vld [vmem:[%s4484 + $0x140] sm:$0xff]
        %v4526 = vld [vmem:[%s4484 + $0x148] sm:$0xff]
        %v4527 = vld [vmem:[%s4484 + $0x150] sm:$0xff]
        %v4528 = vld [vmem:[%s4484 + $0x158] sm:$0xff]
        %v4529 = vld [vmem:[%s4484 + $0x160] sm:$0xff]
        %v4530 = vld [vmem:[%s4484 + $0x168] sm:$0xff]
        %v4531 = vld [vmem:[%s4484 + $0x170] sm:$0xff]
        %v4532 = vld [vmem:[%s4484 + $0x178] sm:$0xff]
        %v4533 = vld [vmem:[%s4484 + $0x180] sm:$0xff]
        %v4534 = vld [vmem:[%s4484 + $0x188] sm:$0xff]
        %v4535 = vld [vmem:[%s4484 + $0x190] sm:$0xff]
        %v4536 = vld [vmem:[%s4484 + $0x198] sm:$0xff]
        %v4537 = vld [vmem:[%s4484 + $0x1a0] sm:$0xff]
        %v4538 = vld [vmem:[%s4484 + $0x1a8] sm:$0xff]
        %v4539 = vld [vmem:[%s4484 + $0x1b0] sm:$0xff]
        %v4540 = vld [vmem:[%s4484 + $0x1b8] sm:$0xff]
        %v4541 = vld [vmem:[%s4484 + $0x1c0] sm:$0xff]
        %v4542 = vld [vmem:[%s4484 + $0x1c8] sm:$0xff]
        %v4543 = vld [vmem:[%s4484 + $0x1d0] sm:$0xff]
        %v4544 = vld [vmem:[%s4484 + $0x1d8] sm:$0xff]
        %v4545 = vld [vmem:[%s4484 + $0x1e0] sm:$0xff]
        %v4546 = vld [vmem:[%s4484 + $0x1e8] sm:$0xff]
        %v4547 = vld [vmem:[%s4484 + $0x1f0] sm:$0xff]
        %v4548 = vld [vmem:[%s4484 + $0x1f8] sm:$0xff]
        %v4549 = vld [vmem:[%s4484 + $0x200] sm:$0xff]
        %v4550 = vld [vmem:[%s4484 + $0x208] sm:$0xff]
        %v4551 = vld [vmem:[%s4484 + $0x210] sm:$0xff]
        %v4552 = vld [vmem:[%s4484 + $0x218] sm:$0xff]
        %v4553 = vld [vmem:[%s4484 + $0x220] sm:$0xff]
        %v4554 = vld [vmem:[%s4484 + $0x228] sm:$0xff]
        %4555 = vmatprep.subr.mxu0 %v4486
        %4556 = vmatpush1.msra.mxu0 %v4485
        %4557 = vmatprep.subr.mxu0 %v4488
        %4558 = vmatpush1.msra.mxu0 %v4487
        %4559 = vmatprep.subr.mxu0 %v4490
        %4560 = vmatpush1.msra.mxu0 %v4489
        %4561 = vmatprep.subr.mxu0 %v4492
        %4562 = vmatpush1.msra.mxu0 %v4491
        %4563 = vmatprep.subr.mxu0 %v4494
        %4564 = vmatpush1.msra.mxu0 %v4493
        %4565 = vmatprep.subr.mxu0 %v4496
        %4566 = vmatpush1.msra.mxu0 %v4495
        %4567 = vmatprep.subr.mxu0 %v4498
        %4568 = vmatpush1.msra.mxu0 %v4497
        %4569 = vmatprep.subr.mxu0 %v4500
        %4570 = vmatpush1.msra.mxu0 %v4499
        %4571 = vmatprep.subr.mxu0 %v4502
        %4572 = vmatpush1.msra.mxu0 %v4501
        %4573 = vmatprep.subr.mxu0 %v4504
        %4574 = vmatpush1.msra.mxu0 %v4503
        %4575 = vmatprep.subr.mxu0 %v4506
        %4576 = vmatpush1.msra.mxu0 %v4505
        %4577 = vmatprep.subr.mxu0 %v4508
        %4578 = vmatpush1.msra.mxu0 %v4507
        %4579 = vmatprep.subr.mxu0 %v4510
        %4580 = vmatpush1.msra.mxu0 %v4509
        %4581 = vmatprep.subr.mxu0 %v4512
        %4582 = vmatpush1.msra.mxu0 %v4511
        %4583 = vmatprep.subr.mxu0 %v4514
        %4584 = vmatpush1.msra.mxu0 %v4513
        %4585 = vmatprep.subr.mxu0 %v4516
        %4586 = vmatpush1.msra.mxu0 %v4515
        %4587 = vmatprep.subr.mxu0 %v4518
        %4588 = vmatpush1.msra.mxu0 %v4517
        %4589 = vmatprep.subr.mxu0 %v4520
        %4590 = vmatpush1.msra.mxu0 %v4519
        %4591 = vmatprep.subr.mxu0 %v4522
        %4592 = vmatpush1.msra.mxu0 %v4521
        %4593 = vmatprep.subr.mxu0 %v4524
        %4594 = vmatpush1.msra.mxu0 %v4523
        %4595 = vmatprep.subr.mxu0 %v4526
        %4596 = vmatpush1.msra.mxu0 %v4525
        %4597 = vmatprep.subr.mxu0 %v4528
        %4598 = vmatpush1.msra.mxu0 %v4527
        %4599 = vmatprep.subr.mxu0 %v4530
        %4600 = vmatpush1.msra.mxu0 %v4529
        %4601 = vmatprep.subr.mxu0 %v4532
        %4602 = vmatpush1.msra.mxu0 %v4531
        %4603 = vmatprep.subr.mxu0 %v4534
        %4604 = vmatpush1.msra.mxu0 %v4533
        %4605 = vmatprep.subr.mxu0 %v4536
        %4606 = vmatpush1.msra.mxu0 %v4535
        %4607 = vmatprep.subr.mxu0 %v4538
        %4608 = vmatpush1.msra.mxu0 %v4537
        %4609 = vmatprep.subr.mxu0 %v4540
        %4610 = vmatpush1.msra.mxu0 %v4539
        %4611 = vmatprep.subr.mxu0 %v4542
        %4612 = vmatpush1.msra.mxu0 %v4541
        %4613 = vmatprep.subr.mxu0 %v4544
        %4614 = vmatpush1.msra.mxu0 %v4543
        %4615 = vmatprep.subr.mxu0 %v4546
        %4616 = vmatpush1.msra.mxu0 %v4545
        %4617 = vmatprep.subr.mxu0 %v4548
        %4618 = vmatpush1.msra.mxu0 %v4547
        %4619 = vmatprep.mubr.f32.mxu0 %v4266
        %4620 = vmatmul.mubr.f32.gmra.mrb[0].mxu0 %v4265
        %v4621 = vpop.f32.mrb[0].mxu0
        %v4622 = vadd.f32 0.0, %v4621
        %v4623 = vpop.f32.mrb[0].mxu0
        %v4624 = vadd.f32 0.0, %v4623
        %4625 = vdwg.mxu0
        %4626 = vmatprep.subr.mxu0 %v4550
        %4627 = vmatpush1.msra.mxu0 %v4549
        %4628 = vmatprep.subr.mxu0 %v4552
        %4629 = vmatpush1.msra.mxu0 %v4551
        %4630 = vmatprep.subr.mxu0 %v4554
        %4631 = vmatpush1.msra.mxu0 %v4553
        %4632 = vmatprep.subr.mxu0 0.0
        %4633 = vmatpush1.msra.mxu0 0.0
        %4634 = vmatprep.subr.mxu0 0.0
        %4635 = vmatpush1.msra.mxu0 0.0
        %4636 = vmatprep.subr.mxu0 0.0
        %4637 = vmatpush1.msra.mxu0 0.0
        %4638 = vmatprep.subr.mxu0 0.0
        %4639 = vmatpush1.msra.mxu0 0.0
        %4640 = vmatprep.subr.mxu0 0.0
        %4641 = vmatpush1.msra.mxu0 0.0
        %4642 = vmatprep.subr.mxu0 0.0
        %4643 = vmatpush1.msra.mxu0 0.0
        %4644 = vmatprep.subr.mxu0 0.0
        %4645 = vmatpush1.msra.mxu0 0.0
        %4646 = vmatprep.subr.mxu0 0.0
        %4647 = vmatpush1.msra.mxu0 0.0
        %4648 = vmatprep.subr.mxu0 0.0
        %4649 = vmatpush1.msra.mxu0 0.0
        %4650 = vmatprep.subr.mxu0 0.0
        %4651 = vmatpush1.msra.mxu0 0.0
        %4652 = vmatprep.subr.mxu0 0.0
        %4653 = vmatpush1.msra.mxu0 0.0
        %4654 = vmatprep.subr.mxu0 0.0
        %4655 = vmatpush1.msra.mxu0 0.0
        %4656 = vmatprep.subr.mxu0 0.0
        %4657 = vmatpush1.msra.mxu0 0.0
        %4658 = vmatprep.subr.mxu0 0.0
        %4659 = vmatpush1.msra.mxu0 0.0
        %4660 = vmatprep.subr.mxu0 0.0
        %4661 = vmatpush1.msra.mxu0 0.0
        %4662 = vmatprep.subr.mxu0 0.0
        %4663 = vmatpush1.msra.mxu0 0.0
        %4664 = vmatprep.subr.mxu0 0.0
        %4665 = vmatpush1.msra.mxu0 0.0
        %4666 = vmatprep.subr.mxu0 0.0
        %4667 = vmatpush1.msra.mxu0 0.0
        %4668 = vmatprep.subr.mxu0 0.0
        %4669 = vmatpush1.msra.mxu0 0.0
        %4670 = vmatprep.subr.mxu0 0.0
        %4671 = vmatpush1.msra.mxu0 0.0
        %4672 = vmatprep.subr.mxu0 0.0
        %4673 = vmatpush1.msra.mxu0 0.0
        %4674 = vmatprep.subr.mxu0 0.0
        %4675 = vmatpush1.msra.mxu0 0.0
        %4676 = vmatprep.subr.mxu0 0.0
        %4677 = vmatpush1.msra.mxu0 0.0
        %4678 = vmatprep.subr.mxu0 0.0
        %4679 = vmatpush1.msra.mxu0 0.0
        %4680 = vmatprep.subr.mxu0 0.0
        %4681 = vmatpush1.msra.mxu0 0.0
        %4682 = vmatprep.subr.mxu0 0.0
        %4683 = vmatpush1.msra.mxu0 0.0
        %4684 = vmatprep.subr.mxu0 0.0
        %4685 = vmatpush1.msra.mxu0 0.0
        %4686 = vmatprep.subr.mxu0 0.0
        %4687 = vmatpush1.msra.mxu0 0.0
        %4688 = vmatprep.subr.mxu0 0.0
        %4689 = vmatpush1.msra.mxu0 0.0
        %4690 = vmatprep.mubr.f32.mxu0 0.0
        %4691 = vmatmul.mubr.f32.gmra.mrb[0].mxu0 %v4340
        %v4692 = vpop.f32.mrb[0].mxu0
        %v4693 = vadd.f32 %v4622, %v4692
        %v4694 = vpop.f32.mrb[0].mxu0
        %v4695 = vadd.f32 %v4624, %v4694
        %4696 = vdwg.mxu0
        %v4697 = vmax.f32 %v4480, %v4693
        %v4698 = vmax.f32 %v4482, %v4695
        %v4699 = vld [vmem:[%s10] sm:$0x7]
        %v4700 = vld [vmem:[%s9] sm:$0xff]
        %v4701 = vld [vmem:[%s9 + $0x8] sm:$0xff]
        %v4702 = vld [vmem:[%s9 + $0x10] sm:$0xff]
        %v4703 = vld [vmem:[%s9 + $0x18] sm:$0xff]
        %v4704 = vld [vmem:[%s9 + $0x20] sm:$0xff]
        %v4705 = vld [vmem:[%s9 + $0x28] sm:$0xff]
        %v4706 = vld [vmem:[%s9 + $0x30] sm:$0xff]
        %v4707 = vld [vmem:[%s9 + $0x38] sm:$0xff]
        %v4708 = vld [vmem:[%s9 + $0x40] sm:$0xff]
        %v4709 = vld [vmem:[%s9 + $0x48] sm:$0xff]
        %v4710 = vld [vmem:[%s9 + $0x50] sm:$0xff]
        %v4711 = vld [vmem:[%s9 + $0x58] sm:$0xff]
        %v4712 = vld [vmem:[%s9 + $0x60] sm:$0xff]
        %v4713 = vld [vmem:[%s9 + $0x68] sm:$0xff]
        %v4714 = vld [vmem:[%s9 + $0x70] sm:$0xff]
        %v4715 = vld [vmem:[%s9 + $0x78] sm:$0xff]
        %v4716 = vld [vmem:[%s9 + $0x80] sm:$0xff]
        %v4717 = vld [vmem:[%s9 + $0x88] sm:$0xff]
        %v4718 = vld [vmem:[%s9 + $0x90] sm:$0xff]
        %v4719 = vld [vmem:[%s9 + $0x98] sm:$0xff]
        %v4720 = vld [vmem:[%s9 + $0xa0] sm:$0xff]
        %v4721 = vld [vmem:[%s9 + $0xa8] sm:$0xff]
        %v4722 = vld [vmem:[%s9 + $0xb0] sm:$0xff]
        %v4723 = vld [vmem:[%s9 + $0xb8] sm:$0xff]
        %v4724 = vld [vmem:[%s9 + $0xc0] sm:$0xff]
        %v4725 = vld [vmem:[%s9 + $0xc8] sm:$0xff]
        %v4726 = vld [vmem:[%s9 + $0xd0] sm:$0xff]
        %v4727 = vld [vmem:[%s9 + $0xd8] sm:$0xff]
        %v4728 = vld [vmem:[%s9 + $0xe0] sm:$0xff]
        %v4729 = vld [vmem:[%s9 + $0xe8] sm:$0xff]
        %v4730 = vld [vmem:[%s9 + $0xf0] sm:$0xff]
        %v4731 = vld [vmem:[%s9 + $0xf8] sm:$0xff]
        %v4732 = vld [vmem:[%s9 + $0x100] sm:$0xff]
        %v4733 = vld [vmem:[%s9 + $0x108] sm:$0xff]
        %v4734 = vld [vmem:[%s9 + $0x110] sm:$0xff]
        %v4735 = vld [vmem:[%s9 + $0x118] sm:$0xff]
        %v4736 = vld [vmem:[%s9 + $0x120] sm:$0xff]
        %v4737 = vld [vmem:[%s9 + $0x128] sm:$0xff]
        %v4738 = vld [vmem:[%s9 + $0x130] sm:$0xff]
        %v4739 = vld [vmem:[%s9 + $0x138] sm:$0xff]
        %v4740 = vld [vmem:[%s9 + $0x140] sm:$0xff]
        %v4741 = vld [vmem:[%s9 + $0x148] sm:$0xff]
        %v4742 = vld [vmem:[%s9 + $0x150] sm:$0xff]
        %v4743 = vld [vmem:[%s9 + $0x158] sm:$0xff]
        %v4744 = vld [vmem:[%s9 + $0x160] sm:$0xff]
        %v4745 = vld [vmem:[%s9 + $0x168] sm:$0xff]
        %v4746 = vld [vmem:[%s9 + $0x170] sm:$0xff]
        %v4747 = vld [vmem:[%s9 + $0x178] sm:$0xff]
        %v4748 = vld [vmem:[%s9 + $0x180] sm:$0xff]
        %v4749 = vld [vmem:[%s9 + $0x188] sm:$0xff]
        %v4750 = vld [vmem:[%s9 + $0x190] sm:$0xff]
        %v4751 = vld [vmem:[%s9 + $0x198] sm:$0xf]
        %v4752 = vld [vmem:[%s9 + $0x1a0] sm:$0xf]
        %v4753 = vld [vmem:[%s9 + $0x1a8] sm:$0xf]
        %vm4754 = vcmask 97280
        %v4756 = vsel %vm4754, %v4698, 0
        %v4759 = vsel %vm1491, %v4751, 0
        %v4762 = vsel %vm1491, %v4752, 0
        %v4765 = vsel %vm1491, %v4753, 0
        %4767 = vmatprep.subr.mxu0 %v4701
        %4768 = vmatpush1.msra.mxu0 %v4700
        %4769 = vmatprep.subr.mxu0 %v4704
        %4770 = vmatpush1.msra.mxu0 %v4703
        %4771 = vmatprep.subr.mxu0 %v4707
        %4772 = vmatpush1.msra.mxu0 %v4706
        %4773 = vmatprep.subr.mxu0 %v4710
        %4774 = vmatpush1.msra.mxu0 %v4709
        %4775 = vmatprep.subr.mxu0 %v4713
        %4776 = vmatpush1.msra.mxu0 %v4712
        %4777 = vmatprep.subr.mxu0 %v4716
        %4778 = vmatpush1.msra.mxu0 %v4715
        %4779 = vmatprep.subr.mxu0 %v4719
        %4780 = vmatpush1.msra.mxu0 %v4718
        %4781 = vmatprep.subr.mxu0 %v4722
        %4782 = vmatpush1.msra.mxu0 %v4721
        %4783 = vmatprep.subr.mxu0 %v4725
        %4784 = vmatpush1.msra.mxu0 %v4724
        %4785 = vmatprep.subr.mxu0 %v4728
        %4786 = vmatpush1.msra.mxu0 %v4727
        %4787 = vmatprep.subr.mxu0 %v4731
        %4788 = vmatpush1.msra.mxu0 %v4730
        %4789 = vmatprep.subr.mxu0 %v4734
        %4790 = vmatpush1.msra.mxu0 %v4733
        %4791 = vmatprep.subr.mxu0 %v4737
        %4792 = vmatpush1.msra.mxu0 %v4736
        %4793 = vmatprep.subr.mxu0 %v4740
        %4794 = vmatpush1.msra.mxu0 %v4739
        %4795 = vmatprep.subr.mxu0 %v4743
        %4796 = vmatpush1.msra.mxu0 %v4742
        %4797 = vmatprep.subr.mxu0 %v4746
        %4798 = vmatpush1.msra.mxu0 %v4745
        %4799 = vmatprep.subr.mxu0 %v4749
        %4800 = vmatpush1.msra.mxu0 %v4748
        %4801 = vmatprep.subr.mxu0 %v4762
        %4802 = vmatpush1.msra.mxu0 %v4759
        %4803 = vmatprep.subr.mxu0 0.0
        %4804 = vmatpush1.msra.mxu0 0.0
        %4805 = vmatprep.subr.mxu0 0.0
        %4806 = vmatpush1.msra.mxu0 0.0
        %4807 = vmatprep.subr.mxu0 0.0
        %4808 = vmatpush1.msra.mxu0 0.0
        %4809 = vmatprep.subr.mxu0 0.0
        %4810 = vmatpush1.msra.mxu0 0.0
        %4811 = vmatprep.subr.mxu0 0.0
        %4812 = vmatpush1.msra.mxu0 0.0
        %4813 = vmatprep.subr.mxu0 0.0
        %4814 = vmatpush1.msra.mxu0 0.0
        %4815 = vmatprep.subr.mxu0 0.0
        %4816 = vmatpush1.msra.mxu0 0.0
        %4817 = vmatprep.subr.mxu0 0.0
        %4818 = vmatpush1.msra.mxu0 0.0
        %4819 = vmatprep.subr.mxu0 0.0
        %4820 = vmatpush1.msra.mxu0 0.0
        %4821 = vmatprep.subr.mxu0 0.0
        %4822 = vmatpush1.msra.mxu0 0.0
        %4823 = vmatprep.subr.mxu0 0.0
        %4824 = vmatpush1.msra.mxu0 0.0
        %4825 = vmatprep.subr.mxu0 0.0
        %4826 = vmatpush1.msra.mxu0 0.0
        %4827 = vmatprep.subr.mxu0 0.0
        %4828 = vmatpush1.msra.mxu0 0.0
        %4829 = vmatprep.subr.mxu0 0.0
        %4830 = vmatpush1.msra.mxu0 0.0
        %4831 = vmatprep.mubr.f32.mxu0 %v4756
        %4832 = vmatmul.mubr.f32.gmra.mrb[0].mxu0 %v4697
        %v4833 = vpop.f32.mrb[0].mxu0
        %v4834 = vadd.f32 0.0, %v4833
        %v4835 = vpop.f32.mrb[0].mxu0
        %v4836 = vadd.f32 0.0, %v4835
        %4837 = vdwg.mxu0
        %4838 = vmatprep.subr.mxu0 0.0
        %4839 = vmatpush1.msra.mxu0 %v4702
        %4840 = vmatprep.subr.mxu0 0.0
        %4841 = vmatpush1.msra.mxu0 %v4705
        %4842 = vmatprep.subr.mxu0 0.0
        %4843 = vmatpush1.msra.mxu0 %v4708
        %4844 = vmatprep.subr.mxu0 0.0
        %4845 = vmatpush1.msra.mxu0 %v4711
        %4846 = vmatprep.subr.mxu0 0.0
        %4847 = vmatpush1.msra.mxu0 %v4714
        %4848 = vmatprep.subr.mxu0 0.0
        %4849 = vmatpush1.msra.mxu0 %v4717
        %4850 = vmatprep.subr.mxu0 0.0
        %4851 = vmatpush1.msra.mxu0 %v4720
        %4852 = vmatprep.subr.mxu0 0.0
        %4853 = vmatpush1.msra.mxu0 %v4723
        %4854 = vmatprep.subr.mxu0 0.0
        %4855 = vmatpush1.msra.mxu0 %v4726
        %4856 = vmatprep.subr.mxu0 0.0
        %4857 = vmatpush1.msra.mxu0 %v4729
        %4858 = vmatprep.subr.mxu0 0.0
        %4859 = vmatpush1.msra.mxu0 %v4732
        %4860 = vmatprep.subr.mxu0 0.0
        %4861 = vmatpush1.msra.mxu0 %v4735
        %4862 = vmatprep.subr.mxu0 0.0
        %4863 = vmatpush1.msra.mxu0 %v4738
        %4864 = vmatprep.subr.mxu0 0.0
        %4865 = vmatpush1.msra.mxu0 %v4741
        %4866 = vmatprep.subr.mxu0 0.0
        %4867 = vmatpush1.msra.mxu0 %v4744
        %4868 = vmatprep.subr.mxu0 0.0
        %4869 = vmatpush1.msra.mxu0 %v4747
        %4870 = vmatprep.subr.mxu0 0.0
        %4871 = vmatpush1.msra.mxu0 %v4750
        %4872 = vmatprep.subr.mxu0 0.0
        %4873 = vmatpush1.msra.mxu0 %v4765
        %4874 = vmatprep.subr.mxu0 0.0
        %4875 = vmatpush1.msra.mxu0 0.0
        %4876 = vmatprep.subr.mxu0 0.0
        %4877 = vmatpush1.msra.mxu0 0.0
        %4878 = vmatprep.subr.mxu0 0.0
        %4879 = vmatpush1.msra.mxu0 0.0
        %4880 = vmatprep.subr.mxu0 0.0
        %4881 = vmatpush1.msra.mxu0 0.0
        %4882 = vmatprep.subr.mxu0 0.0
        %4883 = vmatpush1.msra.mxu0 0.0
        %4884 = vmatprep.subr.mxu0 0.0
        %4885 = vmatpush1.msra.mxu0 0.0
        %4886 = vmatprep.subr.mxu0 0.0
        %4887 = vmatpush1.msra.mxu0 0.0
        %4888 = vmatprep.subr.mxu0 0.0
        %4889 = vmatpush1.msra.mxu0 0.0
        %4890 = vmatprep.subr.mxu0 0.0
        %4891 = vmatpush1.msra.mxu0 0.0
        %4892 = vmatprep.subr.mxu0 0.0
        %4893 = vmatpush1.msra.mxu0 0.0
        %4894 = vmatprep.subr.mxu0 0.0
        %4895 = vmatpush1.msra.mxu0 0.0
        %4896 = vmatprep.subr.mxu0 0.0
        %4897 = vmatpush1.msra.mxu0 0.0
        %4898 = vmatprep.subr.mxu0 0.0
        %4899 = vmatpush1.msra.mxu0 0.0
        %4900 = vmatprep.subr.mxu0 0.0
        %4901 = vmatpush1.msra.mxu0 0.0
        %4902 = vmatprep.mubr.f32.mxu0 %v4756
        %4903 = vmatmul.mubr.f32.gmra.mrb[0].mxu0 %v4697
        %v4904 = vpop.f32.mrb[0].mxu0
        %v4905 = vadd.f32 0.0, %v4904
        %v4906 = vpop.f32.mrb[0].mxu0
        %4907 = vdwg.mxu0
        %v4911 = vcombine.low %v4834, %v4836
        %v4913 = vunpack.c.l.s4 1966171168
        %v4914 = vunpack.c.0.s8 %v4913
        %v4915 = vlaneseq
        %v4916 = vshrl.u32 %v4915, 7
        %v4917 = vsub.s32 %v4914, %v4916
        %v4918 = vrot.slane %v4911, %v4917
        %v4920 = vunpack.c.l.s4 1966171168
        %v4921 = vunpack.c.0.s8 %v4920
        %v4922 = vlaneseq
        %v4923 = vshrl.u32 %v4922, 7
        %v4924 = vsub.s32 %v4921, %v4923
        %v4925 = vrot.slane %v4905, %v4924
        %v4926 = vcombine.low %v4918, %v4925
        %v4928 = vunpack.c.l.s4 1966171168
        %v4929 = vunpack.c.0.s8 %v4928
        %v4930 = vlaneseq
        %v4931 = vshrl.u32 %v4930, 7
        %v4932 = vsub.s32 %v4929, %v4931
        %v4933 = vrot.slane %v4926, %v4932
        %v4935 = vadd.f32 %v4699, %v4933
        %s4936 = scalar_lea.vmem %s9, 432
        %v4937 = vld [vmem:[%s4936] sm:$0xff]
        %v4938 = vld [vmem:[%s4936 + $0x8] sm:$0xff]
        %v4939 = vld [vmem:[%s4936 + $0x10] sm:$0xff]
        %v4940 = vld [vmem:[%s4936 + $0x18] sm:$0xff]
        %v4941 = vld [vmem:[%s4936 + $0x20] sm:$0xff]
        %v4942 = vld [vmem:[%s4936 + $0x28] sm:$0xff]
        %v4943 = vld [vmem:[%s4936 + $0x30] sm:$0xff]
        %v4944 = vld [vmem:[%s4936 + $0x38] sm:$0xff]
        %v4945 = vld [vmem:[%s4936 + $0x40] sm:$0xff]
        %v4946 = vld [vmem:[%s4936 + $0x48] sm:$0xff]
        %v4947 = vld [vmem:[%s4936 + $0x50] sm:$0xff]
        %v4948 = vld [vmem:[%s4936 + $0x58] sm:$0xff]
        %v4949 = vld [vmem:[%s4936 + $0x60] sm:$0xff]
        %v4950 = vld [vmem:[%s4936 + $0x68] sm:$0xff]
        %v4951 = vld [vmem:[%s4936 + $0x70] sm:$0xff]
        %v4952 = vld [vmem:[%s4936 + $0x78] sm:$0xff]
        %v4953 = vld [vmem:[%s4936 + $0x80] sm:$0xff]
        %v4954 = vld [vmem:[%s4936 + $0x88] sm:$0xff]
        %v4955 = vld [vmem:[%s4936 + $0x90] sm:$0xff]
        %v4956 = vld [vmem:[%s4936 + $0x98] sm:$0xff]
        %v4957 = vld [vmem:[%s4936 + $0xa0] sm:$0xff]
        %v4958 = vld [vmem:[%s4936 + $0xa8] sm:$0xff]
        %v4959 = vld [vmem:[%s4936 + $0xb0] sm:$0xff]
        %v4960 = vld [vmem:[%s4936 + $0xb8] sm:$0xff]
        %v4961 = vld [vmem:[%s4936 + $0xc0] sm:$0xff]
        %v4962 = vld [vmem:[%s4936 + $0xc8] sm:$0xff]
        %v4963 = vld [vmem:[%s4936 + $0xd0] sm:$0xff]
        %v4964 = vld [vmem:[%s4936 + $0xd8] sm:$0xff]
        %v4965 = vld [vmem:[%s4936 + $0xe0] sm:$0xff]
        %v4966 = vld [vmem:[%s4936 + $0xe8] sm:$0xff]
        %v4967 = vld [vmem:[%s4936 + $0xf0] sm:$0xff]
        %v4968 = vld [vmem:[%s4936 + $0xf8] sm:$0xff]
        %v4969 = vld [vmem:[%s4936 + $0x100] sm:$0xff]
        %v4970 = vld [vmem:[%s4936 + $0x108] sm:$0xff]
        %v4971 = vld [vmem:[%s4936 + $0x110] sm:$0xff]
        %v4972 = vld [vmem:[%s4936 + $0x118] sm:$0xff]
        %v4973 = vld [vmem:[%s4936 + $0x120] sm:$0xff]
        %v4974 = vld [vmem:[%s4936 + $0x128] sm:$0xff]
        %v4975 = vld [vmem:[%s4936 + $0x130] sm:$0xff]
        %v4976 = vld [vmem:[%s4936 + $0x138] sm:$0xff]
        %v4977 = vld [vmem:[%s4936 + $0x140] sm:$0xff]
        %v4978 = vld [vmem:[%s4936 + $0x148] sm:$0xff]
        %v4979 = vld [vmem:[%s4936 + $0x150] sm:$0xff]
        %v4980 = vld [vmem:[%s4936 + $0x158] sm:$0xff]
        %v4981 = vld [vmem:[%s4936 + $0x160] sm:$0xff]
        %v4982 = vld [vmem:[%s4936 + $0x168] sm:$0xff]
        %v4983 = vld [vmem:[%s4936 + $0x170] sm:$0xff]
        %v4984 = vld [vmem:[%s4936 + $0x178] sm:$0xff]
        %v4985 = vld [vmem:[%s4936 + $0x180] sm:$0xff]
        %v4986 = vld [vmem:[%s4936 + $0x188] sm:$0xff]
        %v4987 = vld [vmem:[%s4936 + $0x190] sm:$0xff]
        %v4988 = vld [vmem:[%s4936 + $0x198] sm:$0xf]
        %v4989 = vld [vmem:[%s4936 + $0x1a0] sm:$0xf]
        %v4990 = vld [vmem:[%s4936 + $0x1a8] sm:$0xf]
        %v4992 = vrot.slane %v4697, 1
        %v4993 = vrot.slane %v4698, 1
        %v4995 = vsel %vm4754, %v4993, 0
        %v4998 = vsel %vm1491, %v4988, 0
        %v5001 = vsel %vm1491, %v4989, 0
        %v5004 = vsel %vm1491, %v4990, 0
        %5006 = vmatprep.subr.mxu0 %v4938
        %5007 = vmatpush1.msra.mxu0 %v4937
        %5008 = vmatprep.subr.mxu0 %v4941
        %5009 = vmatpush1.msra.mxu0 %v4940
        %5010 = vmatprep.subr.mxu0 %v4944
        %5011 = vmatpush1.msra.mxu0 %v4943
        %5012 = vmatprep.subr.mxu0 %v4947
        %5013 = vmatpush1.msra.mxu0 %v4946
        %5014 = vmatprep.subr.mxu0 %v4950
        %5015 = vmatpush1.msra.mxu0 %v4949
        %5016 = vmatprep.subr.mxu0 %v4953
        %5017 = vmatpush1.msra.mxu0 %v4952
        %5018 = vmatprep.subr.mxu0 %v4956
        %5019 = vmatpush1.msra.mxu0 %v4955
        %5020 = vmatprep.subr.mxu0 %v4959
        %5021 = vmatpush1.msra.mxu0 %v4958
        %5022 = vmatprep.subr.mxu0 %v4962
        %5023 = vmatpush1.msra.mxu0 %v4961
        %5024 = vmatprep.subr.mxu0 %v4965
        %5025 = vmatpush1.msra.mxu0 %v4964
        %5026 = vmatprep.subr.mxu0 %v4968
        %5027 = vmatpush1.msra.mxu0 %v4967
        %5028 = vmatprep.subr.mxu0 %v4971
        %5029 = vmatpush1.msra.mxu0 %v4970
        %5030 = vmatprep.subr.mxu0 %v4974
        %5031 = vmatpush1.msra.mxu0 %v4973
        %5032 = vmatprep.subr.mxu0 %v4977
        %5033 = vmatpush1.msra.mxu0 %v4976
        %5034 = vmatprep.subr.mxu0 %v4980
        %5035 = vmatpush1.msra.mxu0 %v4979
        %5036 = vmatprep.subr.mxu0 %v4983
        %5037 = vmatpush1.msra.mxu0 %v4982
        %5038 = vmatprep.subr.mxu0 %v4986
        %5039 = vmatpush1.msra.mxu0 %v4985
        %5040 = vmatprep.subr.mxu0 %v5001
        %5041 = vmatpush1.msra.mxu0 %v4998
        %5042 = vmatprep.subr.mxu0 0.0
        %5043 = vmatpush1.msra.mxu0 0.0
        %5044 = vmatprep.subr.mxu0 0.0
        %5045 = vmatpush1.msra.mxu0 0.0
        %5046 = vmatprep.subr.mxu0 0.0
        %5047 = vmatpush1.msra.mxu0 0.0
        %5048 = vmatprep.subr.mxu0 0.0
        %5049 = vmatpush1.msra.mxu0 0.0
        %5050 = vmatprep.subr.mxu0 0.0
        %5051 = vmatpush1.msra.mxu0 0.0
        %5052 = vmatprep.subr.mxu0 0.0
        %5053 = vmatpush1.msra.mxu0 0.0
        %5054 = vmatprep.subr.mxu0 0.0
        %5055 = vmatpush1.msra.mxu0 0.0
        %5056 = vmatprep.subr.mxu0 0.0
        %5057 = vmatpush1.msra.mxu0 0.0
        %5058 = vmatprep.subr.mxu0 0.0
        %5059 = vmatpush1.msra.mxu0 0.0
        %5060 = vmatprep.subr.mxu0 0.0
        %5061 = vmatpush1.msra.mxu0 0.0
        %5062 = vmatprep.subr.mxu0 0.0
        %5063 = vmatpush1.msra.mxu0 0.0
        %5064 = vmatprep.subr.mxu0 0.0
        %5065 = vmatpush1.msra.mxu0 0.0
        %5066 = vmatprep.subr.mxu0 0.0
        %5067 = vmatpush1.msra.mxu0 0.0
        %5068 = vmatprep.subr.mxu0 0.0
        %5069 = vmatpush1.msra.mxu0 0.0
        %5070 = vmatprep.mubr.f32.mxu0 %v4995
        %5071 = vmatmul.mubr.f32.gmra.mrb[0].mxu0 %v4992
        %v5072 = vpop.f32.mrb[0].mxu0
        %v5073 = vadd.f32 0.0, %v5072
        %v5074 = vpop.f32.mrb[0].mxu0
        %v5075 = vadd.f32 0.0, %v5074
        %5076 = vdwg.mxu0
        %5077 = vmatprep.subr.mxu0 0.0
        %5078 = vmatpush1.msra.mxu0 %v4939
        %5079 = vmatprep.subr.mxu0 0.0
        %5080 = vmatpush1.msra.mxu0 %v4942
        %5081 = vmatprep.subr.mxu0 0.0
        %5082 = vmatpush1.msra.mxu0 %v4945
        %5083 = vmatprep.subr.mxu0 0.0
        %5084 = vmatpush1.msra.mxu0 %v4948
        %5085 = vmatprep.subr.mxu0 0.0
        %5086 = vmatpush1.msra.mxu0 %v4951
        %5087 = vmatprep.subr.mxu0 0.0
        %5088 = vmatpush1.msra.mxu0 %v4954
        %5089 = vmatprep.subr.mxu0 0.0
        %5090 = vmatpush1.msra.mxu0 %v4957
        %5091 = vmatprep.subr.mxu0 0.0
        %5092 = vmatpush1.msra.mxu0 %v4960
        %5093 = vmatprep.subr.mxu0 0.0
        %5094 = vmatpush1.msra.mxu0 %v4963
        %5095 = vmatprep.subr.mxu0 0.0
        %5096 = vmatpush1.msra.mxu0 %v4966
        %5097 = vmatprep.subr.mxu0 0.0
        %5098 = vmatpush1.msra.mxu0 %v4969
        %5099 = vmatprep.subr.mxu0 0.0
        %5100 = vmatpush1.msra.mxu0 %v4972
        %5101 = vmatprep.subr.mxu0 0.0
        %5102 = vmatpush1.msra.mxu0 %v4975
        %5103 = vmatprep.subr.mxu0 0.0
        %5104 = vmatpush1.msra.mxu0 %v4978
        %5105 = vmatprep.subr.mxu0 0.0
        %5106 = vmatpush1.msra.mxu0 %v4981
        %5107 = vmatprep.subr.mxu0 0.0
        %5108 = vmatpush1.msra.mxu0 %v4984
        %5109 = vmatprep.subr.mxu0 0.0
        %5110 = vmatpush1.msra.mxu0 %v4987
        %5111 = vmatprep.subr.mxu0 0.0
        %5112 = vmatpush1.msra.mxu0 %v5004
        %5113 = vmatprep.subr.mxu0 0.0
        %5114 = vmatpush1.msra.mxu0 0.0
        %5115 = vmatprep.subr.mxu0 0.0
        %5116 = vmatpush1.msra.mxu0 0.0
        %5117 = vmatprep.subr.mxu0 0.0
        %5118 = vmatpush1.msra.mxu0 0.0
        %5119 = vmatprep.subr.mxu0 0.0
        %5120 = vmatpush1.msra.mxu0 0.0
        %5121 = vmatprep.subr.mxu0 0.0
        %5122 = vmatpush1.msra.mxu0 0.0
        %5123 = vmatprep.subr.mxu0 0.0
        %5124 = vmatpush1.msra.mxu0 0.0
        %5125 = vmatprep.subr.mxu0 0.0
        %5126 = vmatpush1.msra.mxu0 0.0
        %5127 = vmatprep.subr.mxu0 0.0
        %5128 = vmatpush1.msra.mxu0 0.0
        %5129 = vmatprep.subr.mxu0 0.0
        %5130 = vmatpush1.msra.mxu0 0.0
        %5131 = vmatprep.subr.mxu0 0.0
        %5132 = vmatpush1.msra.mxu0 0.0
        %5133 = vmatprep.subr.mxu0 0.0
        %5134 = vmatpush1.msra.mxu0 0.0
        %5135 = vmatprep.subr.mxu0 0.0
        %5136 = vmatpush1.msra.mxu0 0.0
        %5137 = vmatprep.subr.mxu0 0.0
        %5138 = vmatpush1.msra.mxu0 0.0
        %5139 = vmatprep.subr.mxu0 0.0
        %5140 = vmatpush1.msra.mxu0 0.0
        %5141 = vmatprep.mubr.f32.mxu0 %v4995
        %5142 = vmatmul.mubr.f32.gmra.mrb[0].mxu0 %v4992
        %v5143 = vpop.f32.mrb[0].mxu0
        %v5144 = vadd.f32 0.0, %v5143
        %v5145 = vpop.f32.mrb[0].mxu0
        %5146 = vdwg.mxu0
        %v5150 = vcombine.low %v5073, %v5075
        %v5152 = vunpack.c.l.s4 1966171168
        %v5153 = vunpack.c.0.s8 %v5152
        %v5154 = vlaneseq
        %v5155 = vshrl.u32 %v5154, 7
        %v5156 = vsub.s32 %v5153, %v5155
        %v5157 = vrot.slane %v5150, %v5156
        %v5159 = vunpack.c.l.s4 1966171168
        %v5160 = vunpack.c.0.s8 %v5159
        %v5161 = vlaneseq
        %v5162 = vshrl.u32 %v5161, 7
        %v5163 = vsub.s32 %v5160, %v5162
        %v5164 = vrot.slane %v5144, %v5163
        %v5165 = vcombine.low %v5157, %v5164
        %v5167 = vunpack.c.l.s4 1966171168
        %v5168 = vunpack.c.0.s8 %v5167
        %v5169 = vlaneseq
        %v5170 = vshrl.u32 %v5169, 7
        %v5171 = vsub.s32 %v5168, %v5170
        %v5172 = vrot.slane %v5165, %v5171
        %v5174 = vadd.f32 %v4935, %v5172
        %s5175 = scalar_lea.vmem %s9, 864
        %v5176 = vld [vmem:[%s5175] sm:$0xff]
        %v5177 = vld [vmem:[%s5175 + $0x8] sm:$0xff]
        %v5178 = vld [vmem:[%s5175 + $0x10] sm:$0xff]
        %v5179 = vld [vmem:[%s5175 + $0x18] sm:$0xff]
        %v5180 = vld [vmem:[%s5175 + $0x20] sm:$0xff]
        %v5181 = vld [vmem:[%s5175 + $0x28] sm:$0xff]
        %v5182 = vld [vmem:[%s5175 + $0x30] sm:$0xff]
        %v5183 = vld [vmem:[%s5175 + $0x38] sm:$0xff]
        %v5184 = vld [vmem:[%s5175 + $0x40] sm:$0xff]
        %v5185 = vld [vmem:[%s5175 + $0x48] sm:$0xff]
        %v5186 = vld [vmem:[%s5175 + $0x50] sm:$0xff]
        %v5187 = vld [vmem:[%s5175 + $0x58] sm:$0xff]
        %v5188 = vld [vmem:[%s5175 + $0x60] sm:$0xff]
        %v5189 = vld [vmem:[%s5175 + $0x68] sm:$0xff]
        %v5190 = vld [vmem:[%s5175 + $0x70] sm:$0xff]
        %v5191 = vld [vmem:[%s5175 + $0x78] sm:$0xff]
        %v5192 = vld [vmem:[%s5175 + $0x80] sm:$0xff]
        %v5193 = vld [vmem:[%s5175 + $0x88] sm:$0xff]
        %v5194 = vld [vmem:[%s5175 + $0x90] sm:$0xff]
        %v5195 = vld [vmem:[%s5175 + $0x98] sm:$0xff]
        %v5196 = vld [vmem:[%s5175 + $0xa0] sm:$0xff]
        %v5197 = vld [vmem:[%s5175 + $0xa8] sm:$0xff]
        %v5198 = vld [vmem:[%s5175 + $0xb0] sm:$0xff]
        %v5199 = vld [vmem:[%s5175 + $0xb8] sm:$0xff]
        %v5200 = vld [vmem:[%s5175 + $0xc0] sm:$0xff]
        %v5201 = vld [vmem:[%s5175 + $0xc8] sm:$0xff]
        %v5202 = vld [vmem:[%s5175 + $0xd0] sm:$0xff]
        %v5203 = vld [vmem:[%s5175 + $0xd8] sm:$0xff]
        %v5204 = vld [vmem:[%s5175 + $0xe0] sm:$0xff]
        %v5205 = vld [vmem:[%s5175 + $0xe8] sm:$0xff]
        %v5206 = vld [vmem:[%s5175 + $0xf0] sm:$0xff]
        %v5207 = vld [vmem:[%s5175 + $0xf8] sm:$0xff]
        %v5208 = vld [vmem:[%s5175 + $0x100] sm:$0xff]
        %v5209 = vld [vmem:[%s5175 + $0x108] sm:$0xff]
        %v5210 = vld [vmem:[%s5175 + $0x110] sm:$0xff]
        %v5211 = vld [vmem:[%s5175 + $0x118] sm:$0xff]
        %v5212 = vld [vmem:[%s5175 + $0x120] sm:$0xff]
        %v5213 = vld [vmem:[%s5175 + $0x128] sm:$0xff]
        %v5214 = vld [vmem:[%s5175 + $0x130] sm:$0xff]
        %v5215 = vld [vmem:[%s5175 + $0x138] sm:$0xff]
        %v5216 = vld [vmem:[%s5175 + $0x140] sm:$0xff]
        %v5217 = vld [vmem:[%s5175 + $0x148] sm:$0xff]
        %v5218 = vld [vmem:[%s5175 + $0x150] sm:$0xff]
        %v5219 = vld [vmem:[%s5175 + $0x158] sm:$0xff]
        %v5220 = vld [vmem:[%s5175 + $0x160] sm:$0xff]
        %v5221 = vld [vmem:[%s5175 + $0x168] sm:$0xff]
        %v5222 = vld [vmem:[%s5175 + $0x170] sm:$0xff]
        %v5223 = vld [vmem:[%s5175 + $0x178] sm:$0xff]
        %v5224 = vld [vmem:[%s5175 + $0x180] sm:$0xff]
        %v5225 = vld [vmem:[%s5175 + $0x188] sm:$0xff]
        %v5226 = vld [vmem:[%s5175 + $0x190] sm:$0xff]
        %v5227 = vld [vmem:[%s5175 + $0x198] sm:$0xf]
        %v5228 = vld [vmem:[%s5175 + $0x1a0] sm:$0xf]
        %v5229 = vld [vmem:[%s5175 + $0x1a8] sm:$0xf]
        %v5230 = vrot.slane %v4697, 2
        %v5231 = vrot.slane %v4698, 2
        %v5233 = vsel %vm4754, %v5231, 0
        %v5236 = vsel %vm1491, %v5227, 0
        %v5239 = vsel %vm1491, %v5228, 0
        %v5242 = vsel %vm1491, %v5229, 0
        %5244 = vmatprep.subr.mxu0 %v5177
        %5245 = vmatpush1.msra.mxu0 %v5176
        %5246 = vmatprep.subr.mxu0 %v5180
        %5247 = vmatpush1.msra.mxu0 %v5179
        %5248 = vmatprep.subr.mxu0 %v5183
        %5249 = vmatpush1.msra.mxu0 %v5182
        %5250 = vmatprep.subr.mxu0 %v5186
        %5251 = vmatpush1.msra.mxu0 %v5185
        %5252 = vmatprep.subr.mxu0 %v5189
        %5253 = vmatpush1.msra.mxu0 %v5188
        %5254 = vmatprep.subr.mxu0 %v5192
        %5255 = vmatpush1.msra.mxu0 %v5191
        %5256 = vmatprep.subr.mxu0 %v5195
        %5257 = vmatpush1.msra.mxu0 %v5194
        %5258 = vmatprep.subr.mxu0 %v5198
        %5259 = vmatpush1.msra.mxu0 %v5197
        %5260 = vmatprep.subr.mxu0 %v5201
        %5261 = vmatpush1.msra.mxu0 %v5200
        %5262 = vmatprep.subr.mxu0 %v5204
        %5263 = vmatpush1.msra.mxu0 %v5203
        %5264 = vmatprep.subr.mxu0 %v5207
        %5265 = vmatpush1.msra.mxu0 %v5206
        %5266 = vmatprep.subr.mxu0 %v5210
        %5267 = vmatpush1.msra.mxu0 %v5209
        %5268 = vmatprep.subr.mxu0 %v5213
        %5269 = vmatpush1.msra.mxu0 %v5212
        %5270 = vmatprep.subr.mxu0 %v5216
        %5271 = vmatpush1.msra.mxu0 %v5215
        %5272 = vmatprep.subr.mxu0 %v5219
        %5273 = vmatpush1.msra.mxu0 %v5218
        %5274 = vmatprep.subr.mxu0 %v5222
        %5275 = vmatpush1.msra.mxu0 %v5221
        %5276 = vmatprep.subr.mxu0 %v5225
        %5277 = vmatpush1.msra.mxu0 %v5224
        %5278 = vmatprep.subr.mxu0 %v5239
        %5279 = vmatpush1.msra.mxu0 %v5236
        %5280 = vmatprep.subr.mxu0 0.0
        %5281 = vmatpush1.msra.mxu0 0.0
        %5282 = vmatprep.subr.mxu0 0.0
        %5283 = vmatpush1.msra.mxu0 0.0
        %5284 = vmatprep.subr.mxu0 0.0
        %5285 = vmatpush1.msra.mxu0 0.0
        %5286 = vmatprep.subr.mxu0 0.0
        %5287 = vmatpush1.msra.mxu0 0.0
        %5288 = vmatprep.subr.mxu0 0.0
        %5289 = vmatpush1.msra.mxu0 0.0
        %5290 = vmatprep.subr.mxu0 0.0
        %5291 = vmatpush1.msra.mxu0 0.0
        %5292 = vmatprep.subr.mxu0 0.0
        %5293 = vmatpush1.msra.mxu0 0.0
        %5294 = vmatprep.subr.mxu0 0.0
        %5295 = vmatpush1.msra.mxu0 0.0
        %5296 = vmatprep.subr.mxu0 0.0
        %5297 = vmatpush1.msra.mxu0 0.0
        %5298 = vmatprep.subr.mxu0 0.0
        %5299 = vmatpush1.msra.mxu0 0.0
        %5300 = vmatprep.subr.mxu0 0.0
        %5301 = vmatpush1.msra.mxu0 0.0
        %5302 = vmatprep.subr.mxu0 0.0
        %5303 = vmatpush1.msra.mxu0 0.0
        %5304 = vmatprep.subr.mxu0 0.0
        %5305 = vmatpush1.msra.mxu0 0.0
        %5306 = vmatprep.subr.mxu0 0.0
        %5307 = vmatpush1.msra.mxu0 0.0
        %5308 = vmatprep.mubr.f32.mxu0 %v5233
        %5309 = vmatmul.mubr.f32.gmra.mrb[0].mxu0 %v5230
        %v5310 = vpop.f32.mrb[0].mxu0
        %v5311 = vadd.f32 0.0, %v5310
        %v5312 = vpop.f32.mrb[0].mxu0
        %v5313 = vadd.f32 0.0, %v5312
        %5314 = vdwg.mxu0
        %5315 = vmatprep.subr.mxu0 0.0
        %5316 = vmatpush1.msra.mxu0 %v5178
        %5317 = vmatprep.subr.mxu0 0.0
        %5318 = vmatpush1.msra.mxu0 %v5181
        %5319 = vmatprep.subr.mxu0 0.0
        %5320 = vmatpush1.msra.mxu0 %v5184
        %5321 = vmatprep.subr.mxu0 0.0
        %5322 = vmatpush1.msra.mxu0 %v5187
        %5323 = vmatprep.subr.mxu0 0.0
        %5324 = vmatpush1.msra.mxu0 %v5190
        %5325 = vmatprep.subr.mxu0 0.0
        %5326 = vmatpush1.msra.mxu0 %v5193
        %5327 = vmatprep.subr.mxu0 0.0
        %5328 = vmatpush1.msra.mxu0 %v5196
        %5329 = vmatprep.subr.mxu0 0.0
        %5330 = vmatpush1.msra.mxu0 %v5199
        %5331 = vmatprep.subr.mxu0 0.0
        %5332 = vmatpush1.msra.mxu0 %v5202
        %5333 = vmatprep.subr.mxu0 0.0
        %5334 = vmatpush1.msra.mxu0 %v5205
        %5335 = vmatprep.subr.mxu0 0.0
        %5336 = vmatpush1.msra.mxu0 %v5208
        %5337 = vmatprep.subr.mxu0 0.0
        %5338 = vmatpush1.msra.mxu0 %v5211
        %5339 = vmatprep.subr.mxu0 0.0
        %5340 = vmatpush1.msra.mxu0 %v5214
        %5341 = vmatprep.subr.mxu0 0.0
        %5342 = vmatpush1.msra.mxu0 %v5217
        %5343 = vmatprep.subr.mxu0 0.0
        %5344 = vmatpush1.msra.mxu0 %v5220
        %5345 = vmatprep.subr.mxu0 0.0
        %5346 = vmatpush1.msra.mxu0 %v5223
        %5347 = vmatprep.subr.mxu0 0.0
        %5348 = vmatpush1.msra.mxu0 %v5226
        %5349 = vmatprep.subr.mxu0 0.0
        %5350 = vmatpush1.msra.mxu0 %v5242
        %5351 = vmatprep.subr.mxu0 0.0
        %5352 = vmatpush1.msra.mxu0 0.0
        %5353 = vmatprep.subr.mxu0 0.0
        %5354 = vmatpush1.msra.mxu0 0.0
        %5355 = vmatprep.subr.mxu0 0.0
        %5356 = vmatpush1.msra.mxu0 0.0
        %5357 = vmatprep.subr.mxu0 0.0
        %5358 = vmatpush1.msra.mxu0 0.0
        %5359 = vmatprep.subr.mxu0 0.0
        %5360 = vmatpush1.msra.mxu0 0.0
        %5361 = vmatprep.subr.mxu0 0.0
        %5362 = vmatpush1.msra.mxu0 0.0
        %5363 = vmatprep.subr.mxu0 0.0
        %5364 = vmatpush1.msra.mxu0 0.0
        %5365 = vmatprep.subr.mxu0 0.0
        %5366 = vmatpush1.msra.mxu0 0.0
        %5367 = vmatprep.subr.mxu0 0.0
        %5368 = vmatpush1.msra.mxu0 0.0
        %5369 = vmatprep.subr.mxu0 0.0
        %5370 = vmatpush1.msra.mxu0 0.0
        %5371 = vmatprep.subr.mxu0 0.0
        %5372 = vmatpush1.msra.mxu0 0.0
        %5373 = vmatprep.subr.mxu0 0.0
        %5374 = vmatpush1.msra.mxu0 0.0
        %5375 = vmatprep.subr.mxu0 0.0
        %5376 = vmatpush1.msra.mxu0 0.0
        %5377 = vmatprep.subr.mxu0 0.0
        %5378 = vmatpush1.msra.mxu0 0.0
        %5379 = vmatprep.mubr.f32.mxu0 %v5233
        %5380 = vmatmul.mubr.f32.gmra.mrb[0].mxu0 %v5230
        %v5381 = vpop.f32.mrb[0].mxu0
        %v5382 = vadd.f32 0.0, %v5381
        %v5383 = vpop.f32.mrb[0].mxu0
        %5384 = vdwg.mxu0
        %v5388 = vcombine.low %v5311, %v5313
        %v5390 = vunpack.c.l.s4 1966171168
        %v5391 = vunpack.c.0.s8 %v5390
        %v5392 = vlaneseq
        %v5393 = vshrl.u32 %v5392, 7
        %v5394 = vsub.s32 %v5391, %v5393
        %v5395 = vrot.slane %v5388, %v5394
        %v5397 = vunpack.c.l.s4 1966171168
        %v5398 = vunpack.c.0.s8 %v5397
        %v5399 = vlaneseq
        %v5400 = vshrl.u32 %v5399, 7
        %v5401 = vsub.s32 %v5398, %v5400
        %v5402 = vrot.slane %v5382, %v5401
        %v5403 = vcombine.low %v5395, %v5402
        %v5405 = vunpack.c.l.s4 1966171168
        %v5406 = vunpack.c.0.s8 %v5405
        %v5407 = vlaneseq
        %v5408 = vshrl.u32 %v5407, 7
        %v5409 = vsub.s32 %v5406, %v5408
        %v5410 = vrot.slane %v5403, %v5409
        %v5412 = vadd.f32 %v5174, %v5410
        %s5413 = scalar_lea.vmem %s9, 1296
        %v5414 = vld [vmem:[%s5413] sm:$0xff]
        %v5415 = vld [vmem:[%s5413 + $0x8] sm:$0xff]
        %v5416 = vld [vmem:[%s5413 + $0x10] sm:$0xff]
        %v5417 = vld [vmem:[%s5413 + $0x18] sm:$0xff]
        %v5418 = vld [vmem:[%s5413 + $0x20] sm:$0xff]
        %v5419 = vld [vmem:[%s5413 + $0x28] sm:$0xff]
        %v5420 = vld [vmem:[%s5413 + $0x30] sm:$0xff]
        %v5421 = vld [vmem:[%s5413 + $0x38] sm:$0xff]
        %v5422 = vld [vmem:[%s5413 + $0x40] sm:$0xff]
        %v5423 = vld [vmem:[%s5413 + $0x48] sm:$0xff]
        %v5424 = vld [vmem:[%s5413 + $0x50] sm:$0xff]
        %v5425 = vld [vmem:[%s5413 + $0x58] sm:$0xff]
        %v5426 = vld [vmem:[%s5413 + $0x60] sm:$0xff]
        %v5427 = vld [vmem:[%s5413 + $0x68] sm:$0xff]
        %v5428 = vld [vmem:[%s5413 + $0x70] sm:$0xff]
        %v5429 = vld [vmem:[%s5413 + $0x78] sm:$0xff]
        %v5430 = vld [vmem:[%s5413 + $0x80] sm:$0xff]
        %v5431 = vld [vmem:[%s5413 + $0x88] sm:$0xff]
        %v5432 = vld [vmem:[%s5413 + $0x90] sm:$0xff]
        %v5433 = vld [vmem:[%s5413 + $0x98] sm:$0xff]
        %v5434 = vld [vmem:[%s5413 + $0xa0] sm:$0xff]
        %v5435 = vld [vmem:[%s5413 + $0xa8] sm:$0xff]
        %v5436 = vld [vmem:[%s5413 + $0xb0] sm:$0xff]
        %v5437 = vld [vmem:[%s5413 + $0xb8] sm:$0xff]
        %v5438 = vld [vmem:[%s5413 + $0xc0] sm:$0xff]
        %v5439 = vld [vmem:[%s5413 + $0xc8] sm:$0xff]
        %v5440 = vld [vmem:[%s5413 + $0xd0] sm:$0xff]
        %v5441 = vld [vmem:[%s5413 + $0xd8] sm:$0xff]
        %v5442 = vld [vmem:[%s5413 + $0xe0] sm:$0xff]
        %v5443 = vld [vmem:[%s5413 + $0xe8] sm:$0xff]
        %v5444 = vld [vmem:[%s5413 + $0xf0] sm:$0xff]
        %v5445 = vld [vmem:[%s5413 + $0xf8] sm:$0xff]
        %v5446 = vld [vmem:[%s5413 + $0x100] sm:$0xff]
        %v5447 = vld [vmem:[%s5413 + $0x108] sm:$0xff]
        %v5448 = vld [vmem:[%s5413 + $0x110] sm:$0xff]
        %v5449 = vld [vmem:[%s5413 + $0x118] sm:$0xff]
        %v5450 = vld [vmem:[%s5413 + $0x120] sm:$0xff]
        %v5451 = vld [vmem:[%s5413 + $0x128] sm:$0xff]
        %v5452 = vld [vmem:[%s5413 + $0x130] sm:$0xff]
        %v5453 = vld [vmem:[%s5413 + $0x138] sm:$0xff]
        %v5454 = vld [vmem:[%s5413 + $0x140] sm:$0xff]
        %v5455 = vld [vmem:[%s5413 + $0x148] sm:$0xff]
        %v5456 = vld [vmem:[%s5413 + $0x150] sm:$0xff]
        %v5457 = vld [vmem:[%s5413 + $0x158] sm:$0xff]
        %v5458 = vld [vmem:[%s5413 + $0x160] sm:$0xff]
        %v5459 = vld [vmem:[%s5413 + $0x168] sm:$0xff]
        %v5460 = vld [vmem:[%s5413 + $0x170] sm:$0xff]
        %v5461 = vld [vmem:[%s5413 + $0x178] sm:$0xff]
        %v5462 = vld [vmem:[%s5413 + $0x180] sm:$0xff]
        %v5463 = vld [vmem:[%s5413 + $0x188] sm:$0xff]
        %v5464 = vld [vmem:[%s5413 + $0x190] sm:$0xff]
        %v5465 = vld [vmem:[%s5413 + $0x198] sm:$0xf]
        %v5466 = vld [vmem:[%s5413 + $0x1a0] sm:$0xf]
        %v5467 = vld [vmem:[%s5413 + $0x1a8] sm:$0xf]
        %v5468 = vrot.slane %v4697, 3
        %v5469 = vrot.slane %v4698, 3
        %v5471 = vsel %vm4754, %v5469, 0
        %v5474 = vsel %vm1491, %v5465, 0
        %v5477 = vsel %vm1491, %v5466, 0
        %v5480 = vsel %vm1491, %v5467, 0
        %5482 = vmatprep.subr.mxu0 %v5415
        %5483 = vmatpush1.msra.mxu0 %v5414
        %5484 = vmatprep.subr.mxu0 %v5418
        %5485 = vmatpush1.msra.mxu0 %v5417
        %5486 = vmatprep.subr.mxu0 %v5421
        %5487 = vmatpush1.msra.mxu0 %v5420
        %5488 = vmatprep.subr.mxu0 %v5424
        %5489 = vmatpush1.msra.mxu0 %v5423
        %5490 = vmatprep.subr.mxu0 %v5427
        %5491 = vmatpush1.msra.mxu0 %v5426
        %5492 = vmatprep.subr.mxu0 %v5430
        %5493 = vmatpush1.msra.mxu0 %v5429
        %5494 = vmatprep.subr.mxu0 %v5433
        %5495 = vmatpush1.msra.mxu0 %v5432
        %5496 = vmatprep.subr.mxu0 %v5436
        %5497 = vmatpush1.msra.mxu0 %v5435
        %5498 = vmatprep.subr.mxu0 %v5439
        %5499 = vmatpush1.msra.mxu0 %v5438
        %5500 = vmatprep.subr.mxu0 %v5442
        %5501 = vmatpush1.msra.mxu0 %v5441
        %5502 = vmatprep.subr.mxu0 %v5445
        %5503 = vmatpush1.msra.mxu0 %v5444
        %5504 = vmatprep.subr.mxu0 %v5448
        %5505 = vmatpush1.msra.mxu0 %v5447
        %5506 = vmatprep.subr.mxu0 %v5451
        %5507 = vmatpush1.msra.mxu0 %v5450
        %5508 = vmatprep.subr.mxu0 %v5454
        %5509 = vmatpush1.msra.mxu0 %v5453
        %5510 = vmatprep.subr.mxu0 %v5457
        %5511 = vmatpush1.msra.mxu0 %v5456
        %5512 = vmatprep.subr.mxu0 %v5460
        %5513 = vmatpush1.msra.mxu0 %v5459
        %5514 = vmatprep.subr.mxu0 %v5463
        %5515 = vmatpush1.msra.mxu0 %v5462
        %5516 = vmatprep.subr.mxu0 %v5477
        %5517 = vmatpush1.msra.mxu0 %v5474
        %5518 = vmatprep.subr.mxu0 0.0
        %5519 = vmatpush1.msra.mxu0 0.0
        %5520 = vmatprep.subr.mxu0 0.0
        %5521 = vmatpush1.msra.mxu0 0.0
        %5522 = vmatprep.subr.mxu0 0.0
        %5523 = vmatpush1.msra.mxu0 0.0
        %5524 = vmatprep.subr.mxu0 0.0
        %5525 = vmatpush1.msra.mxu0 0.0
        %5526 = vmatprep.subr.mxu0 0.0
        %5527 = vmatpush1.msra.mxu0 0.0
        %5528 = vmatprep.subr.mxu0 0.0
        %5529 = vmatpush1.msra.mxu0 0.0
        %5530 = vmatprep.subr.mxu0 0.0
        %5531 = vmatpush1.msra.mxu0 0.0
        %5532 = vmatprep.subr.mxu0 0.0
        %5533 = vmatpush1.msra.mxu0 0.0
        %5534 = vmatprep.subr.mxu0 0.0
        %5535 = vmatpush1.msra.mxu0 0.0
        %5536 = vmatprep.subr.mxu0 0.0
        %5537 = vmatpush1.msra.mxu0 0.0
        %5538 = vmatprep.subr.mxu0 0.0
        %5539 = vmatpush1.msra.mxu0 0.0
        %5540 = vmatprep.subr.mxu0 0.0
        %5541 = vmatpush1.msra.mxu0 0.0
        %5542 = vmatprep.subr.mxu0 0.0
        %5543 = vmatpush1.msra.mxu0 0.0
        %5544 = vmatprep.subr.mxu0 0.0
        %5545 = vmatpush1.msra.mxu0 0.0
        %5546 = vmatprep.mubr.f32.mxu0 %v5471
        %5547 = vmatmul.mubr.f32.gmra.mrb[0].mxu0 %v5468
        %v5548 = vpop.f32.mrb[0].mxu0
        %v5549 = vadd.f32 0.0, %v5548
        %v5550 = vpop.f32.mrb[0].mxu0
        %v5551 = vadd.f32 0.0, %v5550
        %5552 = vdwg.mxu0
        %5553 = vmatprep.subr.mxu0 0.0
        %5554 = vmatpush1.msra.mxu0 %v5416
        %5555 = vmatprep.subr.mxu0 0.0
        %5556 = vmatpush1.msra.mxu0 %v5419
        %5557 = vmatprep.subr.mxu0 0.0
        %5558 = vmatpush1.msra.mxu0 %v5422
        %5559 = vmatprep.subr.mxu0 0.0
        %5560 = vmatpush1.msra.mxu0 %v5425
        %5561 = vmatprep.subr.mxu0 0.0
        %5562 = vmatpush1.msra.mxu0 %v5428
        %5563 = vmatprep.subr.mxu0 0.0
        %5564 = vmatpush1.msra.mxu0 %v5431
        %5565 = vmatprep.subr.mxu0 0.0
        %5566 = vmatpush1.msra.mxu0 %v5434
        %5567 = vmatprep.subr.mxu0 0.0
        %5568 = vmatpush1.msra.mxu0 %v5437
        %5569 = vmatprep.subr.mxu0 0.0
        %5570 = vmatpush1.msra.mxu0 %v5440
        %5571 = vmatprep.subr.mxu0 0.0
        %5572 = vmatpush1.msra.mxu0 %v5443
        %5573 = vmatprep.subr.mxu0 0.0
        %5574 = vmatpush1.msra.mxu0 %v5446
        %5575 = vmatprep.subr.mxu0 0.0
        %5576 = vmatpush1.msra.mxu0 %v5449
        %5577 = vmatprep.subr.mxu0 0.0
        %5578 = vmatpush1.msra.mxu0 %v5452
        %5579 = vmatprep.subr.mxu0 0.0
        %5580 = vmatpush1.msra.mxu0 %v5455
        %5581 = vmatprep.subr.mxu0 0.0
        %5582 = vmatpush1.msra.mxu0 %v5458
        %5583 = vmatprep.subr.mxu0 0.0
        %5584 = vmatpush1.msra.mxu0 %v5461
        %5585 = vmatprep.subr.mxu0 0.0
        %5586 = vmatpush1.msra.mxu0 %v5464
        %5587 = vmatprep.subr.mxu0 0.0
        %5588 = vmatpush1.msra.mxu0 %v5480
        %5589 = vmatprep.subr.mxu0 0.0
        %5590 = vmatpush1.msra.mxu0 0.0
        %5591 = vmatprep.subr.mxu0 0.0
        %5592 = vmatpush1.msra.mxu0 0.0
        %5593 = vmatprep.subr.mxu0 0.0
        %5594 = vmatpush1.msra.mxu0 0.0
        %5595 = vmatprep.subr.mxu0 0.0
        %5596 = vmatpush1.msra.mxu0 0.0
        %5597 = vmatprep.subr.mxu0 0.0
        %5598 = vmatpush1.msra.mxu0 0.0
        %5599 = vmatprep.subr.mxu0 0.0
        %5600 = vmatpush1.msra.mxu0 0.0
        %5601 = vmatprep.subr.mxu0 0.0
        %5602 = vmatpush1.msra.mxu0 0.0
        %5603 = vmatprep.subr.mxu0 0.0
        %5604 = vmatpush1.msra.mxu0 0.0
        %5605 = vmatprep.subr.mxu0 0.0
        %5606 = vmatpush1.msra.mxu0 0.0
        %5607 = vmatprep.subr.mxu0 0.0
        %5608 = vmatpush1.msra.mxu0 0.0
        %5609 = vmatprep.subr.mxu0 0.0
        %5610 = vmatpush1.msra.mxu0 0.0
        %5611 = vmatprep.subr.mxu0 0.0
        %5612 = vmatpush1.msra.mxu0 0.0
        %5613 = vmatprep.subr.mxu0 0.0
        %5614 = vmatpush1.msra.mxu0 0.0
        %5615 = vmatprep.subr.mxu0 0.0
        %5616 = vmatpush1.msra.mxu0 0.0
        %5617 = vmatprep.mubr.f32.mxu0 %v5471
        %5618 = vmatmul.mubr.f32.gmra.mrb[0].mxu0 %v5468
        %v5619 = vpop.f32.mrb[0].mxu0
        %v5620 = vadd.f32 0.0, %v5619
        %v5621 = vpop.f32.mrb[0].mxu0
        %5622 = vdwg.mxu0
        %v5626 = vcombine.low %v5549, %v5551
        %v5628 = vunpack.c.l.s4 1966171168
        %v5629 = vunpack.c.0.s8 %v5628
        %v5630 = vlaneseq
        %v5631 = vshrl.u32 %v5630, 7
        %v5632 = vsub.s32 %v5629, %v5631
        %v5633 = vrot.slane %v5626, %v5632
        %v5635 = vunpack.c.l.s4 1966171168
        %v5636 = vunpack.c.0.s8 %v5635
        %v5637 = vlaneseq
        %v5638 = vshrl.u32 %v5637, 7
        %v5639 = vsub.s32 %v5636, %v5638
        %v5640 = vrot.slane %v5620, %v5639
        %v5641 = vcombine.low %v5633, %v5640
        %v5643 = vunpack.c.l.s4 1966171168
        %v5644 = vunpack.c.0.s8 %v5643
        %v5645 = vlaneseq
        %v5646 = vshrl.u32 %v5645, 7
        %v5647 = vsub.s32 %v5644, %v5646
        %v5648 = vrot.slane %v5641, %v5647
        %v5650 = vadd.f32 %v5412, %v5648
        %s5651 = scalar_lea.vmem %s9, 1728
        %v5652 = vld [vmem:[%s5651] sm:$0xff]
        %v5653 = vld [vmem:[%s5651 + $0x8] sm:$0xff]
        %v5654 = vld [vmem:[%s5651 + $0x10] sm:$0xff]
        %v5655 = vld [vmem:[%s5651 + $0x18] sm:$0xff]
        %v5656 = vld [vmem:[%s5651 + $0x20] sm:$0xff]
        %v5657 = vld [vmem:[%s5651 + $0x28] sm:$0xff]
        %v5658 = vld [vmem:[%s5651 + $0x30] sm:$0xff]
        %v5659 = vld [vmem:[%s5651 + $0x38] sm:$0xff]
        %v5660 = vld [vmem:[%s5651 + $0x40] sm:$0xff]
        %v5661 = vld [vmem:[%s5651 + $0x48] sm:$0xff]
        %v5662 = vld [vmem:[%s5651 + $0x50] sm:$0xff]
        %v5663 = vld [vmem:[%s5651 + $0x58] sm:$0xff]
        %v5664 = vld [vmem:[%s5651 + $0x60] sm:$0xff]
        %v5665 = vld [vmem:[%s5651 + $0x68] sm:$0xff]
        %v5666 = vld [vmem:[%s5651 + $0x70] sm:$0xff]
        %v5667 = vld [vmem:[%s5651 + $0x78] sm:$0xff]
        %v5668 = vld [vmem:[%s5651 + $0x80] sm:$0xff]
        %v5669 = vld [vmem:[%s5651 + $0x88] sm:$0xff]
        %v5670 = vld [vmem:[%s5651 + $0x90] sm:$0xff]
        %v5671 = vld [vmem:[%s5651 + $0x98] sm:$0xff]
        %v5672 = vld [vmem:[%s5651 + $0xa0] sm:$0xff]
        %v5673 = vld [vmem:[%s5651 + $0xa8] sm:$0xff]
        %v5674 = vld [vmem:[%s5651 + $0xb0] sm:$0xff]
        %v5675 = vld [vmem:[%s5651 + $0xb8] sm:$0xff]
        %v5676 = vld [vmem:[%s5651 + $0xc0] sm:$0xff]
        %v5677 = vld [vmem:[%s5651 + $0xc8] sm:$0xff]
        %v5678 = vld [vmem:[%s5651 + $0xd0] sm:$0xff]
        %v5679 = vld [vmem:[%s5651 + $0xd8] sm:$0xff]
        %v5680 = vld [vmem:[%s5651 + $0xe0] sm:$0xff]
        %v5681 = vld [vmem:[%s5651 + $0xe8] sm:$0xff]
        %v5682 = vld [vmem:[%s5651 + $0xf0] sm:$0xff]
        %v5683 = vld [vmem:[%s5651 + $0xf8] sm:$0xff]
        %v5684 = vld [vmem:[%s5651 + $0x100] sm:$0xff]
        %v5685 = vld [vmem:[%s5651 + $0x108] sm:$0xff]
        %v5686 = vld [vmem:[%s5651 + $0x110] sm:$0xff]
        %v5687 = vld [vmem:[%s5651 + $0x118] sm:$0xff]
        %v5688 = vld [vmem:[%s5651 + $0x120] sm:$0xff]
        %v5689 = vld [vmem:[%s5651 + $0x128] sm:$0xff]
        %v5690 = vld [vmem:[%s5651 + $0x130] sm:$0xff]
        %v5691 = vld [vmem:[%s5651 + $0x138] sm:$0xff]
        %v5692 = vld [vmem:[%s5651 + $0x140] sm:$0xff]
        %v5693 = vld [vmem:[%s5651 + $0x148] sm:$0xff]
        %v5694 = vld [vmem:[%s5651 + $0x150] sm:$0xff]
        %v5695 = vld [vmem:[%s5651 + $0x158] sm:$0xff]
        %v5696 = vld [vmem:[%s5651 + $0x160] sm:$0xff]
        %v5697 = vld [vmem:[%s5651 + $0x168] sm:$0xff]
        %v5698 = vld [vmem:[%s5651 + $0x170] sm:$0xff]
        %v5699 = vld [vmem:[%s5651 + $0x178] sm:$0xff]
        %v5700 = vld [vmem:[%s5651 + $0x180] sm:$0xff]
        %v5701 = vld [vmem:[%s5651 + $0x188] sm:$0xff]
        %v5702 = vld [vmem:[%s5651 + $0x190] sm:$0xff]
        %v5703 = vld [vmem:[%s5651 + $0x198] sm:$0xf]
        %v5704 = vld [vmem:[%s5651 + $0x1a0] sm:$0xf]
        %v5705 = vld [vmem:[%s5651 + $0x1a8] sm:$0xf]
        %v5706 = vrot.slane %v4697, 4
        %v5707 = vrot.slane %v4698, 4
        %v5709 = vsel %vm4754, %v5707, 0
        %v5712 = vsel %vm1491, %v5703, 0
        %v5715 = vsel %vm1491, %v5704, 0
        %v5718 = vsel %vm1491, %v5705, 0
        %5720 = vmatprep.subr.mxu0 %v5653
        %5721 = vmatpush1.msra.mxu0 %v5652
        %5722 = vmatprep.subr.mxu0 %v5656
        %5723 = vmatpush1.msra.mxu0 %v5655
        %5724 = vmatprep.subr.mxu0 %v5659
        %5725 = vmatpush1.msra.mxu0 %v5658
        %5726 = vmatprep.subr.mxu0 %v5662
        %5727 = vmatpush1.msra.mxu0 %v5661
        %5728 = vmatprep.subr.mxu0 %v5665
        %5729 = vmatpush1.msra.mxu0 %v5664
        %5730 = vmatprep.subr.mxu0 %v5668
        %5731 = vmatpush1.msra.mxu0 %v5667
        %5732 = vmatprep.subr.mxu0 %v5671
        %5733 = vmatpush1.msra.mxu0 %v5670
        %5734 = vmatprep.subr.mxu0 %v5674
        %5735 = vmatpush1.msra.mxu0 %v5673
        %5736 = vmatprep.subr.mxu0 %v5677
        %5737 = vmatpush1.msra.mxu0 %v5676
        %5738 = vmatprep.subr.mxu0 %v5680
        %5739 = vmatpush1.msra.mxu0 %v5679
        %5740 = vmatprep.subr.mxu0 %v5683
        %5741 = vmatpush1.msra.mxu0 %v5682
        %5742 = vmatprep.subr.mxu0 %v5686
        %5743 = vmatpush1.msra.mxu0 %v5685
        %5744 = vmatprep.subr.mxu0 %v5689
        %5745 = vmatpush1.msra.mxu0 %v5688
        %5746 = vmatprep.subr.mxu0 %v5692
        %5747 = vmatpush1.msra.mxu0 %v5691
        %5748 = vmatprep.subr.mxu0 %v5695
        %5749 = vmatpush1.msra.mxu0 %v5694
        %5750 = vmatprep.subr.mxu0 %v5698
        %5751 = vmatpush1.msra.mxu0 %v5697
        %5752 = vmatprep.subr.mxu0 %v5701
        %5753 = vmatpush1.msra.mxu0 %v5700
        %5754 = vmatprep.subr.mxu0 %v5715
        %5755 = vmatpush1.msra.mxu0 %v5712
        %5756 = vmatprep.subr.mxu0 0.0
        %5757 = vmatpush1.msra.mxu0 0.0
        %5758 = vmatprep.subr.mxu0 0.0
        %5759 = vmatpush1.msra.mxu0 0.0
        %5760 = vmatprep.subr.mxu0 0.0
        %5761 = vmatpush1.msra.mxu0 0.0
        %5762 = vmatprep.subr.mxu0 0.0
        %5763 = vmatpush1.msra.mxu0 0.0
        %5764 = vmatprep.subr.mxu0 0.0
        %5765 = vmatpush1.msra.mxu0 0.0
        %5766 = vmatprep.subr.mxu0 0.0
        %5767 = vmatpush1.msra.mxu0 0.0
        %5768 = vmatprep.subr.mxu0 0.0
        %5769 = vmatpush1.msra.mxu0 0.0
        %5770 = vmatprep.subr.mxu0 0.0
        %5771 = vmatpush1.msra.mxu0 0.0
        %5772 = vmatprep.subr.mxu0 0.0
        %5773 = vmatpush1.msra.mxu0 0.0
        %5774 = vmatprep.subr.mxu0 0.0
        %5775 = vmatpush1.msra.mxu0 0.0
        %5776 = vmatprep.subr.mxu0 0.0
        %5777 = vmatpush1.msra.mxu0 0.0
        %5778 = vmatprep.subr.mxu0 0.0
        %5779 = vmatpush1.msra.mxu0 0.0
        %5780 = vmatprep.subr.mxu0 0.0
        %5781 = vmatpush1.msra.mxu0 0.0
        %5782 = vmatprep.subr.mxu0 0.0
        %5783 = vmatpush1.msra.mxu0 0.0
        %5784 = vmatprep.mubr.f32.mxu0 %v5709
        %5785 = vmatmul.mubr.f32.gmra.mrb[0].mxu0 %v5706
        %v5786 = vpop.f32.mrb[0].mxu0
        %v5787 = vadd.f32 0.0, %v5786
        %v5788 = vpop.f32.mrb[0].mxu0
        %v5789 = vadd.f32 0.0, %v5788
        %5790 = vdwg.mxu0
        %5791 = vmatprep.subr.mxu0 0.0
        %5792 = vmatpush1.msra.mxu0 %v5654
        %5793 = vmatprep.subr.mxu0 0.0
        %5794 = vmatpush1.msra.mxu0 %v5657
        %5795 = vmatprep.subr.mxu0 0.0
        %5796 = vmatpush1.msra.mxu0 %v5660
        %5797 = vmatprep.subr.mxu0 0.0
        %5798 = vmatpush1.msra.mxu0 %v5663
        %5799 = vmatprep.subr.mxu0 0.0
        %5800 = vmatpush1.msra.mxu0 %v5666
        %5801 = vmatprep.subr.mxu0 0.0
        %5802 = vmatpush1.msra.mxu0 %v5669
        %5803 = vmatprep.subr.mxu0 0.0
        %5804 = vmatpush1.msra.mxu0 %v5672
        %5805 = vmatprep.subr.mxu0 0.0
        %5806 = vmatpush1.msra.mxu0 %v5675
        %5807 = vmatprep.subr.mxu0 0.0
        %5808 = vmatpush1.msra.mxu0 %v5678
        %5809 = vmatprep.subr.mxu0 0.0
        %5810 = vmatpush1.msra.mxu0 %v5681
        %5811 = vmatprep.subr.mxu0 0.0
        %5812 = vmatpush1.msra.mxu0 %v5684
        %5813 = vmatprep.subr.mxu0 0.0
        %5814 = vmatpush1.msra.mxu0 %v5687
        %5815 = vmatprep.subr.mxu0 0.0
        %5816 = vmatpush1.msra.mxu0 %v5690
        %5817 = vmatprep.subr.mxu0 0.0
        %5818 = vmatpush1.msra.mxu0 %v5693
        %5819 = vmatprep.subr.mxu0 0.0
        %5820 = vmatpush1.msra.mxu0 %v5696
        %5821 = vmatprep.subr.mxu0 0.0
        %5822 = vmatpush1.msra.mxu0 %v5699
        %5823 = vmatprep.subr.mxu0 0.0
        %5824 = vmatpush1.msra.mxu0 %v5702
        %5825 = vmatprep.subr.mxu0 0.0
        %5826 = vmatpush1.msra.mxu0 %v5718
        %5827 = vmatprep.subr.mxu0 0.0
        %5828 = vmatpush1.msra.mxu0 0.0
        %5829 = vmatprep.subr.mxu0 0.0
        %5830 = vmatpush1.msra.mxu0 0.0
        %5831 = vmatprep.subr.mxu0 0.0
        %5832 = vmatpush1.msra.mxu0 0.0
        %5833 = vmatprep.subr.mxu0 0.0
        %5834 = vmatpush1.msra.mxu0 0.0
        %5835 = vmatprep.subr.mxu0 0.0
        %5836 = vmatpush1.msra.mxu0 0.0
        %5837 = vmatprep.subr.mxu0 0.0
        %5838 = vmatpush1.msra.mxu0 0.0
        %5839 = vmatprep.subr.mxu0 0.0
        %5840 = vmatpush1.msra.mxu0 0.0
        %5841 = vmatprep.subr.mxu0 0.0
        %5842 = vmatpush1.msra.mxu0 0.0
        %5843 = vmatprep.subr.mxu0 0.0
        %5844 = vmatpush1.msra.mxu0 0.0
        %5845 = vmatprep.subr.mxu0 0.0
        %5846 = vmatpush1.msra.mxu0 0.0
        %5847 = vmatprep.subr.mxu0 0.0
        %5848 = vmatpush1.msra.mxu0 0.0
        %5849 = vmatprep.subr.mxu0 0.0
        %5850 = vmatpush1.msra.mxu0 0.0
        %5851 = vmatprep.subr.mxu0 0.0
        %5852 = vmatpush1.msra.mxu0 0.0
        %5853 = vmatprep.subr.mxu0 0.0
        %5854 = vmatpush1.msra.mxu0 0.0
        %5855 = vmatprep.mubr.f32.mxu0 %v5709
        %5856 = vmatmul.mubr.f32.gmra.mrb[0].mxu0 %v5706
        %v5857 = vpop.f32.mrb[0].mxu0
        %v5858 = vadd.f32 0.0, %v5857
        %v5859 = vpop.f32.mrb[0].mxu0
        %5860 = vdwg.mxu0
        %v5864 = vcombine.low %v5787, %v5789
        %v5866 = vunpack.c.l.s4 1966171168
        %v5867 = vunpack.c.0.s8 %v5866
        %v5868 = vlaneseq
        %v5869 = vshrl.u32 %v5868, 7
        %v5870 = vsub.s32 %v5867, %v5869
        %v5871 = vrot.slane %v5864, %v5870
        %v5873 = vunpack.c.l.s4 1966171168
        %v5874 = vunpack.c.0.s8 %v5873
        %v5875 = vlaneseq
        %v5876 = vshrl.u32 %v5875, 7
        %v5877 = vsub.s32 %v5874, %v5876
        %v5878 = vrot.slane %v5858, %v5877
        %v5879 = vcombine.low %v5871, %v5878
        %v5881 = vunpack.c.l.s4 1966171168
        %v5882 = vunpack.c.0.s8 %v5881
        %v5883 = vlaneseq
        %v5884 = vshrl.u32 %v5883, 7
        %v5885 = vsub.s32 %v5882, %v5884
        %v5886 = vrot.slane %v5879, %v5885
        %v5888 = vadd.f32 %v5650, %v5886
        %v5889 = vmax.f32 %v5888, 0.0
        %v5890 = vld [vmem:[%s11] sm:$0xff]
        %v5891 = vld [vmem:[%s11 + $0x8] sm:$0xff]
        %v5892 = vld [vmem:[%s11 + $0x10] sm:$0xff]
        %v5893 = vld [vmem:[%s11 + $0x18] sm:$0xff]
        %v5894 = vld [vmem:[%s11 + $0x20] sm:$0xff]
        %v5895 = vld [vmem:[%s11 + $0x28] sm:$0xff]
        %v5896 = vld [vmem:[%s11 + $0x30] sm:$0xff]
        %v5897 = vld [vmem:[%s11 + $0x38] sm:$0xff]
        %v5898 = vld [vmem:[%s11 + $0x40] sm:$0xff]
        %v5899 = vld [vmem:[%s11 + $0x48] sm:$0xff]
        %v5900 = vld [vmem:[%s11 + $0x50] sm:$0xff]
        %v5901 = vld [vmem:[%s11 + $0x58] sm:$0xff]
        %v5902 = vld [vmem:[%s11 + $0x60] sm:$0xff]
        %v5903 = vld [vmem:[%s11 + $0x68] sm:$0xff]
        %v5904 = vld [vmem:[%s11 + $0x70] sm:$0xff]
        %v5905 = vld [vmem:[%s11 + $0x78] sm:$0xff]
        %v5906 = vld [vmem:[%s11 + $0x80] sm:$0xff]
        %v5907 = vld [vmem:[%s11 + $0x88] sm:$0xff]
        %v5908 = vld [vmem:[%s11 + $0x90] sm:$0xff]
        %v5909 = vld [vmem:[%s11 + $0x98] sm:$0xff]
        %v5910 = vld [vmem:[%s11 + $0xa0] sm:$0xff]
        %v5911 = vld [vmem:[%s11 + $0xa8] sm:$0xff]
        %v5912 = vld [vmem:[%s11 + $0xb0] sm:$0xff]
        %v5913 = vld [vmem:[%s11 + $0xb8] sm:$0xff]
        %v5914 = vld [vmem:[%s11 + $0xc0] sm:$0xff]
        %v5915 = vld [vmem:[%s11 + $0xc8] sm:$0xff]
        %v5916 = vld [vmem:[%s11 + $0xd0] sm:$0xff]
        %v5917 = vld [vmem:[%s11 + $0xd8] sm:$0xff]
        %v5918 = vld [vmem:[%s11 + $0xe0] sm:$0xff]
        %v5919 = vld [vmem:[%s11 + $0xe8] sm:$0xff]
        %v5920 = vld [vmem:[%s11 + $0xf0] sm:$0xff]
        %v5921 = vld [vmem:[%s11 + $0xf8] sm:$0xff]
        %v5922 = vld [vmem:[%s11 + $0x100] sm:$0xff]
        %v5923 = vld [vmem:[%s11 + $0x108] sm:$0xff]
        %v5924 = vld [vmem:[%s11 + $0x110] sm:$0xff]
        %v5925 = vld [vmem:[%s11 + $0x118] sm:$0xff]
        %v5926 = vld [vmem:[%s11 + $0x120] sm:$0xff]
        %v5927 = vld [vmem:[%s11 + $0x128] sm:$0xf]
        %v5928 = vld [vmem:[%s12] sm:$0x1]
        %v5930 = vlaneseq
        %v5931 = vshrl.u32 %v5930, 7
        %v5932 = vsub.s32 0, %v5931
        %v5933 = vrot.slane %v5889, %v5932
        %v5934 = vlaneseq
        %v5935 = vshrl.u32 %v5934, 7
        %v5936 = vsub.s32 1, %v5935
        %v5937 = vrot.slane %v5889, %v5936
        %v5938 = vlaneseq
        %v5939 = vshrl.u32 %v5938, 7
        %v5940 = vsub.s32 2, %v5939
        %v5941 = vrot.slane %v5889, %v5940
        %vm5944 = vcmask 359424
        %v5945 = vsel %vm5944, %v5941, 0
        %v5948 = vsel %vm1491, %v5927, 0
        %5950 = vmatprep.subr.mxu0 0.0
        %5951 = vmatpush1.msra.mxu0 %v5890
        %5952 = vmatprep.subr.mxu0 0.0
        %5953 = vmatpush1.msra.mxu0 %v5891
        %5954 = vmatprep.subr.mxu0 0.0
        %5955 = vmatpush1.msra.mxu0 %v5892
        %5956 = vmatprep.subr.mxu0 0.0
        %5957 = vmatpush1.msra.mxu0 %v5893
        %5958 = vmatprep.subr.mxu0 0.0
        %5959 = vmatpush1.msra.mxu0 %v5894
        %5960 = vmatprep.subr.mxu0 0.0
        %5961 = vmatpush1.msra.mxu0 %v5895
        %5962 = vmatprep.subr.mxu0 0.0
        %5963 = vmatpush1.msra.mxu0 %v5896
        %5964 = vmatprep.subr.mxu0 0.0
        %5965 = vmatpush1.msra.mxu0 %v5897
        %5966 = vmatprep.subr.mxu0 0.0
        %5967 = vmatpush1.msra.mxu0 %v5898
        %5968 = vmatprep.subr.mxu0 0.0
        %5969 = vmatpush1.msra.mxu0 %v5899
        %5970 = vmatprep.subr.mxu0 0.0
        %5971 = vmatpush1.msra.mxu0 %v5900
        %5972 = vmatprep.subr.mxu0 0.0
        %5973 = vmatpush1.msra.mxu0 %v5901
        %5974 = vmatprep.subr.mxu0 0.0
        %5975 = vmatpush1.msra.mxu0 %v5902
        %5976 = vmatprep.subr.mxu0 0.0
        %5977 = vmatpush1.msra.mxu0 %v5903
        %5978 = vmatprep.subr.mxu0 0.0
        %5979 = vmatpush1.msra.mxu0 %v5904
        %5980 = vmatprep.subr.mxu0 0.0
        %5981 = vmatpush1.msra.mxu0 %v5905
        %5982 = vmatprep.subr.mxu0 0.0
        %5983 = vmatpush1.msra.mxu0 %v5906
        %5984 = vmatprep.subr.mxu0 0.0
        %5985 = vmatpush1.msra.mxu0 %v5907
        %5986 = vmatprep.subr.mxu0 0.0
        %5987 = vmatpush1.msra.mxu0 %v5908
        %5988 = vmatprep.subr.mxu0 0.0
        %5989 = vmatpush1.msra.mxu0 %v5909
        %5990 = vmatprep.subr.mxu0 0.0
        %5991 = vmatpush1.msra.mxu0 %v5910
        %5992 = vmatprep.subr.mxu0 0.0
        %5993 = vmatpush1.msra.mxu0 %v5911
        %5994 = vmatprep.subr.mxu0 0.0
        %5995 = vmatpush1.msra.mxu0 %v5912
        %5996 = vmatprep.subr.mxu0 0.0
        %5997 = vmatpush1.msra.mxu0 %v5913
        %5998 = vmatprep.subr.mxu0 0.0
        %5999 = vmatpush1.msra.mxu0 %v5914
        %6000 = vmatprep.subr.mxu0 0.0
        %6001 = vmatpush1.msra.mxu0 %v5915
        %6002 = vmatprep.subr.mxu0 0.0
        %6003 = vmatpush1.msra.mxu0 %v5916
        %6004 = vmatprep.subr.mxu0 0.0
        %6005 = vmatpush1.msra.mxu0 %v5917
        %6006 = vmatprep.subr.mxu0 0.0
        %6007 = vmatpush1.msra.mxu0 %v5918
        %6008 = vmatprep.subr.mxu0 0.0
        %6009 = vmatpush1.msra.mxu0 %v5919
        %6010 = vmatprep.subr.mxu0 0.0
        %6011 = vmatpush1.msra.mxu0 %v5920
        %6012 = vmatprep.subr.mxu0 0.0
        %6013 = vmatpush1.msra.mxu0 %v5921
        %6014 = vmatprep.mubr.f32.mxu0 %v5937
        %6015 = vmatmul.mubr.f32.gmra.mrb[0].mxu0 %v5933
        %v6016 = vpop.f32.mrb[0].mxu0
        %v6017 = vadd.f32 %v5928, %v6016
        %v6018 = vpop.f32.mrb[0].mxu0
        %6019 = vdwg.mxu0
        %6020 = vmatprep.subr.mxu0 0.0
        %6021 = vmatpush1.msra.mxu0 %v5922
        %6022 = vmatprep.subr.mxu0 0.0
        %6023 = vmatpush1.msra.mxu0 %v5923
        %6024 = vmatprep.subr.mxu0 0.0
        %6025 = vmatpush1.msra.mxu0 %v5924
        %6026 = vmatprep.subr.mxu0 0.0
        %6027 = vmatpush1.msra.mxu0 %v5925
        %6028 = vmatprep.subr.mxu0 0.0
        %6029 = vmatpush1.msra.mxu0 %v5926
        %6030 = vmatprep.subr.mxu0 0.0
        %6031 = vmatpush1.msra.mxu0 %v5948
        %6032 = vmatprep.subr.mxu0 0.0
        %6033 = vmatpush1.msra.mxu0 0.0
        %6034 = vmatprep.subr.mxu0 0.0
        %6035 = vmatpush1.msra.mxu0 0.0
        %6036 = vmatprep.subr.mxu0 0.0
        %6037 = vmatpush1.msra.mxu0 0.0
        %6038 = vmatprep.subr.mxu0 0.0
        %6039 = vmatpush1.msra.mxu0 0.0
        %6040 = vmatprep.subr.mxu0 0.0
        %6041 = vmatpush1.msra.mxu0 0.0
        %6042 = vmatprep.subr.mxu0 0.0
        %6043 = vmatpush1.msra.mxu0 0.0
        %6044 = vmatprep.subr.mxu0 0.0
        %6045 = vmatpush1.msra.mxu0 0.0
        %6046 = vmatprep.subr.mxu0 0.0
        %6047 = vmatpush1.msra.mxu0 0.0
        %6048 = vmatprep.subr.mxu0 0.0
        %6049 = vmatpush1.msra.mxu0 0.0
        %6050 = vmatprep.subr.mxu0 0.0
        %6051 = vmatpush1.msra.mxu0 0.0
        %6052 = vmatprep.subr.mxu0 0.0
        %6053 = vmatpush1.msra.mxu0 0.0
        %6054 = vmatprep.subr.mxu0 0.0
        %6055 = vmatpush1.msra.mxu0 0.0
        %6056 = vmatprep.subr.mxu0 0.0
        %6057 = vmatpush1.msra.mxu0 0.0
        %6058 = vmatprep.subr.mxu0 0.0
        %6059 = vmatpush1.msra.mxu0 0.0
        %6060 = vmatprep.subr.mxu0 0.0
        %6061 = vmatpush1.msra.mxu0 0.0
        %6062 = vmatprep.subr.mxu0 0.0
        %6063 = vmatpush1.msra.mxu0 0.0
        %6064 = vmatprep.subr.mxu0 0.0
        %6065 = vmatpush1.msra.mxu0 0.0
        %6066 = vmatprep.subr.mxu0 0.0
        %6067 = vmatpush1.msra.mxu0 0.0
        %6068 = vmatprep.subr.mxu0 0.0
        %6069 = vmatpush1.msra.mxu0 0.0
        %6070 = vmatprep.subr.mxu0 0.0
        %6071 = vmatpush1.msra.mxu0 0.0
        %6072 = vmatprep.subr.mxu0 0.0
        %6073 = vmatpush1.msra.mxu0 0.0
        %6074 = vmatprep.subr.mxu0 0.0
        %6075 = vmatpush1.msra.mxu0 0.0
        %6076 = vmatprep.subr.mxu0 0.0
        %6077 = vmatpush1.msra.mxu0 0.0
        %6078 = vmatprep.subr.mxu0 0.0
        %6079 = vmatpush1.msra.mxu0 0.0
        %6080 = vmatprep.subr.mxu0 0.0
        %6081 = vmatpush1.msra.mxu0 0.0
        %6082 = vmatprep.subr.mxu0 0.0
        %6083 = vmatpush1.msra.mxu0 0.0
        %6084 = vmatprep.mubr.f32.mxu0 0.0
        %6085 = vmatmul.mubr.f32.gmra.mrb[0].mxu0 %v5945
        %v6086 = vpop.f32.mrb[0].mxu0
        %v6087 = vadd.f32 %v6017, %v6086
        %v6088 = vpop.f32.mrb[0].mxu0
        %6089 = vdwg.mxu0
        %vm6090 = vcmask 73728
        %v6091 = vsel %vm6090, %v6087, -inf
        %6092 = vmax.xlane.f32.xlu0 %v6091
        %v6093 = vpop.xlane.xlu0 %6092
        %v6094 = vsub.f32 %v6087, %v6093
        %v6095 = vmul.f32 %v6094, 1.442695
        %v6096 = vpow.pop %v6095
        %v6097 = vsel %vm6090, %v6096, 0.0
        %6098 = vadd.xlane.f32.xlu0 %v6097
        %v6099 = vpop.xlane.xlu0 %6098
        %v6100 = vlog2.pop %v6099
        %v6101 = vmul.f32 %v6100, 0.6931472
        %v6102 = vsub.f32 %v6094, %v6101
        %6103 = vst.msk [vmem:[%s432] sm:$0x1] %vm6090, %v6102
        %s6104 = sand.u32 %s313, 1
        %s6105 = scalar_lea.sflag [#allocation3], %s6104
        %s6106 = sand.u32 %s313, 1
        %s6107 = scalar_lea.vmem [#allocation2], %s6106
        // Predicated region
        $region73: #{cnn_cifar_forward.1} parent=71 // pred_check
          %p6108 = pneg %p323
        $region74: #{cnn_cifar_forward.1} parent=71 // pred_check_branch
          %6110 = sbr.rel (%p6108) target = $region76
        $region75: #{cnn_cifar_forward.1} parent=71 // pred_region
          %s6112 = ssub.s32 16, 16
          %6113 = vsyncadd %s6105, %s6112
          %s6114 = smul.addr %s27, 16
          %s6115 = scalar_lea.hbm %s13, %s6114
          %s6117 = sshll.u32 %s6107, 4
          %s6118 = int_to_ptr.vmem [resolvable:$true] %s6117
          %6120 = dma.vmem_to_hbm [thread:$0]  %s6118, 16, %s6115, %s6105
        $region76: #{cnn_cifar_forward.1} parent=71 // pred_fallthru
          _
      $region72: #{cnn_cifar_forward.1} parent=5 // pred_fallthru
        _
      %p6121 = scmp.le.s32.totalorder 2, %s22
      // Predicated region
      $region77: #{cnn_cifar_forward.1} parent=5 // pred_check
        %p6122 = pneg %p6121
      $region78: #{cnn_cifar_forward.1} parent=5 // pred_check_branch
        %6124 = sbr.rel (%p6122) target = $region80
      $region79: #{cnn_cifar_forward.1} parent=5 // pred_region
        %s6125 = ssub.s32 %s22, 2
        // Predicated region
        $region81: #{cnn_cifar_forward.1} parent=79 // pred_check
          %p6126 = pneg %p329
        $region82: #{cnn_cifar_forward.1} parent=79 // pred_check_branch
          %6128 = sbr.rel (%p6126) target = $region84
        $region83: #{cnn_cifar_forward.1} parent=79 // pred_region
          %s6129 = sand.u32 %s314, 1
          %s6130 = scalar_lea.sflag [#allocation3], %s6129
          %s6131 = sand.u32 %s314, 1
          %s6132 = scalar_lea.vmem [#allocation2], %s6131
          %6133 = dma.done %s6130, 16
        $region84: #{cnn_cifar_forward.1} parent=79 // pred_fallthru
          _
      $region80: #{cnn_cifar_forward.1} parent=5 // pred_fallthru
        _
    $region6: #{cnn_cifar_forward.1} parent=1 // loop_footer
      %s26 = sadd.s32 1, %s22
    $region7: #{cnn_cifar_forward.1} parent=1 // loop_footer_branch
      %21 = sbr.rel target = $region3
    $region8: #{cnn_cifar_forward.1} parent=1 // loop_exit
      _
    %6134 = vsyncpa [#allocation3], 1
    %s6135 = scalar_lea.sflag [#allocation3], 1
    %6136 = vsyncpa %s6135, 1

</llo_original>
